<compile_context>
chip_gen: v7x
topology: tpu7x:2x2x1
jax: 0.10.0
libtpu: 0.0.40
codegen_flags: <defaults>
</compile_context>

<pallas_src>
import functools
import numpy as np
import jax
import jax.numpy as jnp
from jax.experimental import pallas as pl

# ----------------------------- model config ---------------------------------
D_MODEL = 32
N_HEAD = 4
D_K = 8
D_V = 8
D_INNER = 64
N_LAYERS = 2
VOCAB = 92            # indices 0..91 (start_idx=90, padding_idx=91)
NUM_CLASSES = 92
PAD_IDX = 91
MAX_SEQ_LEN = 25
LN_EPS = 1e-6
NEG = -1e9

HDK = N_HEAD * D_K    # 32
HDV = N_HEAD * D_V    # 32
VEC_W = 3 * HDK       # 96  (widest packed bias row)
C_PAD = 128           # classifier output padded to full 128-lane width

# ----------------------------- kernel helpers -------------------------------
def _layernorm(x, gamma, beta):
    mu = jnp.mean(x, axis=-1, keepdims=True)
    var = jnp.mean((x - mu) ** 2, axis=-1, keepdims=True)
    return (x - mu) * jax.lax.rsqrt(var + LN_EPS) * gamma + beta


def _softmax_rows(s):
    # numerically-stable softmax; divide moved to the EUP via approx reciprocal
    s = s - jnp.max(s, axis=-1, keepdims=True)
    p = jnp.exp(s)
    return p * pl.reciprocal(jnp.sum(p, axis=-1, keepdims=True), approx=True)


def _attn(q_in, kv_in, bias, w_qkv, b_qkv, wo, bo, gamma, beta, *, fused_qkv):
    """Multi-head attention + residual + post-LayerNorm on VMEM-resident values.

    q_in: (Lq, D); kv_in: (Lk, D); bias: additive mask broadcastable to (H*Lq, Lk).
    w_qkv: (D, 3*HDK) packed [Wq|Wk|Wv]; b_qkv: (1, 3*HDK).
    """
    if fused_qkv:        # q_in is kv_in: one packed projection matmul for Q, K, V
        qkv = jnp.dot(q_in, w_qkv, preferred_element_type=jnp.float32) + b_qkv
        q, k, v = qkv[:, :HDK], qkv[:, HDK:2 * HDK], qkv[:, 2 * HDK:]
    else:
        q = jnp.dot(q_in, w_qkv[:, :HDK],
                    preferred_element_type=jnp.float32) + b_qkv[:, :HDK]
        kv = jnp.dot(kv_in, w_qkv[:, HDK:],
                     preferred_element_type=jnp.float32) + b_qkv[:, HDK:]
        k, v = kv[:, :HDK], kv[:, HDK:]
    q = q * jnp.float32(D_K ** -0.5)
    Lq = q_in.shape[0]

    # all heads' scores stacked along sublanes -> one masked softmax pass
    s = jnp.concatenate(
        [jax.lax.dot_general(q[:, h * D_K:(h + 1) * D_K],
                             k[:, h * D_K:(h + 1) * D_K],
                             (((1,), (1,)), ((), ())),
                             preferred_element_type=jnp.float32)
         for h in range(N_HEAD)], axis=0)                        # (H*Lq, Lk)
    p = _softmax_rows(s + bias)

    # concat per-head contexts, single output-projection matmul
    o = jnp.concatenate(
        [jnp.dot(p[h * Lq:(h + 1) * Lq, :], v[:, h * D_V:(h + 1) * D_V],
                 preferred_element_type=jnp.float32)
         for h in range(N_HEAD)], axis=-1)                       # (Lq, H*Dv)
    o = jnp.dot(o, wo, preferred_element_type=jnp.float32) + bo
    return _layernorm(o + q_in, gamma, beta)


def _ffn(x, w1, b1, w2, b2, gamma, beta):
    h = jnp.maximum(jnp.dot(x, w1, preferred_element_type=jnp.float32) + b1, 0.0)
    o = jnp.dot(h, w2, preferred_element_type=jnp.float32) + b2
    return _layernorm(o + x, gamma, beta)


# ----------------------------- fused Pallas kernel ---------------------------
def fused_decoder_kernel(step, x_ref, src_ref, tkb_ref, skb_ref,
                         w_ref, w2_ref, v_ref, hvec_ref, clsw_ref, out_ref):
    B, L, D = x_ref.shape
    neg = jnp.float32(NEG)

    x_all = x_ref[...]        # (B, L, D)
    src_all = src_ref[...]    # (B, Ls, D)
    tkb = tkb_ref[...]        # (B, L)   additive pad bias for target keys
    skb = skb_ref[...]        # (B, Ls)  additive pad bias for source keys
    hvec = hvec_ref[...]      # (3, C_PAD): final-LN gamma / beta / classifier bias
    clsw = clsw_ref[...]      # (D, C_PAD)

    # causal additive bias built in-kernel (shared across batch & layers)
    rows = jax.lax.broadcasted_iota(jnp.int32, (L, L), 0)
    cols = jax.lax.broadcasted_iota(jnp.int32, (L, L), 1)
    causal = jnp.where(cols <= rows, jnp.float32(0.0), neg)       # (L, L)

    logits = []
    for b in range(B):        # static loop: whole batch processed in one grid step
        x = x_all[b]                                              # (L, D)
        src = src_all[b]                                          # (Ls, D)
        bias_self = causal + tkb[b:b + 1, :]                      # (L, L)
        bias_self_h = jnp.concatenate([bias_self] * N_HEAD, axis=0)   # (H*L, L)
        bias_src = skb[b:b + 1, :]                                # (1, Ls), broadcasts

        for layer in range(N_LAYERS):
            wsl = w_ref[layer]    # (D, 320) packed [qkv_s | wo_s | qkv_c | wo_c | w1]
            w2 = w2_ref[layer]    # (D_INNER, D)
            vec = v_ref[layer]    # (12, 96) packed biases / LayerNorm params
            last = layer == N_LAYERS - 1
            if last:
                # only the `step` query row matters downstream of the last layer;
                # self-attention K/V still use all L rows of the layer input.
                q_in = x[step:step + 1, :]                                    # (1, D)
                b_self = jnp.concatenate(
                    [bias_self[step:step + 1, :]] * N_HEAD, axis=0)           # (H, L)
            else:
                q_in = x
                b_self = bias_self_h

            # self-attention
            h = _attn(q_in, x, b_self,
                      wsl[:, 0:3 * HDK], vec[0:1, :3 * HDK],
                      wsl[:, 3 * HDK:3 * HDK + D], vec[1:2, :D],
                      vec[2:3, :D], vec[3:4, :D], fused_qkv=not last)
            # cross-attention over the encoder output
            c0 = 3 * HDK + D                  # 128
            h = _attn(h, src, bias_src,
                      wsl[:, c0:c0 + 3 * HDK], vec[4:5, :3 * HDK],
                      wsl[:, c0 + 3 * HDK:c0 + 3 * HDK + D], vec[5:6, :D],
                      vec[6:7, :D], vec[7:8, :D], fused_qkv=False)
            # position-wise FFN
            f0 = c0 + 3 * HDK + D             # 256
            x = _ffn(h, wsl[:, f0:f0 + D_INNER], vec[8:9, :D_INNER],
                     w2, vec[9:10, :D], vec[10:11, :D], vec[11:12, :D])

        # fused head: final LayerNorm + classifier on the (1, D) step row
        xn = _layernorm(x, hvec[0:1, :D], hvec[1:2, :D])
        logits.append(jnp.dot(xn, clsw, preferred_element_type=jnp.float32)
                      + hvec[2:3, :])

    out_ref[...] = jnp.concatenate(logits, axis=0)    # (B, C_PAD) lane-dense store


# ----------------------------- wrapper ---------------------------------------
def decoder_forward(params, trg_seq, src, src_mask, step):
    B, L = trg_seq.shape
    # TODO(synk): embedding-table gather (nn.Embedding) + positional-table add stay
    # in JAX glue; no clean Pallas gather at this size.  Dropout is identity (eval).
    x = jnp.take(params["emb"], trg_seq, axis=0) + params["pos_table"][None, :L, :]
    # additive key biases (0.0 = attend, -1e9 = masked)
    tkb = jnp.where(trg_seq == PAD_IDX, jnp.float32(NEG), jnp.float32(0.0))     # (B, L)
    skb = jnp.where(src_mask[:, 0, :] > 0, jnp.float32(0.0), jnp.float32(NEG))  # (B, Ls)

    out = pl.pallas_call(
        functools.partial(fused_decoder_kernel, int(step)),
        out_shape=jax.ShapeDtypeStruct((B, C_PAD), jnp.float32),
    )(x, src, tkb, skb,
      params["w_slab"], params["w2_slab"], params["v_slab"],
      params["head_vec"], params["cls_w"])
    return out[:, :NUM_CLASSES]


# ----------------------------- parameter init --------------------------------
def sinusoid_table(n_position, d_model):
    pos = np.arange(n_position)[:, None].astype(np.float64)
    i = np.arange(d_model)[None, :].astype(np.float64)
    angle = pos / np.power(10000.0, 2.0 * (i // 2) / d_model)
    table = np.zeros((n_position, d_model), np.float64)
    table[:, 0::2] = np.sin(angle[:, 0::2])
    table[:, 1::2] = np.cos(angle[:, 1::2])
    return jnp.asarray(table, jnp.float32)


def init_params(key):
    keys = iter(jax.random.split(key, 64))

    def nrm(shape):
        return jax.random.normal(next(keys), shape, jnp.float32) * 0.02

    def zeros(shape):
        return jnp.zeros(shape, jnp.float32)

    def ones(shape):
        return jnp.ones(shape, jnp.float32)

    def pad_to(v, width):
        return jnp.pad(v, ((0, 0), (0, width - v.shape[1])))

    emb = nrm((VOCAB, D_MODEL)).at[PAD_IDX].set(0.0)   # padding_idx row is zero

    w_slabs, w2_slabs, v_slabs = [], [], []
    for _ in range(N_LAYERS):
        attn = []
        for _a in range(2):   # self-attention then cross-attention
            attn.append(dict(
                wq=nrm((D_MODEL, HDK)), bq=zeros((1, HDK)),
                wk=nrm((D_MODEL, HDK)), bk=zeros((1, HDK)),
                wv=nrm((D_MODEL, HDV)), bv=zeros((1, HDV)),
                wo=nrm((HDV, D_MODEL)), bo=zeros((1, D_MODEL)),
                g=ones((1, D_MODEL)), b=zeros((1, D_MODEL))))
        ff = dict(w1=nrm((D_MODEL, D_INNER)), b1=zeros((1, D_INNER)),
                  w2=nrm((D_INNER, D_MODEL)), b2=zeros((1, D_MODEL)),
                  g=ones((1, D_MODEL)), b=zeros((1, D_MODEL)))
        sa, ca = attn
        # packed weight slab: [wq|wk|wv|wo]_self  [wq|wk|wv|wo]_cross  ffn_w1 -> (32, 320)
        w_slabs.append(jnp.concatenate(
            [sa["wq"], sa["wk"], sa["wv"], sa["wo"],
             ca["wq"], ca["wk"], ca["wv"], ca["wo"], ff["w1"]], axis=1))
        w2_slabs.append(ff["w2"])                                  # (64, 32)
        # packed bias / LayerNorm slab: 12 rows padded to 96 lanes -> (12, 96)
        v_slabs.append(jnp.concatenate(
            [pad_to(jnp.concatenate([sa["bq"], sa["bk"], sa["bv"]], axis=1), VEC_W),
             pad_to(sa["bo"], VEC_W), pad_to(sa["g"], VEC_W), pad_to(sa["b"], VEC_W),
             pad_to(jnp.concatenate([ca["bq"], ca["bk"], ca["bv"]], axis=1), VEC_W),
             pad_to(ca["bo"], VEC_W), pad_to(ca["g"], VEC_W), pad_to(ca["b"], VEC_W),
             pad_to(ff["b1"], VEC_W), pad_to(ff["b2"], VEC_W),
             pad_to(ff["g"], VEC_W), pad_to(ff["b"], VEC_W)], axis=0))

    cls_w = nrm((D_MODEL, NUM_CLASSES))
    cls_b = zeros((1, NUM_CLASSES))
    head_vec = jnp.concatenate(
        [pad_to(ones((1, D_MODEL)), C_PAD),     # final LayerNorm gamma
         pad_to(zeros((1, D_MODEL)), C_PAD),    # final LayerNorm beta
         pad_to(cls_b, C_PAD)], axis=0)         # classifier bias (padded lanes = 0)

    return {
        "emb": emb,
        "pos_table": sinusoid_table(MAX_SEQ_LEN, D_MODEL),
        "w_slab": jnp.stack(w_slabs),           # (N_LAYERS, 32, 320)
        "w2_slab": jnp.stack(w2_slabs),         # (N_LAYERS, 64, 32)
        "v_slab": jnp.stack(v_slabs),           # (N_LAYERS, 12, 96)
        "head_vec": head_vec,                   # (3, 128)
        "cls_w": pad_to(cls_w, C_PAD),          # (32, 128), lane-dense output
    }


# ----------------------------- main -------------------------------------------
if __name__ == "__main__":
    key = jax.random.PRNGKey(0)
    k_param, k_trg, k_src = jax.random.split(key, 3)

    B, L, LS = 2, 8, 16
    params = init_params(k_param)

    # target token ids in [0, start_idx], with trailing padding in batch 1
    trg_seq = jax.random.randint(k_trg, (B, L), 0, 90, dtype=jnp.int32)
    trg_seq = trg_seq.at[0, 0].set(90)       # start token
    trg_seq = trg_seq.at[1, 0].set(90)
    trg_seq = trg_seq.at[1, L - 1].set(PAD_IDX)
    trg_seq = trg_seq.at[1, L - 2].set(PAD_IDX)

    # encoder output and its padding mask (B, 1, Ls)
    src = jax.random.normal(k_src, (B, LS, D_MODEL), jnp.float32)
    src_mask = jnp.ones((B, 1, LS), jnp.float32)
    src_mask = src_mask.at[0, 0, LS - 4:].set(0.0)

    step = 3
    step_result = decoder_forward(params, trg_seq, src, src_mask, step)
    jax.block_until_ready(step_result)

    assert step_result.shape == (B, NUM_CLASSES)
    assert bool(jnp.all(jnp.isfinite(step_result)))
    print("KERNEL_OK")
</pallas_src>

<mosaic_0001>
module attributes {stable_mosaic.version = 11 : i64} {
  func.func @fused_decoder_kernel(%arg0: memref<2x8x32xf32, #tpu.memory_space<vmem>>, %arg1: memref<2x16x32xf32, #tpu.memory_space<vmem>>, %arg2: memref<2x8xf32, #tpu.memory_space<vmem>>, %arg3: memref<2x16xf32, #tpu.memory_space<vmem>>, %arg4: memref<2x32x320xf32, #tpu.memory_space<vmem>>, %arg5: memref<2x64x32xf32, #tpu.memory_space<vmem>>, %arg6: memref<2x12x96xf32, #tpu.memory_space<vmem>>, %arg7: memref<3x128xf32, #tpu.memory_space<vmem>>, %arg8: memref<32x128xf32, #tpu.memory_space<vmem>>, %arg9: memref<2x128xf32, #tpu.memory_space<vmem>>) attributes {dimension_semantics = [], scalar_prefetch = 0 : i64, scratch_operands = 0 : i64, tpu.core_type = #tpu.core_type<tc>} {
    %c0 = arith.constant 0 : index
    %c0_0 = arith.constant 0 : index
    %c0_1 = arith.constant 0 : index
    %0 = vector.load %arg0[%c0, %c0_0, %c0_1] : memref<2x8x32xf32, #tpu.memory_space<vmem>>, vector<2x8x32xf32>
    %c0_2 = arith.constant 0 : index
    %c0_3 = arith.constant 0 : index
    %c0_4 = arith.constant 0 : index
    %1 = vector.load %arg1[%c0_2, %c0_3, %c0_4] : memref<2x16x32xf32, #tpu.memory_space<vmem>>, vector<2x16x32xf32>
    %c0_5 = arith.constant 0 : index
    %c0_6 = arith.constant 0 : index
    %2 = vector.load %arg2[%c0_5, %c0_6] : memref<2x8xf32, #tpu.memory_space<vmem>>, vector<2x8xf32>
    %c0_7 = arith.constant 0 : index
    %c0_8 = arith.constant 0 : index
    %3 = vector.load %arg3[%c0_7, %c0_8] : memref<2x16xf32, #tpu.memory_space<vmem>>, vector<2x16xf32>
    %c0_9 = arith.constant 0 : index
    %c0_10 = arith.constant 0 : index
    %4 = vector.load %arg7[%c0_9, %c0_10] : memref<3x128xf32, #tpu.memory_space<vmem>>, vector<3x128xf32>
    %c0_11 = arith.constant 0 : index
    %c0_12 = arith.constant 0 : index
    %5 = vector.load %arg8[%c0_11, %c0_12] : memref<32x128xf32, #tpu.memory_space<vmem>>, vector<32x128xf32>
    %6 = tpu.iota {dimensions = array<i32: 0>} : vector<8x8xi32>
    %7 = tpu.iota {dimensions = array<i32: 1>} : vector<8x8xi32>
    %8 = arith.cmpi sle, %7, %6 : vector<8x8xi32>
    %cst = arith.constant 0.000000e+00 : f32
    %cst_13 = arith.constant -1.000000e+09 : f32
    %9 = vector.broadcast %cst : f32 to vector<8x8xf32>
    %10 = vector.broadcast %cst_13 : f32 to vector<8x8xf32>
    %11 = arith.select %8, %9, %10 : vector<8x8xi1>, vector<8x8xf32>
    %12 = vector.extract_strided_slice %0 {offsets = [0, 0, 0], sizes = [1, 8, 32], strides = [1, 1, 1]} : vector<2x8x32xf32> to vector<1x8x32xf32>
    %13 = vector.shape_cast %12 : vector<1x8x32xf32> to vector<8x32xf32>
    %14 = vector.extract_strided_slice %1 {offsets = [0, 0, 0], sizes = [1, 16, 32], strides = [1, 1, 1]} : vector<2x16x32xf32> to vector<1x16x32xf32>
    %15 = vector.shape_cast %14 : vector<1x16x32xf32> to vector<16x32xf32>
    %16 = vector.extract_strided_slice %2 {offsets = [0, 0], sizes = [1, 8], strides = [1, 1]} : vector<2x8xf32> to vector<1x8xf32>
    %17 = vector.broadcast %16 : vector<1x8xf32> to vector<8x8xf32>
    %18 = arith.addf %11, %17 : vector<8x8xf32>
    %19 = tpu.concatenate %18, %18, %18, %18 in 0 : vector<8x8xf32>, vector<8x8xf32>, vector<8x8xf32>, vector<8x8xf32> -> vector<32x8xf32>
    %20 = vector.extract_strided_slice %3 {offsets = [0, 0], sizes = [1, 16], strides = [1, 1]} : vector<2x16xf32> to vector<1x16xf32>
    %c0_14 = arith.constant 0 : index
    %c0_15 = arith.constant 0 : index
    %c0_16 = arith.constant 0 : index
    %21 = vector.load %arg4[%c0_14, %c0_15, %c0_16] : memref<2x32x320xf32, #tpu.memory_space<vmem>>, vector<1x32x320xf32>
    %22 = vector.shape_cast %21 : vector<1x32x320xf32> to vector<32x320xf32>
    %c0_17 = arith.constant 0 : index
    %c0_18 = arith.constant 0 : index
    %c0_19 = arith.constant 0 : index
    %23 = vector.load %arg5[%c0_17, %c0_18, %c0_19] : memref<2x64x32xf32, #tpu.memory_space<vmem>>, vector<1x64x32xf32>
    %24 = vector.shape_cast %23 : vector<1x64x32xf32> to vector<64x32xf32>
    %c0_20 = arith.constant 0 : index
    %c0_21 = arith.constant 0 : index
    %c0_22 = arith.constant 0 : index
    %25 = vector.load %arg6[%c0_20, %c0_21, %c0_22] : memref<2x12x96xf32, #tpu.memory_space<vmem>>, vector<1x12x96xf32>
    %26 = vector.shape_cast %25 : vector<1x12x96xf32> to vector<12x96xf32>
    %27 = vector.extract_strided_slice %22 {offsets = [0, 0], sizes = [32, 96], strides = [1, 1]} : vector<32x320xf32> to vector<32x96xf32>
    %28 = vector.extract_strided_slice %26 {offsets = [0, 0], sizes = [1, 96], strides = [1, 1]} : vector<12x96xf32> to vector<1x96xf32>
    %29 = vector.extract_strided_slice %22 {offsets = [0, 96], sizes = [32, 32], strides = [1, 1]} : vector<32x320xf32> to vector<32x32xf32>
    %30 = vector.extract_strided_slice %26 {offsets = [1, 0], sizes = [1, 32], strides = [1, 1]} : vector<12x96xf32> to vector<1x32xf32>
    %31 = vector.extract_strided_slice %26 {offsets = [2, 0], sizes = [1, 32], strides = [1, 1]} : vector<12x96xf32> to vector<1x32xf32>
    %32 = vector.extract_strided_slice %26 {offsets = [3, 0], sizes = [1, 32], strides = [1, 1]} : vector<12x96xf32> to vector<1x32xf32>
    %cst_23 = arith.constant dense<0.000000e+00> : vector<8x96xf32>
    %33 = tpu.matmul %13, %27, %cst_23 {dimension_numbers = #tpu.dot_dimension_numbers<[1], [0], [0], [1], [0, 0, 1, 1], [], []>} : vector<8x32xf32>, vector<32x96xf32>, vector<8x96xf32> -> vector<8x96xf32>
    %34 = vector.broadcast %28 : vector<1x96xf32> to vector<8x96xf32>
    %35 = arith.addf %33, %34 : vector<8x96xf32>
    %36 = vector.extract_strided_slice %35 {offsets = [0, 0], sizes = [8, 32], strides = [1, 1]} : vector<8x96xf32> to vector<8x32xf32>
    %37 = vector.extract_strided_slice %35 {offsets = [0, 32], sizes = [8, 32], strides = [1, 1]} : vector<8x96xf32> to vector<8x32xf32>
    %38 = vector.extract_strided_slice %35 {offsets = [0, 64], sizes = [8, 32], strides = [1, 1]} : vector<8x96xf32> to vector<8x32xf32>
    %cst_24 = arith.constant 0.353553385 : f32
    %39 = vector.broadcast %cst_24 : f32 to vector<8x32xf32>
    %40 = arith.mulf %36, %39 : vector<8x32xf32>
    %41 = vector.extract_strided_slice %40 {offsets = [0, 0], sizes = [8, 8], strides = [1, 1]} : vector<8x32xf32> to vector<8x8xf32>
    %42 = vector.extract_strided_slice %37 {offsets = [0, 0], sizes = [8, 8], strides = [1, 1]} : vector<8x32xf32> to vector<8x8xf32>
    %cst_25 = arith.constant dense<0.000000e+00> : vector<8x8xf32>
    %43 = tpu.matmul %41, %42, %cst_25 {dimension_numbers = #tpu.dot_dimension_numbers<[1], [1], [0], [0], [0, 0, 1, 0], [], []>} : vector<8x8xf32>, vector<8x8xf32>, vector<8x8xf32> -> vector<8x8xf32>
    %44 = vector.extract_strided_slice %40 {offsets = [0, 8], sizes = [8, 8], strides = [1, 1]} : vector<8x32xf32> to vector<8x8xf32>
    %45 = vector.extract_strided_slice %37 {offsets = [0, 8], sizes = [8, 8], strides = [1, 1]} : vector<8x32xf32> to vector<8x8xf32>
    %cst_26 = arith.constant dense<0.000000e+00> : vector<8x8xf32>
    %46 = tpu.matmul %44, %45, %cst_26 {dimension_numbers = #tpu.dot_dimension_numbers<[1], [1], [0], [0], [0, 0, 1, 0], [], []>} : vector<8x8xf32>, vector<8x8xf32>, vector<8x8xf32> -> vector<8x8xf32>
    %47 = vector.extract_strided_slice %40 {offsets = [0, 16], sizes = [8, 8], strides = [1, 1]} : vector<8x32xf32> to vector<8x8xf32>
    %48 = vector.extract_strided_slice %37 {offsets = [0, 16], sizes = [8, 8], strides = [1, 1]} : vector<8x32xf32> to vector<8x8xf32>
    %cst_27 = arith.constant dense<0.000000e+00> : vector<8x8xf32>
    %49 = tpu.matmul %47, %48, %cst_27 {dimension_numbers = #tpu.dot_dimension_numbers<[1], [1], [0], [0], [0, 0, 1, 0], [], []>} : vector<8x8xf32>, vector<8x8xf32>, vector<8x8xf32> -> vector<8x8xf32>
    %50 = vector.extract_strided_slice %40 {offsets = [0, 24], sizes = [8, 8], strides = [1, 1]} : vector<8x32xf32> to vector<8x8xf32>
    %51 = vector.extract_strided_slice %37 {offsets = [0, 24], sizes = [8, 8], strides = [1, 1]} : vector<8x32xf32> to vector<8x8xf32>
    %cst_28 = arith.constant dense<0.000000e+00> : vector<8x8xf32>
    %52 = tpu.matmul %50, %51, %cst_28 {dimension_numbers = #tpu.dot_dimension_numbers<[1], [1], [0], [0], [0, 0, 1, 0], [], []>} : vector<8x8xf32>, vector<8x8xf32>, vector<8x8xf32> -> vector<8x8xf32>
    %53 = tpu.concatenate %43, %46, %49, %52 in 0 : vector<8x8xf32>, vector<8x8xf32>, vector<8x8xf32>, vector<8x8xf32> -> vector<32x8xf32>
    %54 = arith.addf %53, %19 : vector<32x8xf32>
    %cst_29 = arith.constant dense<0xFF800000> : vector<32xf32>
    %55 = vector.multi_reduction <maximumf>, %54, %cst_29 [1] : vector<32x8xf32> to vector<32xf32>
    %56 = vector.shape_cast %55 : vector<32xf32> to vector<32x1xf32>
    %57 = vector.broadcast %56 : vector<32x1xf32> to vector<32x8xf32>
    %58 = arith.subf %54, %57 : vector<32x8xf32>
    %59 = math.exp %58 : vector<32x8xf32>
    %cst_30 = arith.constant dense<0.000000e+00> : vector<32xf32>
    %60 = vector.multi_reduction <add>, %59, %cst_30 [1] : vector<32x8xf32> to vector<32xf32>
    %61 = vector.shape_cast %60 : vector<32xf32> to vector<32x1xf32>
    %62 = tpu.reciprocal %61 {approx = true} : vector<32x1xf32> -> vector<32x1xf32>
    %63 = vector.broadcast %62 : vector<32x1xf32> to vector<32x8xf32>
    %64 = arith.mulf %59, %63 : vector<32x8xf32>
    %65 = vector.extract_strided_slice %64 {offsets = [0, 0], sizes = [8, 8], strides = [1, 1]} : vector<32x8xf32> to vector<8x8xf32>
    %66 = vector.extract_strided_slice %38 {offsets = [0, 0], sizes = [8, 8], strides = [1, 1]} : vector<8x32xf32> to vector<8x8xf32>
    %cst_31 = arith.constant dense<0.000000e+00> : vector<8x8xf32>
    %67 = tpu.matmul %65, %66, %cst_31 {dimension_numbers = #tpu.dot_dimension_numbers<[1], [0], [0], [1], [0, 0, 1, 1], [], []>} : vector<8x8xf32>, vector<8x8xf32>, vector<8x8xf32> -> vector<8x8xf32>
    %68 = vector.extract_strided_slice %64 {offsets = [8, 0], sizes = [8, 8], strides = [1, 1]} : vector<32x8xf32> to vector<8x8xf32>
    %69 = vector.extract_strided_slice %38 {offsets = [0, 8], sizes = [8, 8], strides = [1, 1]} : vector<8x32xf32> to vector<8x8xf32>
    %cst_32 = arith.constant dense<0.000000e+00> : vector<8x8xf32>
    %70 = tpu.matmul %68, %69, %cst_32 {dimension_numbers = #tpu.dot_dimension_numbers<[1], [0], [0], [1], [0, 0, 1, 1], [], []>} : vector<8x8xf32>, vector<8x8xf32>, vector<8x8xf32> -> vector<8x8xf32>
    %71 = vector.extract_strided_slice %64 {offsets = [16, 0], sizes = [8, 8], strides = [1, 1]} : vector<32x8xf32> to vector<8x8xf32>
    %72 = vector.extract_strided_slice %38 {offsets = [0, 16], sizes = [8, 8], strides = [1, 1]} : vector<8x32xf32> to vector<8x8xf32>
    %cst_33 = arith.constant dense<0.000000e+00> : vector<8x8xf32>
    %73 = tpu.matmul %71, %72, %cst_33 {dimension_numbers = #tpu.dot_dimension_numbers<[1], [0], [0], [1], [0, 0, 1, 1], [], []>} : vector<8x8xf32>, vector<8x8xf32>, vector<8x8xf32> -> vector<8x8xf32>
    %74 = vector.extract_strided_slice %64 {offsets = [24, 0], sizes = [8, 8], strides = [1, 1]} : vector<32x8xf32> to vector<8x8xf32>
    %75 = vector.extract_strided_slice %38 {offsets = [0, 24], sizes = [8, 8], strides = [1, 1]} : vector<8x32xf32> to vector<8x8xf32>
    %cst_34 = arith.constant dense<0.000000e+00> : vector<8x8xf32>
    %76 = tpu.matmul %74, %75, %cst_34 {dimension_numbers = #tpu.dot_dimension_numbers<[1], [0], [0], [1], [0, 0, 1, 1], [], []>} : vector<8x8xf32>, vector<8x8xf32>, vector<8x8xf32> -> vector<8x8xf32>
    %77 = tpu.concatenate %67, %70, %73, %76 in 1 : vector<8x8xf32>, vector<8x8xf32>, vector<8x8xf32>, vector<8x8xf32> -> vector<8x32xf32>
    %cst_35 = arith.constant dense<0.000000e+00> : vector<8x32xf32>
    %78 = tpu.matmul %77, %29, %cst_35 {dimension_numbers = #tpu.dot_dimension_numbers<[1], [0], [0], [1], [0, 0, 1, 1], [], []>} : vector<8x32xf32>, vector<32x32xf32>, vector<8x32xf32> -> vector<8x32xf32>
    %79 = vector.broadcast %30 : vector<1x32xf32> to vector<8x32xf32>
    %80 = arith.addf %78, %79 : vector<8x32xf32>
    %81 = arith.addf %80, %13 : vector<8x32xf32>
    %cst_36 = arith.constant dense<0.000000e+00> : vector<8xf32>
    %82 = vector.multi_reduction <add>, %81, %cst_36 [1] : vector<8x32xf32> to vector<8xf32>
    %83 = vector.shape_cast %82 : vector<8xf32> to vector<8x1xf32>
    %cst_37 = arith.constant 3.200000e+01 : f32
    %84 = vector.broadcast %cst_37 : f32 to vector<8x1xf32>
    %85 = arith.divf %83, %84 : vector<8x1xf32>
    %86 = vector.broadcast %85 : vector<8x1xf32> to vector<8x32xf32>
    %87 = arith.subf %81, %86 : vector<8x32xf32>
    %88 = arith.mulf %87, %87 : vector<8x32xf32>
    %cst_38 = arith.constant dense<0.000000e+00> : vector<8xf32>
    %89 = vector.multi_reduction <add>, %88, %cst_38 [1] : vector<8x32xf32> to vector<8xf32>
    %90 = vector.shape_cast %89 : vector<8xf32> to vector<8x1xf32>
    %cst_39 = arith.constant 3.200000e+01 : f32
    %91 = vector.broadcast %cst_39 : f32 to vector<8x1xf32>
    %92 = arith.divf %90, %91 : vector<8x1xf32>
    %93 = vector.broadcast %85 : vector<8x1xf32> to vector<8x32xf32>
    %94 = arith.subf %81, %93 : vector<8x32xf32>
    %cst_40 = arith.constant 9.99999997E-7 : f32
    %95 = vector.broadcast %cst_40 : f32 to vector<8x1xf32>
    %96 = arith.addf %92, %95 : vector<8x1xf32>
    %97 = math.rsqrt %96 : vector<8x1xf32>
    %98 = vector.broadcast %97 : vector<8x1xf32> to vector<8x32xf32>
    %99 = arith.mulf %94, %98 : vector<8x32xf32>
    %100 = vector.broadcast %31 : vector<1x32xf32> to vector<8x32xf32>
    %101 = arith.mulf %99, %100 : vector<8x32xf32>
    %102 = vector.broadcast %32 : vector<1x32xf32> to vector<8x32xf32>
    %103 = arith.addf %101, %102 : vector<8x32xf32>
    %104 = vector.extract_strided_slice %22 {offsets = [0, 128], sizes = [32, 96], strides = [1, 1]} : vector<32x320xf32> to vector<32x96xf32>
    %105 = vector.extract_strided_slice %26 {offsets = [4, 0], sizes = [1, 96], strides = [1, 1]} : vector<12x96xf32> to vector<1x96xf32>
    %106 = vector.extract_strided_slice %22 {offsets = [0, 224], sizes = [32, 32], strides = [1, 1]} : vector<32x320xf32> to vector<32x32xf32>
    %107 = vector.extract_strided_slice %26 {offsets = [5, 0], sizes = [1, 32], strides = [1, 1]} : vector<12x96xf32> to vector<1x32xf32>
    %108 = vector.extract_strided_slice %26 {offsets = [6, 0], sizes = [1, 32], strides = [1, 1]} : vector<12x96xf32> to vector<1x32xf32>
    %109 = vector.extract_strided_slice %26 {offsets = [7, 0], sizes = [1, 32], strides = [1, 1]} : vector<12x96xf32> to vector<1x32xf32>
    %110 = vector.extract_strided_slice %104 {offsets = [0, 0], sizes = [32, 32], strides = [1, 1]} : vector<32x96xf32> to vector<32x32xf32>
    %cst_41 = arith.constant dense<0.000000e+00> : vector<8x32xf32>
    %111 = tpu.matmul %103, %110, %cst_41 {dimension_numbers = #tpu.dot_dimension_numbers<[1], [0], [0], [1], [0, 0, 1, 1], [], []>} : vector<8x32xf32>, vector<32x32xf32>, vector<8x32xf32> -> vector<8x32xf32>
    %112 = vector.extract_strided_slice %105 {offsets = [0, 0], sizes = [1, 32], strides = [1, 1]} : vector<1x96xf32> to vector<1x32xf32>
    %113 = vector.broadcast %112 : vector<1x32xf32> to vector<8x32xf32>
    %114 = arith.addf %111, %113 : vector<8x32xf32>
    %115 = vector.extract_strided_slice %104 {offsets = [0, 32], sizes = [32, 64], strides = [1, 1]} : vector<32x96xf32> to vector<32x64xf32>
    %cst_42 = arith.constant dense<0.000000e+00> : vector<16x64xf32>
    %116 = tpu.matmul %15, %115, %cst_42 {dimension_numbers = #tpu.dot_dimension_numbers<[1], [0], [0], [1], [0, 0, 1, 1], [], []>} : vector<16x32xf32>, vector<32x64xf32>, vector<16x64xf32> -> vector<16x64xf32>
    %117 = vector.extract_strided_slice %105 {offsets = [0, 32], sizes = [1, 64], strides = [1, 1]} : vector<1x96xf32> to vector<1x64xf32>
    %118 = vector.broadcast %117 : vector<1x64xf32> to vector<16x64xf32>
    %119 = arith.addf %116, %118 : vector<16x64xf32>
    %120 = vector.extract_strided_slice %119 {offsets = [0, 0], sizes = [16, 32], strides = [1, 1]} : vector<16x64xf32> to vector<16x32xf32>
    %121 = vector.extract_strided_slice %119 {offsets = [0, 32], sizes = [16, 32], strides = [1, 1]} : vector<16x64xf32> to vector<16x32xf32>
    %cst_43 = arith.constant 0.353553385 : f32
    %122 = vector.broadcast %cst_43 : f32 to vector<8x32xf32>
    %123 = arith.mulf %114, %122 : vector<8x32xf32>
    %124 = vector.extract_strided_slice %123 {offsets = [0, 0], sizes = [8, 8], strides = [1, 1]} : vector<8x32xf32> to vector<8x8xf32>
    %125 = vector.extract_strided_slice %120 {offsets = [0, 0], sizes = [16, 8], strides = [1, 1]} : vector<16x32xf32> to vector<16x8xf32>
    %cst_44 = arith.constant dense<0.000000e+00> : vector<8x16xf32>
    %126 = tpu.matmul %124, %125, %cst_44 {dimension_numbers = #tpu.dot_dimension_numbers<[1], [1], [0], [0], [0, 0, 1, 0], [], []>} : vector<8x8xf32>, vector<16x8xf32>, vector<8x16xf32> -> vector<8x16xf32>
    %127 = vector.extract_strided_slice %123 {offsets = [0, 8], sizes = [8, 8], strides = [1, 1]} : vector<8x32xf32> to vector<8x8xf32>
    %128 = vector.extract_strided_slice %120 {offsets = [0, 8], sizes = [16, 8], strides = [1, 1]} : vector<16x32xf32> to vector<16x8xf32>
    %cst_45 = arith.constant dense<0.000000e+00> : vector<8x16xf32>
    %129 = tpu.matmul %127, %128, %cst_45 {dimension_numbers = #tpu.dot_dimension_numbers<[1], [1], [0], [0], [0, 0, 1, 0], [], []>} : vector<8x8xf32>, vector<16x8xf32>, vector<8x16xf32> -> vector<8x16xf32>
    %130 = vector.extract_strided_slice %123 {offsets = [0, 16], sizes = [8, 8], strides = [1, 1]} : vector<8x32xf32> to vector<8x8xf32>
    %131 = vector.extract_strided_slice %120 {offsets = [0, 16], sizes = [16, 8], strides = [1, 1]} : vector<16x32xf32> to vector<16x8xf32>
    %cst_46 = arith.constant dense<0.000000e+00> : vector<8x16xf32>
    %132 = tpu.matmul %130, %131, %cst_46 {dimension_numbers = #tpu.dot_dimension_numbers<[1], [1], [0], [0], [0, 0, 1, 0], [], []>} : vector<8x8xf32>, vector<16x8xf32>, vector<8x16xf32> -> vector<8x16xf32>
    %133 = vector.extract_strided_slice %123 {offsets = [0, 24], sizes = [8, 8], strides = [1, 1]} : vector<8x32xf32> to vector<8x8xf32>
    %134 = vector.extract_strided_slice %120 {offsets = [0, 24], sizes = [16, 8], strides = [1, 1]} : vector<16x32xf32> to vector<16x8xf32>
    %cst_47 = arith.constant dense<0.000000e+00> : vector<8x16xf32>
    %135 = tpu.matmul %133, %134, %cst_47 {dimension_numbers = #tpu.dot_dimension_numbers<[1], [1], [0], [0], [0, 0, 1, 0], [], []>} : vector<8x8xf32>, vector<16x8xf32>, vector<8x16xf32> -> vector<8x16xf32>
    %136 = tpu.concatenate %126, %129, %132, %135 in 0 : vector<8x16xf32>, vector<8x16xf32>, vector<8x16xf32>, vector<8x16xf32> -> vector<32x16xf32>
    %137 = vector.broadcast %20 : vector<1x16xf32> to vector<32x16xf32>
    %138 = arith.addf %136, %137 : vector<32x16xf32>
    %cst_48 = arith.constant dense<0xFF800000> : vector<32xf32>
    %139 = vector.multi_reduction <maximumf>, %138, %cst_48 [1] : vector<32x16xf32> to vector<32xf32>
    %140 = vector.shape_cast %139 : vector<32xf32> to vector<32x1xf32>
    %141 = vector.broadcast %140 : vector<32x1xf32> to vector<32x16xf32>
    %142 = arith.subf %138, %141 : vector<32x16xf32>
    %143 = math.exp %142 : vector<32x16xf32>
    %cst_49 = arith.constant dense<0.000000e+00> : vector<32xf32>
    %144 = vector.multi_reduction <add>, %143, %cst_49 [1] : vector<32x16xf32> to vector<32xf32>
    %145 = vector.shape_cast %144 : vector<32xf32> to vector<32x1xf32>
    %146 = tpu.reciprocal %145 {approx = true} : vector<32x1xf32> -> vector<32x1xf32>
    %147 = vector.broadcast %146 : vector<32x1xf32> to vector<32x16xf32>
    %148 = arith.mulf %143, %147 : vector<32x16xf32>
    %149 = vector.extract_strided_slice %148 {offsets = [0, 0], sizes = [8, 16], strides = [1, 1]} : vector<32x16xf32> to vector<8x16xf32>
    %150 = vector.extract_strided_slice %121 {offsets = [0, 0], sizes = [16, 8], strides = [1, 1]} : vector<16x32xf32> to vector<16x8xf32>
    %cst_50 = arith.constant dense<0.000000e+00> : vector<8x8xf32>
    %151 = tpu.matmul %149, %150, %cst_50 {dimension_numbers = #tpu.dot_dimension_numbers<[1], [0], [0], [1], [0, 0, 1, 1], [], []>} : vector<8x16xf32>, vector<16x8xf32>, vector<8x8xf32> -> vector<8x8xf32>
    %152 = vector.extract_strided_slice %148 {offsets = [8, 0], sizes = [8, 16], strides = [1, 1]} : vector<32x16xf32> to vector<8x16xf32>
    %153 = vector.extract_strided_slice %121 {offsets = [0, 8], sizes = [16, 8], strides = [1, 1]} : vector<16x32xf32> to vector<16x8xf32>
    %cst_51 = arith.constant dense<0.000000e+00> : vector<8x8xf32>
    %154 = tpu.matmul %152, %153, %cst_51 {dimension_numbers = #tpu.dot_dimension_numbers<[1], [0], [0], [1], [0, 0, 1, 1], [], []>} : vector<8x16xf32>, vector<16x8xf32>, vector<8x8xf32> -> vector<8x8xf32>
    %155 = vector.extract_strided_slice %148 {offsets = [16, 0], sizes = [8, 16], strides = [1, 1]} : vector<32x16xf32> to vector<8x16xf32>
    %156 = vector.extract_strided_slice %121 {offsets = [0, 16], sizes = [16, 8], strides = [1, 1]} : vector<16x32xf32> to vector<16x8xf32>
    %cst_52 = arith.constant dense<0.000000e+00> : vector<8x8xf32>
    %157 = tpu.matmul %155, %156, %cst_52 {dimension_numbers = #tpu.dot_dimension_numbers<[1], [0], [0], [1], [0, 0, 1, 1], [], []>} : vector<8x16xf32>, vector<16x8xf32>, vector<8x8xf32> -> vector<8x8xf32>
    %158 = vector.extract_strided_slice %148 {offsets = [24, 0], sizes = [8, 16], strides = [1, 1]} : vector<32x16xf32> to vector<8x16xf32>
    %159 = vector.extract_strided_slice %121 {offsets = [0, 24], sizes = [16, 8], strides = [1, 1]} : vector<16x32xf32> to vector<16x8xf32>
    %cst_53 = arith.constant dense<0.000000e+00> : vector<8x8xf32>
    %160 = tpu.matmul %158, %159, %cst_53 {dimension_numbers = #tpu.dot_dimension_numbers<[1], [0], [0], [1], [0, 0, 1, 1], [], []>} : vector<8x16xf32>, vector<16x8xf32>, vector<8x8xf32> -> vector<8x8xf32>
    %161 = tpu.concatenate %151, %154, %157, %160 in 1 : vector<8x8xf32>, vector<8x8xf32>, vector<8x8xf32>, vector<8x8xf32> -> vector<8x32xf32>
    %cst_54 = arith.constant dense<0.000000e+00> : vector<8x32xf32>
    %162 = tpu.matmul %161, %106, %cst_54 {dimension_numbers = #tpu.dot_dimension_numbers<[1], [0], [0], [1], [0, 0, 1, 1], [], []>} : vector<8x32xf32>, vector<32x32xf32>, vector<8x32xf32> -> vector<8x32xf32>
    %163 = vector.broadcast %107 : vector<1x32xf32> to vector<8x32xf32>
    %164 = arith.addf %162, %163 : vector<8x32xf32>
    %165 = arith.addf %164, %103 : vector<8x32xf32>
    %cst_55 = arith.constant dense<0.000000e+00> : vector<8xf32>
    %166 = vector.multi_reduction <add>, %165, %cst_55 [1] : vector<8x32xf32> to vector<8xf32>
    %167 = vector.shape_cast %166 : vector<8xf32> to vector<8x1xf32>
    %cst_56 = arith.constant 3.200000e+01 : f32
    %168 = vector.broadcast %cst_56 : f32 to vector<8x1xf32>
    %169 = arith.divf %167, %168 : vector<8x1xf32>
    %170 = vector.broadcast %169 : vector<8x1xf32> to vector<8x32xf32>
    %171 = arith.subf %165, %170 : vector<8x32xf32>
    %172 = arith.mulf %171, %171 : vector<8x32xf32>
    %cst_57 = arith.constant dense<0.000000e+00> : vector<8xf32>
    %173 = vector.multi_reduction <add>, %172, %cst_57 [1] : vector<8x32xf32> to vector<8xf32>
    %174 = vector.shape_cast %173 : vector<8xf32> to vector<8x1xf32>
    %cst_58 = arith.constant 3.200000e+01 : f32
    %175 = vector.broadcast %cst_58 : f32 to vector<8x1xf32>
    %176 = arith.divf %174, %175 : vector<8x1xf32>
    %177 = vector.broadcast %169 : vector<8x1xf32> to vector<8x32xf32>
    %178 = arith.subf %165, %177 : vector<8x32xf32>
    %cst_59 = arith.constant 9.99999997E-7 : f32
    %179 = vector.broadcast %cst_59 : f32 to vector<8x1xf32>
    %180 = arith.addf %176, %179 : vector<8x1xf32>
    %181 = math.rsqrt %180 : vector<8x1xf32>
    %182 = vector.broadcast %181 : vector<8x1xf32> to vector<8x32xf32>
    %183 = arith.mulf %178, %182 : vector<8x32xf32>
    %184 = vector.broadcast %108 : vector<1x32xf32> to vector<8x32xf32>
    %185 = arith.mulf %183, %184 : vector<8x32xf32>
    %186 = vector.broadcast %109 : vector<1x32xf32> to vector<8x32xf32>
    %187 = arith.addf %185, %186 : vector<8x32xf32>
    %188 = vector.extract_strided_slice %22 {offsets = [0, 256], sizes = [32, 64], strides = [1, 1]} : vector<32x320xf32> to vector<32x64xf32>
    %189 = vector.extract_strided_slice %26 {offsets = [8, 0], sizes = [1, 64], strides = [1, 1]} : vector<12x96xf32> to vector<1x64xf32>
    %190 = vector.extract_strided_slice %26 {offsets = [9, 0], sizes = [1, 32], strides = [1, 1]} : vector<12x96xf32> to vector<1x32xf32>
    %191 = vector.extract_strided_slice %26 {offsets = [10, 0], sizes = [1, 32], strides = [1, 1]} : vector<12x96xf32> to vector<1x32xf32>
    %192 = vector.extract_strided_slice %26 {offsets = [11, 0], sizes = [1, 32], strides = [1, 1]} : vector<12x96xf32> to vector<1x32xf32>
    %cst_60 = arith.constant dense<0.000000e+00> : vector<8x64xf32>
    %193 = tpu.matmul %187, %188, %cst_60 {dimension_numbers = #tpu.dot_dimension_numbers<[1], [0], [0], [1], [0, 0, 1, 1], [], []>} : vector<8x32xf32>, vector<32x64xf32>, vector<8x64xf32> -> vector<8x64xf32>
    %194 = vector.broadcast %189 : vector<1x64xf32> to vector<8x64xf32>
    %195 = arith.addf %193, %194 : vector<8x64xf32>
    %cst_61 = arith.constant 0.000000e+00 : f32
    %196 = vector.broadcast %cst_61 : f32 to vector<8x64xf32>
    %197 = arith.maximumf %195, %196 : vector<8x64xf32>
    %cst_62 = arith.constant dense<0.000000e+00> : vector<8x32xf32>
    %198 = tpu.matmul %197, %24, %cst_62 {dimension_numbers = #tpu.dot_dimension_numbers<[1], [0], [0], [1], [0, 0, 1, 1], [], []>} : vector<8x64xf32>, vector<64x32xf32>, vector<8x32xf32> -> vector<8x32xf32>
    %199 = vector.broadcast %190 : vector<1x32xf32> to vector<8x32xf32>
    %200 = arith.addf %198, %199 : vector<8x32xf32>
    %201 = arith.addf %200, %187 : vector<8x32xf32>
    %cst_63 = arith.constant dense<0.000000e+00> : vector<8xf32>
    %202 = vector.multi_reduction <add>, %201, %cst_63 [1] : vector<8x32xf32> to vector<8xf32>
    %203 = vector.shape_cast %202 : vector<8xf32> to vector<8x1xf32>
    %cst_64 = arith.constant 3.200000e+01 : f32
    %204 = vector.broadcast %cst_64 : f32 to vector<8x1xf32>
    %205 = arith.divf %203, %204 : vector<8x1xf32>
    %206 = vector.broadcast %205 : vector<8x1xf32> to vector<8x32xf32>
    %207 = arith.subf %201, %206 : vector<8x32xf32>
    %208 = arith.mulf %207, %207 : vector<8x32xf32>
    %cst_65 = arith.constant dense<0.000000e+00> : vector<8xf32>
    %209 = vector.multi_reduction <add>, %208, %cst_65 [1] : vector<8x32xf32> to vector<8xf32>
    %210 = vector.shape_cast %209 : vector<8xf32> to vector<8x1xf32>
    %cst_66 = arith.constant 3.200000e+01 : f32
    %211 = vector.broadcast %cst_66 : f32 to vector<8x1xf32>
    %212 = arith.divf %210, %211 : vector<8x1xf32>
    %213 = vector.broadcast %205 : vector<8x1xf32> to vector<8x32xf32>
    %214 = arith.subf %201, %213 : vector<8x32xf32>
    %cst_67 = arith.constant 9.99999997E-7 : f32
    %215 = vector.broadcast %cst_67 : f32 to vector<8x1xf32>
    %216 = arith.addf %212, %215 : vector<8x1xf32>
    %217 = math.rsqrt %216 : vector<8x1xf32>
    %218 = vector.broadcast %217 : vector<8x1xf32> to vector<8x32xf32>
    %219 = arith.mulf %214, %218 : vector<8x32xf32>
    %220 = vector.broadcast %191 : vector<1x32xf32> to vector<8x32xf32>
    %221 = arith.mulf %219, %220 : vector<8x32xf32>
    %222 = vector.broadcast %192 : vector<1x32xf32> to vector<8x32xf32>
    %223 = arith.addf %221, %222 : vector<8x32xf32>
    %c1 = arith.constant 1 : index
    %c0_68 = arith.constant 0 : index
    %c0_69 = arith.constant 0 : index
    %224 = vector.load %arg4[%c1, %c0_68, %c0_69] : memref<2x32x320xf32, #tpu.memory_space<vmem>>, vector<1x32x320xf32>
    %225 = vector.shape_cast %224 : vector<1x32x320xf32> to vector<32x320xf32>
    %c1_70 = arith.constant 1 : index
    %c0_71 = arith.constant 0 : index
    %c0_72 = arith.constant 0 : index
    %226 = vector.load %arg5[%c1_70, %c0_71, %c0_72] : memref<2x64x32xf32, #tpu.memory_space<vmem>>, vector<1x64x32xf32>
    %227 = vector.shape_cast %226 : vector<1x64x32xf32> to vector<64x32xf32>
    %c1_73 = arith.constant 1 : index
    %c0_74 = arith.constant 0 : index
    %c0_75 = arith.constant 0 : index
    %228 = vector.load %arg6[%c1_73, %c0_74, %c0_75] : memref<2x12x96xf32, #tpu.memory_space<vmem>>, vector<1x12x96xf32>
    %229 = vector.shape_cast %228 : vector<1x12x96xf32> to vector<12x96xf32>
    %230 = vector.extract_strided_slice %223 {offsets = [3, 0], sizes = [1, 32], strides = [1, 1]} : vector<8x32xf32> to vector<1x32xf32>
    %231 = vector.extract_strided_slice %18 {offsets = [3, 0], sizes = [1, 8], strides = [1, 1]} : vector<8x8xf32> to vector<1x8xf32>
    %232 = tpu.concatenate %231, %231, %231, %231 in 0 : vector<1x8xf32>, vector<1x8xf32>, vector<1x8xf32>, vector<1x8xf32> -> vector<4x8xf32>
    %233 = vector.extract_strided_slice %225 {offsets = [0, 0], sizes = [32, 96], strides = [1, 1]} : vector<32x320xf32> to vector<32x96xf32>
    %234 = vector.extract_strided_slice %229 {offsets = [0, 0], sizes = [1, 96], strides = [1, 1]} : vector<12x96xf32> to vector<1x96xf32>
    %235 = vector.extract_strided_slice %225 {offsets = [0, 96], sizes = [32, 32], strides = [1, 1]} : vector<32x320xf32> to vector<32x32xf32>
    %236 = vector.extract_strided_slice %229 {offsets = [1, 0], sizes = [1, 32], strides = [1, 1]} : vector<12x96xf32> to vector<1x32xf32>
    %237 = vector.extract_strided_slice %229 {offsets = [2, 0], sizes = [1, 32], strides = [1, 1]} : vector<12x96xf32> to vector<1x32xf32>
    %238 = vector.extract_strided_slice %229 {offsets = [3, 0], sizes = [1, 32], strides = [1, 1]} : vector<12x96xf32> to vector<1x32xf32>
    %239 = vector.extract_strided_slice %233 {offsets = [0, 0], sizes = [32, 32], strides = [1, 1]} : vector<32x96xf32> to vector<32x32xf32>
    %cst_76 = arith.constant dense<0.000000e+00> : vector<1x32xf32>
    %240 = tpu.matmul %230, %239, %cst_76 {dimension_numbers = #tpu.dot_dimension_numbers<[1], [0], [0], [1], [0, 0, 1, 1], [], []>} : vector<1x32xf32>, vector<32x32xf32>, vector<1x32xf32> -> vector<1x32xf32>
    %241 = vector.extract_strided_slice %234 {offsets = [0, 0], sizes = [1, 32], strides = [1, 1]} : vector<1x96xf32> to vector<1x32xf32>
    %242 = arith.addf %240, %241 : vector<1x32xf32>
    %243 = vector.extract_strided_slice %233 {offsets = [0, 32], sizes = [32, 64], strides = [1, 1]} : vector<32x96xf32> to vector<32x64xf32>
    %cst_77 = arith.constant dense<0.000000e+00> : vector<8x64xf32>
    %244 = tpu.matmul %223, %243, %cst_77 {dimension_numbers = #tpu.dot_dimension_numbers<[1], [0], [0], [1], [0, 0, 1, 1], [], []>} : vector<8x32xf32>, vector<32x64xf32>, vector<8x64xf32> -> vector<8x64xf32>
    %245 = vector.extract_strided_slice %234 {offsets = [0, 32], sizes = [1, 64], strides = [1, 1]} : vector<1x96xf32> to vector<1x64xf32>
    %246 = vector.broadcast %245 : vector<1x64xf32> to vector<8x64xf32>
    %247 = arith.addf %244, %246 : vector<8x64xf32>
    %248 = vector.extract_strided_slice %247 {offsets = [0, 0], sizes = [8, 32], strides = [1, 1]} : vector<8x64xf32> to vector<8x32xf32>
    %249 = vector.extract_strided_slice %247 {offsets = [0, 32], sizes = [8, 32], strides = [1, 1]} : vector<8x64xf32> to vector<8x32xf32>
    %cst_78 = arith.constant 0.353553385 : f32
    %250 = vector.broadcast %cst_78 : f32 to vector<1x32xf32>
    %251 = arith.mulf %242, %250 : vector<1x32xf32>
    %252 = vector.extract_strided_slice %251 {offsets = [0, 0], sizes = [1, 8], strides = [1, 1]} : vector<1x32xf32> to vector<1x8xf32>
    %253 = vector.extract_strided_slice %248 {offsets = [0, 0], sizes = [8, 8], strides = [1, 1]} : vector<8x32xf32> to vector<8x8xf32>
    %cst_79 = arith.constant dense<0.000000e+00> : vector<1x8xf32>
    %254 = tpu.matmul %252, %253, %cst_79 {dimension_numbers = #tpu.dot_dimension_numbers<[1], [1], [0], [0], [0, 0, 1, 0], [], []>} : vector<1x8xf32>, vector<8x8xf32>, vector<1x8xf32> -> vector<1x8xf32>
    %255 = vector.extract_strided_slice %251 {offsets = [0, 8], sizes = [1, 8], strides = [1, 1]} : vector<1x32xf32> to vector<1x8xf32>
    %256 = vector.extract_strided_slice %248 {offsets = [0, 8], sizes = [8, 8], strides = [1, 1]} : vector<8x32xf32> to vector<8x8xf32>
    %cst_80 = arith.constant dense<0.000000e+00> : vector<1x8xf32>
    %257 = tpu.matmul %255, %256, %cst_80 {dimension_numbers = #tpu.dot_dimension_numbers<[1], [1], [0], [0], [0, 0, 1, 0], [], []>} : vector<1x8xf32>, vector<8x8xf32>, vector<1x8xf32> -> vector<1x8xf32>
    %258 = vector.extract_strided_slice %251 {offsets = [0, 16], sizes = [1, 8], strides = [1, 1]} : vector<1x32xf32> to vector<1x8xf32>
    %259 = vector.extract_strided_slice %248 {offsets = [0, 16], sizes = [8, 8], strides = [1, 1]} : vector<8x32xf32> to vector<8x8xf32>
    %cst_81 = arith.constant dense<0.000000e+00> : vector<1x8xf32>
    %260 = tpu.matmul %258, %259, %cst_81 {dimension_numbers = #tpu.dot_dimension_numbers<[1], [1], [0], [0], [0, 0, 1, 0], [], []>} : vector<1x8xf32>, vector<8x8xf32>, vector<1x8xf32> -> vector<1x8xf32>
    %261 = vector.extract_strided_slice %251 {offsets = [0, 24], sizes = [1, 8], strides = [1, 1]} : vector<1x32xf32> to vector<1x8xf32>
    %262 = vector.extract_strided_slice %248 {offsets = [0, 24], sizes = [8, 8], strides = [1, 1]} : vector<8x32xf32> to vector<8x8xf32>
    %cst_82 = arith.constant dense<0.000000e+00> : vector<1x8xf32>
    %263 = tpu.matmul %261, %262, %cst_82 {dimension_numbers = #tpu.dot_dimension_numbers<[1], [1], [0], [0], [0, 0, 1, 0], [], []>} : vector<1x8xf32>, vector<8x8xf32>, vector<1x8xf32> -> vector<1x8xf32>
    %264 = tpu.concatenate %254, %257, %260, %263 in 0 : vector<1x8xf32>, vector<1x8xf32>, vector<1x8xf32>, vector<1x8xf32> -> vector<4x8xf32>
    %265 = arith.addf %264, %232 : vector<4x8xf32>
    %cst_83 = arith.constant dense<0xFF800000> : vector<4xf32>
    %266 = vector.multi_reduction <maximumf>, %265, %cst_83 [1] : vector<4x8xf32> to vector<4xf32>
    %267 = vector.shape_cast %266 : vector<4xf32> to vector<4x1xf32>
    %268 = vector.broadcast %267 : vector<4x1xf32> to vector<4x8xf32>
    %269 = arith.subf %265, %268 : vector<4x8xf32>
    %270 = math.exp %269 : vector<4x8xf32>
    %cst_84 = arith.constant dense<0.000000e+00> : vector<4xf32>
    %271 = vector.multi_reduction <add>, %270, %cst_84 [1] : vector<4x8xf32> to vector<4xf32>
    %272 = vector.shape_cast %271 : vector<4xf32> to vector<4x1xf32>
    %273 = tpu.reciprocal %272 {approx = true} : vector<4x1xf32> -> vector<4x1xf32>
    %274 = vector.broadcast %273 : vector<4x1xf32> to vector<4x8xf32>
    %275 = arith.mulf %270, %274 : vector<4x8xf32>
    %276 = vector.extract_strided_slice %275 {offsets = [0, 0], sizes = [1, 8], strides = [1, 1]} : vector<4x8xf32> to vector<1x8xf32>
    %277 = vector.extract_strided_slice %249 {offsets = [0, 0], sizes = [8, 8], strides = [1, 1]} : vector<8x32xf32> to vector<8x8xf32>
    %cst_85 = arith.constant dense<0.000000e+00> : vector<1x8xf32>
    %278 = tpu.matmul %276, %277, %cst_85 {dimension_numbers = #tpu.dot_dimension_numbers<[1], [0], [0], [1], [0, 0, 1, 1], [], []>} : vector<1x8xf32>, vector<8x8xf32>, vector<1x8xf32> -> vector<1x8xf32>
    %279 = vector.extract_strided_slice %275 {offsets = [1, 0], sizes = [1, 8], strides = [1, 1]} : vector<4x8xf32> to vector<1x8xf32>
    %280 = vector.extract_strided_slice %249 {offsets = [0, 8], sizes = [8, 8], strides = [1, 1]} : vector<8x32xf32> to vector<8x8xf32>
    %cst_86 = arith.constant dense<0.000000e+00> : vector<1x8xf32>
    %281 = tpu.matmul %279, %280, %cst_86 {dimension_numbers = #tpu.dot_dimension_numbers<[1], [0], [0], [1], [0, 0, 1, 1], [], []>} : vector<1x8xf32>, vector<8x8xf32>, vector<1x8xf32> -> vector<1x8xf32>
    %282 = vector.extract_strided_slice %275 {offsets = [2, 0], sizes = [1, 8], strides = [1, 1]} : vector<4x8xf32> to vector<1x8xf32>
    %283 = vector.extract_strided_slice %249 {offsets = [0, 16], sizes = [8, 8], strides = [1, 1]} : vector<8x32xf32> to vector<8x8xf32>
    %cst_87 = arith.constant dense<0.000000e+00> : vector<1x8xf32>
    %284 = tpu.matmul %282, %283, %cst_87 {dimension_numbers = #tpu.dot_dimension_numbers<[1], [0], [0], [1], [0, 0, 1, 1], [], []>} : vector<1x8xf32>, vector<8x8xf32>, vector<1x8xf32> -> vector<1x8xf32>
    %285 = vector.extract_strided_slice %275 {offsets = [3, 0], sizes = [1, 8], strides = [1, 1]} : vector<4x8xf32> to vector<1x8xf32>
    %286 = vector.extract_strided_slice %249 {offsets = [0, 24], sizes = [8, 8], strides = [1, 1]} : vector<8x32xf32> to vector<8x8xf32>
    %cst_88 = arith.constant dense<0.000000e+00> : vector<1x8xf32>
    %287 = tpu.matmul %285, %286, %cst_88 {dimension_numbers = #tpu.dot_dimension_numbers<[1], [0], [0], [1], [0, 0, 1, 1], [], []>} : vector<1x8xf32>, vector<8x8xf32>, vector<1x8xf32> -> vector<1x8xf32>
    %288 = tpu.concatenate %278, %281, %284, %287 in 1 : vector<1x8xf32>, vector<1x8xf32>, vector<1x8xf32>, vector<1x8xf32> -> vector<1x32xf32>
    %cst_89 = arith.constant dense<0.000000e+00> : vector<1x32xf32>
    %289 = tpu.matmul %288, %235, %cst_89 {dimension_numbers = #tpu.dot_dimension_numbers<[1], [0], [0], [1], [0, 0, 1, 1], [], []>} : vector<1x32xf32>, vector<32x32xf32>, vector<1x32xf32> -> vector<1x32xf32>
    %290 = arith.addf %289, %236 : vector<1x32xf32>
    %291 = arith.addf %290, %230 : vector<1x32xf32>
    %cst_90 = arith.constant dense<0.000000e+00> : vector<1xf32>
    %292 = vector.multi_reduction <add>, %291, %cst_90 [1] : vector<1x32xf32> to vector<1xf32>
    %293 = vector.shape_cast %292 : vector<1xf32> to vector<1x1xf32>
    %cst_91 = arith.constant 3.200000e+01 : f32
    %294 = vector.broadcast %cst_91 : f32 to vector<1x1xf32>
    %295 = arith.divf %293, %294 : vector<1x1xf32>
    %296 = vector.broadcast %295 : vector<1x1xf32> to vector<1x32xf32>
    %297 = arith.subf %291, %296 : vector<1x32xf32>
    %298 = arith.mulf %297, %297 : vector<1x32xf32>
    %cst_92 = arith.constant dense<0.000000e+00> : vector<1xf32>
    %299 = vector.multi_reduction <add>, %298, %cst_92 [1] : vector<1x32xf32> to vector<1xf32>
    %300 = vector.shape_cast %299 : vector<1xf32> to vector<1x1xf32>
    %cst_93 = arith.constant 3.200000e+01 : f32
    %301 = vector.broadcast %cst_93 : f32 to vector<1x1xf32>
    %302 = arith.divf %300, %301 : vector<1x1xf32>
    %303 = vector.broadcast %295 : vector<1x1xf32> to vector<1x32xf32>
    %304 = arith.subf %291, %303 : vector<1x32xf32>
    %cst_94 = arith.constant 9.99999997E-7 : f32
    %305 = vector.broadcast %cst_94 : f32 to vector<1x1xf32>
    %306 = arith.addf %302, %305 : vector<1x1xf32>
    %307 = math.rsqrt %306 : vector<1x1xf32>
    %308 = vector.broadcast %307 : vector<1x1xf32> to vector<1x32xf32>
    %309 = arith.mulf %304, %308 : vector<1x32xf32>
    %310 = arith.mulf %309, %237 : vector<1x32xf32>
    %311 = arith.addf %310, %238 : vector<1x32xf32>
    %312 = vector.extract_strided_slice %225 {offsets = [0, 128], sizes = [32, 96], strides = [1, 1]} : vector<32x320xf32> to vector<32x96xf32>
    %313 = vector.extract_strided_slice %229 {offsets = [4, 0], sizes = [1, 96], strides = [1, 1]} : vector<12x96xf32> to vector<1x96xf32>
    %314 = vector.extract_strided_slice %225 {offsets = [0, 224], sizes = [32, 32], strides = [1, 1]} : vector<32x320xf32> to vector<32x32xf32>
    %315 = vector.extract_strided_slice %229 {offsets = [5, 0], sizes = [1, 32], strides = [1, 1]} : vector<12x96xf32> to vector<1x32xf32>
    %316 = vector.extract_strided_slice %229 {offsets = [6, 0], sizes = [1, 32], strides = [1, 1]} : vector<12x96xf32> to vector<1x32xf32>
    %317 = vector.extract_strided_slice %229 {offsets = [7, 0], sizes = [1, 32], strides = [1, 1]} : vector<12x96xf32> to vector<1x32xf32>
    %318 = vector.extract_strided_slice %312 {offsets = [0, 0], sizes = [32, 32], strides = [1, 1]} : vector<32x96xf32> to vector<32x32xf32>
    %cst_95 = arith.constant dense<0.000000e+00> : vector<1x32xf32>
    %319 = tpu.matmul %311, %318, %cst_95 {dimension_numbers = #tpu.dot_dimension_numbers<[1], [0], [0], [1], [0, 0, 1, 1], [], []>} : vector<1x32xf32>, vector<32x32xf32>, vector<1x32xf32> -> vector<1x32xf32>
    %320 = vector.extract_strided_slice %313 {offsets = [0, 0], sizes = [1, 32], strides = [1, 1]} : vector<1x96xf32> to vector<1x32xf32>
    %321 = arith.addf %319, %320 : vector<1x32xf32>
    %322 = vector.extract_strided_slice %312 {offsets = [0, 32], sizes = [32, 64], strides = [1, 1]} : vector<32x96xf32> to vector<32x64xf32>
    %cst_96 = arith.constant dense<0.000000e+00> : vector<16x64xf32>
    %323 = tpu.matmul %15, %322, %cst_96 {dimension_numbers = #tpu.dot_dimension_numbers<[1], [0], [0], [1], [0, 0, 1, 1], [], []>} : vector<16x32xf32>, vector<32x64xf32>, vector<16x64xf32> -> vector<16x64xf32>
    %324 = vector.extract_strided_slice %313 {offsets = [0, 32], sizes = [1, 64], strides = [1, 1]} : vector<1x96xf32> to vector<1x64xf32>
    %325 = vector.broadcast %324 : vector<1x64xf32> to vector<16x64xf32>
    %326 = arith.addf %323, %325 : vector<16x64xf32>
    %327 = vector.extract_strided_slice %326 {offsets = [0, 0], sizes = [16, 32], strides = [1, 1]} : vector<16x64xf32> to vector<16x32xf32>
    %328 = vector.extract_strided_slice %326 {offsets = [0, 32], sizes = [16, 32], strides = [1, 1]} : vector<16x64xf32> to vector<16x32xf32>
    %cst_97 = arith.constant 0.353553385 : f32
    %329 = vector.broadcast %cst_97 : f32 to vector<1x32xf32>
    %330 = arith.mulf %321, %329 : vector<1x32xf32>
    %331 = vector.extract_strided_slice %330 {offsets = [0, 0], sizes = [1, 8], strides = [1, 1]} : vector<1x32xf32> to vector<1x8xf32>
    %332 = vector.extract_strided_slice %327 {offsets = [0, 0], sizes = [16, 8], strides = [1, 1]} : vector<16x32xf32> to vector<16x8xf32>
    %cst_98 = arith.constant dense<0.000000e+00> : vector<1x16xf32>
    %333 = tpu.matmul %331, %332, %cst_98 {dimension_numbers = #tpu.dot_dimension_numbers<[1], [1], [0], [0], [0, 0, 1, 0], [], []>} : vector<1x8xf32>, vector<16x8xf32>, vector<1x16xf32> -> vector<1x16xf32>
    %334 = vector.extract_strided_slice %330 {offsets = [0, 8], sizes = [1, 8], strides = [1, 1]} : vector<1x32xf32> to vector<1x8xf32>
    %335 = vector.extract_strided_slice %327 {offsets = [0, 8], sizes = [16, 8], strides = [1, 1]} : vector<16x32xf32> to vector<16x8xf32>
    %cst_99 = arith.constant dense<0.000000e+00> : vector<1x16xf32>
    %336 = tpu.matmul %334, %335, %cst_99 {dimension_numbers = #tpu.dot_dimension_numbers<[1], [1], [0], [0], [0, 0, 1, 0], [], []>} : vector<1x8xf32>, vector<16x8xf32>, vector<1x16xf32> -> vector<1x16xf32>
    %337 = vector.extract_strided_slice %330 {offsets = [0, 16], sizes = [1, 8], strides = [1, 1]} : vector<1x32xf32> to vector<1x8xf32>
    %338 = vector.extract_strided_slice %327 {offsets = [0, 16], sizes = [16, 8], strides = [1, 1]} : vector<16x32xf32> to vector<16x8xf32>
    %cst_100 = arith.constant dense<0.000000e+00> : vector<1x16xf32>
    %339 = tpu.matmul %337, %338, %cst_100 {dimension_numbers = #tpu.dot_dimension_numbers<[1], [1], [0], [0], [0, 0, 1, 0], [], []>} : vector<1x8xf32>, vector<16x8xf32>, vector<1x16xf32> -> vector<1x16xf32>
    %340 = vector.extract_strided_slice %330 {offsets = [0, 24], sizes = [1, 8], strides = [1, 1]} : vector<1x32xf32> to vector<1x8xf32>
    %341 = vector.extract_strided_slice %327 {offsets = [0, 24], sizes = [16, 8], strides = [1, 1]} : vector<16x32xf32> to vector<16x8xf32>
    %cst_101 = arith.constant dense<0.000000e+00> : vector<1x16xf32>
    %342 = tpu.matmul %340, %341, %cst_101 {dimension_numbers = #tpu.dot_dimension_numbers<[1], [1], [0], [0], [0, 0, 1, 0], [], []>} : vector<1x8xf32>, vector<16x8xf32>, vector<1x16xf32> -> vector<1x16xf32>
    %343 = tpu.concatenate %333, %336, %339, %342 in 0 : vector<1x16xf32>, vector<1x16xf32>, vector<1x16xf32>, vector<1x16xf32> -> vector<4x16xf32>
    %344 = vector.broadcast %20 : vector<1x16xf32> to vector<4x16xf32>
    %345 = arith.addf %343, %344 : vector<4x16xf32>
    %cst_102 = arith.constant dense<0xFF800000> : vector<4xf32>
    %346 = vector.multi_reduction <maximumf>, %345, %cst_102 [1] : vector<4x16xf32> to vector<4xf32>
    %347 = vector.shape_cast %346 : vector<4xf32> to vector<4x1xf32>
    %348 = vector.broadcast %347 : vector<4x1xf32> to vector<4x16xf32>
    %349 = arith.subf %345, %348 : vector<4x16xf32>
    %350 = math.exp %349 : vector<4x16xf32>
    %cst_103 = arith.constant dense<0.000000e+00> : vector<4xf32>
    %351 = vector.multi_reduction <add>, %350, %cst_103 [1] : vector<4x16xf32> to vector<4xf32>
    %352 = vector.shape_cast %351 : vector<4xf32> to vector<4x1xf32>
    %353 = tpu.reciprocal %352 {approx = true} : vector<4x1xf32> -> vector<4x1xf32>
    %354 = vector.broadcast %353 : vector<4x1xf32> to vector<4x16xf32>
    %355 = arith.mulf %350, %354 : vector<4x16xf32>
    %356 = vector.extract_strided_slice %355 {offsets = [0, 0], sizes = [1, 16], strides = [1, 1]} : vector<4x16xf32> to vector<1x16xf32>
    %357 = vector.extract_strided_slice %328 {offsets = [0, 0], sizes = [16, 8], strides = [1, 1]} : vector<16x32xf32> to vector<16x8xf32>
    %cst_104 = arith.constant dense<0.000000e+00> : vector<1x8xf32>
    %358 = tpu.matmul %356, %357, %cst_104 {dimension_numbers = #tpu.dot_dimension_numbers<[1], [0], [0], [1], [0, 0, 1, 1], [], []>} : vector<1x16xf32>, vector<16x8xf32>, vector<1x8xf32> -> vector<1x8xf32>
    %359 = vector.extract_strided_slice %355 {offsets = [1, 0], sizes = [1, 16], strides = [1, 1]} : vector<4x16xf32> to vector<1x16xf32>
    %360 = vector.extract_strided_slice %328 {offsets = [0, 8], sizes = [16, 8], strides = [1, 1]} : vector<16x32xf32> to vector<16x8xf32>
    %cst_105 = arith.constant dense<0.000000e+00> : vector<1x8xf32>
    %361 = tpu.matmul %359, %360, %cst_105 {dimension_numbers = #tpu.dot_dimension_numbers<[1], [0], [0], [1], [0, 0, 1, 1], [], []>} : vector<1x16xf32>, vector<16x8xf32>, vector<1x8xf32> -> vector<1x8xf32>
    %362 = vector.extract_strided_slice %355 {offsets = [2, 0], sizes = [1, 16], strides = [1, 1]} : vector<4x16xf32> to vector<1x16xf32>
    %363 = vector.extract_strided_slice %328 {offsets = [0, 16], sizes = [16, 8], strides = [1, 1]} : vector<16x32xf32> to vector<16x8xf32>
    %cst_106 = arith.constant dense<0.000000e+00> : vector<1x8xf32>
    %364 = tpu.matmul %362, %363, %cst_106 {dimension_numbers = #tpu.dot_dimension_numbers<[1], [0], [0], [1], [0, 0, 1, 1], [], []>} : vector<1x16xf32>, vector<16x8xf32>, vector<1x8xf32> -> vector<1x8xf32>
    %365 = vector.extract_strided_slice %355 {offsets = [3, 0], sizes = [1, 16], strides = [1, 1]} : vector<4x16xf32> to vector<1x16xf32>
    %366 = vector.extract_strided_slice %328 {offsets = [0, 24], sizes = [16, 8], strides = [1, 1]} : vector<16x32xf32> to vector<16x8xf32>
    %cst_107 = arith.constant dense<0.000000e+00> : vector<1x8xf32>
    %367 = tpu.matmul %365, %366, %cst_107 {dimension_numbers = #tpu.dot_dimension_numbers<[1], [0], [0], [1], [0, 0, 1, 1], [], []>} : vector<1x16xf32>, vector<16x8xf32>, vector<1x8xf32> -> vector<1x8xf32>
    %368 = tpu.concatenate %358, %361, %364, %367 in 1 : vector<1x8xf32>, vector<1x8xf32>, vector<1x8xf32>, vector<1x8xf32> -> vector<1x32xf32>
    %cst_108 = arith.constant dense<0.000000e+00> : vector<1x32xf32>
    %369 = tpu.matmul %368, %314, %cst_108 {dimension_numbers = #tpu.dot_dimension_numbers<[1], [0], [0], [1], [0, 0, 1, 1], [], []>} : vector<1x32xf32>, vector<32x32xf32>, vector<1x32xf32> -> vector<1x32xf32>
    %370 = arith.addf %369, %315 : vector<1x32xf32>
    %371 = arith.addf %370, %311 : vector<1x32xf32>
    %cst_109 = arith.constant dense<0.000000e+00> : vector<1xf32>
    %372 = vector.multi_reduction <add>, %371, %cst_109 [1] : vector<1x32xf32> to vector<1xf32>
    %373 = vector.shape_cast %372 : vector<1xf32> to vector<1x1xf32>
    %cst_110 = arith.constant 3.200000e+01 : f32
    %374 = vector.broadcast %cst_110 : f32 to vector<1x1xf32>
    %375 = arith.divf %373, %374 : vector<1x1xf32>
    %376 = vector.broadcast %375 : vector<1x1xf32> to vector<1x32xf32>
    %377 = arith.subf %371, %376 : vector<1x32xf32>
    %378 = arith.mulf %377, %377 : vector<1x32xf32>
    %cst_111 = arith.constant dense<0.000000e+00> : vector<1xf32>
    %379 = vector.multi_reduction <add>, %378, %cst_111 [1] : vector<1x32xf32> to vector<1xf32>
    %380 = vector.shape_cast %379 : vector<1xf32> to vector<1x1xf32>
    %cst_112 = arith.constant 3.200000e+01 : f32
    %381 = vector.broadcast %cst_112 : f32 to vector<1x1xf32>
    %382 = arith.divf %380, %381 : vector<1x1xf32>
    %383 = vector.broadcast %375 : vector<1x1xf32> to vector<1x32xf32>
    %384 = arith.subf %371, %383 : vector<1x32xf32>
    %cst_113 = arith.constant 9.99999997E-7 : f32
    %385 = vector.broadcast %cst_113 : f32 to vector<1x1xf32>
    %386 = arith.addf %382, %385 : vector<1x1xf32>
    %387 = math.rsqrt %386 : vector<1x1xf32>
    %388 = vector.broadcast %387 : vector<1x1xf32> to vector<1x32xf32>
    %389 = arith.mulf %384, %388 : vector<1x32xf32>
    %390 = arith.mulf %389, %316 : vector<1x32xf32>
    %391 = arith.addf %390, %317 : vector<1x32xf32>
    %392 = vector.extract_strided_slice %225 {offsets = [0, 256], sizes = [32, 64], strides = [1, 1]} : vector<32x320xf32> to vector<32x64xf32>
    %393 = vector.extract_strided_slice %229 {offsets = [8, 0], sizes = [1, 64], strides = [1, 1]} : vector<12x96xf32> to vector<1x64xf32>
    %394 = vector.extract_strided_slice %229 {offsets = [9, 0], sizes = [1, 32], strides = [1, 1]} : vector<12x96xf32> to vector<1x32xf32>
    %395 = vector.extract_strided_slice %229 {offsets = [10, 0], sizes = [1, 32], strides = [1, 1]} : vector<12x96xf32> to vector<1x32xf32>
    %396 = vector.extract_strided_slice %229 {offsets = [11, 0], sizes = [1, 32], strides = [1, 1]} : vector<12x96xf32> to vector<1x32xf32>
    %cst_114 = arith.constant dense<0.000000e+00> : vector<1x64xf32>
    %397 = tpu.matmul %391, %392, %cst_114 {dimension_numbers = #tpu.dot_dimension_numbers<[1], [0], [0], [1], [0, 0, 1, 1], [], []>} : vector<1x32xf32>, vector<32x64xf32>, vector<1x64xf32> -> vector<1x64xf32>
    %398 = arith.addf %397, %393 : vector<1x64xf32>
    %cst_115 = arith.constant 0.000000e+00 : f32
    %399 = vector.broadcast %cst_115 : f32 to vector<1x64xf32>
    %400 = arith.maximumf %398, %399 : vector<1x64xf32>
    %cst_116 = arith.constant dense<0.000000e+00> : vector<1x32xf32>
    %401 = tpu.matmul %400, %227, %cst_116 {dimension_numbers = #tpu.dot_dimension_numbers<[1], [0], [0], [1], [0, 0, 1, 1], [], []>} : vector<1x64xf32>, vector<64x32xf32>, vector<1x32xf32> -> vector<1x32xf32>
    %402 = arith.addf %401, %394 : vector<1x32xf32>
    %403 = arith.addf %402, %391 : vector<1x32xf32>
    %cst_117 = arith.constant dense<0.000000e+00> : vector<1xf32>
    %404 = vector.multi_reduction <add>, %403, %cst_117 [1] : vector<1x32xf32> to vector<1xf32>
    %405 = vector.shape_cast %404 : vector<1xf32> to vector<1x1xf32>
    %cst_118 = arith.constant 3.200000e+01 : f32
    %406 = vector.broadcast %cst_118 : f32 to vector<1x1xf32>
    %407 = arith.divf %405, %406 : vector<1x1xf32>
    %408 = vector.broadcast %407 : vector<1x1xf32> to vector<1x32xf32>
    %409 = arith.subf %403, %408 : vector<1x32xf32>
    %410 = arith.mulf %409, %409 : vector<1x32xf32>
    %cst_119 = arith.constant dense<0.000000e+00> : vector<1xf32>
    %411 = vector.multi_reduction <add>, %410, %cst_119 [1] : vector<1x32xf32> to vector<1xf32>
    %412 = vector.shape_cast %411 : vector<1xf32> to vector<1x1xf32>
    %cst_120 = arith.constant 3.200000e+01 : f32
    %413 = vector.broadcast %cst_120 : f32 to vector<1x1xf32>
    %414 = arith.divf %412, %413 : vector<1x1xf32>
    %415 = vector.broadcast %407 : vector<1x1xf32> to vector<1x32xf32>
    %416 = arith.subf %403, %415 : vector<1x32xf32>
    %cst_121 = arith.constant 9.99999997E-7 : f32
    %417 = vector.broadcast %cst_121 : f32 to vector<1x1xf32>
    %418 = arith.addf %414, %417 : vector<1x1xf32>
    %419 = math.rsqrt %418 : vector<1x1xf32>
    %420 = vector.broadcast %419 : vector<1x1xf32> to vector<1x32xf32>
    %421 = arith.mulf %416, %420 : vector<1x32xf32>
    %422 = arith.mulf %421, %395 : vector<1x32xf32>
    %423 = arith.addf %422, %396 : vector<1x32xf32>
    %424 = vector.extract_strided_slice %4 {offsets = [0, 0], sizes = [1, 32], strides = [1, 1]} : vector<3x128xf32> to vector<1x32xf32>
    %425 = vector.extract_strided_slice %4 {offsets = [1, 0], sizes = [1, 32], strides = [1, 1]} : vector<3x128xf32> to vector<1x32xf32>
    %cst_122 = arith.constant dense<0.000000e+00> : vector<1xf32>
    %426 = vector.multi_reduction <add>, %423, %cst_122 [1] : vector<1x32xf32> to vector<1xf32>
    %427 = vector.shape_cast %426 : vector<1xf32> to vector<1x1xf32>
    %cst_123 = arith.constant 3.200000e+01 : f32
    %428 = vector.broadcast %cst_123 : f32 to vector<1x1xf32>
    %429 = arith.divf %427, %428 : vector<1x1xf32>
    %430 = vector.broadcast %429 : vector<1x1xf32> to vector<1x32xf32>
    %431 = arith.subf %423, %430 : vector<1x32xf32>
    %432 = arith.mulf %431, %431 : vector<1x32xf32>
    %cst_124 = arith.constant dense<0.000000e+00> : vector<1xf32>
    %433 = vector.multi_reduction <add>, %432, %cst_124 [1] : vector<1x32xf32> to vector<1xf32>
    %434 = vector.shape_cast %433 : vector<1xf32> to vector<1x1xf32>
    %cst_125 = arith.constant 3.200000e+01 : f32
    %435 = vector.broadcast %cst_125 : f32 to vector<1x1xf32>
    %436 = arith.divf %434, %435 : vector<1x1xf32>
    %437 = vector.broadcast %429 : vector<1x1xf32> to vector<1x32xf32>
    %438 = arith.subf %423, %437 : vector<1x32xf32>
    %cst_126 = arith.constant 9.99999997E-7 : f32
    %439 = vector.broadcast %cst_126 : f32 to vector<1x1xf32>
    %440 = arith.addf %436, %439 : vector<1x1xf32>
    %441 = math.rsqrt %440 : vector<1x1xf32>
    %442 = vector.broadcast %441 : vector<1x1xf32> to vector<1x32xf32>
    %443 = arith.mulf %438, %442 : vector<1x32xf32>
    %444 = arith.mulf %443, %424 : vector<1x32xf32>
    %445 = arith.addf %444, %425 : vector<1x32xf32>
    %cst_127 = arith.constant dense<0.000000e+00> : vector<1x128xf32>
    %446 = tpu.matmul %445, %5, %cst_127 {dimension_numbers = #tpu.dot_dimension_numbers<[1], [0], [0], [1], [0, 0, 1, 1], [], []>} : vector<1x32xf32>, vector<32x128xf32>, vector<1x128xf32> -> vector<1x128xf32>
    %447 = vector.extract_strided_slice %4 {offsets = [2, 0], sizes = [1, 128], strides = [1, 1]} : vector<3x128xf32> to vector<1x128xf32>
    %448 = arith.addf %446, %447 : vector<1x128xf32>
    %449 = vector.extract_strided_slice %0 {offsets = [1, 0, 0], sizes = [1, 8, 32], strides = [1, 1, 1]} : vector<2x8x32xf32> to vector<1x8x32xf32>
    %450 = vector.shape_cast %449 : vector<1x8x32xf32> to vector<8x32xf32>
    %451 = vector.extract_strided_slice %1 {offsets = [1, 0, 0], sizes = [1, 16, 32], strides = [1, 1, 1]} : vector<2x16x32xf32> to vector<1x16x32xf32>
    %452 = vector.shape_cast %451 : vector<1x16x32xf32> to vector<16x32xf32>
    %453 = vector.extract_strided_slice %2 {offsets = [1, 0], sizes = [1, 8], strides = [1, 1]} : vector<2x8xf32> to vector<1x8xf32>
    %454 = vector.broadcast %453 : vector<1x8xf32> to vector<8x8xf32>
    %455 = arith.addf %11, %454 : vector<8x8xf32>
    %456 = tpu.concatenate %455, %455, %455, %455 in 0 : vector<8x8xf32>, vector<8x8xf32>, vector<8x8xf32>, vector<8x8xf32> -> vector<32x8xf32>
    %457 = vector.extract_strided_slice %3 {offsets = [1, 0], sizes = [1, 16], strides = [1, 1]} : vector<2x16xf32> to vector<1x16xf32>
    %c0_128 = arith.constant 0 : index
    %c0_129 = arith.constant 0 : index
    %c0_130 = arith.constant 0 : index
    %458 = vector.load %arg4[%c0_128, %c0_129, %c0_130] : memref<2x32x320xf32, #tpu.memory_space<vmem>>, vector<1x32x320xf32>
    %459 = vector.shape_cast %458 : vector<1x32x320xf32> to vector<32x320xf32>
    %c0_131 = arith.constant 0 : index
    %c0_132 = arith.constant 0 : index
    %c0_133 = arith.constant 0 : index
    %460 = vector.load %arg5[%c0_131, %c0_132, %c0_133] : memref<2x64x32xf32, #tpu.memory_space<vmem>>, vector<1x64x32xf32>
    %461 = vector.shape_cast %460 : vector<1x64x32xf32> to vector<64x32xf32>
    %c0_134 = arith.constant 0 : index
    %c0_135 = arith.constant 0 : index
    %c0_136 = arith.constant 0 : index
    %462 = vector.load %arg6[%c0_134, %c0_135, %c0_136] : memref<2x12x96xf32, #tpu.memory_space<vmem>>, vector<1x12x96xf32>
    %463 = vector.shape_cast %462 : vector<1x12x96xf32> to vector<12x96xf32>
    %464 = vector.extract_strided_slice %459 {offsets = [0, 0], sizes = [32, 96], strides = [1, 1]} : vector<32x320xf32> to vector<32x96xf32>
    %465 = vector.extract_strided_slice %463 {offsets = [0, 0], sizes = [1, 96], strides = [1, 1]} : vector<12x96xf32> to vector<1x96xf32>
    %466 = vector.extract_strided_slice %459 {offsets = [0, 96], sizes = [32, 32], strides = [1, 1]} : vector<32x320xf32> to vector<32x32xf32>
    %467 = vector.extract_strided_slice %463 {offsets = [1, 0], sizes = [1, 32], strides = [1, 1]} : vector<12x96xf32> to vector<1x32xf32>
    %468 = vector.extract_strided_slice %463 {offsets = [2, 0], sizes = [1, 32], strides = [1, 1]} : vector<12x96xf32> to vector<1x32xf32>
    %469 = vector.extract_strided_slice %463 {offsets = [3, 0], sizes = [1, 32], strides = [1, 1]} : vector<12x96xf32> to vector<1x32xf32>
    %cst_137 = arith.constant dense<0.000000e+00> : vector<8x96xf32>
    %470 = tpu.matmul %450, %464, %cst_137 {dimension_numbers = #tpu.dot_dimension_numbers<[1], [0], [0], [1], [0, 0, 1, 1], [], []>} : vector<8x32xf32>, vector<32x96xf32>, vector<8x96xf32> -> vector<8x96xf32>
    %471 = vector.broadcast %465 : vector<1x96xf32> to vector<8x96xf32>
    %472 = arith.addf %470, %471 : vector<8x96xf32>
    %473 = vector.extract_strided_slice %472 {offsets = [0, 0], sizes = [8, 32], strides = [1, 1]} : vector<8x96xf32> to vector<8x32xf32>
    %474 = vector.extract_strided_slice %472 {offsets = [0, 32], sizes = [8, 32], strides = [1, 1]} : vector<8x96xf32> to vector<8x32xf32>
    %475 = vector.extract_strided_slice %472 {offsets = [0, 64], sizes = [8, 32], strides = [1, 1]} : vector<8x96xf32> to vector<8x32xf32>
    %cst_138 = arith.constant 0.353553385 : f32
    %476 = vector.broadcast %cst_138 : f32 to vector<8x32xf32>
    %477 = arith.mulf %473, %476 : vector<8x32xf32>
    %478 = vector.extract_strided_slice %477 {offsets = [0, 0], sizes = [8, 8], strides = [1, 1]} : vector<8x32xf32> to vector<8x8xf32>
    %479 = vector.extract_strided_slice %474 {offsets = [0, 0], sizes = [8, 8], strides = [1, 1]} : vector<8x32xf32> to vector<8x8xf32>
    %cst_139 = arith.constant dense<0.000000e+00> : vector<8x8xf32>
    %480 = tpu.matmul %478, %479, %cst_139 {dimension_numbers = #tpu.dot_dimension_numbers<[1], [1], [0], [0], [0, 0, 1, 0], [], []>} : vector<8x8xf32>, vector<8x8xf32>, vector<8x8xf32> -> vector<8x8xf32>
    %481 = vector.extract_strided_slice %477 {offsets = [0, 8], sizes = [8, 8], strides = [1, 1]} : vector<8x32xf32> to vector<8x8xf32>
    %482 = vector.extract_strided_slice %474 {offsets = [0, 8], sizes = [8, 8], strides = [1, 1]} : vector<8x32xf32> to vector<8x8xf32>
    %cst_140 = arith.constant dense<0.000000e+00> : vector<8x8xf32>
    %483 = tpu.matmul %481, %482, %cst_140 {dimension_numbers = #tpu.dot_dimension_numbers<[1], [1], [0], [0], [0, 0, 1, 0], [], []>} : vector<8x8xf32>, vector<8x8xf32>, vector<8x8xf32> -> vector<8x8xf32>
    %484 = vector.extract_strided_slice %477 {offsets = [0, 16], sizes = [8, 8], strides = [1, 1]} : vector<8x32xf32> to vector<8x8xf32>
    %485 = vector.extract_strided_slice %474 {offsets = [0, 16], sizes = [8, 8], strides = [1, 1]} : vector<8x32xf32> to vector<8x8xf32>
    %cst_141 = arith.constant dense<0.000000e+00> : vector<8x8xf32>
    %486 = tpu.matmul %484, %485, %cst_141 {dimension_numbers = #tpu.dot_dimension_numbers<[1], [1], [0], [0], [0, 0, 1, 0], [], []>} : vector<8x8xf32>, vector<8x8xf32>, vector<8x8xf32> -> vector<8x8xf32>
    %487 = vector.extract_strided_slice %477 {offsets = [0, 24], sizes = [8, 8], strides = [1, 1]} : vector<8x32xf32> to vector<8x8xf32>
    %488 = vector.extract_strided_slice %474 {offsets = [0, 24], sizes = [8, 8], strides = [1, 1]} : vector<8x32xf32> to vector<8x8xf32>
    %cst_142 = arith.constant dense<0.000000e+00> : vector<8x8xf32>
    %489 = tpu.matmul %487, %488, %cst_142 {dimension_numbers = #tpu.dot_dimension_numbers<[1], [1], [0], [0], [0, 0, 1, 0], [], []>} : vector<8x8xf32>, vector<8x8xf32>, vector<8x8xf32> -> vector<8x8xf32>
    %490 = tpu.concatenate %480, %483, %486, %489 in 0 : vector<8x8xf32>, vector<8x8xf32>, vector<8x8xf32>, vector<8x8xf32> -> vector<32x8xf32>
    %491 = arith.addf %490, %456 : vector<32x8xf32>
    %cst_143 = arith.constant dense<0xFF800000> : vector<32xf32>
    %492 = vector.multi_reduction <maximumf>, %491, %cst_143 [1] : vector<32x8xf32> to vector<32xf32>
    %493 = vector.shape_cast %492 : vector<32xf32> to vector<32x1xf32>
    %494 = vector.broadcast %493 : vector<32x1xf32> to vector<32x8xf32>
    %495 = arith.subf %491, %494 : vector<32x8xf32>
    %496 = math.exp %495 : vector<32x8xf32>
    %cst_144 = arith.constant dense<0.000000e+00> : vector<32xf32>
    %497 = vector.multi_reduction <add>, %496, %cst_144 [1] : vector<32x8xf32> to vector<32xf32>
    %498 = vector.shape_cast %497 : vector<32xf32> to vector<32x1xf32>
    %499 = tpu.reciprocal %498 {approx = true} : vector<32x1xf32> -> vector<32x1xf32>
    %500 = vector.broadcast %499 : vector<32x1xf32> to vector<32x8xf32>
    %501 = arith.mulf %496, %500 : vector<32x8xf32>
    %502 = vector.extract_strided_slice %501 {offsets = [0, 0], sizes = [8, 8], strides = [1, 1]} : vector<32x8xf32> to vector<8x8xf32>
    %503 = vector.extract_strided_slice %475 {offsets = [0, 0], sizes = [8, 8], strides = [1, 1]} : vector<8x32xf32> to vector<8x8xf32>
    %cst_145 = arith.constant dense<0.000000e+00> : vector<8x8xf32>
    %504 = tpu.matmul %502, %503, %cst_145 {dimension_numbers = #tpu.dot_dimension_numbers<[1], [0], [0], [1], [0, 0, 1, 1], [], []>} : vector<8x8xf32>, vector<8x8xf32>, vector<8x8xf32> -> vector<8x8xf32>
    %505 = vector.extract_strided_slice %501 {offsets = [8, 0], sizes = [8, 8], strides = [1, 1]} : vector<32x8xf32> to vector<8x8xf32>
    %506 = vector.extract_strided_slice %475 {offsets = [0, 8], sizes = [8, 8], strides = [1, 1]} : vector<8x32xf32> to vector<8x8xf32>
    %cst_146 = arith.constant dense<0.000000e+00> : vector<8x8xf32>
    %507 = tpu.matmul %505, %506, %cst_146 {dimension_numbers = #tpu.dot_dimension_numbers<[1], [0], [0], [1], [0, 0, 1, 1], [], []>} : vector<8x8xf32>, vector<8x8xf32>, vector<8x8xf32> -> vector<8x8xf32>
    %508 = vector.extract_strided_slice %501 {offsets = [16, 0], sizes = [8, 8], strides = [1, 1]} : vector<32x8xf32> to vector<8x8xf32>
    %509 = vector.extract_strided_slice %475 {offsets = [0, 16], sizes = [8, 8], strides = [1, 1]} : vector<8x32xf32> to vector<8x8xf32>
    %cst_147 = arith.constant dense<0.000000e+00> : vector<8x8xf32>
    %510 = tpu.matmul %508, %509, %cst_147 {dimension_numbers = #tpu.dot_dimension_numbers<[1], [0], [0], [1], [0, 0, 1, 1], [], []>} : vector<8x8xf32>, vector<8x8xf32>, vector<8x8xf32> -> vector<8x8xf32>
    %511 = vector.extract_strided_slice %501 {offsets = [24, 0], sizes = [8, 8], strides = [1, 1]} : vector<32x8xf32> to vector<8x8xf32>
    %512 = vector.extract_strided_slice %475 {offsets = [0, 24], sizes = [8, 8], strides = [1, 1]} : vector<8x32xf32> to vector<8x8xf32>
    %cst_148 = arith.constant dense<0.000000e+00> : vector<8x8xf32>
    %513 = tpu.matmul %511, %512, %cst_148 {dimension_numbers = #tpu.dot_dimension_numbers<[1], [0], [0], [1], [0, 0, 1, 1], [], []>} : vector<8x8xf32>, vector<8x8xf32>, vector<8x8xf32> -> vector<8x8xf32>
    %514 = tpu.concatenate %504, %507, %510, %513 in 1 : vector<8x8xf32>, vector<8x8xf32>, vector<8x8xf32>, vector<8x8xf32> -> vector<8x32xf32>
    %cst_149 = arith.constant dense<0.000000e+00> : vector<8x32xf32>
    %515 = tpu.matmul %514, %466, %cst_149 {dimension_numbers = #tpu.dot_dimension_numbers<[1], [0], [0], [1], [0, 0, 1, 1], [], []>} : vector<8x32xf32>, vector<32x32xf32>, vector<8x32xf32> -> vector<8x32xf32>
    %516 = vector.broadcast %467 : vector<1x32xf32> to vector<8x32xf32>
    %517 = arith.addf %515, %516 : vector<8x32xf32>
    %518 = arith.addf %517, %450 : vector<8x32xf32>
    %cst_150 = arith.constant dense<0.000000e+00> : vector<8xf32>
    %519 = vector.multi_reduction <add>, %518, %cst_150 [1] : vector<8x32xf32> to vector<8xf32>
    %520 = vector.shape_cast %519 : vector<8xf32> to vector<8x1xf32>
    %cst_151 = arith.constant 3.200000e+01 : f32
    %521 = vector.broadcast %cst_151 : f32 to vector<8x1xf32>
    %522 = arith.divf %520, %521 : vector<8x1xf32>
    %523 = vector.broadcast %522 : vector<8x1xf32> to vector<8x32xf32>
    %524 = arith.subf %518, %523 : vector<8x32xf32>
    %525 = arith.mulf %524, %524 : vector<8x32xf32>
    %cst_152 = arith.constant dense<0.000000e+00> : vector<8xf32>
    %526 = vector.multi_reduction <add>, %525, %cst_152 [1] : vector<8x32xf32> to vector<8xf32>
    %527 = vector.shape_cast %526 : vector<8xf32> to vector<8x1xf32>
    %cst_153 = arith.constant 3.200000e+01 : f32
    %528 = vector.broadcast %cst_153 : f32 to vector<8x1xf32>
    %529 = arith.divf %527, %528 : vector<8x1xf32>
    %530 = vector.broadcast %522 : vector<8x1xf32> to vector<8x32xf32>
    %531 = arith.subf %518, %530 : vector<8x32xf32>
    %cst_154 = arith.constant 9.99999997E-7 : f32
    %532 = vector.broadcast %cst_154 : f32 to vector<8x1xf32>
    %533 = arith.addf %529, %532 : vector<8x1xf32>
    %534 = math.rsqrt %533 : vector<8x1xf32>
    %535 = vector.broadcast %534 : vector<8x1xf32> to vector<8x32xf32>
    %536 = arith.mulf %531, %535 : vector<8x32xf32>
    %537 = vector.broadcast %468 : vector<1x32xf32> to vector<8x32xf32>
    %538 = arith.mulf %536, %537 : vector<8x32xf32>
    %539 = vector.broadcast %469 : vector<1x32xf32> to vector<8x32xf32>
    %540 = arith.addf %538, %539 : vector<8x32xf32>
    %541 = vector.extract_strided_slice %459 {offsets = [0, 128], sizes = [32, 96], strides = [1, 1]} : vector<32x320xf32> to vector<32x96xf32>
    %542 = vector.extract_strided_slice %463 {offsets = [4, 0], sizes = [1, 96], strides = [1, 1]} : vector<12x96xf32> to vector<1x96xf32>
    %543 = vector.extract_strided_slice %459 {offsets = [0, 224], sizes = [32, 32], strides = [1, 1]} : vector<32x320xf32> to vector<32x32xf32>
    %544 = vector.extract_strided_slice %463 {offsets = [5, 0], sizes = [1, 32], strides = [1, 1]} : vector<12x96xf32> to vector<1x32xf32>
    %545 = vector.extract_strided_slice %463 {offsets = [6, 0], sizes = [1, 32], strides = [1, 1]} : vector<12x96xf32> to vector<1x32xf32>
    %546 = vector.extract_strided_slice %463 {offsets = [7, 0], sizes = [1, 32], strides = [1, 1]} : vector<12x96xf32> to vector<1x32xf32>
    %547 = vector.extract_strided_slice %541 {offsets = [0, 0], sizes = [32, 32], strides = [1, 1]} : vector<32x96xf32> to vector<32x32xf32>
    %cst_155 = arith.constant dense<0.000000e+00> : vector<8x32xf32>
    %548 = tpu.matmul %540, %547, %cst_155 {dimension_numbers = #tpu.dot_dimension_numbers<[1], [0], [0], [1], [0, 0, 1, 1], [], []>} : vector<8x32xf32>, vector<32x32xf32>, vector<8x32xf32> -> vector<8x32xf32>
    %549 = vector.extract_strided_slice %542 {offsets = [0, 0], sizes = [1, 32], strides = [1, 1]} : vector<1x96xf32> to vector<1x32xf32>
    %550 = vector.broadcast %549 : vector<1x32xf32> to vector<8x32xf32>
    %551 = arith.addf %548, %550 : vector<8x32xf32>
    %552 = vector.extract_strided_slice %541 {offsets = [0, 32], sizes = [32, 64], strides = [1, 1]} : vector<32x96xf32> to vector<32x64xf32>
    %cst_156 = arith.constant dense<0.000000e+00> : vector<16x64xf32>
    %553 = tpu.matmul %452, %552, %cst_156 {dimension_numbers = #tpu.dot_dimension_numbers<[1], [0], [0], [1], [0, 0, 1, 1], [], []>} : vector<16x32xf32>, vector<32x64xf32>, vector<16x64xf32> -> vector<16x64xf32>
    %554 = vector.extract_strided_slice %542 {offsets = [0, 32], sizes = [1, 64], strides = [1, 1]} : vector<1x96xf32> to vector<1x64xf32>
    %555 = vector.broadcast %554 : vector<1x64xf32> to vector<16x64xf32>
    %556 = arith.addf %553, %555 : vector<16x64xf32>
    %557 = vector.extract_strided_slice %556 {offsets = [0, 0], sizes = [16, 32], strides = [1, 1]} : vector<16x64xf32> to vector<16x32xf32>
    %558 = vector.extract_strided_slice %556 {offsets = [0, 32], sizes = [16, 32], strides = [1, 1]} : vector<16x64xf32> to vector<16x32xf32>
    %cst_157 = arith.constant 0.353553385 : f32
    %559 = vector.broadcast %cst_157 : f32 to vector<8x32xf32>
    %560 = arith.mulf %551, %559 : vector<8x32xf32>
    %561 = vector.extract_strided_slice %560 {offsets = [0, 0], sizes = [8, 8], strides = [1, 1]} : vector<8x32xf32> to vector<8x8xf32>
    %562 = vector.extract_strided_slice %557 {offsets = [0, 0], sizes = [16, 8], strides = [1, 1]} : vector<16x32xf32> to vector<16x8xf32>
    %cst_158 = arith.constant dense<0.000000e+00> : vector<8x16xf32>
    %563 = tpu.matmul %561, %562, %cst_158 {dimension_numbers = #tpu.dot_dimension_numbers<[1], [1], [0], [0], [0, 0, 1, 0], [], []>} : vector<8x8xf32>, vector<16x8xf32>, vector<8x16xf32> -> vector<8x16xf32>
    %564 = vector.extract_strided_slice %560 {offsets = [0, 8], sizes = [8, 8], strides = [1, 1]} : vector<8x32xf32> to vector<8x8xf32>
    %565 = vector.extract_strided_slice %557 {offsets = [0, 8], sizes = [16, 8], strides = [1, 1]} : vector<16x32xf32> to vector<16x8xf32>
    %cst_159 = arith.constant dense<0.000000e+00> : vector<8x16xf32>
    %566 = tpu.matmul %564, %565, %cst_159 {dimension_numbers = #tpu.dot_dimension_numbers<[1], [1], [0], [0], [0, 0, 1, 0], [], []>} : vector<8x8xf32>, vector<16x8xf32>, vector<8x16xf32> -> vector<8x16xf32>
    %567 = vector.extract_strided_slice %560 {offsets = [0, 16], sizes = [8, 8], strides = [1, 1]} : vector<8x32xf32> to vector<8x8xf32>
    %568 = vector.extract_strided_slice %557 {offsets = [0, 16], sizes = [16, 8], strides = [1, 1]} : vector<16x32xf32> to vector<16x8xf32>
    %cst_160 = arith.constant dense<0.000000e+00> : vector<8x16xf32>
    %569 = tpu.matmul %567, %568, %cst_160 {dimension_numbers = #tpu.dot_dimension_numbers<[1], [1], [0], [0], [0, 0, 1, 0], [], []>} : vector<8x8xf32>, vector<16x8xf32>, vector<8x16xf32> -> vector<8x16xf32>
    %570 = vector.extract_strided_slice %560 {offsets = [0, 24], sizes = [8, 8], strides = [1, 1]} : vector<8x32xf32> to vector<8x8xf32>
    %571 = vector.extract_strided_slice %557 {offsets = [0, 24], sizes = [16, 8], strides = [1, 1]} : vector<16x32xf32> to vector<16x8xf32>
    %cst_161 = arith.constant dense<0.000000e+00> : vector<8x16xf32>
    %572 = tpu.matmul %570, %571, %cst_161 {dimension_numbers = #tpu.dot_dimension_numbers<[1], [1], [0], [0], [0, 0, 1, 0], [], []>} : vector<8x8xf32>, vector<16x8xf32>, vector<8x16xf32> -> vector<8x16xf32>
    %573 = tpu.concatenate %563, %566, %569, %572 in 0 : vector<8x16xf32>, vector<8x16xf32>, vector<8x16xf32>, vector<8x16xf32> -> vector<32x16xf32>
    %574 = vector.broadcast %457 : vector<1x16xf32> to vector<32x16xf32>
    %575 = arith.addf %573, %574 : vector<32x16xf32>
    %cst_162 = arith.constant dense<0xFF800000> : vector<32xf32>
    %576 = vector.multi_reduction <maximumf>, %575, %cst_162 [1] : vector<32x16xf32> to vector<32xf32>
    %577 = vector.shape_cast %576 : vector<32xf32> to vector<32x1xf32>
    %578 = vector.broadcast %577 : vector<32x1xf32> to vector<32x16xf32>
    %579 = arith.subf %575, %578 : vector<32x16xf32>
    %580 = math.exp %579 : vector<32x16xf32>
    %cst_163 = arith.constant dense<0.000000e+00> : vector<32xf32>
    %581 = vector.multi_reduction <add>, %580, %cst_163 [1] : vector<32x16xf32> to vector<32xf32>
    %582 = vector.shape_cast %581 : vector<32xf32> to vector<32x1xf32>
    %583 = tpu.reciprocal %582 {approx = true} : vector<32x1xf32> -> vector<32x1xf32>
    %584 = vector.broadcast %583 : vector<32x1xf32> to vector<32x16xf32>
    %585 = arith.mulf %580, %584 : vector<32x16xf32>
    %586 = vector.extract_strided_slice %585 {offsets = [0, 0], sizes = [8, 16], strides = [1, 1]} : vector<32x16xf32> to vector<8x16xf32>
    %587 = vector.extract_strided_slice %558 {offsets = [0, 0], sizes = [16, 8], strides = [1, 1]} : vector<16x32xf32> to vector<16x8xf32>
    %cst_164 = arith.constant dense<0.000000e+00> : vector<8x8xf32>
    %588 = tpu.matmul %586, %587, %cst_164 {dimension_numbers = #tpu.dot_dimension_numbers<[1], [0], [0], [1], [0, 0, 1, 1], [], []>} : vector<8x16xf32>, vector<16x8xf32>, vector<8x8xf32> -> vector<8x8xf32>
    %589 = vector.extract_strided_slice %585 {offsets = [8, 0], sizes = [8, 16], strides = [1, 1]} : vector<32x16xf32> to vector<8x16xf32>
    %590 = vector.extract_strided_slice %558 {offsets = [0, 8], sizes = [16, 8], strides = [1, 1]} : vector<16x32xf32> to vector<16x8xf32>
    %cst_165 = arith.constant dense<0.000000e+00> : vector<8x8xf32>
    %591 = tpu.matmul %589, %590, %cst_165 {dimension_numbers = #tpu.dot_dimension_numbers<[1], [0], [0], [1], [0, 0, 1, 1], [], []>} : vector<8x16xf32>, vector<16x8xf32>, vector<8x8xf32> -> vector<8x8xf32>
    %592 = vector.extract_strided_slice %585 {offsets = [16, 0], sizes = [8, 16], strides = [1, 1]} : vector<32x16xf32> to vector<8x16xf32>
    %593 = vector.extract_strided_slice %558 {offsets = [0, 16], sizes = [16, 8], strides = [1, 1]} : vector<16x32xf32> to vector<16x8xf32>
    %cst_166 = arith.constant dense<0.000000e+00> : vector<8x8xf32>
    %594 = tpu.matmul %592, %593, %cst_166 {dimension_numbers = #tpu.dot_dimension_numbers<[1], [0], [0], [1], [0, 0, 1, 1], [], []>} : vector<8x16xf32>, vector<16x8xf32>, vector<8x8xf32> -> vector<8x8xf32>
    %595 = vector.extract_strided_slice %585 {offsets = [24, 0], sizes = [8, 16], strides = [1, 1]} : vector<32x16xf32> to vector<8x16xf32>
    %596 = vector.extract_strided_slice %558 {offsets = [0, 24], sizes = [16, 8], strides = [1, 1]} : vector<16x32xf32> to vector<16x8xf32>
    %cst_167 = arith.constant dense<0.000000e+00> : vector<8x8xf32>
    %597 = tpu.matmul %595, %596, %cst_167 {dimension_numbers = #tpu.dot_dimension_numbers<[1], [0], [0], [1], [0, 0, 1, 1], [], []>} : vector<8x16xf32>, vector<16x8xf32>, vector<8x8xf32> -> vector<8x8xf32>
    %598 = tpu.concatenate %588, %591, %594, %597 in 1 : vector<8x8xf32>, vector<8x8xf32>, vector<8x8xf32>, vector<8x8xf32> -> vector<8x32xf32>
    %cst_168 = arith.constant dense<0.000000e+00> : vector<8x32xf32>
    %599 = tpu.matmul %598, %543, %cst_168 {dimension_numbers = #tpu.dot_dimension_numbers<[1], [0], [0], [1], [0, 0, 1, 1], [], []>} : vector<8x32xf32>, vector<32x32xf32>, vector<8x32xf32> -> vector<8x32xf32>
    %600 = vector.broadcast %544 : vector<1x32xf32> to vector<8x32xf32>
    %601 = arith.addf %599, %600 : vector<8x32xf32>
    %602 = arith.addf %601, %540 : vector<8x32xf32>
    %cst_169 = arith.constant dense<0.000000e+00> : vector<8xf32>
    %603 = vector.multi_reduction <add>, %602, %cst_169 [1] : vector<8x32xf32> to vector<8xf32>
    %604 = vector.shape_cast %603 : vector<8xf32> to vector<8x1xf32>
    %cst_170 = arith.constant 3.200000e+01 : f32
    %605 = vector.broadcast %cst_170 : f32 to vector<8x1xf32>
    %606 = arith.divf %604, %605 : vector<8x1xf32>
    %607 = vector.broadcast %606 : vector<8x1xf32> to vector<8x32xf32>
    %608 = arith.subf %602, %607 : vector<8x32xf32>
    %609 = arith.mulf %608, %608 : vector<8x32xf32>
    %cst_171 = arith.constant dense<0.000000e+00> : vector<8xf32>
    %610 = vector.multi_reduction <add>, %609, %cst_171 [1] : vector<8x32xf32> to vector<8xf32>
    %611 = vector.shape_cast %610 : vector<8xf32> to vector<8x1xf32>
    %cst_172 = arith.constant 3.200000e+01 : f32
    %612 = vector.broadcast %cst_172 : f32 to vector<8x1xf32>
    %613 = arith.divf %611, %612 : vector<8x1xf32>
    %614 = vector.broadcast %606 : vector<8x1xf32> to vector<8x32xf32>
    %615 = arith.subf %602, %614 : vector<8x32xf32>
    %cst_173 = arith.constant 9.99999997E-7 : f32
    %616 = vector.broadcast %cst_173 : f32 to vector<8x1xf32>
    %617 = arith.addf %613, %616 : vector<8x1xf32>
    %618 = math.rsqrt %617 : vector<8x1xf32>
    %619 = vector.broadcast %618 : vector<8x1xf32> to vector<8x32xf32>
    %620 = arith.mulf %615, %619 : vector<8x32xf32>
    %621 = vector.broadcast %545 : vector<1x32xf32> to vector<8x32xf32>
    %622 = arith.mulf %620, %621 : vector<8x32xf32>
    %623 = vector.broadcast %546 : vector<1x32xf32> to vector<8x32xf32>
    %624 = arith.addf %622, %623 : vector<8x32xf32>
    %625 = vector.extract_strided_slice %459 {offsets = [0, 256], sizes = [32, 64], strides = [1, 1]} : vector<32x320xf32> to vector<32x64xf32>
    %626 = vector.extract_strided_slice %463 {offsets = [8, 0], sizes = [1, 64], strides = [1, 1]} : vector<12x96xf32> to vector<1x64xf32>
    %627 = vector.extract_strided_slice %463 {offsets = [9, 0], sizes = [1, 32], strides = [1, 1]} : vector<12x96xf32> to vector<1x32xf32>
    %628 = vector.extract_strided_slice %463 {offsets = [10, 0], sizes = [1, 32], strides = [1, 1]} : vector<12x96xf32> to vector<1x32xf32>
    %629 = vector.extract_strided_slice %463 {offsets = [11, 0], sizes = [1, 32], strides = [1, 1]} : vector<12x96xf32> to vector<1x32xf32>
    %cst_174 = arith.constant dense<0.000000e+00> : vector<8x64xf32>
    %630 = tpu.matmul %624, %625, %cst_174 {dimension_numbers = #tpu.dot_dimension_numbers<[1], [0], [0], [1], [0, 0, 1, 1], [], []>} : vector<8x32xf32>, vector<32x64xf32>, vector<8x64xf32> -> vector<8x64xf32>
    %631 = vector.broadcast %626 : vector<1x64xf32> to vector<8x64xf32>
    %632 = arith.addf %630, %631 : vector<8x64xf32>
    %cst_175 = arith.constant 0.000000e+00 : f32
    %633 = vector.broadcast %cst_175 : f32 to vector<8x64xf32>
    %634 = arith.maximumf %632, %633 : vector<8x64xf32>
    %cst_176 = arith.constant dense<0.000000e+00> : vector<8x32xf32>
    %635 = tpu.matmul %634, %461, %cst_176 {dimension_numbers = #tpu.dot_dimension_numbers<[1], [0], [0], [1], [0, 0, 1, 1], [], []>} : vector<8x64xf32>, vector<64x32xf32>, vector<8x32xf32> -> vector<8x32xf32>
    %636 = vector.broadcast %627 : vector<1x32xf32> to vector<8x32xf32>
    %637 = arith.addf %635, %636 : vector<8x32xf32>
    %638 = arith.addf %637, %624 : vector<8x32xf32>
    %cst_177 = arith.constant dense<0.000000e+00> : vector<8xf32>
    %639 = vector.multi_reduction <add>, %638, %cst_177 [1] : vector<8x32xf32> to vector<8xf32>
    %640 = vector.shape_cast %639 : vector<8xf32> to vector<8x1xf32>
    %cst_178 = arith.constant 3.200000e+01 : f32
    %641 = vector.broadcast %cst_178 : f32 to vector<8x1xf32>
    %642 = arith.divf %640, %641 : vector<8x1xf32>
    %643 = vector.broadcast %642 : vector<8x1xf32> to vector<8x32xf32>
    %644 = arith.subf %638, %643 : vector<8x32xf32>
    %645 = arith.mulf %644, %644 : vector<8x32xf32>
    %cst_179 = arith.constant dense<0.000000e+00> : vector<8xf32>
    %646 = vector.multi_reduction <add>, %645, %cst_179 [1] : vector<8x32xf32> to vector<8xf32>
    %647 = vector.shape_cast %646 : vector<8xf32> to vector<8x1xf32>
    %cst_180 = arith.constant 3.200000e+01 : f32
    %648 = vector.broadcast %cst_180 : f32 to vector<8x1xf32>
    %649 = arith.divf %647, %648 : vector<8x1xf32>
    %650 = vector.broadcast %642 : vector<8x1xf32> to vector<8x32xf32>
    %651 = arith.subf %638, %650 : vector<8x32xf32>
    %cst_181 = arith.constant 9.99999997E-7 : f32
    %652 = vector.broadcast %cst_181 : f32 to vector<8x1xf32>
    %653 = arith.addf %649, %652 : vector<8x1xf32>
    %654 = math.rsqrt %653 : vector<8x1xf32>
    %655 = vector.broadcast %654 : vector<8x1xf32> to vector<8x32xf32>
    %656 = arith.mulf %651, %655 : vector<8x32xf32>
    %657 = vector.broadcast %628 : vector<1x32xf32> to vector<8x32xf32>
    %658 = arith.mulf %656, %657 : vector<8x32xf32>
    %659 = vector.broadcast %629 : vector<1x32xf32> to vector<8x32xf32>
    %660 = arith.addf %658, %659 : vector<8x32xf32>
    %c1_182 = arith.constant 1 : index
    %c0_183 = arith.constant 0 : index
    %c0_184 = arith.constant 0 : index
    %661 = vector.load %arg4[%c1_182, %c0_183, %c0_184] : memref<2x32x320xf32, #tpu.memory_space<vmem>>, vector<1x32x320xf32>
    %662 = vector.shape_cast %661 : vector<1x32x320xf32> to vector<32x320xf32>
    %c1_185 = arith.constant 1 : index
    %c0_186 = arith.constant 0 : index
    %c0_187 = arith.constant 0 : index
    %663 = vector.load %arg5[%c1_185, %c0_186, %c0_187] : memref<2x64x32xf32, #tpu.memory_space<vmem>>, vector<1x64x32xf32>
    %664 = vector.shape_cast %663 : vector<1x64x32xf32> to vector<64x32xf32>
    %c1_188 = arith.constant 1 : index
    %c0_189 = arith.constant 0 : index
    %c0_190 = arith.constant 0 : index
    %665 = vector.load %arg6[%c1_188, %c0_189, %c0_190] : memref<2x12x96xf32, #tpu.memory_space<vmem>>, vector<1x12x96xf32>
    %666 = vector.shape_cast %665 : vector<1x12x96xf32> to vector<12x96xf32>
    %667 = vector.extract_strided_slice %660 {offsets = [3, 0], sizes = [1, 32], strides = [1, 1]} : vector<8x32xf32> to vector<1x32xf32>
    %668 = vector.extract_strided_slice %455 {offsets = [3, 0], sizes = [1, 8], strides = [1, 1]} : vector<8x8xf32> to vector<1x8xf32>
    %669 = tpu.concatenate %668, %668, %668, %668 in 0 : vector<1x8xf32>, vector<1x8xf32>, vector<1x8xf32>, vector<1x8xf32> -> vector<4x8xf32>
    %670 = vector.extract_strided_slice %662 {offsets = [0, 0], sizes = [32, 96], strides = [1, 1]} : vector<32x320xf32> to vector<32x96xf32>
    %671 = vector.extract_strided_slice %666 {offsets = [0, 0], sizes = [1, 96], strides = [1, 1]} : vector<12x96xf32> to vector<1x96xf32>
    %672 = vector.extract_strided_slice %662 {offsets = [0, 96], sizes = [32, 32], strides = [1, 1]} : vector<32x320xf32> to vector<32x32xf32>
    %673 = vector.extract_strided_slice %666 {offsets = [1, 0], sizes = [1, 32], strides = [1, 1]} : vector<12x96xf32> to vector<1x32xf32>
    %674 = vector.extract_strided_slice %666 {offsets = [2, 0], sizes = [1, 32], strides = [1, 1]} : vector<12x96xf32> to vector<1x32xf32>
    %675 = vector.extract_strided_slice %666 {offsets = [3, 0], sizes = [1, 32], strides = [1, 1]} : vector<12x96xf32> to vector<1x32xf32>
    %676 = vector.extract_strided_slice %670 {offsets = [0, 0], sizes = [32, 32], strides = [1, 1]} : vector<32x96xf32> to vector<32x32xf32>
    %cst_191 = arith.constant dense<0.000000e+00> : vector<1x32xf32>
    %677 = tpu.matmul %667, %676, %cst_191 {dimension_numbers = #tpu.dot_dimension_numbers<[1], [0], [0], [1], [0, 0, 1, 1], [], []>} : vector<1x32xf32>, vector<32x32xf32>, vector<1x32xf32> -> vector<1x32xf32>
    %678 = vector.extract_strided_slice %671 {offsets = [0, 0], sizes = [1, 32], strides = [1, 1]} : vector<1x96xf32> to vector<1x32xf32>
    %679 = arith.addf %677, %678 : vector<1x32xf32>
    %680 = vector.extract_strided_slice %670 {offsets = [0, 32], sizes = [32, 64], strides = [1, 1]} : vector<32x96xf32> to vector<32x64xf32>
    %cst_192 = arith.constant dense<0.000000e+00> : vector<8x64xf32>
    %681 = tpu.matmul %660, %680, %cst_192 {dimension_numbers = #tpu.dot_dimension_numbers<[1], [0], [0], [1], [0, 0, 1, 1], [], []>} : vector<8x32xf32>, vector<32x64xf32>, vector<8x64xf32> -> vector<8x64xf32>
    %682 = vector.extract_strided_slice %671 {offsets = [0, 32], sizes = [1, 64], strides = [1, 1]} : vector<1x96xf32> to vector<1x64xf32>
    %683 = vector.broadcast %682 : vector<1x64xf32> to vector<8x64xf32>
    %684 = arith.addf %681, %683 : vector<8x64xf32>
    %685 = vector.extract_strided_slice %684 {offsets = [0, 0], sizes = [8, 32], strides = [1, 1]} : vector<8x64xf32> to vector<8x32xf32>
    %686 = vector.extract_strided_slice %684 {offsets = [0, 32], sizes = [8, 32], strides = [1, 1]} : vector<8x64xf32> to vector<8x32xf32>
    %cst_193 = arith.constant 0.353553385 : f32
    %687 = vector.broadcast %cst_193 : f32 to vector<1x32xf32>
    %688 = arith.mulf %679, %687 : vector<1x32xf32>
    %689 = vector.extract_strided_slice %688 {offsets = [0, 0], sizes = [1, 8], strides = [1, 1]} : vector<1x32xf32> to vector<1x8xf32>
    %690 = vector.extract_strided_slice %685 {offsets = [0, 0], sizes = [8, 8], strides = [1, 1]} : vector<8x32xf32> to vector<8x8xf32>
    %cst_194 = arith.constant dense<0.000000e+00> : vector<1x8xf32>
    %691 = tpu.matmul %689, %690, %cst_194 {dimension_numbers = #tpu.dot_dimension_numbers<[1], [1], [0], [0], [0, 0, 1, 0], [], []>} : vector<1x8xf32>, vector<8x8xf32>, vector<1x8xf32> -> vector<1x8xf32>
    %692 = vector.extract_strided_slice %688 {offsets = [0, 8], sizes = [1, 8], strides = [1, 1]} : vector<1x32xf32> to vector<1x8xf32>
    %693 = vector.extract_strided_slice %685 {offsets = [0, 8], sizes = [8, 8], strides = [1, 1]} : vector<8x32xf32> to vector<8x8xf32>
    %cst_195 = arith.constant dense<0.000000e+00> : vector<1x8xf32>
    %694 = tpu.matmul %692, %693, %cst_195 {dimension_numbers = #tpu.dot_dimension_numbers<[1], [1], [0], [0], [0, 0, 1, 0], [], []>} : vector<1x8xf32>, vector<8x8xf32>, vector<1x8xf32> -> vector<1x8xf32>
    %695 = vector.extract_strided_slice %688 {offsets = [0, 16], sizes = [1, 8], strides = [1, 1]} : vector<1x32xf32> to vector<1x8xf32>
    %696 = vector.extract_strided_slice %685 {offsets = [0, 16], sizes = [8, 8], strides = [1, 1]} : vector<8x32xf32> to vector<8x8xf32>
    %cst_196 = arith.constant dense<0.000000e+00> : vector<1x8xf32>
    %697 = tpu.matmul %695, %696, %cst_196 {dimension_numbers = #tpu.dot_dimension_numbers<[1], [1], [0], [0], [0, 0, 1, 0], [], []>} : vector<1x8xf32>, vector<8x8xf32>, vector<1x8xf32> -> vector<1x8xf32>
    %698 = vector.extract_strided_slice %688 {offsets = [0, 24], sizes = [1, 8], strides = [1, 1]} : vector<1x32xf32> to vector<1x8xf32>
    %699 = vector.extract_strided_slice %685 {offsets = [0, 24], sizes = [8, 8], strides = [1, 1]} : vector<8x32xf32> to vector<8x8xf32>
    %cst_197 = arith.constant dense<0.000000e+00> : vector<1x8xf32>
    %700 = tpu.matmul %698, %699, %cst_197 {dimension_numbers = #tpu.dot_dimension_numbers<[1], [1], [0], [0], [0, 0, 1, 0], [], []>} : vector<1x8xf32>, vector<8x8xf32>, vector<1x8xf32> -> vector<1x8xf32>
    %701 = tpu.concatenate %691, %694, %697, %700 in 0 : vector<1x8xf32>, vector<1x8xf32>, vector<1x8xf32>, vector<1x8xf32> -> vector<4x8xf32>
    %702 = arith.addf %701, %669 : vector<4x8xf32>
    %cst_198 = arith.constant dense<0xFF800000> : vector<4xf32>
    %703 = vector.multi_reduction <maximumf>, %702, %cst_198 [1] : vector<4x8xf32> to vector<4xf32>
    %704 = vector.shape_cast %703 : vector<4xf32> to vector<4x1xf32>
    %705 = vector.broadcast %704 : vector<4x1xf32> to vector<4x8xf32>
    %706 = arith.subf %702, %705 : vector<4x8xf32>
    %707 = math.exp %706 : vector<4x8xf32>
    %cst_199 = arith.constant dense<0.000000e+00> : vector<4xf32>
    %708 = vector.multi_reduction <add>, %707, %cst_199 [1] : vector<4x8xf32> to vector<4xf32>
    %709 = vector.shape_cast %708 : vector<4xf32> to vector<4x1xf32>
    %710 = tpu.reciprocal %709 {approx = true} : vector<4x1xf32> -> vector<4x1xf32>
    %711 = vector.broadcast %710 : vector<4x1xf32> to vector<4x8xf32>
    %712 = arith.mulf %707, %711 : vector<4x8xf32>
    %713 = vector.extract_strided_slice %712 {offsets = [0, 0], sizes = [1, 8], strides = [1, 1]} : vector<4x8xf32> to vector<1x8xf32>
    %714 = vector.extract_strided_slice %686 {offsets = [0, 0], sizes = [8, 8], strides = [1, 1]} : vector<8x32xf32> to vector<8x8xf32>
    %cst_200 = arith.constant dense<0.000000e+00> : vector<1x8xf32>
    %715 = tpu.matmul %713, %714, %cst_200 {dimension_numbers = #tpu.dot_dimension_numbers<[1], [0], [0], [1], [0, 0, 1, 1], [], []>} : vector<1x8xf32>, vector<8x8xf32>, vector<1x8xf32> -> vector<1x8xf32>
    %716 = vector.extract_strided_slice %712 {offsets = [1, 0], sizes = [1, 8], strides = [1, 1]} : vector<4x8xf32> to vector<1x8xf32>
    %717 = vector.extract_strided_slice %686 {offsets = [0, 8], sizes = [8, 8], strides = [1, 1]} : vector<8x32xf32> to vector<8x8xf32>
    %cst_201 = arith.constant dense<0.000000e+00> : vector<1x8xf32>
    %718 = tpu.matmul %716, %717, %cst_201 {dimension_numbers = #tpu.dot_dimension_numbers<[1], [0], [0], [1], [0, 0, 1, 1], [], []>} : vector<1x8xf32>, vector<8x8xf32>, vector<1x8xf32> -> vector<1x8xf32>
    %719 = vector.extract_strided_slice %712 {offsets = [2, 0], sizes = [1, 8], strides = [1, 1]} : vector<4x8xf32> to vector<1x8xf32>
    %720 = vector.extract_strided_slice %686 {offsets = [0, 16], sizes = [8, 8], strides = [1, 1]} : vector<8x32xf32> to vector<8x8xf32>
    %cst_202 = arith.constant dense<0.000000e+00> : vector<1x8xf32>
    %721 = tpu.matmul %719, %720, %cst_202 {dimension_numbers = #tpu.dot_dimension_numbers<[1], [0], [0], [1], [0, 0, 1, 1], [], []>} : vector<1x8xf32>, vector<8x8xf32>, vector<1x8xf32> -> vector<1x8xf32>
    %722 = vector.extract_strided_slice %712 {offsets = [3, 0], sizes = [1, 8], strides = [1, 1]} : vector<4x8xf32> to vector<1x8xf32>
    %723 = vector.extract_strided_slice %686 {offsets = [0, 24], sizes = [8, 8], strides = [1, 1]} : vector<8x32xf32> to vector<8x8xf32>
    %cst_203 = arith.constant dense<0.000000e+00> : vector<1x8xf32>
    %724 = tpu.matmul %722, %723, %cst_203 {dimension_numbers = #tpu.dot_dimension_numbers<[1], [0], [0], [1], [0, 0, 1, 1], [], []>} : vector<1x8xf32>, vector<8x8xf32>, vector<1x8xf32> -> vector<1x8xf32>
    %725 = tpu.concatenate %715, %718, %721, %724 in 1 : vector<1x8xf32>, vector<1x8xf32>, vector<1x8xf32>, vector<1x8xf32> -> vector<1x32xf32>
    %cst_204 = arith.constant dense<0.000000e+00> : vector<1x32xf32>
    %726 = tpu.matmul %725, %672, %cst_204 {dimension_numbers = #tpu.dot_dimension_numbers<[1], [0], [0], [1], [0, 0, 1, 1], [], []>} : vector<1x32xf32>, vector<32x32xf32>, vector<1x32xf32> -> vector<1x32xf32>
    %727 = arith.addf %726, %673 : vector<1x32xf32>
    %728 = arith.addf %727, %667 : vector<1x32xf32>
    %cst_205 = arith.constant dense<0.000000e+00> : vector<1xf32>
    %729 = vector.multi_reduction <add>, %728, %cst_205 [1] : vector<1x32xf32> to vector<1xf32>
    %730 = vector.shape_cast %729 : vector<1xf32> to vector<1x1xf32>
    %cst_206 = arith.constant 3.200000e+01 : f32
    %731 = vector.broadcast %cst_206 : f32 to vector<1x1xf32>
    %732 = arith.divf %730, %731 : vector<1x1xf32>
    %733 = vector.broadcast %732 : vector<1x1xf32> to vector<1x32xf32>
    %734 = arith.subf %728, %733 : vector<1x32xf32>
    %735 = arith.mulf %734, %734 : vector<1x32xf32>
    %cst_207 = arith.constant dense<0.000000e+00> : vector<1xf32>
    %736 = vector.multi_reduction <add>, %735, %cst_207 [1] : vector<1x32xf32> to vector<1xf32>
    %737 = vector.shape_cast %736 : vector<1xf32> to vector<1x1xf32>
    %cst_208 = arith.constant 3.200000e+01 : f32
    %738 = vector.broadcast %cst_208 : f32 to vector<1x1xf32>
    %739 = arith.divf %737, %738 : vector<1x1xf32>
    %740 = vector.broadcast %732 : vector<1x1xf32> to vector<1x32xf32>
    %741 = arith.subf %728, %740 : vector<1x32xf32>
    %cst_209 = arith.constant 9.99999997E-7 : f32
    %742 = vector.broadcast %cst_209 : f32 to vector<1x1xf32>
    %743 = arith.addf %739, %742 : vector<1x1xf32>
    %744 = math.rsqrt %743 : vector<1x1xf32>
    %745 = vector.broadcast %744 : vector<1x1xf32> to vector<1x32xf32>
    %746 = arith.mulf %741, %745 : vector<1x32xf32>
    %747 = arith.mulf %746, %674 : vector<1x32xf32>
    %748 = arith.addf %747, %675 : vector<1x32xf32>
    %749 = vector.extract_strided_slice %662 {offsets = [0, 128], sizes = [32, 96], strides = [1, 1]} : vector<32x320xf32> to vector<32x96xf32>
    %750 = vector.extract_strided_slice %666 {offsets = [4, 0], sizes = [1, 96], strides = [1, 1]} : vector<12x96xf32> to vector<1x96xf32>
    %751 = vector.extract_strided_slice %662 {offsets = [0, 224], sizes = [32, 32], strides = [1, 1]} : vector<32x320xf32> to vector<32x32xf32>
    %752 = vector.extract_strided_slice %666 {offsets = [5, 0], sizes = [1, 32], strides = [1, 1]} : vector<12x96xf32> to vector<1x32xf32>
    %753 = vector.extract_strided_slice %666 {offsets = [6, 0], sizes = [1, 32], strides = [1, 1]} : vector<12x96xf32> to vector<1x32xf32>
    %754 = vector.extract_strided_slice %666 {offsets = [7, 0], sizes = [1, 32], strides = [1, 1]} : vector<12x96xf32> to vector<1x32xf32>
    %755 = vector.extract_strided_slice %749 {offsets = [0, 0], sizes = [32, 32], strides = [1, 1]} : vector<32x96xf32> to vector<32x32xf32>
    %cst_210 = arith.constant dense<0.000000e+00> : vector<1x32xf32>
    %756 = tpu.matmul %748, %755, %cst_210 {dimension_numbers = #tpu.dot_dimension_numbers<[1], [0], [0], [1], [0, 0, 1, 1], [], []>} : vector<1x32xf32>, vector<32x32xf32>, vector<1x32xf32> -> vector<1x32xf32>
    %757 = vector.extract_strided_slice %750 {offsets = [0, 0], sizes = [1, 32], strides = [1, 1]} : vector<1x96xf32> to vector<1x32xf32>
    %758 = arith.addf %756, %757 : vector<1x32xf32>
    %759 = vector.extract_strided_slice %749 {offsets = [0, 32], sizes = [32, 64], strides = [1, 1]} : vector<32x96xf32> to vector<32x64xf32>
    %cst_211 = arith.constant dense<0.000000e+00> : vector<16x64xf32>
    %760 = tpu.matmul %452, %759, %cst_211 {dimension_numbers = #tpu.dot_dimension_numbers<[1], [0], [0], [1], [0, 0, 1, 1], [], []>} : vector<16x32xf32>, vector<32x64xf32>, vector<16x64xf32> -> vector<16x64xf32>
    %761 = vector.extract_strided_slice %750 {offsets = [0, 32], sizes = [1, 64], strides = [1, 1]} : vector<1x96xf32> to vector<1x64xf32>
    %762 = vector.broadcast %761 : vector<1x64xf32> to vector<16x64xf32>
    %763 = arith.addf %760, %762 : vector<16x64xf32>
    %764 = vector.extract_strided_slice %763 {offsets = [0, 0], sizes = [16, 32], strides = [1, 1]} : vector<16x64xf32> to vector<16x32xf32>
    %765 = vector.extract_strided_slice %763 {offsets = [0, 32], sizes = [16, 32], strides = [1, 1]} : vector<16x64xf32> to vector<16x32xf32>
    %cst_212 = arith.constant 0.353553385 : f32
    %766 = vector.broadcast %cst_212 : f32 to vector<1x32xf32>
    %767 = arith.mulf %758, %766 : vector<1x32xf32>
    %768 = vector.extract_strided_slice %767 {offsets = [0, 0], sizes = [1, 8], strides = [1, 1]} : vector<1x32xf32> to vector<1x8xf32>
    %769 = vector.extract_strided_slice %764 {offsets = [0, 0], sizes = [16, 8], strides = [1, 1]} : vector<16x32xf32> to vector<16x8xf32>
    %cst_213 = arith.constant dense<0.000000e+00> : vector<1x16xf32>
    %770 = tpu.matmul %768, %769, %cst_213 {dimension_numbers = #tpu.dot_dimension_numbers<[1], [1], [0], [0], [0, 0, 1, 0], [], []>} : vector<1x8xf32>, vector<16x8xf32>, vector<1x16xf32> -> vector<1x16xf32>
    %771 = vector.extract_strided_slice %767 {offsets = [0, 8], sizes = [1, 8], strides = [1, 1]} : vector<1x32xf32> to vector<1x8xf32>
    %772 = vector.extract_strided_slice %764 {offsets = [0, 8], sizes = [16, 8], strides = [1, 1]} : vector<16x32xf32> to vector<16x8xf32>
    %cst_214 = arith.constant dense<0.000000e+00> : vector<1x16xf32>
    %773 = tpu.matmul %771, %772, %cst_214 {dimension_numbers = #tpu.dot_dimension_numbers<[1], [1], [0], [0], [0, 0, 1, 0], [], []>} : vector<1x8xf32>, vector<16x8xf32>, vector<1x16xf32> -> vector<1x16xf32>
    %774 = vector.extract_strided_slice %767 {offsets = [0, 16], sizes = [1, 8], strides = [1, 1]} : vector<1x32xf32> to vector<1x8xf32>
    %775 = vector.extract_strided_slice %764 {offsets = [0, 16], sizes = [16, 8], strides = [1, 1]} : vector<16x32xf32> to vector<16x8xf32>
    %cst_215 = arith.constant dense<0.000000e+00> : vector<1x16xf32>
    %776 = tpu.matmul %774, %775, %cst_215 {dimension_numbers = #tpu.dot_dimension_numbers<[1], [1], [0], [0], [0, 0, 1, 0], [], []>} : vector<1x8xf32>, vector<16x8xf32>, vector<1x16xf32> -> vector<1x16xf32>
    %777 = vector.extract_strided_slice %767 {offsets = [0, 24], sizes = [1, 8], strides = [1, 1]} : vector<1x32xf32> to vector<1x8xf32>
    %778 = vector.extract_strided_slice %764 {offsets = [0, 24], sizes = [16, 8], strides = [1, 1]} : vector<16x32xf32> to vector<16x8xf32>
    %cst_216 = arith.constant dense<0.000000e+00> : vector<1x16xf32>
    %779 = tpu.matmul %777, %778, %cst_216 {dimension_numbers = #tpu.dot_dimension_numbers<[1], [1], [0], [0], [0, 0, 1, 0], [], []>} : vector<1x8xf32>, vector<16x8xf32>, vector<1x16xf32> -> vector<1x16xf32>
    %780 = tpu.concatenate %770, %773, %776, %779 in 0 : vector<1x16xf32>, vector<1x16xf32>, vector<1x16xf32>, vector<1x16xf32> -> vector<4x16xf32>
    %781 = vector.broadcast %457 : vector<1x16xf32> to vector<4x16xf32>
    %782 = arith.addf %780, %781 : vector<4x16xf32>
    %cst_217 = arith.constant dense<0xFF800000> : vector<4xf32>
    %783 = vector.multi_reduction <maximumf>, %782, %cst_217 [1] : vector<4x16xf32> to vector<4xf32>
    %784 = vector.shape_cast %783 : vector<4xf32> to vector<4x1xf32>
    %785 = vector.broadcast %784 : vector<4x1xf32> to vector<4x16xf32>
    %786 = arith.subf %782, %785 : vector<4x16xf32>
    %787 = math.exp %786 : vector<4x16xf32>
    %cst_218 = arith.constant dense<0.000000e+00> : vector<4xf32>
    %788 = vector.multi_reduction <add>, %787, %cst_218 [1] : vector<4x16xf32> to vector<4xf32>
    %789 = vector.shape_cast %788 : vector<4xf32> to vector<4x1xf32>
    %790 = tpu.reciprocal %789 {approx = true} : vector<4x1xf32> -> vector<4x1xf32>
    %791 = vector.broadcast %790 : vector<4x1xf32> to vector<4x16xf32>
    %792 = arith.mulf %787, %791 : vector<4x16xf32>
    %793 = vector.extract_strided_slice %792 {offsets = [0, 0], sizes = [1, 16], strides = [1, 1]} : vector<4x16xf32> to vector<1x16xf32>
    %794 = vector.extract_strided_slice %765 {offsets = [0, 0], sizes = [16, 8], strides = [1, 1]} : vector<16x32xf32> to vector<16x8xf32>
    %cst_219 = arith.constant dense<0.000000e+00> : vector<1x8xf32>
    %795 = tpu.matmul %793, %794, %cst_219 {dimension_numbers = #tpu.dot_dimension_numbers<[1], [0], [0], [1], [0, 0, 1, 1], [], []>} : vector<1x16xf32>, vector<16x8xf32>, vector<1x8xf32> -> vector<1x8xf32>
    %796 = vector.extract_strided_slice %792 {offsets = [1, 0], sizes = [1, 16], strides = [1, 1]} : vector<4x16xf32> to vector<1x16xf32>
    %797 = vector.extract_strided_slice %765 {offsets = [0, 8], sizes = [16, 8], strides = [1, 1]} : vector<16x32xf32> to vector<16x8xf32>
    %cst_220 = arith.constant dense<0.000000e+00> : vector<1x8xf32>
    %798 = tpu.matmul %796, %797, %cst_220 {dimension_numbers = #tpu.dot_dimension_numbers<[1], [0], [0], [1], [0, 0, 1, 1], [], []>} : vector<1x16xf32>, vector<16x8xf32>, vector<1x8xf32> -> vector<1x8xf32>
    %799 = vector.extract_strided_slice %792 {offsets = [2, 0], sizes = [1, 16], strides = [1, 1]} : vector<4x16xf32> to vector<1x16xf32>
    %800 = vector.extract_strided_slice %765 {offsets = [0, 16], sizes = [16, 8], strides = [1, 1]} : vector<16x32xf32> to vector<16x8xf32>
    %cst_221 = arith.constant dense<0.000000e+00> : vector<1x8xf32>
    %801 = tpu.matmul %799, %800, %cst_221 {dimension_numbers = #tpu.dot_dimension_numbers<[1], [0], [0], [1], [0, 0, 1, 1], [], []>} : vector<1x16xf32>, vector<16x8xf32>, vector<1x8xf32> -> vector<1x8xf32>
    %802 = vector.extract_strided_slice %792 {offsets = [3, 0], sizes = [1, 16], strides = [1, 1]} : vector<4x16xf32> to vector<1x16xf32>
    %803 = vector.extract_strided_slice %765 {offsets = [0, 24], sizes = [16, 8], strides = [1, 1]} : vector<16x32xf32> to vector<16x8xf32>
    %cst_222 = arith.constant dense<0.000000e+00> : vector<1x8xf32>
    %804 = tpu.matmul %802, %803, %cst_222 {dimension_numbers = #tpu.dot_dimension_numbers<[1], [0], [0], [1], [0, 0, 1, 1], [], []>} : vector<1x16xf32>, vector<16x8xf32>, vector<1x8xf32> -> vector<1x8xf32>
    %805 = tpu.concatenate %795, %798, %801, %804 in 1 : vector<1x8xf32>, vector<1x8xf32>, vector<1x8xf32>, vector<1x8xf32> -> vector<1x32xf32>
    %cst_223 = arith.constant dense<0.000000e+00> : vector<1x32xf32>
    %806 = tpu.matmul %805, %751, %cst_223 {dimension_numbers = #tpu.dot_dimension_numbers<[1], [0], [0], [1], [0, 0, 1, 1], [], []>} : vector<1x32xf32>, vector<32x32xf32>, vector<1x32xf32> -> vector<1x32xf32>
    %807 = arith.addf %806, %752 : vector<1x32xf32>
    %808 = arith.addf %807, %748 : vector<1x32xf32>
    %cst_224 = arith.constant dense<0.000000e+00> : vector<1xf32>
    %809 = vector.multi_reduction <add>, %808, %cst_224 [1] : vector<1x32xf32> to vector<1xf32>
    %810 = vector.shape_cast %809 : vector<1xf32> to vector<1x1xf32>
    %cst_225 = arith.constant 3.200000e+01 : f32
    %811 = vector.broadcast %cst_225 : f32 to vector<1x1xf32>
    %812 = arith.divf %810, %811 : vector<1x1xf32>
    %813 = vector.broadcast %812 : vector<1x1xf32> to vector<1x32xf32>
    %814 = arith.subf %808, %813 : vector<1x32xf32>
    %815 = arith.mulf %814, %814 : vector<1x32xf32>
    %cst_226 = arith.constant dense<0.000000e+00> : vector<1xf32>
    %816 = vector.multi_reduction <add>, %815, %cst_226 [1] : vector<1x32xf32> to vector<1xf32>
    %817 = vector.shape_cast %816 : vector<1xf32> to vector<1x1xf32>
    %cst_227 = arith.constant 3.200000e+01 : f32
    %818 = vector.broadcast %cst_227 : f32 to vector<1x1xf32>
    %819 = arith.divf %817, %818 : vector<1x1xf32>
    %820 = vector.broadcast %812 : vector<1x1xf32> to vector<1x32xf32>
    %821 = arith.subf %808, %820 : vector<1x32xf32>
    %cst_228 = arith.constant 9.99999997E-7 : f32
    %822 = vector.broadcast %cst_228 : f32 to vector<1x1xf32>
    %823 = arith.addf %819, %822 : vector<1x1xf32>
    %824 = math.rsqrt %823 : vector<1x1xf32>
    %825 = vector.broadcast %824 : vector<1x1xf32> to vector<1x32xf32>
    %826 = arith.mulf %821, %825 : vector<1x32xf32>
    %827 = arith.mulf %826, %753 : vector<1x32xf32>
    %828 = arith.addf %827, %754 : vector<1x32xf32>
    %829 = vector.extract_strided_slice %662 {offsets = [0, 256], sizes = [32, 64], strides = [1, 1]} : vector<32x320xf32> to vector<32x64xf32>
    %830 = vector.extract_strided_slice %666 {offsets = [8, 0], sizes = [1, 64], strides = [1, 1]} : vector<12x96xf32> to vector<1x64xf32>
    %831 = vector.extract_strided_slice %666 {offsets = [9, 0], sizes = [1, 32], strides = [1, 1]} : vector<12x96xf32> to vector<1x32xf32>
    %832 = vector.extract_strided_slice %666 {offsets = [10, 0], sizes = [1, 32], strides = [1, 1]} : vector<12x96xf32> to vector<1x32xf32>
    %833 = vector.extract_strided_slice %666 {offsets = [11, 0], sizes = [1, 32], strides = [1, 1]} : vector<12x96xf32> to vector<1x32xf32>
    %cst_229 = arith.constant dense<0.000000e+00> : vector<1x64xf32>
    %834 = tpu.matmul %828, %829, %cst_229 {dimension_numbers = #tpu.dot_dimension_numbers<[1], [0], [0], [1], [0, 0, 1, 1], [], []>} : vector<1x32xf32>, vector<32x64xf32>, vector<1x64xf32> -> vector<1x64xf32>
    %835 = arith.addf %834, %830 : vector<1x64xf32>
    %cst_230 = arith.constant 0.000000e+00 : f32
    %836 = vector.broadcast %cst_230 : f32 to vector<1x64xf32>
    %837 = arith.maximumf %835, %836 : vector<1x64xf32>
    %cst_231 = arith.constant dense<0.000000e+00> : vector<1x32xf32>
    %838 = tpu.matmul %837, %664, %cst_231 {dimension_numbers = #tpu.dot_dimension_numbers<[1], [0], [0], [1], [0, 0, 1, 1], [], []>} : vector<1x64xf32>, vector<64x32xf32>, vector<1x32xf32> -> vector<1x32xf32>
    %839 = arith.addf %838, %831 : vector<1x32xf32>
    %840 = arith.addf %839, %828 : vector<1x32xf32>
    %cst_232 = arith.constant dense<0.000000e+00> : vector<1xf32>
    %841 = vector.multi_reduction <add>, %840, %cst_232 [1] : vector<1x32xf32> to vector<1xf32>
    %842 = vector.shape_cast %841 : vector<1xf32> to vector<1x1xf32>
    %cst_233 = arith.constant 3.200000e+01 : f32
    %843 = vector.broadcast %cst_233 : f32 to vector<1x1xf32>
    %844 = arith.divf %842, %843 : vector<1x1xf32>
    %845 = vector.broadcast %844 : vector<1x1xf32> to vector<1x32xf32>
    %846 = arith.subf %840, %845 : vector<1x32xf32>
    %847 = arith.mulf %846, %846 : vector<1x32xf32>
    %cst_234 = arith.constant dense<0.000000e+00> : vector<1xf32>
    %848 = vector.multi_reduction <add>, %847, %cst_234 [1] : vector<1x32xf32> to vector<1xf32>
    %849 = vector.shape_cast %848 : vector<1xf32> to vector<1x1xf32>
    %cst_235 = arith.constant 3.200000e+01 : f32
    %850 = vector.broadcast %cst_235 : f32 to vector<1x1xf32>
    %851 = arith.divf %849, %850 : vector<1x1xf32>
    %852 = vector.broadcast %844 : vector<1x1xf32> to vector<1x32xf32>
    %853 = arith.subf %840, %852 : vector<1x32xf32>
    %cst_236 = arith.constant 9.99999997E-7 : f32
    %854 = vector.broadcast %cst_236 : f32 to vector<1x1xf32>
    %855 = arith.addf %851, %854 : vector<1x1xf32>
    %856 = math.rsqrt %855 : vector<1x1xf32>
    %857 = vector.broadcast %856 : vector<1x1xf32> to vector<1x32xf32>
    %858 = arith.mulf %853, %857 : vector<1x32xf32>
    %859 = arith.mulf %858, %832 : vector<1x32xf32>
    %860 = arith.addf %859, %833 : vector<1x32xf32>
    %861 = vector.extract_strided_slice %4 {offsets = [0, 0], sizes = [1, 32], strides = [1, 1]} : vector<3x128xf32> to vector<1x32xf32>
    %862 = vector.extract_strided_slice %4 {offsets = [1, 0], sizes = [1, 32], strides = [1, 1]} : vector<3x128xf32> to vector<1x32xf32>
    %cst_237 = arith.constant dense<0.000000e+00> : vector<1xf32>
    %863 = vector.multi_reduction <add>, %860, %cst_237 [1] : vector<1x32xf32> to vector<1xf32>
    %864 = vector.shape_cast %863 : vector<1xf32> to vector<1x1xf32>
    %cst_238 = arith.constant 3.200000e+01 : f32
    %865 = vector.broadcast %cst_238 : f32 to vector<1x1xf32>
    %866 = arith.divf %864, %865 : vector<1x1xf32>
    %867 = vector.broadcast %866 : vector<1x1xf32> to vector<1x32xf32>
    %868 = arith.subf %860, %867 : vector<1x32xf32>
    %869 = arith.mulf %868, %868 : vector<1x32xf32>
    %cst_239 = arith.constant dense<0.000000e+00> : vector<1xf32>
    %870 = vector.multi_reduction <add>, %869, %cst_239 [1] : vector<1x32xf32> to vector<1xf32>
    %871 = vector.shape_cast %870 : vector<1xf32> to vector<1x1xf32>
    %cst_240 = arith.constant 3.200000e+01 : f32
    %872 = vector.broadcast %cst_240 : f32 to vector<1x1xf32>
    %873 = arith.divf %871, %872 : vector<1x1xf32>
    %874 = vector.broadcast %866 : vector<1x1xf32> to vector<1x32xf32>
    %875 = arith.subf %860, %874 : vector<1x32xf32>
    %cst_241 = arith.constant 9.99999997E-7 : f32
    %876 = vector.broadcast %cst_241 : f32 to vector<1x1xf32>
    %877 = arith.addf %873, %876 : vector<1x1xf32>
    %878 = math.rsqrt %877 : vector<1x1xf32>
    %879 = vector.broadcast %878 : vector<1x1xf32> to vector<1x32xf32>
    %880 = arith.mulf %875, %879 : vector<1x32xf32>
    %881 = arith.mulf %880, %861 : vector<1x32xf32>
    %882 = arith.addf %881, %862 : vector<1x32xf32>
    %cst_242 = arith.constant dense<0.000000e+00> : vector<1x128xf32>
    %883 = tpu.matmul %882, %5, %cst_242 {dimension_numbers = #tpu.dot_dimension_numbers<[1], [0], [0], [1], [0, 0, 1, 1], [], []>} : vector<1x32xf32>, vector<32x128xf32>, vector<1x128xf32> -> vector<1x128xf32>
    %884 = vector.extract_strided_slice %4 {offsets = [2, 0], sizes = [1, 128], strides = [1, 1]} : vector<3x128xf32> to vector<1x128xf32>
    %885 = arith.addf %883, %884 : vector<1x128xf32>
    %886 = tpu.concatenate %448, %885 in 0 : vector<1x128xf32>, vector<1x128xf32> -> vector<2x128xf32>
    %c0_243 = arith.constant 0 : index
    %c0_244 = arith.constant 0 : index
    %887 = vector.load %arg9[%c0_243, %c0_244] : memref<2x128xf32, #tpu.memory_space<vmem>>, vector<2x128xf32>
    tpu.vector_store %arg9[%c0_243, %c0_244], %886 {strides = array<i32>} : memref<2x128xf32, #tpu.memory_space<vmem>>, vector<2x128xf32>,
    return
  }
}

</mosaic_0001>

<llo_original>
// kernel: tpu_custom_call.1
$region0: #{tpu_custom_call.1}
  #allocation0 [shape = 'u32[]', space=smem, size = 0x4, offset = 0x4, fixed_abs, tag = 'smem constant byte address 0x4 - core index']
  #allocation1 [shape = 'u32[144,128]{1,0:T(1,128)}', space=vmem, size = 0x12000, scoped, tag = 'internal scratch']
  %s0 = inlined_call_operand.hbm [shape: f32[2,8,32], index: 0, kind: input, shape index: {}]
  %s1 = inlined_call_operand.hbm [shape: f32[2,16,32], index: 1, kind: input, shape index: {}]
  %s2 = inlined_call_operand.vmem [shape: f32[2,8], index: 2, kind: input, shape index: {}]
  %s3 = inlined_call_operand.vmem [shape: f32[2,16], index: 3, kind: input, shape index: {}]
  %s4 = inlined_call_operand.vmem [shape: f32[2,32,320], index: 4, kind: input, shape index: {}]
  %s5 = inlined_call_operand.vmem [shape: f32[2,64,32], index: 5, kind: input, shape index: {}]
  %s6 = inlined_call_operand.vmem [shape: f32[2,12,96], index: 6, kind: input, shape index: {}]
  %s7 = inlined_call_operand.vmem [shape: f32[3,128], index: 7, kind: input, shape index: {}]
  %s8 = inlined_call_operand.hbm [shape: f32[32,128], index: 8, kind: input, shape index: {}]
  %s9 = inlined_call_operand.hbm [shape: f32[2,128], index: 9, kind: output, shape index: {}]
  %s10 = sld [smem:[#allocation0]]
  $region58: #{tpu_custom_call.1} parent=0
    _
  %s12 = ssub.s32 1, %s10
  %s13 = scalar_select 0, %s12, %s10
  $region1: #{tpu_custom_call.1} parent=0
    #allocation2 [shape = 'u8[8192]{0}', space=vmem, size = 0x2000, scoped, tag = 'input window, operand 0, single buffered']
    #allocation3 [shape = 's32[1]{0}', space=sflag, size = 0x4, scoped, tag = 'scoped memory for tpu_custom_call.1']
    #allocation4 [shape = 's32[1]{0}', space=sflag, size = 0x4, scoped, tag = 'scoped memory for tpu_custom_call.1']
    #allocation5 [shape = 'u8[16384]{0}', space=vmem, size = 0x4000, scoped, tag = 'input window, operand 1, single buffered']
    #allocation6 [shape = 's32[1]{0}', space=sflag, size = 0x4, scoped, tag = 'scoped memory for tpu_custom_call.1']
    #allocation7 [shape = 'u8[16384]{0}', space=vmem, size = 0x4000, scoped, tag = 'input window, operand 8, single buffered']
    #allocation8 [shape = 'u8[1024]{0}', space=vmem, size = 0x400, scoped, tag = 'output window, operand 0, single buffered']
    %14 = vsyncpa [#allocation3], 0
    %15 = vsyncpa [#allocation6], 0
    %16 = vsyncpa [#allocation4], 0
    // Predicated region
    $region2: #{tpu_custom_call.1} parent=1 // pred_check
      _
    $region3: #{tpu_custom_call.1} parent=1 // pred_check_branch
      %18 = sbr.rel (0) target = $region5
    $region4: #{tpu_custom_call.1} parent=1 // pred_region
      %s20 = ssub.s32 256, 256
      %21 = vsyncadd [#allocation3], %s20
      %s22 = sshll.u32 [#allocation2], 4
      %s23 = int_to_ptr.vmem [resolvable:$true] %s22
      %28 = dma.hbm_to_vmem [thread:$0]  %s0, 256, %s23, [#allocation3], 128, 128, 8
    $region5: #{tpu_custom_call.1} parent=1 // pred_fallthru
      _
    // Predicated region
    $region6: #{tpu_custom_call.1} parent=1 // pred_check
      _
    $region7: #{tpu_custom_call.1} parent=1 // pred_check_branch
      %30 = sbr.rel (0) target = $region9
    $region8: #{tpu_custom_call.1} parent=1 // pred_region
      %s32 = ssub.s32 512, 512
      %33 = vsyncadd [#allocation6], %s32
      %s34 = sshll.u32 [#allocation5], 4
      %s35 = int_to_ptr.vmem [resolvable:$true] %s34
      %40 = dma.hbm_to_vmem [thread:$0]  %s1, 512, %s35, [#allocation6], 128, 128, 8
    $region9: #{tpu_custom_call.1} parent=1 // pred_fallthru
      _
    // Predicated region
    $region10: #{tpu_custom_call.1} parent=1 // pred_check
      _
    $region11: #{tpu_custom_call.1} parent=1 // pred_check_branch
      %42 = sbr.rel (0) target = $region13
    $region12: #{tpu_custom_call.1} parent=1 // pred_region
      _
    $region13: #{tpu_custom_call.1} parent=1 // pred_fallthru
      _
    // Predicated region
    $region14: #{tpu_custom_call.1} parent=1 // pred_check
      _
    $region15: #{tpu_custom_call.1} parent=1 // pred_check_branch
      %44 = sbr.rel (0) target = $region17
    $region16: #{tpu_custom_call.1} parent=1 // pred_region
      _
    $region17: #{tpu_custom_call.1} parent=1 // pred_fallthru
      _
    // Predicated region
    $region18: #{tpu_custom_call.1} parent=1 // pred_check
      _
    $region19: #{tpu_custom_call.1} parent=1 // pred_check_branch
      %46 = sbr.rel (0) target = $region21
    $region20: #{tpu_custom_call.1} parent=1 // pred_region
      _
    $region21: #{tpu_custom_call.1} parent=1 // pred_fallthru
      _
    // Predicated region
    $region22: #{tpu_custom_call.1} parent=1 // pred_check
      _
    $region23: #{tpu_custom_call.1} parent=1 // pred_check_branch
      %48 = sbr.rel (0) target = $region25
    $region24: #{tpu_custom_call.1} parent=1 // pred_region
      _
    $region25: #{tpu_custom_call.1} parent=1 // pred_fallthru
      _
    // Predicated region
    $region26: #{tpu_custom_call.1} parent=1 // pred_check
      _
    $region27: #{tpu_custom_call.1} parent=1 // pred_check_branch
      %50 = sbr.rel (0) target = $region29
    $region28: #{tpu_custom_call.1} parent=1 // pred_region
      _
    $region29: #{tpu_custom_call.1} parent=1 // pred_fallthru
      _
    // Predicated region
    $region30: #{tpu_custom_call.1} parent=1 // pred_check
      _
    $region31: #{tpu_custom_call.1} parent=1 // pred_check_branch
      %52 = sbr.rel (0) target = $region33
    $region32: #{tpu_custom_call.1} parent=1 // pred_region
      _
    $region33: #{tpu_custom_call.1} parent=1 // pred_fallthru
      _
    // Predicated region
    $region34: #{tpu_custom_call.1} parent=1 // pred_check
      _
    $region35: #{tpu_custom_call.1} parent=1 // pred_check_branch
      %54 = sbr.rel (0) target = $region37
    $region36: #{tpu_custom_call.1} parent=1 // pred_region
      %s56 = ssub.s32 512, 512
      %57 = vsyncadd [#allocation6], %s56
      %s58 = sshll.u32 [#allocation7], 4
      %s59 = int_to_ptr.vmem [resolvable:$true] %s58
      %64 = dma.hbm_to_vmem [thread:$0]  %s8, 512, %s59, [#allocation6], 128, 128, 8
    $region37: #{tpu_custom_call.1} parent=1 // pred_fallthru
      _
    // Predicated region
    $region38: #{tpu_custom_call.1} parent=1 // pred_check
      _
    $region39: #{tpu_custom_call.1} parent=1 // pred_check_branch
      %66 = sbr.rel (0) target = $region41
    $region40: #{tpu_custom_call.1} parent=1 // pred_region
      %67 = dma.done [#allocation3], 256
    $region41: #{tpu_custom_call.1} parent=1 // pred_fallthru
      _
    // Predicated region
    $region42: #{tpu_custom_call.1} parent=1 // pred_check
      _
    $region43: #{tpu_custom_call.1} parent=1 // pred_check_branch
      %69 = sbr.rel (0) target = $region45
    $region44: #{tpu_custom_call.1} parent=1 // pred_region
      %70 = dma.done [#allocation6], 512
    $region45: #{tpu_custom_call.1} parent=1 // pred_fallthru
      _
    // Predicated region
    $region46: #{tpu_custom_call.1} parent=1 // pred_check
      _
    $region47: #{tpu_custom_call.1} parent=1 // pred_check_branch
      %72 = sbr.rel (0) target = $region49
    $region48: #{tpu_custom_call.1} parent=1 // pred_region
      %73 = dma.done [#allocation6], 512
    $region49: #{tpu_custom_call.1} parent=1 // pred_fallthru
      _
    %v74 = vld [vmem:[#allocation2] sm:$0xff]
    %v75 = vld [vmem:[#allocation2 + $0x8] sm:$0xff]
    %v76 = vld [vmem:[#allocation5] sm:$0xff]
    %v77 = vld [vmem:[#allocation5 + $0x8] sm:$0xff]
    %v78 = vld [vmem:[#allocation5 + $0x10] sm:$0xff]
    %v79 = vld [vmem:[#allocation5 + $0x18] sm:$0xff]
    %v80 = vld [vmem:[%s2] sm:$0x3]
    %v81 = vld [vmem:[%s3] sm:$0x3]
    %v82 = vld [vmem:[%s7] sm:$0x7]
    %v83 = vld [vmem:[#allocation7] sm:$0xff]
    %v84 = vld [vmem:[#allocation7 + $0x8] sm:$0xff]
    %v85 = vld [vmem:[#allocation7 + $0x10] sm:$0xff]
    %v86 = vld [vmem:[#allocation7 + $0x18] sm:$0xff]
    %v87 = vlaneseq
    %v88 = vshrl.u32 %v87, 7
    %v89 = vlaneseq
    %v90 = vand.u32 %v89, 127
    %vm91 = vcmp.le.s32.totalorder %v90, %v88
    %v92 = vsel %vm91, 0.0, -1e+09
    %v93 = vlaneseq
    %v94 = vshrl.u32 %v93, 7
    %v95 = vsub.s32 0, %v94
    %v96 = vrot.slane %v80, %v95
    %v97 = vadd.f32 %v92, %v96
    %v98 = vld [vmem:[%s4] sm:$0xff]
    %v99 = vld [vmem:[%s4 + $0x8] sm:$0xff]
    %v100 = vld [vmem:[%s4 + $0x10] sm:$0xff]
    %v101 = vld [vmem:[%s4 + $0x18] sm:$0xff]
    %v102 = vld [vmem:[%s4 + $0x20] sm:$0xff]
    %v103 = vld [vmem:[%s4 + $0x28] sm:$0xff]
    %v104 = vld [vmem:[%s4 + $0x30] sm:$0xff]
    %v105 = vld [vmem:[%s4 + $0x38] sm:$0xff]
    %v106 = vld [vmem:[%s4 + $0x40] sm:$0xff]
    %v107 = vld [vmem:[%s4 + $0x48] sm:$0xff]
    %v108 = vld [vmem:[%s4 + $0x50] sm:$0xff]
    %v109 = vld [vmem:[%s4 + $0x58] sm:$0xff]
    %v110 = vld [vmem:[%s5] sm:$0xff]
    %v111 = vld [vmem:[%s5 + $0x8] sm:$0xff]
    %v112 = vld [vmem:[%s5 + $0x10] sm:$0xff]
    %v113 = vld [vmem:[%s5 + $0x18] sm:$0xff]
    %v114 = vld [vmem:[%s5 + $0x20] sm:$0xff]
    %v115 = vld [vmem:[%s5 + $0x28] sm:$0xff]
    %v116 = vld [vmem:[%s5 + $0x30] sm:$0xff]
    %v117 = vld [vmem:[%s5 + $0x38] sm:$0xff]
    %v118 = vld [vmem:[%s6] sm:$0xff]
    %v119 = vld [vmem:[%s6 + $0x8] sm:$0xf]
    %v120 = vlaneseq
    %v121 = vshrl.u32 %v120, 7
    %v122 = vsub.s32 0, %v121
    %v123 = vrot.slane %v118, %v122
    %vm124 = vcmask 261120
    %v126 = vsel %vm124, %v74, 0
    %128 = vmatprep.subr.mxu0 0.0
    %129 = vmatpush1.msra.mxu0 %v98
    %130 = vmatprep.subr.mxu0 0.0
    %131 = vmatpush1.msra.mxu0 %v101
    %132 = vmatprep.subr.mxu0 0.0
    %133 = vmatpush1.msra.mxu0 %v104
    %134 = vmatprep.subr.mxu0 0.0
    %135 = vmatpush1.msra.mxu0 %v107
    %136 = vmatprep.subr.mxu0 0.0
    %137 = vmatpush1.msra.mxu0 0.0
    %138 = vmatprep.subr.mxu0 0.0
    %139 = vmatpush1.msra.mxu0 0.0
    %140 = vmatprep.subr.mxu0 0.0
    %141 = vmatpush1.msra.mxu0 0.0
    %142 = vmatprep.subr.mxu0 0.0
    %143 = vmatpush1.msra.mxu0 0.0
    %144 = vmatprep.subr.mxu0 0.0
    %145 = vmatpush1.msra.mxu0 0.0
    %146 = vmatprep.subr.mxu0 0.0
    %147 = vmatpush1.msra.mxu0 0.0
    %148 = vmatprep.subr.mxu0 0.0
    %149 = vmatpush1.msra.mxu0 0.0
    %150 = vmatprep.subr.mxu0 0.0
    %151 = vmatpush1.msra.mxu0 0.0
    %152 = vmatprep.subr.mxu0 0.0
    %153 = vmatpush1.msra.mxu0 0.0
    %154 = vmatprep.subr.mxu0 0.0
    %155 = vmatpush1.msra.mxu0 0.0
    %156 = vmatprep.subr.mxu0 0.0
    %157 = vmatpush1.msra.mxu0 0.0
    %158 = vmatprep.subr.mxu0 0.0
    %159 = vmatpush1.msra.mxu0 0.0
    %160 = vmatprep.subr.mxu0 0.0
    %161 = vmatpush1.msra.mxu0 0.0
    %162 = vmatprep.subr.mxu0 0.0
    %163 = vmatpush1.msra.mxu0 0.0
    %164 = vmatprep.subr.mxu0 0.0
    %165 = vmatpush1.msra.mxu0 0.0
    %166 = vmatprep.subr.mxu0 0.0
    %167 = vmatpush1.msra.mxu0 0.0
    %168 = vmatprep.subr.mxu0 0.0
    %169 = vmatpush1.msra.mxu0 0.0
    %170 = vmatprep.subr.mxu0 0.0
    %171 = vmatpush1.msra.mxu0 0.0
    %172 = vmatprep.subr.mxu0 0.0
    %173 = vmatpush1.msra.mxu0 0.0
    %174 = vmatprep.subr.mxu0 0.0
    %175 = vmatpush1.msra.mxu0 0.0
    %176 = vmatprep.subr.mxu0 0.0
    %177 = vmatpush1.msra.mxu0 0.0
    %178 = vmatprep.subr.mxu0 0.0
    %179 = vmatpush1.msra.mxu0 0.0
    %180 = vmatprep.subr.mxu0 0.0
    %181 = vmatpush1.msra.mxu0 0.0
    %182 = vmatprep.subr.mxu0 0.0
    %183 = vmatpush1.msra.mxu0 0.0
    %184 = vmatprep.subr.mxu0 0.0
    %185 = vmatpush1.msra.mxu0 0.0
    %186 = vmatprep.subr.mxu0 0.0
    %187 = vmatpush1.msra.mxu0 0.0
    %188 = vmatprep.subr.mxu0 0.0
    %189 = vmatpush1.msra.mxu0 0.0
    %190 = vmatprep.subr.mxu0 0.0
    %191 = vmatpush1.msra.mxu0 0.0
    %192 = vmatprep.mubr.f32.mxu0 0.0
    %193 = vmatmul.mubr.f32.gmra.mrb[0].mxu0 %v126
    %v194 = vpop.f32.mrb[0].mxu0
    %v195 = vadd.f32 %v123, %v194
    %v196 = vpop.f32.mrb[0].mxu0
    %197 = vdwg.mxu0
    %v198 = vmul.f32 %v195, 0.35355338
    %200 = vrot.lane.b32.xlu0 %v195, 96
    %v201 = vpop.permute.xlu0 %200
    %vm202 = vcmask 64512
    %v204 = vsel %vm202, %v198, 0
    %v206 = vsel %vm202, %v201, 0
    %208 = vmatprep.subr.mxu0 0.0
    %209 = vmatpush1.xpose.msra.mxu0 %v206
    %210 = vmatprep.subr.mxu0 0.0
    %211 = vmatpush1.xpose.msra.mxu0 0.0
    %212 = vmatprep.subr.mxu0 0.0
    %213 = vmatpush1.xpose.msra.mxu0 0.0
    %214 = vmatprep.subr.mxu0 0.0
    %215 = vmatpush1.xpose.msra.mxu0 0.0
    %216 = vmatprep.subr.mxu0 0.0
    %217 = vmatpush1.xpose.msra.mxu0 0.0
    %218 = vmatprep.subr.mxu0 0.0
    %219 = vmatpush1.xpose.msra.mxu0 0.0
    %220 = vmatprep.subr.mxu0 0.0
    %221 = vmatpush1.xpose.msra.mxu0 0.0
    %222 = vmatprep.subr.mxu0 0.0
    %223 = vmatpush1.xpose.msra.mxu0 0.0
    %224 = vmatprep.subr.mxu0 0.0
    %225 = vmatpush1.xpose.msra.mxu0 0.0
    %226 = vmatprep.subr.mxu0 0.0
    %227 = vmatpush1.xpose.msra.mxu0 0.0
    %228 = vmatprep.subr.mxu0 0.0
    %229 = vmatpush1.xpose.msra.mxu0 0.0
    %230 = vmatprep.subr.mxu0 0.0
    %231 = vmatpush1.xpose.msra.mxu0 0.0
    %232 = vmatprep.subr.mxu0 0.0
    %233 = vmatpush1.xpose.msra.mxu0 0.0
    %234 = vmatprep.subr.mxu0 0.0
    %235 = vmatpush1.xpose.msra.mxu0 0.0
    %236 = vmatprep.subr.mxu0 0.0
    %237 = vmatpush1.xpose.msra.mxu0 0.0
    %238 = vmatprep.subr.mxu0 0.0
    %239 = vmatpush1.xpose.msra.mxu0 0.0
    %240 = vmatprep.subr.mxu0 0.0
    %241 = vmatpush1.xpose.msra.mxu0 0.0
    %242 = vmatprep.subr.mxu0 0.0
    %243 = vmatpush1.xpose.msra.mxu0 0.0
    %244 = vmatprep.subr.mxu0 0.0
    %245 = vmatpush1.xpose.msra.mxu0 0.0
    %246 = vmatprep.subr.mxu0 0.0
    %247 = vmatpush1.xpose.msra.mxu0 0.0
    %248 = vmatprep.subr.mxu0 0.0
    %249 = vmatpush1.xpose.msra.mxu0 0.0
    %250 = vmatprep.subr.mxu0 0.0
    %251 = vmatpush1.xpose.msra.mxu0 0.0
    %252 = vmatprep.subr.mxu0 0.0
    %253 = vmatpush1.xpose.msra.mxu0 0.0
    %254 = vmatprep.subr.mxu0 0.0
    %255 = vmatpush1.xpose.msra.mxu0 0.0
    %256 = vmatprep.subr.mxu0 0.0
    %257 = vmatpush1.xpose.msra.mxu0 0.0
    %258 = vmatprep.subr.mxu0 0.0
    %259 = vmatpush1.xpose.msra.mxu0 0.0
    %260 = vmatprep.subr.mxu0 0.0
    %261 = vmatpush1.xpose.msra.mxu0 0.0
    %262 = vmatprep.subr.mxu0 0.0
    %263 = vmatpush1.xpose.msra.mxu0 0.0
    %264 = vmatprep.subr.mxu0 0.0
    %265 = vmatpush1.xpose.msra.mxu0 0.0
    %266 = vmatprep.subr.mxu0 0.0
    %267 = vmatpush1.xpose.msra.mxu0 0.0
    %268 = vmatprep.subr.mxu0 0.0
    %269 = vmatpush1.xpose.msra.mxu0 0.0
    %270 = vmatprep.subr.mxu0 0.0
    %271 = vmatpush1.xpose.msra.mxu0 0.0
    %272 = vmatprep.mubr.f32.mxu0 0.0
    %273 = vmatmul.mubr.f32.gmra.mrb[0].mxu0 %v204
    %v274 = vpop.f32.mrb[0].mxu0
    %v275 = vadd.f32 0.0, %v274
    %v276 = vpop.f32.mrb[0].mxu0
    %277 = vdwg.mxu0
    %278 = vrot.lane.b32.xlu0 %v198, 120
    %v279 = vpop.permute.xlu0 %278
    %280 = vrot.lane.b32.xlu0 %v195, 88
    %v281 = vpop.permute.xlu0 %280
    %v282 = vsel %vm202, %v279, 0
    %v284 = vsel %vm202, %v281, 0
    %286 = vmatprep.subr.mxu0 0.0
    %287 = vmatpush1.xpose.msra.mxu0 %v284
    %288 = vmatprep.subr.mxu0 0.0
    %289 = vmatpush1.xpose.msra.mxu0 0.0
    %290 = vmatprep.subr.mxu0 0.0
    %291 = vmatpush1.xpose.msra.mxu0 0.0
    %292 = vmatprep.subr.mxu0 0.0
    %293 = vmatpush1.xpose.msra.mxu0 0.0
    %294 = vmatprep.subr.mxu0 0.0
    %295 = vmatpush1.xpose.msra.mxu0 0.0
    %296 = vmatprep.subr.mxu0 0.0
    %297 = vmatpush1.xpose.msra.mxu0 0.0
    %298 = vmatprep.subr.mxu0 0.0
    %299 = vmatpush1.xpose.msra.mxu0 0.0
    %300 = vmatprep.subr.mxu0 0.0
    %301 = vmatpush1.xpose.msra.mxu0 0.0
    %302 = vmatprep.subr.mxu0 0.0
    %303 = vmatpush1.xpose.msra.mxu0 0.0
    %304 = vmatprep.subr.mxu0 0.0
    %305 = vmatpush1.xpose.msra.mxu0 0.0
    %306 = vmatprep.subr.mxu0 0.0
    %307 = vmatpush1.xpose.msra.mxu0 0.0
    %308 = vmatprep.subr.mxu0 0.0
    %309 = vmatpush1.xpose.msra.mxu0 0.0
    %310 = vmatprep.subr.mxu0 0.0
    %311 = vmatpush1.xpose.msra.mxu0 0.0
    %312 = vmatprep.subr.mxu0 0.0
    %313 = vmatpush1.xpose.msra.mxu0 0.0
    %314 = vmatprep.subr.mxu0 0.0
    %315 = vmatpush1.xpose.msra.mxu0 0.0
    %316 = vmatprep.subr.mxu0 0.0
    %317 = vmatpush1.xpose.msra.mxu0 0.0
    %318 = vmatprep.subr.mxu0 0.0
    %319 = vmatpush1.xpose.msra.mxu0 0.0
    %320 = vmatprep.subr.mxu0 0.0
    %321 = vmatpush1.xpose.msra.mxu0 0.0
    %322 = vmatprep.subr.mxu0 0.0
    %323 = vmatpush1.xpose.msra.mxu0 0.0
    %324 = vmatprep.subr.mxu0 0.0
    %325 = vmatpush1.xpose.msra.mxu0 0.0
    %326 = vmatprep.subr.mxu0 0.0
    %327 = vmatpush1.xpose.msra.mxu0 0.0
    %328 = vmatprep.subr.mxu0 0.0
    %329 = vmatpush1.xpose.msra.mxu0 0.0
    %330 = vmatprep.subr.mxu0 0.0
    %331 = vmatpush1.xpose.msra.mxu0 0.0
    %332 = vmatprep.subr.mxu0 0.0
    %333 = vmatpush1.xpose.msra.mxu0 0.0
    %334 = vmatprep.subr.mxu0 0.0
    %335 = vmatpush1.xpose.msra.mxu0 0.0
    %336 = vmatprep.subr.mxu0 0.0
    %337 = vmatpush1.xpose.msra.mxu0 0.0
    %338 = vmatprep.subr.mxu0 0.0
    %339 = vmatpush1.xpose.msra.mxu0 0.0
    %340 = vmatprep.subr.mxu0 0.0
    %341 = vmatpush1.xpose.msra.mxu0 0.0
    %342 = vmatprep.subr.mxu0 0.0
    %343 = vmatpush1.xpose.msra.mxu0 0.0
    %344 = vmatprep.subr.mxu0 0.0
    %345 = vmatpush1.xpose.msra.mxu0 0.0
    %346 = vmatprep.subr.mxu0 0.0
    %347 = vmatpush1.xpose.msra.mxu0 0.0
    %348 = vmatprep.subr.mxu0 0.0
    %349 = vmatpush1.xpose.msra.mxu0 0.0
    %350 = vmatprep.mubr.f32.mxu0 0.0
    %351 = vmatmul.mubr.f32.gmra.mrb[0].mxu0 %v282
    %v352 = vpop.f32.mrb[0].mxu0
    %v353 = vadd.f32 0.0, %v352
    %v354 = vpop.f32.mrb[0].mxu0
    %355 = vdwg.mxu0
    %356 = vrot.lane.b32.xlu0 %v198, 112
    %v357 = vpop.permute.xlu0 %356
    %358 = vrot.lane.b32.xlu0 %v195, 80
    %v359 = vpop.permute.xlu0 %358
    %v360 = vsel %vm202, %v357, 0
    %v362 = vsel %vm202, %v359, 0
    %364 = vmatprep.subr.mxu0 0.0
    %365 = vmatpush1.xpose.msra.mxu0 %v362
    %366 = vmatprep.subr.mxu0 0.0
    %367 = vmatpush1.xpose.msra.mxu0 0.0
    %368 = vmatprep.subr.mxu0 0.0
    %369 = vmatpush1.xpose.msra.mxu0 0.0
    %370 = vmatprep.subr.mxu0 0.0
    %371 = vmatpush1.xpose.msra.mxu0 0.0
    %372 = vmatprep.subr.mxu0 0.0
    %373 = vmatpush1.xpose.msra.mxu0 0.0
    %374 = vmatprep.subr.mxu0 0.0
    %375 = vmatpush1.xpose.msra.mxu0 0.0
    %376 = vmatprep.subr.mxu0 0.0
    %377 = vmatpush1.xpose.msra.mxu0 0.0
    %378 = vmatprep.subr.mxu0 0.0
    %379 = vmatpush1.xpose.msra.mxu0 0.0
    %380 = vmatprep.subr.mxu0 0.0
    %381 = vmatpush1.xpose.msra.mxu0 0.0
    %382 = vmatprep.subr.mxu0 0.0
    %383 = vmatpush1.xpose.msra.mxu0 0.0
    %384 = vmatprep.subr.mxu0 0.0
    %385 = vmatpush1.xpose.msra.mxu0 0.0
    %386 = vmatprep.subr.mxu0 0.0
    %387 = vmatpush1.xpose.msra.mxu0 0.0
    %388 = vmatprep.subr.mxu0 0.0
    %389 = vmatpush1.xpose.msra.mxu0 0.0
    %390 = vmatprep.subr.mxu0 0.0
    %391 = vmatpush1.xpose.msra.mxu0 0.0
    %392 = vmatprep.subr.mxu0 0.0
    %393 = vmatpush1.xpose.msra.mxu0 0.0
    %394 = vmatprep.subr.mxu0 0.0
    %395 = vmatpush1.xpose.msra.mxu0 0.0
    %396 = vmatprep.subr.mxu0 0.0
    %397 = vmatpush1.xpose.msra.mxu0 0.0
    %398 = vmatprep.subr.mxu0 0.0
    %399 = vmatpush1.xpose.msra.mxu0 0.0
    %400 = vmatprep.subr.mxu0 0.0
    %401 = vmatpush1.xpose.msra.mxu0 0.0
    %402 = vmatprep.subr.mxu0 0.0
    %403 = vmatpush1.xpose.msra.mxu0 0.0
    %404 = vmatprep.subr.mxu0 0.0
    %405 = vmatpush1.xpose.msra.mxu0 0.0
    %406 = vmatprep.subr.mxu0 0.0
    %407 = vmatpush1.xpose.msra.mxu0 0.0
    %408 = vmatprep.subr.mxu0 0.0
    %409 = vmatpush1.xpose.msra.mxu0 0.0
    %410 = vmatprep.subr.mxu0 0.0
    %411 = vmatpush1.xpose.msra.mxu0 0.0
    %412 = vmatprep.subr.mxu0 0.0
    %413 = vmatpush1.xpose.msra.mxu0 0.0
    %414 = vmatprep.subr.mxu0 0.0
    %415 = vmatpush1.xpose.msra.mxu0 0.0
    %416 = vmatprep.subr.mxu0 0.0
    %417 = vmatpush1.xpose.msra.mxu0 0.0
    %418 = vmatprep.subr.mxu0 0.0
    %419 = vmatpush1.xpose.msra.mxu0 0.0
    %420 = vmatprep.subr.mxu0 0.0
    %421 = vmatpush1.xpose.msra.mxu0 0.0
    %422 = vmatprep.subr.mxu0 0.0
    %423 = vmatpush1.xpose.msra.mxu0 0.0
    %424 = vmatprep.subr.mxu0 0.0
    %425 = vmatpush1.xpose.msra.mxu0 0.0
    %426 = vmatprep.subr.mxu0 0.0
    %427 = vmatpush1.xpose.msra.mxu0 0.0
    %428 = vmatprep.mubr.f32.mxu0 0.0
    %429 = vmatmul.mubr.f32.gmra.mrb[0].mxu0 %v360
    %v430 = vpop.f32.mrb[0].mxu0
    %v431 = vadd.f32 0.0, %v430
    %v432 = vpop.f32.mrb[0].mxu0
    %433 = vdwg.mxu0
    %434 = vrot.lane.b32.xlu0 %v198, 104
    %v435 = vpop.permute.xlu0 %434
    %436 = vrot.lane.b32.xlu0 %v195, 72
    %v437 = vpop.permute.xlu0 %436
    %v438 = vsel %vm202, %v435, 0
    %v440 = vsel %vm202, %v437, 0
    %442 = vmatprep.subr.mxu0 0.0
    %443 = vmatpush1.xpose.msra.mxu0 %v440
    %444 = vmatprep.subr.mxu0 0.0
    %445 = vmatpush1.xpose.msra.mxu0 0.0
    %446 = vmatprep.subr.mxu0 0.0
    %447 = vmatpush1.xpose.msra.mxu0 0.0
    %448 = vmatprep.subr.mxu0 0.0
    %449 = vmatpush1.xpose.msra.mxu0 0.0
    %450 = vmatprep.subr.mxu0 0.0
    %451 = vmatpush1.xpose.msra.mxu0 0.0
    %452 = vmatprep.subr.mxu0 0.0
    %453 = vmatpush1.xpose.msra.mxu0 0.0
    %454 = vmatprep.subr.mxu0 0.0
    %455 = vmatpush1.xpose.msra.mxu0 0.0
    %456 = vmatprep.subr.mxu0 0.0
    %457 = vmatpush1.xpose.msra.mxu0 0.0
    %458 = vmatprep.subr.mxu0 0.0
    %459 = vmatpush1.xpose.msra.mxu0 0.0
    %460 = vmatprep.subr.mxu0 0.0
    %461 = vmatpush1.xpose.msra.mxu0 0.0
    %462 = vmatprep.subr.mxu0 0.0
    %463 = vmatpush1.xpose.msra.mxu0 0.0
    %464 = vmatprep.subr.mxu0 0.0
    %465 = vmatpush1.xpose.msra.mxu0 0.0
    %466 = vmatprep.subr.mxu0 0.0
    %467 = vmatpush1.xpose.msra.mxu0 0.0
    %468 = vmatprep.subr.mxu0 0.0
    %469 = vmatpush1.xpose.msra.mxu0 0.0
    %470 = vmatprep.subr.mxu0 0.0
    %471 = vmatpush1.xpose.msra.mxu0 0.0
    %472 = vmatprep.subr.mxu0 0.0
    %473 = vmatpush1.xpose.msra.mxu0 0.0
    %474 = vmatprep.subr.mxu0 0.0
    %475 = vmatpush1.xpose.msra.mxu0 0.0
    %476 = vmatprep.subr.mxu0 0.0
    %477 = vmatpush1.xpose.msra.mxu0 0.0
    %478 = vmatprep.subr.mxu0 0.0
    %479 = vmatpush1.xpose.msra.mxu0 0.0
    %480 = vmatprep.subr.mxu0 0.0
    %481 = vmatpush1.xpose.msra.mxu0 0.0
    %482 = vmatprep.subr.mxu0 0.0
    %483 = vmatpush1.xpose.msra.mxu0 0.0
    %484 = vmatprep.subr.mxu0 0.0
    %485 = vmatpush1.xpose.msra.mxu0 0.0
    %486 = vmatprep.subr.mxu0 0.0
    %487 = vmatpush1.xpose.msra.mxu0 0.0
    %488 = vmatprep.subr.mxu0 0.0
    %489 = vmatpush1.xpose.msra.mxu0 0.0
    %490 = vmatprep.subr.mxu0 0.0
    %491 = vmatpush1.xpose.msra.mxu0 0.0
    %492 = vmatprep.subr.mxu0 0.0
    %493 = vmatpush1.xpose.msra.mxu0 0.0
    %494 = vmatprep.subr.mxu0 0.0
    %495 = vmatpush1.xpose.msra.mxu0 0.0
    %496 = vmatprep.subr.mxu0 0.0
    %497 = vmatpush1.xpose.msra.mxu0 0.0
    %498 = vmatprep.subr.mxu0 0.0
    %499 = vmatpush1.xpose.msra.mxu0 0.0
    %500 = vmatprep.subr.mxu0 0.0
    %501 = vmatpush1.xpose.msra.mxu0 0.0
    %502 = vmatprep.subr.mxu0 0.0
    %503 = vmatpush1.xpose.msra.mxu0 0.0
    %504 = vmatprep.subr.mxu0 0.0
    %505 = vmatpush1.xpose.msra.mxu0 0.0
    %506 = vmatprep.mubr.f32.mxu0 0.0
    %507 = vmatmul.mubr.f32.gmra.mrb[0].mxu0 %v438
    %v508 = vpop.f32.mrb[0].mxu0
    %v509 = vadd.f32 0.0, %v508
    %v510 = vpop.f32.mrb[0].mxu0
    %511 = vdwg.mxu0
    %v512 = vadd.f32 %v275, %v97
    %v513 = vadd.f32 %v353, %v97
    %v514 = vadd.f32 %v431, %v97
    %v515 = vadd.f32 %v509, %v97
    %v516 = vsel %vm202, %v512, -inf
    %517 = vmax.xlane.f32.xlu0 %v516
    %v518 = vpop.xlane.xlu0 %517
    %v519 = vsel %vm202, %v513, -inf
    %520 = vmax.xlane.f32.xlu0 %v519
    %v521 = vpop.xlane.xlu0 %520
    %v522 = vsel %vm202, %v514, -inf
    %523 = vmax.xlane.f32.xlu0 %v522
    %v524 = vpop.xlane.xlu0 %523
    %v525 = vsel %vm202, %v515, -inf
    %526 = vmax.xlane.f32.xlu0 %v525
    %v527 = vpop.xlane.xlu0 %526
    %v528 = vsub.f32 %v512, %v518
    %v529 = vsub.f32 %v513, %v521
    %v530 = vsub.f32 %v514, %v524
    %v531 = vsub.f32 %v515, %v527
    %v532 = vmul.f32 %v528, 1.442695
    %v533 = vpow.pop %v532
    %v534 = vmul.f32 %v529, 1.442695
    %v535 = vpow.pop %v534
    %v536 = vmul.f32 %v530, 1.442695
    %v537 = vpow.pop %v536
    %v538 = vmul.f32 %v531, 1.442695
    %v539 = vpow.pop %v538
    %v540 = vsel %vm202, %v533, 0.0
    %541 = vadd.xlane.f32.xlu0 %v540
    %v542 = vpop.xlane.xlu0 %541
    %v543 = vsel %vm202, %v535, 0.0
    %544 = vadd.xlane.f32.xlu0 %v543
    %v545 = vpop.xlane.xlu0 %544
    %v546 = vsel %vm202, %v537, 0.0
    %547 = vadd.xlane.f32.xlu0 %v546
    %v548 = vpop.xlane.xlu0 %547
    %v549 = vsel %vm202, %v539, 0.0
    %550 = vadd.xlane.f32.xlu0 %v549
    %v551 = vpop.xlane.xlu0 %550
    %v552 = vrcp.pop %v542
    %v553 = vrcp.pop %v545
    %v554 = vrcp.pop %v548
    %v555 = vrcp.pop %v551
    %v556 = vmul.f32 %v533, %v552
    %v557 = vmul.f32 %v535, %v553
    %v558 = vmul.f32 %v537, %v554
    %v559 = vmul.f32 %v539, %v555
    %560 = vrot.lane.b32.xlu0 %v195, 64
    %v561 = vpop.permute.xlu0 %560
    %v564 = vsel %vm202, %v556, 0
    %566 = vmatprep.subr.mxu0 0.0
    %567 = vmatpush1.msra.mxu0 %v561
    %568 = vmatprep.subr.mxu0 0.0
    %569 = vmatpush1.msra.mxu0 0.0
    %570 = vmatprep.subr.mxu0 0.0
    %571 = vmatpush1.msra.mxu0 0.0
    %572 = vmatprep.subr.mxu0 0.0
    %573 = vmatpush1.msra.mxu0 0.0
    %574 = vmatprep.subr.mxu0 0.0
    %575 = vmatpush1.msra.mxu0 0.0
    %576 = vmatprep.subr.mxu0 0.0
    %577 = vmatpush1.msra.mxu0 0.0
    %578 = vmatprep.subr.mxu0 0.0
    %579 = vmatpush1.msra.mxu0 0.0
    %580 = vmatprep.subr.mxu0 0.0
    %581 = vmatpush1.msra.mxu0 0.0
    %582 = vmatprep.subr.mxu0 0.0
    %583 = vmatpush1.msra.mxu0 0.0
    %584 = vmatprep.subr.mxu0 0.0
    %585 = vmatpush1.msra.mxu0 0.0
    %586 = vmatprep.subr.mxu0 0.0
    %587 = vmatpush1.msra.mxu0 0.0
    %588 = vmatprep.subr.mxu0 0.0
    %589 = vmatpush1.msra.mxu0 0.0
    %590 = vmatprep.subr.mxu0 0.0
    %591 = vmatpush1.msra.mxu0 0.0
    %592 = vmatprep.subr.mxu0 0.0
    %593 = vmatpush1.msra.mxu0 0.0
    %594 = vmatprep.subr.mxu0 0.0
    %595 = vmatpush1.msra.mxu0 0.0
    %596 = vmatprep.subr.mxu0 0.0
    %597 = vmatpush1.msra.mxu0 0.0
    %598 = vmatprep.subr.mxu0 0.0
    %599 = vmatpush1.msra.mxu0 0.0
    %600 = vmatprep.subr.mxu0 0.0
    %601 = vmatpush1.msra.mxu0 0.0
    %602 = vmatprep.subr.mxu0 0.0
    %603 = vmatpush1.msra.mxu0 0.0
    %604 = vmatprep.subr.mxu0 0.0
    %605 = vmatpush1.msra.mxu0 0.0
    %606 = vmatprep.subr.mxu0 0.0
    %607 = vmatpush1.msra.mxu0 0.0
    %608 = vmatprep.subr.mxu0 0.0
    %609 = vmatpush1.msra.mxu0 0.0
    %610 = vmatprep.subr.mxu0 0.0
    %611 = vmatpush1.msra.mxu0 0.0
    %612 = vmatprep.subr.mxu0 0.0
    %613 = vmatpush1.msra.mxu0 0.0
    %614 = vmatprep.subr.mxu0 0.0
    %615 = vmatpush1.msra.mxu0 0.0
    %616 = vmatprep.subr.mxu0 0.0
    %617 = vmatpush1.msra.mxu0 0.0
    %618 = vmatprep.subr.mxu0 0.0
    %619 = vmatpush1.msra.mxu0 0.0
    %620 = vmatprep.subr.mxu0 0.0
    %621 = vmatpush1.msra.mxu0 0.0
    %622 = vmatprep.subr.mxu0 0.0
    %623 = vmatpush1.msra.mxu0 0.0
    %624 = vmatprep.subr.mxu0 0.0
    %625 = vmatpush1.msra.mxu0 0.0
    %626 = vmatprep.subr.mxu0 0.0
    %627 = vmatpush1.msra.mxu0 0.0
    %628 = vmatprep.subr.mxu0 0.0
    %629 = vmatpush1.msra.mxu0 0.0
    %630 = vmatprep.mubr.f32.mxu0 0.0
    %631 = vmatmul.mubr.f32.gmra.mrb[0].mxu0 %v564
    %v632 = vpop.f32.mrb[0].mxu0
    %v633 = vadd.f32 0.0, %v632
    %v634 = vpop.f32.mrb[0].mxu0
    %635 = vdwg.mxu0
    %636 = vrot.lane.b32.xlu0 %v195, 56
    %v637 = vpop.permute.xlu0 %636
    %v640 = vsel %vm202, %v557, 0
    %642 = vmatprep.subr.mxu0 0.0
    %643 = vmatpush1.msra.mxu0 %v637
    %644 = vmatprep.subr.mxu0 0.0
    %645 = vmatpush1.msra.mxu0 0.0
    %646 = vmatprep.subr.mxu0 0.0
    %647 = vmatpush1.msra.mxu0 0.0
    %648 = vmatprep.subr.mxu0 0.0
    %649 = vmatpush1.msra.mxu0 0.0
    %650 = vmatprep.subr.mxu0 0.0
    %651 = vmatpush1.msra.mxu0 0.0
    %652 = vmatprep.subr.mxu0 0.0
    %653 = vmatpush1.msra.mxu0 0.0
    %654 = vmatprep.subr.mxu0 0.0
    %655 = vmatpush1.msra.mxu0 0.0
    %656 = vmatprep.subr.mxu0 0.0
    %657 = vmatpush1.msra.mxu0 0.0
    %658 = vmatprep.subr.mxu0 0.0
    %659 = vmatpush1.msra.mxu0 0.0
    %660 = vmatprep.subr.mxu0 0.0
    %661 = vmatpush1.msra.mxu0 0.0
    %662 = vmatprep.subr.mxu0 0.0
    %663 = vmatpush1.msra.mxu0 0.0
    %664 = vmatprep.subr.mxu0 0.0
    %665 = vmatpush1.msra.mxu0 0.0
    %666 = vmatprep.subr.mxu0 0.0
    %667 = vmatpush1.msra.mxu0 0.0
    %668 = vmatprep.subr.mxu0 0.0
    %669 = vmatpush1.msra.mxu0 0.0
    %670 = vmatprep.subr.mxu0 0.0
    %671 = vmatpush1.msra.mxu0 0.0
    %672 = vmatprep.subr.mxu0 0.0
    %673 = vmatpush1.msra.mxu0 0.0
    %674 = vmatprep.subr.mxu0 0.0
    %675 = vmatpush1.msra.mxu0 0.0
    %676 = vmatprep.subr.mxu0 0.0
    %677 = vmatpush1.msra.mxu0 0.0
    %678 = vmatprep.subr.mxu0 0.0
    %679 = vmatpush1.msra.mxu0 0.0
    %680 = vmatprep.subr.mxu0 0.0
    %681 = vmatpush1.msra.mxu0 0.0
    %682 = vmatprep.subr.mxu0 0.0
    %683 = vmatpush1.msra.mxu0 0.0
    %684 = vmatprep.subr.mxu0 0.0
    %685 = vmatpush1.msra.mxu0 0.0
    %686 = vmatprep.subr.mxu0 0.0
    %687 = vmatpush1.msra.mxu0 0.0
    %688 = vmatprep.subr.mxu0 0.0
    %689 = vmatpush1.msra.mxu0 0.0
    %690 = vmatprep.subr.mxu0 0.0
    %691 = vmatpush1.msra.mxu0 0.0
    %692 = vmatprep.subr.mxu0 0.0
    %693 = vmatpush1.msra.mxu0 0.0
    %694 = vmatprep.subr.mxu0 0.0
    %695 = vmatpush1.msra.mxu0 0.0
    %696 = vmatprep.subr.mxu0 0.0
    %697 = vmatpush1.msra.mxu0 0.0
    %698 = vmatprep.subr.mxu0 0.0
    %699 = vmatpush1.msra.mxu0 0.0
    %700 = vmatprep.subr.mxu0 0.0
    %701 = vmatpush1.msra.mxu0 0.0
    %702 = vmatprep.subr.mxu0 0.0
    %703 = vmatpush1.msra.mxu0 0.0
    %704 = vmatprep.subr.mxu0 0.0
    %705 = vmatpush1.msra.mxu0 0.0
    %706 = vmatprep.mubr.f32.mxu0 0.0
    %707 = vmatmul.mubr.f32.gmra.mrb[0].mxu0 %v640
    %v708 = vpop.f32.mrb[0].mxu0
    %v709 = vadd.f32 0.0, %v708
    %v710 = vpop.f32.mrb[0].mxu0
    %711 = vdwg.mxu0
    %712 = vrot.lane.b32.xlu0 %v195, 48
    %v713 = vpop.permute.xlu0 %712
    %v716 = vsel %vm202, %v558, 0
    %718 = vmatprep.subr.mxu0 0.0
    %719 = vmatpush1.msra.mxu0 %v713
    %720 = vmatprep.subr.mxu0 0.0
    %721 = vmatpush1.msra.mxu0 0.0
    %722 = vmatprep.subr.mxu0 0.0
    %723 = vmatpush1.msra.mxu0 0.0
    %724 = vmatprep.subr.mxu0 0.0
    %725 = vmatpush1.msra.mxu0 0.0
    %726 = vmatprep.subr.mxu0 0.0
    %727 = vmatpush1.msra.mxu0 0.0
    %728 = vmatprep.subr.mxu0 0.0
    %729 = vmatpush1.msra.mxu0 0.0
    %730 = vmatprep.subr.mxu0 0.0
    %731 = vmatpush1.msra.mxu0 0.0
    %732 = vmatprep.subr.mxu0 0.0
    %733 = vmatpush1.msra.mxu0 0.0
    %734 = vmatprep.subr.mxu0 0.0
    %735 = vmatpush1.msra.mxu0 0.0
    %736 = vmatprep.subr.mxu0 0.0
    %737 = vmatpush1.msra.mxu0 0.0
    %738 = vmatprep.subr.mxu0 0.0
    %739 = vmatpush1.msra.mxu0 0.0
    %740 = vmatprep.subr.mxu0 0.0
    %741 = vmatpush1.msra.mxu0 0.0
    %742 = vmatprep.subr.mxu0 0.0
    %743 = vmatpush1.msra.mxu0 0.0
    %744 = vmatprep.subr.mxu0 0.0
    %745 = vmatpush1.msra.mxu0 0.0
    %746 = vmatprep.subr.mxu0 0.0
    %747 = vmatpush1.msra.mxu0 0.0
    %748 = vmatprep.subr.mxu0 0.0
    %749 = vmatpush1.msra.mxu0 0.0
    %750 = vmatprep.subr.mxu0 0.0
    %751 = vmatpush1.msra.mxu0 0.0
    %752 = vmatprep.subr.mxu0 0.0
    %753 = vmatpush1.msra.mxu0 0.0
    %754 = vmatprep.subr.mxu0 0.0
    %755 = vmatpush1.msra.mxu0 0.0
    %756 = vmatprep.subr.mxu0 0.0
    %757 = vmatpush1.msra.mxu0 0.0
    %758 = vmatprep.subr.mxu0 0.0
    %759 = vmatpush1.msra.mxu0 0.0
    %760 = vmatprep.subr.mxu0 0.0
    %761 = vmatpush1.msra.mxu0 0.0
    %762 = vmatprep.subr.mxu0 0.0
    %763 = vmatpush1.msra.mxu0 0.0
    %764 = vmatprep.subr.mxu0 0.0
    %765 = vmatpush1.msra.mxu0 0.0
    %766 = vmatprep.subr.mxu0 0.0
    %767 = vmatpush1.msra.mxu0 0.0
    %768 = vmatprep.subr.mxu0 0.0
    %769 = vmatpush1.msra.mxu0 0.0
    %770 = vmatprep.subr.mxu0 0.0
    %771 = vmatpush1.msra.mxu0 0.0
    %772 = vmatprep.subr.mxu0 0.0
    %773 = vmatpush1.msra.mxu0 0.0
    %774 = vmatprep.subr.mxu0 0.0
    %775 = vmatpush1.msra.mxu0 0.0
    %776 = vmatprep.subr.mxu0 0.0
    %777 = vmatpush1.msra.mxu0 0.0
    %778 = vmatprep.subr.mxu0 0.0
    %779 = vmatpush1.msra.mxu0 0.0
    %780 = vmatprep.subr.mxu0 0.0
    %781 = vmatpush1.msra.mxu0 0.0
    %782 = vmatprep.mubr.f32.mxu0 0.0
    %783 = vmatmul.mubr.f32.gmra.mrb[0].mxu0 %v716
    %v784 = vpop.f32.mrb[0].mxu0
    %v785 = vadd.f32 0.0, %v784
    %v786 = vpop.f32.mrb[0].mxu0
    %787 = vdwg.mxu0
    %788 = vrot.lane.b32.xlu0 %v195, 40
    %v789 = vpop.permute.xlu0 %788
    %v792 = vsel %vm202, %v559, 0
    %794 = vmatprep.subr.mxu0 0.0
    %795 = vmatpush1.msra.mxu0 %v789
    %796 = vmatprep.subr.mxu0 0.0
    %797 = vmatpush1.msra.mxu0 0.0
    %798 = vmatprep.subr.mxu0 0.0
    %799 = vmatpush1.msra.mxu0 0.0
    %800 = vmatprep.subr.mxu0 0.0
    %801 = vmatpush1.msra.mxu0 0.0
    %802 = vmatprep.subr.mxu0 0.0
    %803 = vmatpush1.msra.mxu0 0.0
    %804 = vmatprep.subr.mxu0 0.0
    %805 = vmatpush1.msra.mxu0 0.0
    %806 = vmatprep.subr.mxu0 0.0
    %807 = vmatpush1.msra.mxu0 0.0
    %808 = vmatprep.subr.mxu0 0.0
    %809 = vmatpush1.msra.mxu0 0.0
    %810 = vmatprep.subr.mxu0 0.0
    %811 = vmatpush1.msra.mxu0 0.0
    %812 = vmatprep.subr.mxu0 0.0
    %813 = vmatpush1.msra.mxu0 0.0
    %814 = vmatprep.subr.mxu0 0.0
    %815 = vmatpush1.msra.mxu0 0.0
    %816 = vmatprep.subr.mxu0 0.0
    %817 = vmatpush1.msra.mxu0 0.0
    %818 = vmatprep.subr.mxu0 0.0
    %819 = vmatpush1.msra.mxu0 0.0
    %820 = vmatprep.subr.mxu0 0.0
    %821 = vmatpush1.msra.mxu0 0.0
    %822 = vmatprep.subr.mxu0 0.0
    %823 = vmatpush1.msra.mxu0 0.0
    %824 = vmatprep.subr.mxu0 0.0
    %825 = vmatpush1.msra.mxu0 0.0
    %826 = vmatprep.subr.mxu0 0.0
    %827 = vmatpush1.msra.mxu0 0.0
    %828 = vmatprep.subr.mxu0 0.0
    %829 = vmatpush1.msra.mxu0 0.0
    %830 = vmatprep.subr.mxu0 0.0
    %831 = vmatpush1.msra.mxu0 0.0
    %832 = vmatprep.subr.mxu0 0.0
    %833 = vmatpush1.msra.mxu0 0.0
    %834 = vmatprep.subr.mxu0 0.0
    %835 = vmatpush1.msra.mxu0 0.0
    %836 = vmatprep.subr.mxu0 0.0
    %837 = vmatpush1.msra.mxu0 0.0
    %838 = vmatprep.subr.mxu0 0.0
    %839 = vmatpush1.msra.mxu0 0.0
    %840 = vmatprep.subr.mxu0 0.0
    %841 = vmatpush1.msra.mxu0 0.0
    %842 = vmatprep.subr.mxu0 0.0
    %843 = vmatpush1.msra.mxu0 0.0
    %844 = vmatprep.subr.mxu0 0.0
    %845 = vmatpush1.msra.mxu0 0.0
    %846 = vmatprep.subr.mxu0 0.0
    %847 = vmatpush1.msra.mxu0 0.0
    %848 = vmatprep.subr.mxu0 0.0
    %849 = vmatpush1.msra.mxu0 0.0
    %850 = vmatprep.subr.mxu0 0.0
    %851 = vmatpush1.msra.mxu0 0.0
    %852 = vmatprep.subr.mxu0 0.0
    %853 = vmatpush1.msra.mxu0 0.0
    %854 = vmatprep.subr.mxu0 0.0
    %855 = vmatpush1.msra.mxu0 0.0
    %856 = vmatprep.subr.mxu0 0.0
    %857 = vmatpush1.msra.mxu0 0.0
    %858 = vmatprep.mubr.f32.mxu0 0.0
    %859 = vmatmul.mubr.f32.gmra.mrb[0].mxu0 %v792
    %v860 = vpop.f32.mrb[0].mxu0
    %v861 = vadd.f32 0.0, %v860
    %v862 = vpop.f32.mrb[0].mxu0
    %863 = vdwg.mxu0
    %865 = vrot.lane.b32.xlu0 %v709, 8
    %v866 = vpop.permute.xlu0 %865
    %869 = vrot.lane.b32.xlu0 %v785, 16
    %v870 = vpop.permute.xlu0 %869
    %873 = vrot.lane.b32.xlu0 %v861, 24
    %v874 = vpop.permute.xlu0 %873
    %v876 = vsel %vm202, %v633, %v866
    %vm877 = vcmask 130048
    %v878 = vsel %vm877, %v876, %v870
    %vm879 = vcmask 195584
    %v880 = vsel %vm879, %v878, %v874
    %v881 = vlaneseq
    %v882 = vshrl.u32 %v881, 7
    %v883 = vsub.s32 1, %v882
    %v884 = vrot.slane %v118, %v883
    %889 = vrot.lane.b32.xlu0 %v98, 32
    %v890 = vpop.permute.xlu0 %889
    %891 = vrot.lane.b32.xlu0 %v101, 32
    %v892 = vpop.permute.xlu0 %891
    %893 = vrot.lane.b32.xlu0 %v104, 32
    %v894 = vpop.permute.xlu0 %893
    %895 = vrot.lane.b32.xlu0 %v107, 32
    %v896 = vpop.permute.xlu0 %895
    %v902 = vsel %vm124, %v880, 0
    %904 = vmatprep.subr.mxu0 0.0
    %905 = vmatpush1.msra.mxu0 %v890
    %906 = vmatprep.subr.mxu0 0.0
    %907 = vmatpush1.msra.mxu0 %v892
    %908 = vmatprep.subr.mxu0 0.0
    %909 = vmatpush1.msra.mxu0 %v894
    %910 = vmatprep.subr.mxu0 0.0
    %911 = vmatpush1.msra.mxu0 %v896
    %912 = vmatprep.subr.mxu0 0.0
    %913 = vmatpush1.msra.mxu0 0.0
    %914 = vmatprep.subr.mxu0 0.0
    %915 = vmatpush1.msra.mxu0 0.0
    %916 = vmatprep.subr.mxu0 0.0
    %917 = vmatpush1.msra.mxu0 0.0
    %918 = vmatprep.subr.mxu0 0.0
    %919 = vmatpush1.msra.mxu0 0.0
    %920 = vmatprep.subr.mxu0 0.0
    %921 = vmatpush1.msra.mxu0 0.0
    %922 = vmatprep.subr.mxu0 0.0
    %923 = vmatpush1.msra.mxu0 0.0
    %924 = vmatprep.subr.mxu0 0.0
    %925 = vmatpush1.msra.mxu0 0.0
    %926 = vmatprep.subr.mxu0 0.0
    %927 = vmatpush1.msra.mxu0 0.0
    %928 = vmatprep.subr.mxu0 0.0
    %929 = vmatpush1.msra.mxu0 0.0
    %930 = vmatprep.subr.mxu0 0.0
    %931 = vmatpush1.msra.mxu0 0.0
    %932 = vmatprep.subr.mxu0 0.0
    %933 = vmatpush1.msra.mxu0 0.0
    %934 = vmatprep.subr.mxu0 0.0
    %935 = vmatpush1.msra.mxu0 0.0
    %936 = vmatprep.subr.mxu0 0.0
    %937 = vmatpush1.msra.mxu0 0.0
    %938 = vmatprep.subr.mxu0 0.0
    %939 = vmatpush1.msra.mxu0 0.0
    %940 = vmatprep.subr.mxu0 0.0
    %941 = vmatpush1.msra.mxu0 0.0
    %942 = vmatprep.subr.mxu0 0.0
    %943 = vmatpush1.msra.mxu0 0.0
    %944 = vmatprep.subr.mxu0 0.0
    %945 = vmatpush1.msra.mxu0 0.0
    %946 = vmatprep.subr.mxu0 0.0
    %947 = vmatpush1.msra.mxu0 0.0
    %948 = vmatprep.subr.mxu0 0.0
    %949 = vmatpush1.msra.mxu0 0.0
    %950 = vmatprep.subr.mxu0 0.0
    %951 = vmatpush1.msra.mxu0 0.0
    %952 = vmatprep.subr.mxu0 0.0
    %953 = vmatpush1.msra.mxu0 0.0
    %954 = vmatprep.subr.mxu0 0.0
    %955 = vmatpush1.msra.mxu0 0.0
    %956 = vmatprep.subr.mxu0 0.0
    %957 = vmatpush1.msra.mxu0 0.0
    %958 = vmatprep.subr.mxu0 0.0
    %959 = vmatpush1.msra.mxu0 0.0
    %960 = vmatprep.subr.mxu0 0.0
    %961 = vmatpush1.msra.mxu0 0.0
    %962 = vmatprep.subr.mxu0 0.0
    %963 = vmatpush1.msra.mxu0 0.0
    %964 = vmatprep.subr.mxu0 0.0
    %965 = vmatpush1.msra.mxu0 0.0
    %966 = vmatprep.subr.mxu0 0.0
    %967 = vmatpush1.msra.mxu0 0.0
    %968 = vmatprep.mubr.f32.mxu0 0.0
    %969 = vmatmul.mubr.f32.gmra.mrb[0].mxu0 %v902
    %v970 = vpop.f32.mrb[0].mxu0
    %v971 = vadd.f32 %v884, %v970
    %v972 = vpop.f32.mrb[0].mxu0
    %973 = vdwg.mxu0
    %v974 = vadd.f32 %v971, %v74
    %v975 = vsel %vm124, %v974, 0.0
    %976 = vadd.xlane.f32.xlu0 %v975
    %v977 = vpop.xlane.xlu0 %976
    %v978 = vrcp.pop 32.0
    %v979 = vmul.f32 %v977, %v978
    %v980 = vsub.f32 %v974, %v979
    %v981 = vmul.f32 %v980, %v980
    %v982 = vsel %vm124, %v981, 0.0
    %983 = vadd.xlane.f32.xlu0 %v982
    %v984 = vpop.xlane.xlu0 %983
    %v985 = vmul.f32 %v984, %v978
    %v986 = vadd.f32 %v985, 1e-06
    %v987 = vrsqrt.pop %v986
    %v988 = vmul.f32 %v980, %v987
    %v989 = vlaneseq
    %v990 = vshrl.u32 %v989, 7
    %v991 = vsub.s32 2, %v990
    %v992 = vrot.slane %v118, %v991
    %v993 = vmul.f32 %v988, %v992
    %v994 = vlaneseq
    %v995 = vshrl.u32 %v994, 7
    %v996 = vsub.s32 3, %v995
    %v997 = vrot.slane %v118, %v996
    %v998 = vadd.f32 %v993, %v997
    %v999 = vlaneseq
    %v1000 = vshrl.u32 %v999, 7
    %v1001 = vsub.s32 4, %v1000
    %v1002 = vrot.slane %v118, %v1001
    %v1004 = vsel %vm124, %v998, 0
    %1006 = vmatprep.subr.mxu0 0.0
    %1007 = vmatpush1.msra.mxu0 %v99
    %1008 = vmatprep.subr.mxu0 0.0
    %1009 = vmatpush1.msra.mxu0 %v102
    %1010 = vmatprep.subr.mxu0 0.0
    %1011 = vmatpush1.msra.mxu0 %v105
    %1012 = vmatprep.subr.mxu0 0.0
    %1013 = vmatpush1.msra.mxu0 %v108
    %1014 = vmatprep.subr.mxu0 0.0
    %1015 = vmatpush1.msra.mxu0 0.0
    %1016 = vmatprep.subr.mxu0 0.0
    %1017 = vmatpush1.msra.mxu0 0.0
    %1018 = vmatprep.subr.mxu0 0.0
    %1019 = vmatpush1.msra.mxu0 0.0
    %1020 = vmatprep.subr.mxu0 0.0
    %1021 = vmatpush1.msra.mxu0 0.0
    %1022 = vmatprep.subr.mxu0 0.0
    %1023 = vmatpush1.msra.mxu0 0.0
    %1024 = vmatprep.subr.mxu0 0.0
    %1025 = vmatpush1.msra.mxu0 0.0
    %1026 = vmatprep.subr.mxu0 0.0
    %1027 = vmatpush1.msra.mxu0 0.0
    %1028 = vmatprep.subr.mxu0 0.0
    %1029 = vmatpush1.msra.mxu0 0.0
    %1030 = vmatprep.subr.mxu0 0.0
    %1031 = vmatpush1.msra.mxu0 0.0
    %1032 = vmatprep.subr.mxu0 0.0
    %1033 = vmatpush1.msra.mxu0 0.0
    %1034 = vmatprep.subr.mxu0 0.0
    %1035 = vmatpush1.msra.mxu0 0.0
    %1036 = vmatprep.subr.mxu0 0.0
    %1037 = vmatpush1.msra.mxu0 0.0
    %1038 = vmatprep.subr.mxu0 0.0
    %1039 = vmatpush1.msra.mxu0 0.0
    %1040 = vmatprep.subr.mxu0 0.0
    %1041 = vmatpush1.msra.mxu0 0.0
    %1042 = vmatprep.subr.mxu0 0.0
    %1043 = vmatpush1.msra.mxu0 0.0
    %1044 = vmatprep.subr.mxu0 0.0
    %1045 = vmatpush1.msra.mxu0 0.0
    %1046 = vmatprep.subr.mxu0 0.0
    %1047 = vmatpush1.msra.mxu0 0.0
    %1048 = vmatprep.subr.mxu0 0.0
    %1049 = vmatpush1.msra.mxu0 0.0
    %1050 = vmatprep.subr.mxu0 0.0
    %1051 = vmatpush1.msra.mxu0 0.0
    %1052 = vmatprep.subr.mxu0 0.0
    %1053 = vmatpush1.msra.mxu0 0.0
    %1054 = vmatprep.subr.mxu0 0.0
    %1055 = vmatpush1.msra.mxu0 0.0
    %1056 = vmatprep.subr.mxu0 0.0
    %1057 = vmatpush1.msra.mxu0 0.0
    %1058 = vmatprep.subr.mxu0 0.0
    %1059 = vmatpush1.msra.mxu0 0.0
    %1060 = vmatprep.subr.mxu0 0.0
    %1061 = vmatpush1.msra.mxu0 0.0
    %1062 = vmatprep.subr.mxu0 0.0
    %1063 = vmatpush1.msra.mxu0 0.0
    %1064 = vmatprep.subr.mxu0 0.0
    %1065 = vmatpush1.msra.mxu0 0.0
    %1066 = vmatprep.subr.mxu0 0.0
    %1067 = vmatpush1.msra.mxu0 0.0
    %1068 = vmatprep.subr.mxu0 0.0
    %1069 = vmatpush1.msra.mxu0 0.0
    %1070 = vmatprep.mubr.f32.mxu0 0.0
    %1071 = vmatmul.mubr.f32.gmra.mrb[0].mxu0 %v1004
    %v1072 = vpop.f32.mrb[0].mxu0
    %v1073 = vadd.f32 %v1002, %v1072
    %v1074 = vpop.f32.mrb[0].mxu0
    %1075 = vdwg.mxu0
    %1080 = vrot.lane.b32.xlu0 %v99, 96
    %v1081 = vpop.permute.xlu0 %1080
    %1082 = vrot.lane.b32.xlu0 %v102, 96
    %v1083 = vpop.permute.xlu0 %1082
    %1084 = vrot.lane.b32.xlu0 %v105, 96
    %v1085 = vpop.permute.xlu0 %1084
    %1086 = vrot.lane.b32.xlu0 %v108, 96
    %v1087 = vpop.permute.xlu0 %1086
    %1093 = vrot.lane.b32.xlu0 %v1002, 96
    %v1094 = vpop.permute.xlu0 %1093
    %v1097 = vsel %vm124, %v76, 0
    %v1100 = vsel %vm124, %v77, 0
    %1102 = vmatprep.subr.mxu0 0.0
    %1103 = vmatpush1.msra.mxu0 %v1081
    %1104 = vmatprep.subr.mxu0 0.0
    %1105 = vmatpush1.msra.mxu0 %v1083
    %1106 = vmatprep.subr.mxu0 0.0
    %1107 = vmatpush1.msra.mxu0 %v1085
    %1108 = vmatprep.subr.mxu0 0.0
    %1109 = vmatpush1.msra.mxu0 %v1087
    %1110 = vmatprep.subr.mxu0 0.0
    %1111 = vmatpush1.msra.mxu0 0.0
    %1112 = vmatprep.subr.mxu0 0.0
    %1113 = vmatpush1.msra.mxu0 0.0
    %1114 = vmatprep.subr.mxu0 0.0
    %1115 = vmatpush1.msra.mxu0 0.0
    %1116 = vmatprep.subr.mxu0 0.0
    %1117 = vmatpush1.msra.mxu0 0.0
    %1118 = vmatprep.subr.mxu0 0.0
    %1119 = vmatpush1.msra.mxu0 0.0
    %1120 = vmatprep.subr.mxu0 0.0
    %1121 = vmatpush1.msra.mxu0 0.0
    %1122 = vmatprep.subr.mxu0 0.0
    %1123 = vmatpush1.msra.mxu0 0.0
    %1124 = vmatprep.subr.mxu0 0.0
    %1125 = vmatpush1.msra.mxu0 0.0
    %1126 = vmatprep.subr.mxu0 0.0
    %1127 = vmatpush1.msra.mxu0 0.0
    %1128 = vmatprep.subr.mxu0 0.0
    %1129 = vmatpush1.msra.mxu0 0.0
    %1130 = vmatprep.subr.mxu0 0.0
    %1131 = vmatpush1.msra.mxu0 0.0
    %1132 = vmatprep.subr.mxu0 0.0
    %1133 = vmatpush1.msra.mxu0 0.0
    %1134 = vmatprep.subr.mxu0 0.0
    %1135 = vmatpush1.msra.mxu0 0.0
    %1136 = vmatprep.subr.mxu0 0.0
    %1137 = vmatpush1.msra.mxu0 0.0
    %1138 = vmatprep.subr.mxu0 0.0
    %1139 = vmatpush1.msra.mxu0 0.0
    %1140 = vmatprep.subr.mxu0 0.0
    %1141 = vmatpush1.msra.mxu0 0.0
    %1142 = vmatprep.subr.mxu0 0.0
    %1143 = vmatpush1.msra.mxu0 0.0
    %1144 = vmatprep.subr.mxu0 0.0
    %1145 = vmatpush1.msra.mxu0 0.0
    %1146 = vmatprep.subr.mxu0 0.0
    %1147 = vmatpush1.msra.mxu0 0.0
    %1148 = vmatprep.subr.mxu0 0.0
    %1149 = vmatpush1.msra.mxu0 0.0
    %1150 = vmatprep.subr.mxu0 0.0
    %1151 = vmatpush1.msra.mxu0 0.0
    %1152 = vmatprep.subr.mxu0 0.0
    %1153 = vmatpush1.msra.mxu0 0.0
    %1154 = vmatprep.subr.mxu0 0.0
    %1155 = vmatpush1.msra.mxu0 0.0
    %1156 = vmatprep.subr.mxu0 0.0
    %1157 = vmatpush1.msra.mxu0 0.0
    %1158 = vmatprep.subr.mxu0 0.0
    %1159 = vmatpush1.msra.mxu0 0.0
    %1160 = vmatprep.subr.mxu0 0.0
    %1161 = vmatpush1.msra.mxu0 0.0
    %1162 = vmatprep.subr.mxu0 0.0
    %1163 = vmatpush1.msra.mxu0 0.0
    %1164 = vmatprep.subr.mxu0 0.0
    %1165 = vmatpush1.msra.mxu0 0.0
    %1166 = vmatprep.mubr.f32.mxu0 0.0
    %1167 = vmatmul.mubr.f32.gmra.mrb[0].mxu0 %v1097
    %v1168 = vpop.f32.mrb[0].mxu0
    %v1169 = vadd.f32 %v1094, %v1168
    %v1170 = vpop.f32.mrb[0].mxu0
    %1171 = vmatprep.mubr.f32.mxu0 0.0
    %1172 = vmatmul.mubr.f32.gmra.mrb[0].mxu0 %v1100
    %v1173 = vpop.f32.mrb[0].mxu0
    %v1174 = vadd.f32 %v1094, %v1173
    %v1175 = vpop.f32.mrb[0].mxu0
    %1176 = vdwg.mxu0
    %v1177 = vmul.f32 %v1073, 0.35355338
    %v1179 = vsel %vm202, %v1177, 0
    %v1182 = vsel %vm202, %v1169, 0
    %v1185 = vsel %vm202, %v1174, 0
    %1187 = vmatprep.subr.mxu0 0.0
    %1188 = vmatpush1.xpose.msra.mxu0 %v1182
    %1189 = vmatprep.subr.mxu0 0.0
    %1190 = vmatpush1.xpose.msra.mxu0 %v1185
    %1191 = vmatprep.subr.mxu0 0.0
    %1192 = vmatpush1.xpose.msra.mxu0 0.0
    %1193 = vmatprep.subr.mxu0 0.0
    %1194 = vmatpush1.xpose.msra.mxu0 0.0
    %1195 = vmatprep.subr.mxu0 0.0
    %1196 = vmatpush1.xpose.msra.mxu0 0.0
    %1197 = vmatprep.subr.mxu0 0.0
    %1198 = vmatpush1.xpose.msra.mxu0 0.0
    %1199 = vmatprep.subr.mxu0 0.0
    %1200 = vmatpush1.xpose.msra.mxu0 0.0
    %1201 = vmatprep.subr.mxu0 0.0
    %1202 = vmatpush1.xpose.msra.mxu0 0.0
    %1203 = vmatprep.subr.mxu0 0.0
    %1204 = vmatpush1.xpose.msra.mxu0 0.0
    %1205 = vmatprep.subr.mxu0 0.0
    %1206 = vmatpush1.xpose.msra.mxu0 0.0
    %1207 = vmatprep.subr.mxu0 0.0
    %1208 = vmatpush1.xpose.msra.mxu0 0.0
    %1209 = vmatprep.subr.mxu0 0.0
    %1210 = vmatpush1.xpose.msra.mxu0 0.0
    %1211 = vmatprep.subr.mxu0 0.0
    %1212 = vmatpush1.xpose.msra.mxu0 0.0
    %1213 = vmatprep.subr.mxu0 0.0
    %1214 = vmatpush1.xpose.msra.mxu0 0.0
    %1215 = vmatprep.subr.mxu0 0.0
    %1216 = vmatpush1.xpose.msra.mxu0 0.0
    %1217 = vmatprep.subr.mxu0 0.0
    %1218 = vmatpush1.xpose.msra.mxu0 0.0
    %1219 = vmatprep.subr.mxu0 0.0
    %1220 = vmatpush1.xpose.msra.mxu0 0.0
    %1221 = vmatprep.subr.mxu0 0.0
    %1222 = vmatpush1.xpose.msra.mxu0 0.0
    %1223 = vmatprep.subr.mxu0 0.0
    %1224 = vmatpush1.xpose.msra.mxu0 0.0
    %1225 = vmatprep.subr.mxu0 0.0
    %1226 = vmatpush1.xpose.msra.mxu0 0.0
    %1227 = vmatprep.subr.mxu0 0.0
    %1228 = vmatpush1.xpose.msra.mxu0 0.0
    %1229 = vmatprep.subr.mxu0 0.0
    %1230 = vmatpush1.xpose.msra.mxu0 0.0
    %1231 = vmatprep.subr.mxu0 0.0
    %1232 = vmatpush1.xpose.msra.mxu0 0.0
    %1233 = vmatprep.subr.mxu0 0.0
    %1234 = vmatpush1.xpose.msra.mxu0 0.0
    %1235 = vmatprep.subr.mxu0 0.0
    %1236 = vmatpush1.xpose.msra.mxu0 0.0
    %1237 = vmatprep.subr.mxu0 0.0
    %1238 = vmatpush1.xpose.msra.mxu0 0.0
    %1239 = vmatprep.subr.mxu0 0.0
    %1240 = vmatpush1.xpose.msra.mxu0 0.0
    %1241 = vmatprep.subr.mxu0 0.0
    %1242 = vmatpush1.xpose.msra.mxu0 0.0
    %1243 = vmatprep.subr.mxu0 0.0
    %1244 = vmatpush1.xpose.msra.mxu0 0.0
    %1245 = vmatprep.subr.mxu0 0.0
    %1246 = vmatpush1.xpose.msra.mxu0 0.0
    %1247 = vmatprep.subr.mxu0 0.0
    %1248 = vmatpush1.xpose.msra.mxu0 0.0
    %1249 = vmatprep.subr.mxu0 0.0
    %1250 = vmatpush1.xpose.msra.mxu0 0.0
    %1251 = vmatprep.mubr.f32.mxu0 0.0
    %1252 = vmatmul.mubr.f32.gmra.mrb[0].mxu0 %v1179
    %v1253 = vpop.f32.mrb[0].mxu0
    %v1254 = vadd.f32 0.0, %v1253
    %v1255 = vpop.f32.mrb[0].mxu0
    %1256 = vdwg.mxu0
    %1257 = vrot.lane.b32.xlu0 %v1177, 120
    %v1258 = vpop.permute.xlu0 %1257
    %1259 = vrot.lane.b32.xlu0 %v1169, 120
    %v1260 = vpop.permute.xlu0 %1259
    %1261 = vrot.lane.b32.xlu0 %v1174, 120
    %v1262 = vpop.permute.xlu0 %1261
    %v1263 = vsel %vm202, %v1258, 0
    %v1265 = vsel %vm202, %v1260, 0
    %v1267 = vsel %vm202, %v1262, 0
    %1269 = vmatprep.subr.mxu0 0.0
    %1270 = vmatpush1.xpose.msra.mxu0 %v1265
    %1271 = vmatprep.subr.mxu0 0.0
    %1272 = vmatpush1.xpose.msra.mxu0 %v1267
    %1273 = vmatprep.subr.mxu0 0.0
    %1274 = vmatpush1.xpose.msra.mxu0 0.0
    %1275 = vmatprep.subr.mxu0 0.0
    %1276 = vmatpush1.xpose.msra.mxu0 0.0
    %1277 = vmatprep.subr.mxu0 0.0
    %1278 = vmatpush1.xpose.msra.mxu0 0.0
    %1279 = vmatprep.subr.mxu0 0.0
    %1280 = vmatpush1.xpose.msra.mxu0 0.0
    %1281 = vmatprep.subr.mxu0 0.0
    %1282 = vmatpush1.xpose.msra.mxu0 0.0
    %1283 = vmatprep.subr.mxu0 0.0
    %1284 = vmatpush1.xpose.msra.mxu0 0.0
    %1285 = vmatprep.subr.mxu0 0.0
    %1286 = vmatpush1.xpose.msra.mxu0 0.0
    %1287 = vmatprep.subr.mxu0 0.0
    %1288 = vmatpush1.xpose.msra.mxu0 0.0
    %1289 = vmatprep.subr.mxu0 0.0
    %1290 = vmatpush1.xpose.msra.mxu0 0.0
    %1291 = vmatprep.subr.mxu0 0.0
    %1292 = vmatpush1.xpose.msra.mxu0 0.0
    %1293 = vmatprep.subr.mxu0 0.0
    %1294 = vmatpush1.xpose.msra.mxu0 0.0
    %1295 = vmatprep.subr.mxu0 0.0
    %1296 = vmatpush1.xpose.msra.mxu0 0.0
    %1297 = vmatprep.subr.mxu0 0.0
    %1298 = vmatpush1.xpose.msra.mxu0 0.0
    %1299 = vmatprep.subr.mxu0 0.0
    %1300 = vmatpush1.xpose.msra.mxu0 0.0
    %1301 = vmatprep.subr.mxu0 0.0
    %1302 = vmatpush1.xpose.msra.mxu0 0.0
    %1303 = vmatprep.subr.mxu0 0.0
    %1304 = vmatpush1.xpose.msra.mxu0 0.0
    %1305 = vmatprep.subr.mxu0 0.0
    %1306 = vmatpush1.xpose.msra.mxu0 0.0
    %1307 = vmatprep.subr.mxu0 0.0
    %1308 = vmatpush1.xpose.msra.mxu0 0.0
    %1309 = vmatprep.subr.mxu0 0.0
    %1310 = vmatpush1.xpose.msra.mxu0 0.0
    %1311 = vmatprep.subr.mxu0 0.0
    %1312 = vmatpush1.xpose.msra.mxu0 0.0
    %1313 = vmatprep.subr.mxu0 0.0
    %1314 = vmatpush1.xpose.msra.mxu0 0.0
    %1315 = vmatprep.subr.mxu0 0.0
    %1316 = vmatpush1.xpose.msra.mxu0 0.0
    %1317 = vmatprep.subr.mxu0 0.0
    %1318 = vmatpush1.xpose.msra.mxu0 0.0
    %1319 = vmatprep.subr.mxu0 0.0
    %1320 = vmatpush1.xpose.msra.mxu0 0.0
    %1321 = vmatprep.subr.mxu0 0.0
    %1322 = vmatpush1.xpose.msra.mxu0 0.0
    %1323 = vmatprep.subr.mxu0 0.0
    %1324 = vmatpush1.xpose.msra.mxu0 0.0
    %1325 = vmatprep.subr.mxu0 0.0
    %1326 = vmatpush1.xpose.msra.mxu0 0.0
    %1327 = vmatprep.subr.mxu0 0.0
    %1328 = vmatpush1.xpose.msra.mxu0 0.0
    %1329 = vmatprep.subr.mxu0 0.0
    %1330 = vmatpush1.xpose.msra.mxu0 0.0
    %1331 = vmatprep.subr.mxu0 0.0
    %1332 = vmatpush1.xpose.msra.mxu0 0.0
    %1333 = vmatprep.mubr.f32.mxu0 0.0
    %1334 = vmatmul.mubr.f32.gmra.mrb[0].mxu0 %v1263
    %v1335 = vpop.f32.mrb[0].mxu0
    %v1336 = vadd.f32 0.0, %v1335
    %v1337 = vpop.f32.mrb[0].mxu0
    %1338 = vdwg.mxu0
    %1339 = vrot.lane.b32.xlu0 %v1177, 112
    %v1340 = vpop.permute.xlu0 %1339
    %1341 = vrot.lane.b32.xlu0 %v1169, 112
    %v1342 = vpop.permute.xlu0 %1341
    %1343 = vrot.lane.b32.xlu0 %v1174, 112
    %v1344 = vpop.permute.xlu0 %1343
    %v1345 = vsel %vm202, %v1340, 0
    %v1347 = vsel %vm202, %v1342, 0
    %v1349 = vsel %vm202, %v1344, 0
    %1351 = vmatprep.subr.mxu0 0.0
    %1352 = vmatpush1.xpose.msra.mxu0 %v1347
    %1353 = vmatprep.subr.mxu0 0.0
    %1354 = vmatpush1.xpose.msra.mxu0 %v1349
    %1355 = vmatprep.subr.mxu0 0.0
    %1356 = vmatpush1.xpose.msra.mxu0 0.0
    %1357 = vmatprep.subr.mxu0 0.0
    %1358 = vmatpush1.xpose.msra.mxu0 0.0
    %1359 = vmatprep.subr.mxu0 0.0
    %1360 = vmatpush1.xpose.msra.mxu0 0.0
    %1361 = vmatprep.subr.mxu0 0.0
    %1362 = vmatpush1.xpose.msra.mxu0 0.0
    %1363 = vmatprep.subr.mxu0 0.0
    %1364 = vmatpush1.xpose.msra.mxu0 0.0
    %1365 = vmatprep.subr.mxu0 0.0
    %1366 = vmatpush1.xpose.msra.mxu0 0.0
    %1367 = vmatprep.subr.mxu0 0.0
    %1368 = vmatpush1.xpose.msra.mxu0 0.0
    %1369 = vmatprep.subr.mxu0 0.0
    %1370 = vmatpush1.xpose.msra.mxu0 0.0
    %1371 = vmatprep.subr.mxu0 0.0
    %1372 = vmatpush1.xpose.msra.mxu0 0.0
    %1373 = vmatprep.subr.mxu0 0.0
    %1374 = vmatpush1.xpose.msra.mxu0 0.0
    %1375 = vmatprep.subr.mxu0 0.0
    %1376 = vmatpush1.xpose.msra.mxu0 0.0
    %1377 = vmatprep.subr.mxu0 0.0
    %1378 = vmatpush1.xpose.msra.mxu0 0.0
    %1379 = vmatprep.subr.mxu0 0.0
    %1380 = vmatpush1.xpose.msra.mxu0 0.0
    %1381 = vmatprep.subr.mxu0 0.0
    %1382 = vmatpush1.xpose.msra.mxu0 0.0
    %1383 = vmatprep.subr.mxu0 0.0
    %1384 = vmatpush1.xpose.msra.mxu0 0.0
    %1385 = vmatprep.subr.mxu0 0.0
    %1386 = vmatpush1.xpose.msra.mxu0 0.0
    %1387 = vmatprep.subr.mxu0 0.0
    %1388 = vmatpush1.xpose.msra.mxu0 0.0
    %1389 = vmatprep.subr.mxu0 0.0
    %1390 = vmatpush1.xpose.msra.mxu0 0.0
    %1391 = vmatprep.subr.mxu0 0.0
    %1392 = vmatpush1.xpose.msra.mxu0 0.0
    %1393 = vmatprep.subr.mxu0 0.0
    %1394 = vmatpush1.xpose.msra.mxu0 0.0
    %1395 = vmatprep.subr.mxu0 0.0
    %1396 = vmatpush1.xpose.msra.mxu0 0.0
    %1397 = vmatprep.subr.mxu0 0.0
    %1398 = vmatpush1.xpose.msra.mxu0 0.0
    %1399 = vmatprep.subr.mxu0 0.0
    %1400 = vmatpush1.xpose.msra.mxu0 0.0
    %1401 = vmatprep.subr.mxu0 0.0
    %1402 = vmatpush1.xpose.msra.mxu0 0.0
    %1403 = vmatprep.subr.mxu0 0.0
    %1404 = vmatpush1.xpose.msra.mxu0 0.0
    %1405 = vmatprep.subr.mxu0 0.0
    %1406 = vmatpush1.xpose.msra.mxu0 0.0
    %1407 = vmatprep.subr.mxu0 0.0
    %1408 = vmatpush1.xpose.msra.mxu0 0.0
    %1409 = vmatprep.subr.mxu0 0.0
    %1410 = vmatpush1.xpose.msra.mxu0 0.0
    %1411 = vmatprep.subr.mxu0 0.0
    %1412 = vmatpush1.xpose.msra.mxu0 0.0
    %1413 = vmatprep.subr.mxu0 0.0
    %1414 = vmatpush1.xpose.msra.mxu0 0.0
    %1415 = vmatprep.mubr.f32.mxu0 0.0
    %1416 = vmatmul.mubr.f32.gmra.mrb[0].mxu0 %v1345
    %v1417 = vpop.f32.mrb[0].mxu0
    %v1418 = vadd.f32 0.0, %v1417
    %v1419 = vpop.f32.mrb[0].mxu0
    %1420 = vdwg.mxu0
    %1421 = vrot.lane.b32.xlu0 %v1177, 104
    %v1422 = vpop.permute.xlu0 %1421
    %1423 = vrot.lane.b32.xlu0 %v1169, 104
    %v1424 = vpop.permute.xlu0 %1423
    %1425 = vrot.lane.b32.xlu0 %v1174, 104
    %v1426 = vpop.permute.xlu0 %1425
    %v1427 = vsel %vm202, %v1422, 0
    %v1429 = vsel %vm202, %v1424, 0
    %v1431 = vsel %vm202, %v1426, 0
    %1433 = vmatprep.subr.mxu0 0.0
    %1434 = vmatpush1.xpose.msra.mxu0 %v1429
    %1435 = vmatprep.subr.mxu0 0.0
    %1436 = vmatpush1.xpose.msra.mxu0 %v1431
    %1437 = vmatprep.subr.mxu0 0.0
    %1438 = vmatpush1.xpose.msra.mxu0 0.0
    %1439 = vmatprep.subr.mxu0 0.0
    %1440 = vmatpush1.xpose.msra.mxu0 0.0
    %1441 = vmatprep.subr.mxu0 0.0
    %1442 = vmatpush1.xpose.msra.mxu0 0.0
    %1443 = vmatprep.subr.mxu0 0.0
    %1444 = vmatpush1.xpose.msra.mxu0 0.0
    %1445 = vmatprep.subr.mxu0 0.0
    %1446 = vmatpush1.xpose.msra.mxu0 0.0
    %1447 = vmatprep.subr.mxu0 0.0
    %1448 = vmatpush1.xpose.msra.mxu0 0.0
    %1449 = vmatprep.subr.mxu0 0.0
    %1450 = vmatpush1.xpose.msra.mxu0 0.0
    %1451 = vmatprep.subr.mxu0 0.0
    %1452 = vmatpush1.xpose.msra.mxu0 0.0
    %1453 = vmatprep.subr.mxu0 0.0
    %1454 = vmatpush1.xpose.msra.mxu0 0.0
    %1455 = vmatprep.subr.mxu0 0.0
    %1456 = vmatpush1.xpose.msra.mxu0 0.0
    %1457 = vmatprep.subr.mxu0 0.0
    %1458 = vmatpush1.xpose.msra.mxu0 0.0
    %1459 = vmatprep.subr.mxu0 0.0
    %1460 = vmatpush1.xpose.msra.mxu0 0.0
    %1461 = vmatprep.subr.mxu0 0.0
    %1462 = vmatpush1.xpose.msra.mxu0 0.0
    %1463 = vmatprep.subr.mxu0 0.0
    %1464 = vmatpush1.xpose.msra.mxu0 0.0
    %1465 = vmatprep.subr.mxu0 0.0
    %1466 = vmatpush1.xpose.msra.mxu0 0.0
    %1467 = vmatprep.subr.mxu0 0.0
    %1468 = vmatpush1.xpose.msra.mxu0 0.0
    %1469 = vmatprep.subr.mxu0 0.0
    %1470 = vmatpush1.xpose.msra.mxu0 0.0
    %1471 = vmatprep.subr.mxu0 0.0
    %1472 = vmatpush1.xpose.msra.mxu0 0.0
    %1473 = vmatprep.subr.mxu0 0.0
    %1474 = vmatpush1.xpose.msra.mxu0 0.0
    %1475 = vmatprep.subr.mxu0 0.0
    %1476 = vmatpush1.xpose.msra.mxu0 0.0
    %1477 = vmatprep.subr.mxu0 0.0
    %1478 = vmatpush1.xpose.msra.mxu0 0.0
    %1479 = vmatprep.subr.mxu0 0.0
    %1480 = vmatpush1.xpose.msra.mxu0 0.0
    %1481 = vmatprep.subr.mxu0 0.0
    %1482 = vmatpush1.xpose.msra.mxu0 0.0
    %1483 = vmatprep.subr.mxu0 0.0
    %1484 = vmatpush1.xpose.msra.mxu0 0.0
    %1485 = vmatprep.subr.mxu0 0.0
    %1486 = vmatpush1.xpose.msra.mxu0 0.0
    %1487 = vmatprep.subr.mxu0 0.0
    %1488 = vmatpush1.xpose.msra.mxu0 0.0
    %1489 = vmatprep.subr.mxu0 0.0
    %1490 = vmatpush1.xpose.msra.mxu0 0.0
    %1491 = vmatprep.subr.mxu0 0.0
    %1492 = vmatpush1.xpose.msra.mxu0 0.0
    %1493 = vmatprep.subr.mxu0 0.0
    %1494 = vmatpush1.xpose.msra.mxu0 0.0
    %1495 = vmatprep.subr.mxu0 0.0
    %1496 = vmatpush1.xpose.msra.mxu0 0.0
    %1497 = vmatprep.mubr.f32.mxu0 0.0
    %1498 = vmatmul.mubr.f32.gmra.mrb[0].mxu0 %v1427
    %v1499 = vpop.f32.mrb[0].mxu0
    %v1500 = vadd.f32 0.0, %v1499
    %v1501 = vpop.f32.mrb[0].mxu0
    %1502 = vdwg.mxu0
    %v1503 = vlaneseq
    %v1504 = vshrl.u32 %v1503, 7
    %v1505 = vsub.s32 0, %v1504
    %v1506 = vrot.slane %v81, %v1505
    %v1507 = vadd.f32 %v1254, %v1506
    %v1508 = vadd.f32 %v1336, %v1506
    %v1509 = vadd.f32 %v1418, %v1506
    %v1510 = vadd.f32 %v1500, %v1506
    %v1511 = vsel %vm877, %v1507, -inf
    %1512 = vmax.xlane.f32.xlu0 %v1511
    %v1513 = vpop.xlane.xlu0 %1512
    %v1514 = vsel %vm877, %v1508, -inf
    %1515 = vmax.xlane.f32.xlu0 %v1514
    %v1516 = vpop.xlane.xlu0 %1515
    %v1517 = vsel %vm877, %v1509, -inf
    %1518 = vmax.xlane.f32.xlu0 %v1517
    %v1519 = vpop.xlane.xlu0 %1518
    %v1520 = vsel %vm877, %v1510, -inf
    %1521 = vmax.xlane.f32.xlu0 %v1520
    %v1522 = vpop.xlane.xlu0 %1521
    %v1523 = vsub.f32 %v1507, %v1513
    %v1524 = vsub.f32 %v1508, %v1516
    %v1525 = vsub.f32 %v1509, %v1519
    %v1526 = vsub.f32 %v1510, %v1522
    %v1527 = vmul.f32 %v1523, 1.442695
    %v1528 = vpow.pop %v1527
    %v1529 = vmul.f32 %v1524, 1.442695
    %v1530 = vpow.pop %v1529
    %v1531 = vmul.f32 %v1525, 1.442695
    %v1532 = vpow.pop %v1531
    %v1533 = vmul.f32 %v1526, 1.442695
    %v1534 = vpow.pop %v1533
    %v1535 = vsel %vm877, %v1528, 0.0
    %1536 = vadd.xlane.f32.xlu0 %v1535
    %v1537 = vpop.xlane.xlu0 %1536
    %v1538 = vsel %vm877, %v1530, 0.0
    %1539 = vadd.xlane.f32.xlu0 %v1538
    %v1540 = vpop.xlane.xlu0 %1539
    %v1541 = vsel %vm877, %v1532, 0.0
    %1542 = vadd.xlane.f32.xlu0 %v1541
    %v1543 = vpop.xlane.xlu0 %1542
    %v1544 = vsel %vm877, %v1534, 0.0
    %1545 = vadd.xlane.f32.xlu0 %v1544
    %v1546 = vpop.xlane.xlu0 %1545
    %v1547 = vrcp.pop %v1537
    %v1548 = vrcp.pop %v1540
    %v1549 = vrcp.pop %v1543
    %v1550 = vrcp.pop %v1546
    %v1551 = vmul.f32 %v1528, %v1547
    %v1552 = vmul.f32 %v1530, %v1548
    %v1553 = vmul.f32 %v1532, %v1549
    %v1554 = vmul.f32 %v1534, %v1550
    %1555 = vrot.lane.b32.xlu0 %v1169, 96
    %v1556 = vpop.permute.xlu0 %1555
    %1557 = vrot.lane.b32.xlu0 %v1174, 96
    %v1558 = vpop.permute.xlu0 %1557
    %v1562 = vsel %vm877, %v1551, 0
    %1564 = vmatprep.subr.mxu0 0.0
    %1565 = vmatpush1.msra.mxu0 %v1556
    %1566 = vmatprep.subr.mxu0 0.0
    %1567 = vmatpush1.msra.mxu0 %v1558
    %1568 = vmatprep.subr.mxu0 0.0
    %1569 = vmatpush1.msra.mxu0 0.0
    %1570 = vmatprep.subr.mxu0 0.0
    %1571 = vmatpush1.msra.mxu0 0.0
    %1572 = vmatprep.subr.mxu0 0.0
    %1573 = vmatpush1.msra.mxu0 0.0
    %1574 = vmatprep.subr.mxu0 0.0
    %1575 = vmatpush1.msra.mxu0 0.0
    %1576 = vmatprep.subr.mxu0 0.0
    %1577 = vmatpush1.msra.mxu0 0.0
    %1578 = vmatprep.subr.mxu0 0.0
    %1579 = vmatpush1.msra.mxu0 0.0
    %1580 = vmatprep.subr.mxu0 0.0
    %1581 = vmatpush1.msra.mxu0 0.0
    %1582 = vmatprep.subr.mxu0 0.0
    %1583 = vmatpush1.msra.mxu0 0.0
    %1584 = vmatprep.subr.mxu0 0.0
    %1585 = vmatpush1.msra.mxu0 0.0
    %1586 = vmatprep.subr.mxu0 0.0
    %1587 = vmatpush1.msra.mxu0 0.0
    %1588 = vmatprep.subr.mxu0 0.0
    %1589 = vmatpush1.msra.mxu0 0.0
    %1590 = vmatprep.subr.mxu0 0.0
    %1591 = vmatpush1.msra.mxu0 0.0
    %1592 = vmatprep.subr.mxu0 0.0
    %1593 = vmatpush1.msra.mxu0 0.0
    %1594 = vmatprep.subr.mxu0 0.0
    %1595 = vmatpush1.msra.mxu0 0.0
    %1596 = vmatprep.subr.mxu0 0.0
    %1597 = vmatpush1.msra.mxu0 0.0
    %1598 = vmatprep.subr.mxu0 0.0
    %1599 = vmatpush1.msra.mxu0 0.0
    %1600 = vmatprep.subr.mxu0 0.0
    %1601 = vmatpush1.msra.mxu0 0.0
    %1602 = vmatprep.subr.mxu0 0.0
    %1603 = vmatpush1.msra.mxu0 0.0
    %1604 = vmatprep.subr.mxu0 0.0
    %1605 = vmatpush1.msra.mxu0 0.0
    %1606 = vmatprep.subr.mxu0 0.0
    %1607 = vmatpush1.msra.mxu0 0.0
    %1608 = vmatprep.subr.mxu0 0.0
    %1609 = vmatpush1.msra.mxu0 0.0
    %1610 = vmatprep.subr.mxu0 0.0
    %1611 = vmatpush1.msra.mxu0 0.0
    %1612 = vmatprep.subr.mxu0 0.0
    %1613 = vmatpush1.msra.mxu0 0.0
    %1614 = vmatprep.subr.mxu0 0.0
    %1615 = vmatpush1.msra.mxu0 0.0
    %1616 = vmatprep.subr.mxu0 0.0
    %1617 = vmatpush1.msra.mxu0 0.0
    %1618 = vmatprep.subr.mxu0 0.0
    %1619 = vmatpush1.msra.mxu0 0.0
    %1620 = vmatprep.subr.mxu0 0.0
    %1621 = vmatpush1.msra.mxu0 0.0
    %1622 = vmatprep.subr.mxu0 0.0
    %1623 = vmatpush1.msra.mxu0 0.0
    %1624 = vmatprep.subr.mxu0 0.0
    %1625 = vmatpush1.msra.mxu0 0.0
    %1626 = vmatprep.subr.mxu0 0.0
    %1627 = vmatpush1.msra.mxu0 0.0
    %1628 = vmatprep.mubr.f32.mxu0 0.0
    %1629 = vmatmul.mubr.f32.gmra.mrb[0].mxu0 %v1562
    %v1630 = vpop.f32.mrb[0].mxu0
    %v1631 = vadd.f32 0.0, %v1630
    %v1632 = vpop.f32.mrb[0].mxu0
    %1633 = vdwg.mxu0
    %1634 = vrot.lane.b32.xlu0 %v1169, 88
    %v1635 = vpop.permute.xlu0 %1634
    %1636 = vrot.lane.b32.xlu0 %v1174, 88
    %v1637 = vpop.permute.xlu0 %1636
    %v1641 = vsel %vm877, %v1552, 0
    %1643 = vmatprep.subr.mxu0 0.0
    %1644 = vmatpush1.msra.mxu0 %v1635
    %1645 = vmatprep.subr.mxu0 0.0
    %1646 = vmatpush1.msra.mxu0 %v1637
    %1647 = vmatprep.subr.mxu0 0.0
    %1648 = vmatpush1.msra.mxu0 0.0
    %1649 = vmatprep.subr.mxu0 0.0
    %1650 = vmatpush1.msra.mxu0 0.0
    %1651 = vmatprep.subr.mxu0 0.0
    %1652 = vmatpush1.msra.mxu0 0.0
    %1653 = vmatprep.subr.mxu0 0.0
    %1654 = vmatpush1.msra.mxu0 0.0
    %1655 = vmatprep.subr.mxu0 0.0
    %1656 = vmatpush1.msra.mxu0 0.0
    %1657 = vmatprep.subr.mxu0 0.0
    %1658 = vmatpush1.msra.mxu0 0.0
    %1659 = vmatprep.subr.mxu0 0.0
    %1660 = vmatpush1.msra.mxu0 0.0
    %1661 = vmatprep.subr.mxu0 0.0
    %1662 = vmatpush1.msra.mxu0 0.0
    %1663 = vmatprep.subr.mxu0 0.0
    %1664 = vmatpush1.msra.mxu0 0.0
    %1665 = vmatprep.subr.mxu0 0.0
    %1666 = vmatpush1.msra.mxu0 0.0
    %1667 = vmatprep.subr.mxu0 0.0
    %1668 = vmatpush1.msra.mxu0 0.0
    %1669 = vmatprep.subr.mxu0 0.0
    %1670 = vmatpush1.msra.mxu0 0.0
    %1671 = vmatprep.subr.mxu0 0.0
    %1672 = vmatpush1.msra.mxu0 0.0
    %1673 = vmatprep.subr.mxu0 0.0
    %1674 = vmatpush1.msra.mxu0 0.0
    %1675 = vmatprep.subr.mxu0 0.0
    %1676 = vmatpush1.msra.mxu0 0.0
    %1677 = vmatprep.subr.mxu0 0.0
    %1678 = vmatpush1.msra.mxu0 0.0
    %1679 = vmatprep.subr.mxu0 0.0
    %1680 = vmatpush1.msra.mxu0 0.0
    %1681 = vmatprep.subr.mxu0 0.0
    %1682 = vmatpush1.msra.mxu0 0.0
    %1683 = vmatprep.subr.mxu0 0.0
    %1684 = vmatpush1.msra.mxu0 0.0
    %1685 = vmatprep.subr.mxu0 0.0
    %1686 = vmatpush1.msra.mxu0 0.0
    %1687 = vmatprep.subr.mxu0 0.0
    %1688 = vmatpush1.msra.mxu0 0.0
    %1689 = vmatprep.subr.mxu0 0.0
    %1690 = vmatpush1.msra.mxu0 0.0
    %1691 = vmatprep.subr.mxu0 0.0
    %1692 = vmatpush1.msra.mxu0 0.0
    %1693 = vmatprep.subr.mxu0 0.0
    %1694 = vmatpush1.msra.mxu0 0.0
    %1695 = vmatprep.subr.mxu0 0.0
    %1696 = vmatpush1.msra.mxu0 0.0
    %1697 = vmatprep.subr.mxu0 0.0
    %1698 = vmatpush1.msra.mxu0 0.0
    %1699 = vmatprep.subr.mxu0 0.0
    %1700 = vmatpush1.msra.mxu0 0.0
    %1701 = vmatprep.subr.mxu0 0.0
    %1702 = vmatpush1.msra.mxu0 0.0
    %1703 = vmatprep.subr.mxu0 0.0
    %1704 = vmatpush1.msra.mxu0 0.0
    %1705 = vmatprep.subr.mxu0 0.0
    %1706 = vmatpush1.msra.mxu0 0.0
    %1707 = vmatprep.mubr.f32.mxu0 0.0
    %1708 = vmatmul.mubr.f32.gmra.mrb[0].mxu0 %v1641
    %v1709 = vpop.f32.mrb[0].mxu0
    %v1710 = vadd.f32 0.0, %v1709
    %v1711 = vpop.f32.mrb[0].mxu0
    %1712 = vdwg.mxu0
    %1713 = vrot.lane.b32.xlu0 %v1169, 80
    %v1714 = vpop.permute.xlu0 %1713
    %1715 = vrot.lane.b32.xlu0 %v1174, 80
    %v1716 = vpop.permute.xlu0 %1715
    %v1720 = vsel %vm877, %v1553, 0
    %1722 = vmatprep.subr.mxu0 0.0
    %1723 = vmatpush1.msra.mxu0 %v1714
    %1724 = vmatprep.subr.mxu0 0.0
    %1725 = vmatpush1.msra.mxu0 %v1716
    %1726 = vmatprep.subr.mxu0 0.0
    %1727 = vmatpush1.msra.mxu0 0.0
    %1728 = vmatprep.subr.mxu0 0.0
    %1729 = vmatpush1.msra.mxu0 0.0
    %1730 = vmatprep.subr.mxu0 0.0
    %1731 = vmatpush1.msra.mxu0 0.0
    %1732 = vmatprep.subr.mxu0 0.0
    %1733 = vmatpush1.msra.mxu0 0.0
    %1734 = vmatprep.subr.mxu0 0.0
    %1735 = vmatpush1.msra.mxu0 0.0
    %1736 = vmatprep.subr.mxu0 0.0
    %1737 = vmatpush1.msra.mxu0 0.0
    %1738 = vmatprep.subr.mxu0 0.0
    %1739 = vmatpush1.msra.mxu0 0.0
    %1740 = vmatprep.subr.mxu0 0.0
    %1741 = vmatpush1.msra.mxu0 0.0
    %1742 = vmatprep.subr.mxu0 0.0
    %1743 = vmatpush1.msra.mxu0 0.0
    %1744 = vmatprep.subr.mxu0 0.0
    %1745 = vmatpush1.msra.mxu0 0.0
    %1746 = vmatprep.subr.mxu0 0.0
    %1747 = vmatpush1.msra.mxu0 0.0
    %1748 = vmatprep.subr.mxu0 0.0
    %1749 = vmatpush1.msra.mxu0 0.0
    %1750 = vmatprep.subr.mxu0 0.0
    %1751 = vmatpush1.msra.mxu0 0.0
    %1752 = vmatprep.subr.mxu0 0.0
    %1753 = vmatpush1.msra.mxu0 0.0
    %1754 = vmatprep.subr.mxu0 0.0
    %1755 = vmatpush1.msra.mxu0 0.0
    %1756 = vmatprep.subr.mxu0 0.0
    %1757 = vmatpush1.msra.mxu0 0.0
    %1758 = vmatprep.subr.mxu0 0.0
    %1759 = vmatpush1.msra.mxu0 0.0
    %1760 = vmatprep.subr.mxu0 0.0
    %1761 = vmatpush1.msra.mxu0 0.0
    %1762 = vmatprep.subr.mxu0 0.0
    %1763 = vmatpush1.msra.mxu0 0.0
    %1764 = vmatprep.subr.mxu0 0.0
    %1765 = vmatpush1.msra.mxu0 0.0
    %1766 = vmatprep.subr.mxu0 0.0
    %1767 = vmatpush1.msra.mxu0 0.0
    %1768 = vmatprep.subr.mxu0 0.0
    %1769 = vmatpush1.msra.mxu0 0.0
    %1770 = vmatprep.subr.mxu0 0.0
    %1771 = vmatpush1.msra.mxu0 0.0
    %1772 = vmatprep.subr.mxu0 0.0
    %1773 = vmatpush1.msra.mxu0 0.0
    %1774 = vmatprep.subr.mxu0 0.0
    %1775 = vmatpush1.msra.mxu0 0.0
    %1776 = vmatprep.subr.mxu0 0.0
    %1777 = vmatpush1.msra.mxu0 0.0
    %1778 = vmatprep.subr.mxu0 0.0
    %1779 = vmatpush1.msra.mxu0 0.0
    %1780 = vmatprep.subr.mxu0 0.0
    %1781 = vmatpush1.msra.mxu0 0.0
    %1782 = vmatprep.subr.mxu0 0.0
    %1783 = vmatpush1.msra.mxu0 0.0
    %1784 = vmatprep.subr.mxu0 0.0
    %1785 = vmatpush1.msra.mxu0 0.0
    %1786 = vmatprep.mubr.f32.mxu0 0.0
    %1787 = vmatmul.mubr.f32.gmra.mrb[0].mxu0 %v1720
    %v1788 = vpop.f32.mrb[0].mxu0
    %v1789 = vadd.f32 0.0, %v1788
    %v1790 = vpop.f32.mrb[0].mxu0
    %1791 = vdwg.mxu0
    %1792 = vrot.lane.b32.xlu0 %v1169, 72
    %v1793 = vpop.permute.xlu0 %1792
    %1794 = vrot.lane.b32.xlu0 %v1174, 72
    %v1795 = vpop.permute.xlu0 %1794
    %v1799 = vsel %vm877, %v1554, 0
    %1801 = vmatprep.subr.mxu0 0.0
    %1802 = vmatpush1.msra.mxu0 %v1793
    %1803 = vmatprep.subr.mxu0 0.0
    %1804 = vmatpush1.msra.mxu0 %v1795
    %1805 = vmatprep.subr.mxu0 0.0
    %1806 = vmatpush1.msra.mxu0 0.0
    %1807 = vmatprep.subr.mxu0 0.0
    %1808 = vmatpush1.msra.mxu0 0.0
    %1809 = vmatprep.subr.mxu0 0.0
    %1810 = vmatpush1.msra.mxu0 0.0
    %1811 = vmatprep.subr.mxu0 0.0
    %1812 = vmatpush1.msra.mxu0 0.0
    %1813 = vmatprep.subr.mxu0 0.0
    %1814 = vmatpush1.msra.mxu0 0.0
    %1815 = vmatprep.subr.mxu0 0.0
    %1816 = vmatpush1.msra.mxu0 0.0
    %1817 = vmatprep.subr.mxu0 0.0
    %1818 = vmatpush1.msra.mxu0 0.0
    %1819 = vmatprep.subr.mxu0 0.0
    %1820 = vmatpush1.msra.mxu0 0.0
    %1821 = vmatprep.subr.mxu0 0.0
    %1822 = vmatpush1.msra.mxu0 0.0
    %1823 = vmatprep.subr.mxu0 0.0
    %1824 = vmatpush1.msra.mxu0 0.0
    %1825 = vmatprep.subr.mxu0 0.0
    %1826 = vmatpush1.msra.mxu0 0.0
    %1827 = vmatprep.subr.mxu0 0.0
    %1828 = vmatpush1.msra.mxu0 0.0
    %1829 = vmatprep.subr.mxu0 0.0
    %1830 = vmatpush1.msra.mxu0 0.0
    %1831 = vmatprep.subr.mxu0 0.0
    %1832 = vmatpush1.msra.mxu0 0.0
    %1833 = vmatprep.subr.mxu0 0.0
    %1834 = vmatpush1.msra.mxu0 0.0
    %1835 = vmatprep.subr.mxu0 0.0
    %1836 = vmatpush1.msra.mxu0 0.0
    %1837 = vmatprep.subr.mxu0 0.0
    %1838 = vmatpush1.msra.mxu0 0.0
    %1839 = vmatprep.subr.mxu0 0.0
    %1840 = vmatpush1.msra.mxu0 0.0
    %1841 = vmatprep.subr.mxu0 0.0
    %1842 = vmatpush1.msra.mxu0 0.0
    %1843 = vmatprep.subr.mxu0 0.0
    %1844 = vmatpush1.msra.mxu0 0.0
    %1845 = vmatprep.subr.mxu0 0.0
    %1846 = vmatpush1.msra.mxu0 0.0
    %1847 = vmatprep.subr.mxu0 0.0
    %1848 = vmatpush1.msra.mxu0 0.0
    %1849 = vmatprep.subr.mxu0 0.0
    %1850 = vmatpush1.msra.mxu0 0.0
    %1851 = vmatprep.subr.mxu0 0.0
    %1852 = vmatpush1.msra.mxu0 0.0
    %1853 = vmatprep.subr.mxu0 0.0
    %1854 = vmatpush1.msra.mxu0 0.0
    %1855 = vmatprep.subr.mxu0 0.0
    %1856 = vmatpush1.msra.mxu0 0.0
    %1857 = vmatprep.subr.mxu0 0.0
    %1858 = vmatpush1.msra.mxu0 0.0
    %1859 = vmatprep.subr.mxu0 0.0
    %1860 = vmatpush1.msra.mxu0 0.0
    %1861 = vmatprep.subr.mxu0 0.0
    %1862 = vmatpush1.msra.mxu0 0.0
    %1863 = vmatprep.subr.mxu0 0.0
    %1864 = vmatpush1.msra.mxu0 0.0
    %1865 = vmatprep.mubr.f32.mxu0 0.0
    %1866 = vmatmul.mubr.f32.gmra.mrb[0].mxu0 %v1799
    %v1867 = vpop.f32.mrb[0].mxu0
    %v1868 = vadd.f32 0.0, %v1867
    %v1869 = vpop.f32.mrb[0].mxu0
    %1870 = vdwg.mxu0
    %1872 = vrot.lane.b32.xlu0 %v1710, 8
    %v1873 = vpop.permute.xlu0 %1872
    %1876 = vrot.lane.b32.xlu0 %v1789, 16
    %v1877 = vpop.permute.xlu0 %1876
    %1880 = vrot.lane.b32.xlu0 %v1868, 24
    %v1881 = vpop.permute.xlu0 %1880
    %v1883 = vsel %vm202, %v1631, %v1873
    %v1884 = vsel %vm877, %v1883, %v1877
    %v1885 = vsel %vm879, %v1884, %v1881
    %v1886 = vlaneseq
    %v1887 = vshrl.u32 %v1886, 7
    %v1888 = vsub.s32 5, %v1887
    %v1889 = vrot.slane %v118, %v1888
    %1890 = vrot.lane.b32.xlu0 %v99, 32
    %v1891 = vpop.permute.xlu0 %1890
    %1892 = vrot.lane.b32.xlu0 %v102, 32
    %v1893 = vpop.permute.xlu0 %1892
    %1894 = vrot.lane.b32.xlu0 %v105, 32
    %v1895 = vpop.permute.xlu0 %1894
    %1896 = vrot.lane.b32.xlu0 %v108, 32
    %v1897 = vpop.permute.xlu0 %1896
    %v1903 = vsel %vm124, %v1885, 0
    %1905 = vmatprep.subr.mxu0 0.0
    %1906 = vmatpush1.msra.mxu0 %v1891
    %1907 = vmatprep.subr.mxu0 0.0
    %1908 = vmatpush1.msra.mxu0 %v1893
    %1909 = vmatprep.subr.mxu0 0.0
    %1910 = vmatpush1.msra.mxu0 %v1895
    %1911 = vmatprep.subr.mxu0 0.0
    %1912 = vmatpush1.msra.mxu0 %v1897
    %1913 = vmatprep.subr.mxu0 0.0
    %1914 = vmatpush1.msra.mxu0 0.0
    %1915 = vmatprep.subr.mxu0 0.0
    %1916 = vmatpush1.msra.mxu0 0.0
    %1917 = vmatprep.subr.mxu0 0.0
    %1918 = vmatpush1.msra.mxu0 0.0
    %1919 = vmatprep.subr.mxu0 0.0
    %1920 = vmatpush1.msra.mxu0 0.0
    %1921 = vmatprep.subr.mxu0 0.0
    %1922 = vmatpush1.msra.mxu0 0.0
    %1923 = vmatprep.subr.mxu0 0.0
    %1924 = vmatpush1.msra.mxu0 0.0
    %1925 = vmatprep.subr.mxu0 0.0
    %1926 = vmatpush1.msra.mxu0 0.0
    %1927 = vmatprep.subr.mxu0 0.0
    %1928 = vmatpush1.msra.mxu0 0.0
    %1929 = vmatprep.subr.mxu0 0.0
    %1930 = vmatpush1.msra.mxu0 0.0
    %1931 = vmatprep.subr.mxu0 0.0
    %1932 = vmatpush1.msra.mxu0 0.0
    %1933 = vmatprep.subr.mxu0 0.0
    %1934 = vmatpush1.msra.mxu0 0.0
    %1935 = vmatprep.subr.mxu0 0.0
    %1936 = vmatpush1.msra.mxu0 0.0
    %1937 = vmatprep.subr.mxu0 0.0
    %1938 = vmatpush1.msra.mxu0 0.0
    %1939 = vmatprep.subr.mxu0 0.0
    %1940 = vmatpush1.msra.mxu0 0.0
    %1941 = vmatprep.subr.mxu0 0.0
    %1942 = vmatpush1.msra.mxu0 0.0
    %1943 = vmatprep.subr.mxu0 0.0
    %1944 = vmatpush1.msra.mxu0 0.0
    %1945 = vmatprep.subr.mxu0 0.0
    %1946 = vmatpush1.msra.mxu0 0.0
    %1947 = vmatprep.subr.mxu0 0.0
    %1948 = vmatpush1.msra.mxu0 0.0
    %1949 = vmatprep.subr.mxu0 0.0
    %1950 = vmatpush1.msra.mxu0 0.0
    %1951 = vmatprep.subr.mxu0 0.0
    %1952 = vmatpush1.msra.mxu0 0.0
    %1953 = vmatprep.subr.mxu0 0.0
    %1954 = vmatpush1.msra.mxu0 0.0
    %1955 = vmatprep.subr.mxu0 0.0
    %1956 = vmatpush1.msra.mxu0 0.0
    %1957 = vmatprep.subr.mxu0 0.0
    %1958 = vmatpush1.msra.mxu0 0.0
    %1959 = vmatprep.subr.mxu0 0.0
    %1960 = vmatpush1.msra.mxu0 0.0
    %1961 = vmatprep.subr.mxu0 0.0
    %1962 = vmatpush1.msra.mxu0 0.0
    %1963 = vmatprep.subr.mxu0 0.0
    %1964 = vmatpush1.msra.mxu0 0.0
    %1965 = vmatprep.subr.mxu0 0.0
    %1966 = vmatpush1.msra.mxu0 0.0
    %1967 = vmatprep.subr.mxu0 0.0
    %1968 = vmatpush1.msra.mxu0 0.0
    %1969 = vmatprep.mubr.f32.mxu0 0.0
    %1970 = vmatmul.mubr.f32.gmra.mrb[0].mxu0 %v1903
    %v1971 = vpop.f32.mrb[0].mxu0
    %v1972 = vadd.f32 %v1889, %v1971
    %v1973 = vpop.f32.mrb[0].mxu0
    %1974 = vdwg.mxu0
    %v1975 = vadd.f32 %v1972, %v998
    %v1976 = vsel %vm124, %v1975, 0.0
    %1977 = vadd.xlane.f32.xlu0 %v1976
    %v1978 = vpop.xlane.xlu0 %1977
    %v1979 = vmul.f32 %v1978, %v978
    %v1980 = vsub.f32 %v1975, %v1979
    %v1981 = vmul.f32 %v1980, %v1980
    %v1982 = vsel %vm124, %v1981, 0.0
    %1983 = vadd.xlane.f32.xlu0 %v1982
    %v1984 = vpop.xlane.xlu0 %1983
    %v1985 = vmul.f32 %v1984, %v978
    %v1986 = vadd.f32 %v1985, 1e-06
    %v1987 = vrsqrt.pop %v1986
    %v1988 = vmul.f32 %v1980, %v1987
    %v1989 = vlaneseq
    %v1990 = vshrl.u32 %v1989, 7
    %v1991 = vsub.s32 6, %v1990
    %v1992 = vrot.slane %v118, %v1991
    %v1993 = vmul.f32 %v1988, %v1992
    %v1994 = vlaneseq
    %v1995 = vshrl.u32 %v1994, 7
    %v1996 = vsub.s32 7, %v1995
    %v1997 = vrot.slane %v118, %v1996
    %v1998 = vadd.f32 %v1993, %v1997
    %v1999 = vlaneseq
    %v2000 = vshrl.u32 %v1999, 7
    %v2001 = vsub.s32 0, %v2000
    %v2002 = vrot.slane %v119, %v2001
    %v2004 = vsel %vm124, %v1998, 0
    %2006 = vmatprep.subr.mxu0 0.0
    %2007 = vmatpush1.msra.mxu0 %v100
    %2008 = vmatprep.subr.mxu0 0.0
    %2009 = vmatpush1.msra.mxu0 %v103
    %2010 = vmatprep.subr.mxu0 0.0
    %2011 = vmatpush1.msra.mxu0 %v106
    %2012 = vmatprep.subr.mxu0 0.0
    %2013 = vmatpush1.msra.mxu0 %v109
    %2014 = vmatprep.subr.mxu0 0.0
    %2015 = vmatpush1.msra.mxu0 0.0
    %2016 = vmatprep.subr.mxu0 0.0
    %2017 = vmatpush1.msra.mxu0 0.0
    %2018 = vmatprep.subr.mxu0 0.0
    %2019 = vmatpush1.msra.mxu0 0.0
    %2020 = vmatprep.subr.mxu0 0.0
    %2021 = vmatpush1.msra.mxu0 0.0
    %2022 = vmatprep.subr.mxu0 0.0
    %2023 = vmatpush1.msra.mxu0 0.0
    %2024 = vmatprep.subr.mxu0 0.0
    %2025 = vmatpush1.msra.mxu0 0.0
    %2026 = vmatprep.subr.mxu0 0.0
    %2027 = vmatpush1.msra.mxu0 0.0
    %2028 = vmatprep.subr.mxu0 0.0
    %2029 = vmatpush1.msra.mxu0 0.0
    %2030 = vmatprep.subr.mxu0 0.0
    %2031 = vmatpush1.msra.mxu0 0.0
    %2032 = vmatprep.subr.mxu0 0.0
    %2033 = vmatpush1.msra.mxu0 0.0
    %2034 = vmatprep.subr.mxu0 0.0
    %2035 = vmatpush1.msra.mxu0 0.0
    %2036 = vmatprep.subr.mxu0 0.0
    %2037 = vmatpush1.msra.mxu0 0.0
    %2038 = vmatprep.subr.mxu0 0.0
    %2039 = vmatpush1.msra.mxu0 0.0
    %2040 = vmatprep.subr.mxu0 0.0
    %2041 = vmatpush1.msra.mxu0 0.0
    %2042 = vmatprep.subr.mxu0 0.0
    %2043 = vmatpush1.msra.mxu0 0.0
    %2044 = vmatprep.subr.mxu0 0.0
    %2045 = vmatpush1.msra.mxu0 0.0
    %2046 = vmatprep.subr.mxu0 0.0
    %2047 = vmatpush1.msra.mxu0 0.0
    %2048 = vmatprep.subr.mxu0 0.0
    %2049 = vmatpush1.msra.mxu0 0.0
    %2050 = vmatprep.subr.mxu0 0.0
    %2051 = vmatpush1.msra.mxu0 0.0
    %2052 = vmatprep.subr.mxu0 0.0
    %2053 = vmatpush1.msra.mxu0 0.0
    %2054 = vmatprep.subr.mxu0 0.0
    %2055 = vmatpush1.msra.mxu0 0.0
    %2056 = vmatprep.subr.mxu0 0.0
    %2057 = vmatpush1.msra.mxu0 0.0
    %2058 = vmatprep.subr.mxu0 0.0
    %2059 = vmatpush1.msra.mxu0 0.0
    %2060 = vmatprep.subr.mxu0 0.0
    %2061 = vmatpush1.msra.mxu0 0.0
    %2062 = vmatprep.subr.mxu0 0.0
    %2063 = vmatpush1.msra.mxu0 0.0
    %2064 = vmatprep.subr.mxu0 0.0
    %2065 = vmatpush1.msra.mxu0 0.0
    %2066 = vmatprep.subr.mxu0 0.0
    %2067 = vmatpush1.msra.mxu0 0.0
    %2068 = vmatprep.subr.mxu0 0.0
    %2069 = vmatpush1.msra.mxu0 0.0
    %2070 = vmatprep.mubr.f32.mxu0 0.0
    %2071 = vmatmul.mubr.f32.gmra.mrb[0].mxu0 %v2004
    %v2072 = vpop.f32.mrb[0].mxu0
    %v2073 = vadd.f32 %v2002, %v2072
    %v2074 = vpop.f32.mrb[0].mxu0
    %2075 = vdwg.mxu0
    %v2076 = vmax.f32 %v2073, 0.0
    %v2077 = vlaneseq
    %v2078 = vshrl.u32 %v2077, 7
    %v2079 = vsub.s32 1, %v2078
    %v2080 = vrot.slane %v119, %v2079
    %vm2081 = vcmask 523264
    %v2083 = vsel %vm2081, %v2076, 0
    %2085 = vmatprep.subr.mxu0 0.0
    %2086 = vmatpush1.msra.mxu0 %v110
    %2087 = vmatprep.subr.mxu0 0.0
    %2088 = vmatpush1.msra.mxu0 %v111
    %2089 = vmatprep.subr.mxu0 0.0
    %2090 = vmatpush1.msra.mxu0 %v112
    %2091 = vmatprep.subr.mxu0 0.0
    %2092 = vmatpush1.msra.mxu0 %v113
    %2093 = vmatprep.subr.mxu0 0.0
    %2094 = vmatpush1.msra.mxu0 %v114
    %2095 = vmatprep.subr.mxu0 0.0
    %2096 = vmatpush1.msra.mxu0 %v115
    %2097 = vmatprep.subr.mxu0 0.0
    %2098 = vmatpush1.msra.mxu0 %v116
    %2099 = vmatprep.subr.mxu0 0.0
    %2100 = vmatpush1.msra.mxu0 %v117
    %2101 = vmatprep.subr.mxu0 0.0
    %2102 = vmatpush1.msra.mxu0 0.0
    %2103 = vmatprep.subr.mxu0 0.0
    %2104 = vmatpush1.msra.mxu0 0.0
    %2105 = vmatprep.subr.mxu0 0.0
    %2106 = vmatpush1.msra.mxu0 0.0
    %2107 = vmatprep.subr.mxu0 0.0
    %2108 = vmatpush1.msra.mxu0 0.0
    %2109 = vmatprep.subr.mxu0 0.0
    %2110 = vmatpush1.msra.mxu0 0.0
    %2111 = vmatprep.subr.mxu0 0.0
    %2112 = vmatpush1.msra.mxu0 0.0
    %2113 = vmatprep.subr.mxu0 0.0
    %2114 = vmatpush1.msra.mxu0 0.0
    %2115 = vmatprep.subr.mxu0 0.0
    %2116 = vmatpush1.msra.mxu0 0.0
    %2117 = vmatprep.subr.mxu0 0.0
    %2118 = vmatpush1.msra.mxu0 0.0
    %2119 = vmatprep.subr.mxu0 0.0
    %2120 = vmatpush1.msra.mxu0 0.0
    %2121 = vmatprep.subr.mxu0 0.0
    %2122 = vmatpush1.msra.mxu0 0.0
    %2123 = vmatprep.subr.mxu0 0.0
    %2124 = vmatpush1.msra.mxu0 0.0
    %2125 = vmatprep.subr.mxu0 0.0
    %2126 = vmatpush1.msra.mxu0 0.0
    %2127 = vmatprep.subr.mxu0 0.0
    %2128 = vmatpush1.msra.mxu0 0.0
    %2129 = vmatprep.subr.mxu0 0.0
    %2130 = vmatpush1.msra.mxu0 0.0
    %2131 = vmatprep.subr.mxu0 0.0
    %2132 = vmatpush1.msra.mxu0 0.0
    %2133 = vmatprep.subr.mxu0 0.0
    %2134 = vmatpush1.msra.mxu0 0.0
    %2135 = vmatprep.subr.mxu0 0.0
    %2136 = vmatpush1.msra.mxu0 0.0
    %2137 = vmatprep.subr.mxu0 0.0
    %2138 = vmatpush1.msra.mxu0 0.0
    %2139 = vmatprep.subr.mxu0 0.0
    %2140 = vmatpush1.msra.mxu0 0.0
    %2141 = vmatprep.subr.mxu0 0.0
    %2142 = vmatpush1.msra.mxu0 0.0
    %2143 = vmatprep.subr.mxu0 0.0
    %2144 = vmatpush1.msra.mxu0 0.0
    %2145 = vmatprep.subr.mxu0 0.0
    %2146 = vmatpush1.msra.mxu0 0.0
    %2147 = vmatprep.subr.mxu0 0.0
    %2148 = vmatpush1.msra.mxu0 0.0
    %2149 = vmatprep.mubr.f32.mxu0 0.0
    %2150 = vmatmul.mubr.f32.gmra.mrb[0].mxu0 %v2083
    %v2151 = vpop.f32.mrb[0].mxu0
    %v2152 = vadd.f32 %v2080, %v2151
    %v2153 = vpop.f32.mrb[0].mxu0
    %2154 = vdwg.mxu0
    %v2155 = vadd.f32 %v2152, %v1998
    %v2156 = vsel %vm124, %v2155, 0.0
    %2157 = vadd.xlane.f32.xlu0 %v2156
    %v2158 = vpop.xlane.xlu0 %2157
    %v2159 = vmul.f32 %v2158, %v978
    %v2160 = vsub.f32 %v2155, %v2159
    %v2161 = vmul.f32 %v2160, %v2160
    %v2162 = vsel %vm124, %v2161, 0.0
    %2163 = vadd.xlane.f32.xlu0 %v2162
    %v2164 = vpop.xlane.xlu0 %2163
    %v2165 = vmul.f32 %v2164, %v978
    %v2166 = vadd.f32 %v2165, 1e-06
    %v2167 = vrsqrt.pop %v2166
    %v2168 = vmul.f32 %v2160, %v2167
    %v2169 = vlaneseq
    %v2170 = vshrl.u32 %v2169, 7
    %v2171 = vsub.s32 2, %v2170
    %v2172 = vrot.slane %v119, %v2171
    %v2173 = vmul.f32 %v2168, %v2172
    %v2174 = vlaneseq
    %v2175 = vshrl.u32 %v2174, 7
    %v2176 = vsub.s32 3, %v2175
    %v2177 = vrot.slane %v119, %v2176
    %v2178 = vadd.f32 %v2173, %v2177
    %s2179 = scalar_lea.vmem %s4, 96
    %v2180 = vld [vmem:[%s2179] sm:$0xff]
    %v2181 = vld [vmem:[%s2179 + $0x8] sm:$0xff]
    %v2182 = vld [vmem:[%s2179 + $0x10] sm:$0xff]
    %v2183 = vld [vmem:[%s2179 + $0x18] sm:$0xff]
    %v2184 = vld [vmem:[%s2179 + $0x20] sm:$0xff]
    %v2185 = vld [vmem:[%s2179 + $0x28] sm:$0xff]
    %v2186 = vld [vmem:[%s2179 + $0x30] sm:$0xff]
    %v2187 = vld [vmem:[%s2179 + $0x38] sm:$0xff]
    %v2188 = vld [vmem:[%s2179 + $0x40] sm:$0xff]
    %v2189 = vld [vmem:[%s2179 + $0x48] sm:$0xff]
    %v2190 = vld [vmem:[%s2179 + $0x50] sm:$0xff]
    %v2191 = vld [vmem:[%s2179 + $0x58] sm:$0xff]
    %s2192 = scalar_lea.vmem %s5, 64
    %v2193 = vld [vmem:[%s2192] sm:$0xff]
    %v2194 = vld [vmem:[%s2192 + $0x8] sm:$0xff]
    %v2195 = vld [vmem:[%s2192 + $0x10] sm:$0xff]
    %v2196 = vld [vmem:[%s2192 + $0x18] sm:$0xff]
    %v2197 = vld [vmem:[%s2192 + $0x20] sm:$0xff]
    %v2198 = vld [vmem:[%s2192 + $0x28] sm:$0xff]
    %v2199 = vld [vmem:[%s2192 + $0x30] sm:$0xff]
    %v2200 = vld [vmem:[%s2192 + $0x38] sm:$0xff]
    %s2201 = scalar_lea.vmem %s6, 16
    %v2202 = vld [vmem:[%s2201] sm:$0xff]
    %v2203 = vld [vmem:[%s2201 + $0x8] sm:$0xf]
    %v2205 = vrot.slane %v97, 3
    %v2207 = vrot.slane %v97, 2
    %v2209 = vrot.slane %v97, 1
    %vm2211 = vcmask 1040384
    %v2212 = vsel %vm2211, %v2205, %v2207
    %vm2213 = vcmask 1041408
    %v2214 = vsel %vm2213, %v2212, %v2209
    %vm2215 = vcmask 1042432
    %v2216 = vsel %vm2215, %v2214, %v97
    %v2218 = vrot.slane %v2178, 3
    %v2219 = vsel %vm124, %v2218, 0
    %2221 = vmatprep.subr.mxu0 0.0
    %2222 = vmatpush1.msra.mxu0 %v2180
    %2223 = vmatprep.subr.mxu0 0.0
    %2224 = vmatpush1.msra.mxu0 %v2183
    %2225 = vmatprep.subr.mxu0 0.0
    %2226 = vmatpush1.msra.mxu0 %v2186
    %2227 = vmatprep.subr.mxu0 0.0
    %2228 = vmatpush1.msra.mxu0 %v2189
    %2229 = vmatprep.subr.mxu0 0.0
    %2230 = vmatpush1.msra.mxu0 0.0
    %2231 = vmatprep.subr.mxu0 0.0
    %2232 = vmatpush1.msra.mxu0 0.0
    %2233 = vmatprep.subr.mxu0 0.0
    %2234 = vmatpush1.msra.mxu0 0.0
    %2235 = vmatprep.subr.mxu0 0.0
    %2236 = vmatpush1.msra.mxu0 0.0
    %2237 = vmatprep.subr.mxu0 0.0
    %2238 = vmatpush1.msra.mxu0 0.0
    %2239 = vmatprep.subr.mxu0 0.0
    %2240 = vmatpush1.msra.mxu0 0.0
    %2241 = vmatprep.subr.mxu0 0.0
    %2242 = vmatpush1.msra.mxu0 0.0
    %2243 = vmatprep.subr.mxu0 0.0
    %2244 = vmatpush1.msra.mxu0 0.0
    %2245 = vmatprep.subr.mxu0 0.0
    %2246 = vmatpush1.msra.mxu0 0.0
    %2247 = vmatprep.subr.mxu0 0.0
    %2248 = vmatpush1.msra.mxu0 0.0
    %2249 = vmatprep.subr.mxu0 0.0
    %2250 = vmatpush1.msra.mxu0 0.0
    %2251 = vmatprep.subr.mxu0 0.0
    %2252 = vmatpush1.msra.mxu0 0.0
    %2253 = vmatprep.subr.mxu0 0.0
    %2254 = vmatpush1.msra.mxu0 0.0
    %2255 = vmatprep.subr.mxu0 0.0
    %2256 = vmatpush1.msra.mxu0 0.0
    %2257 = vmatprep.subr.mxu0 0.0
    %2258 = vmatpush1.msra.mxu0 0.0
    %2259 = vmatprep.subr.mxu0 0.0
    %2260 = vmatpush1.msra.mxu0 0.0
    %2261 = vmatprep.subr.mxu0 0.0
    %2262 = vmatpush1.msra.mxu0 0.0
    %2263 = vmatprep.subr.mxu0 0.0
    %2264 = vmatpush1.msra.mxu0 0.0
    %2265 = vmatprep.subr.mxu0 0.0
    %2266 = vmatpush1.msra.mxu0 0.0
    %2267 = vmatprep.subr.mxu0 0.0
    %2268 = vmatpush1.msra.mxu0 0.0
    %2269 = vmatprep.subr.mxu0 0.0
    %2270 = vmatpush1.msra.mxu0 0.0
    %2271 = vmatprep.subr.mxu0 0.0
    %2272 = vmatpush1.msra.mxu0 0.0
    %2273 = vmatprep.subr.mxu0 0.0
    %2274 = vmatpush1.msra.mxu0 0.0
    %2275 = vmatprep.subr.mxu0 0.0
    %2276 = vmatpush1.msra.mxu0 0.0
    %2277 = vmatprep.subr.mxu0 0.0
    %2278 = vmatpush1.msra.mxu0 0.0
    %2279 = vmatprep.subr.mxu0 0.0
    %2280 = vmatpush1.msra.mxu0 0.0
    %2281 = vmatprep.subr.mxu0 0.0
    %2282 = vmatpush1.msra.mxu0 0.0
    %2283 = vmatprep.subr.mxu0 0.0
    %2284 = vmatpush1.msra.mxu0 0.0
    %2285 = vmatprep.mubr.f32.mxu0 0.0
    %2286 = vmatmul.mubr.f32.gmra.mrb[0].mxu0 %v2219
    %v2287 = vpop.f32.mrb[0].mxu0
    %v2288 = vadd.f32 %v2202, %v2287
    %v2289 = vpop.f32.mrb[0].mxu0
    %2290 = vdwg.mxu0
    %v2291 = vlaneseq
    %v2292 = vshrl.u32 %v2291, 7
    %v2293 = vsub.s32 0, %v2292
    %v2294 = vrot.slane %v2202, %v2293
    %2299 = vrot.lane.b32.xlu0 %v2180, 96
    %v2300 = vpop.permute.xlu0 %2299
    %2301 = vrot.lane.b32.xlu0 %v2183, 96
    %v2302 = vpop.permute.xlu0 %2301
    %2303 = vrot.lane.b32.xlu0 %v2186, 96
    %v2304 = vpop.permute.xlu0 %2303
    %2305 = vrot.lane.b32.xlu0 %v2189, 96
    %v2306 = vpop.permute.xlu0 %2305
    %2312 = vrot.lane.b32.xlu0 %v2294, 96
    %v2313 = vpop.permute.xlu0 %2312
    %v2315 = vsel %vm124, %v2178, 0
    %2317 = vmatprep.subr.mxu0 0.0
    %2318 = vmatpush1.msra.mxu0 %v2300
    %2319 = vmatprep.subr.mxu0 0.0
    %2320 = vmatpush1.msra.mxu0 %v2302
    %2321 = vmatprep.subr.mxu0 0.0
    %2322 = vmatpush1.msra.mxu0 %v2304
    %2323 = vmatprep.subr.mxu0 0.0
    %2324 = vmatpush1.msra.mxu0 %v2306
    %2325 = vmatprep.subr.mxu0 0.0
    %2326 = vmatpush1.msra.mxu0 0.0
    %2327 = vmatprep.subr.mxu0 0.0
    %2328 = vmatpush1.msra.mxu0 0.0
    %2329 = vmatprep.subr.mxu0 0.0
    %2330 = vmatpush1.msra.mxu0 0.0
    %2331 = vmatprep.subr.mxu0 0.0
    %2332 = vmatpush1.msra.mxu0 0.0
    %2333 = vmatprep.subr.mxu0 0.0
    %2334 = vmatpush1.msra.mxu0 0.0
    %2335 = vmatprep.subr.mxu0 0.0
    %2336 = vmatpush1.msra.mxu0 0.0
    %2337 = vmatprep.subr.mxu0 0.0
    %2338 = vmatpush1.msra.mxu0 0.0
    %2339 = vmatprep.subr.mxu0 0.0
    %2340 = vmatpush1.msra.mxu0 0.0
    %2341 = vmatprep.subr.mxu0 0.0
    %2342 = vmatpush1.msra.mxu0 0.0
    %2343 = vmatprep.subr.mxu0 0.0
    %2344 = vmatpush1.msra.mxu0 0.0
    %2345 = vmatprep.subr.mxu0 0.0
    %2346 = vmatpush1.msra.mxu0 0.0
    %2347 = vmatprep.subr.mxu0 0.0
    %2348 = vmatpush1.msra.mxu0 0.0
    %2349 = vmatprep.subr.mxu0 0.0
    %2350 = vmatpush1.msra.mxu0 0.0
    %2351 = vmatprep.subr.mxu0 0.0
    %2352 = vmatpush1.msra.mxu0 0.0
    %2353 = vmatprep.subr.mxu0 0.0
    %2354 = vmatpush1.msra.mxu0 0.0
    %2355 = vmatprep.subr.mxu0 0.0
    %2356 = vmatpush1.msra.mxu0 0.0
    %2357 = vmatprep.subr.mxu0 0.0
    %2358 = vmatpush1.msra.mxu0 0.0
    %2359 = vmatprep.subr.mxu0 0.0
    %2360 = vmatpush1.msra.mxu0 0.0
    %2361 = vmatprep.subr.mxu0 0.0
    %2362 = vmatpush1.msra.mxu0 0.0
    %2363 = vmatprep.subr.mxu0 0.0
    %2364 = vmatpush1.msra.mxu0 0.0
    %2365 = vmatprep.subr.mxu0 0.0
    %2366 = vmatpush1.msra.mxu0 0.0
    %2367 = vmatprep.subr.mxu0 0.0
    %2368 = vmatpush1.msra.mxu0 0.0
    %2369 = vmatprep.subr.mxu0 0.0
    %2370 = vmatpush1.msra.mxu0 0.0
    %2371 = vmatprep.subr.mxu0 0.0
    %2372 = vmatpush1.msra.mxu0 0.0
    %2373 = vmatprep.subr.mxu0 0.0
    %2374 = vmatpush1.msra.mxu0 0.0
    %2375 = vmatprep.subr.mxu0 0.0
    %2376 = vmatpush1.msra.mxu0 0.0
    %2377 = vmatprep.subr.mxu0 0.0
    %2378 = vmatpush1.msra.mxu0 0.0
    %2379 = vmatprep.subr.mxu0 0.0
    %2380 = vmatpush1.msra.mxu0 0.0
    %2381 = vmatprep.mubr.f32.mxu0 0.0
    %2382 = vmatmul.mubr.f32.gmra.mrb[0].mxu0 %v2315
    %v2383 = vpop.f32.mrb[0].mxu0
    %v2384 = vadd.f32 %v2313, %v2383
    %v2385 = vpop.f32.mrb[0].mxu0
    %2386 = vdwg.mxu0
    %v2387 = vmul.f32 %v2288, 0.35355338
    %v2389 = vsel %vm202, %v2387, 0
    %v2392 = vsel %vm202, %v2384, 0
    %2394 = vmatprep.subr.mxu0 0.0
    %2395 = vmatpush1.xpose.msra.mxu0 %v2392
    %2396 = vmatprep.subr.mxu0 0.0
    %2397 = vmatpush1.xpose.msra.mxu0 0.0
    %2398 = vmatprep.subr.mxu0 0.0
    %2399 = vmatpush1.xpose.msra.mxu0 0.0
    %2400 = vmatprep.subr.mxu0 0.0
    %2401 = vmatpush1.xpose.msra.mxu0 0.0
    %2402 = vmatprep.subr.mxu0 0.0
    %2403 = vmatpush1.xpose.msra.mxu0 0.0
    %2404 = vmatprep.subr.mxu0 0.0
    %2405 = vmatpush1.xpose.msra.mxu0 0.0
    %2406 = vmatprep.subr.mxu0 0.0
    %2407 = vmatpush1.xpose.msra.mxu0 0.0
    %2408 = vmatprep.subr.mxu0 0.0
    %2409 = vmatpush1.xpose.msra.mxu0 0.0
    %2410 = vmatprep.subr.mxu0 0.0
    %2411 = vmatpush1.xpose.msra.mxu0 0.0
    %2412 = vmatprep.subr.mxu0 0.0
    %2413 = vmatpush1.xpose.msra.mxu0 0.0
    %2414 = vmatprep.subr.mxu0 0.0
    %2415 = vmatpush1.xpose.msra.mxu0 0.0
    %2416 = vmatprep.subr.mxu0 0.0
    %2417 = vmatpush1.xpose.msra.mxu0 0.0
    %2418 = vmatprep.subr.mxu0 0.0
    %2419 = vmatpush1.xpose.msra.mxu0 0.0
    %2420 = vmatprep.subr.mxu0 0.0
    %2421 = vmatpush1.xpose.msra.mxu0 0.0
    %2422 = vmatprep.subr.mxu0 0.0
    %2423 = vmatpush1.xpose.msra.mxu0 0.0
    %2424 = vmatprep.subr.mxu0 0.0
    %2425 = vmatpush1.xpose.msra.mxu0 0.0
    %2426 = vmatprep.subr.mxu0 0.0
    %2427 = vmatpush1.xpose.msra.mxu0 0.0
    %2428 = vmatprep.subr.mxu0 0.0
    %2429 = vmatpush1.xpose.msra.mxu0 0.0
    %2430 = vmatprep.subr.mxu0 0.0
    %2431 = vmatpush1.xpose.msra.mxu0 0.0
    %2432 = vmatprep.subr.mxu0 0.0
    %2433 = vmatpush1.xpose.msra.mxu0 0.0
    %2434 = vmatprep.subr.mxu0 0.0
    %2435 = vmatpush1.xpose.msra.mxu0 0.0
    %2436 = vmatprep.subr.mxu0 0.0
    %2437 = vmatpush1.xpose.msra.mxu0 0.0
    %2438 = vmatprep.subr.mxu0 0.0
    %2439 = vmatpush1.xpose.msra.mxu0 0.0
    %2440 = vmatprep.subr.mxu0 0.0
    %2441 = vmatpush1.xpose.msra.mxu0 0.0
    %2442 = vmatprep.subr.mxu0 0.0
    %2443 = vmatpush1.xpose.msra.mxu0 0.0
    %2444 = vmatprep.subr.mxu0 0.0
    %2445 = vmatpush1.xpose.msra.mxu0 0.0
    %2446 = vmatprep.subr.mxu0 0.0
    %2447 = vmatpush1.xpose.msra.mxu0 0.0
    %2448 = vmatprep.subr.mxu0 0.0
    %2449 = vmatpush1.xpose.msra.mxu0 0.0
    %2450 = vmatprep.subr.mxu0 0.0
    %2451 = vmatpush1.xpose.msra.mxu0 0.0
    %2452 = vmatprep.subr.mxu0 0.0
    %2453 = vmatpush1.xpose.msra.mxu0 0.0
    %2454 = vmatprep.subr.mxu0 0.0
    %2455 = vmatpush1.xpose.msra.mxu0 0.0
    %2456 = vmatprep.subr.mxu0 0.0
    %2457 = vmatpush1.xpose.msra.mxu0 0.0
    %2458 = vmatprep.mubr.f32.mxu0 0.0
    %2459 = vmatmul.mubr.f32.gmra.mrb[0].mxu0 %v2389
    %v2460 = vpop.f32.mrb[0].mxu0
    %v2461 = vadd.f32 0.0, %v2460
    %v2462 = vpop.f32.mrb[0].mxu0
    %2463 = vdwg.mxu0
    %2464 = vrot.lane.b32.xlu0 %v2387, 120
    %v2465 = vpop.permute.xlu0 %2464
    %2466 = vrot.lane.b32.xlu0 %v2384, 120
    %v2467 = vpop.permute.xlu0 %2466
    %v2468 = vsel %vm202, %v2465, 0
    %v2470 = vsel %vm202, %v2467, 0
    %2472 = vmatprep.subr.mxu0 0.0
    %2473 = vmatpush1.xpose.msra.mxu0 %v2470
    %2474 = vmatprep.subr.mxu0 0.0
    %2475 = vmatpush1.xpose.msra.mxu0 0.0
    %2476 = vmatprep.subr.mxu0 0.0
    %2477 = vmatpush1.xpose.msra.mxu0 0.0
    %2478 = vmatprep.subr.mxu0 0.0
    %2479 = vmatpush1.xpose.msra.mxu0 0.0
    %2480 = vmatprep.subr.mxu0 0.0
    %2481 = vmatpush1.xpose.msra.mxu0 0.0
    %2482 = vmatprep.subr.mxu0 0.0
    %2483 = vmatpush1.xpose.msra.mxu0 0.0
    %2484 = vmatprep.subr.mxu0 0.0
    %2485 = vmatpush1.xpose.msra.mxu0 0.0
    %2486 = vmatprep.subr.mxu0 0.0
    %2487 = vmatpush1.xpose.msra.mxu0 0.0
    %2488 = vmatprep.subr.mxu0 0.0
    %2489 = vmatpush1.xpose.msra.mxu0 0.0
    %2490 = vmatprep.subr.mxu0 0.0
    %2491 = vmatpush1.xpose.msra.mxu0 0.0
    %2492 = vmatprep.subr.mxu0 0.0
    %2493 = vmatpush1.xpose.msra.mxu0 0.0
    %2494 = vmatprep.subr.mxu0 0.0
    %2495 = vmatpush1.xpose.msra.mxu0 0.0
    %2496 = vmatprep.subr.mxu0 0.0
    %2497 = vmatpush1.xpose.msra.mxu0 0.0
    %2498 = vmatprep.subr.mxu0 0.0
    %2499 = vmatpush1.xpose.msra.mxu0 0.0
    %2500 = vmatprep.subr.mxu0 0.0
    %2501 = vmatpush1.xpose.msra.mxu0 0.0
    %2502 = vmatprep.subr.mxu0 0.0
    %2503 = vmatpush1.xpose.msra.mxu0 0.0
    %2504 = vmatprep.subr.mxu0 0.0
    %2505 = vmatpush1.xpose.msra.mxu0 0.0
    %2506 = vmatprep.subr.mxu0 0.0
    %2507 = vmatpush1.xpose.msra.mxu0 0.0
    %2508 = vmatprep.subr.mxu0 0.0
    %2509 = vmatpush1.xpose.msra.mxu0 0.0
    %2510 = vmatprep.subr.mxu0 0.0
    %2511 = vmatpush1.xpose.msra.mxu0 0.0
    %2512 = vmatprep.subr.mxu0 0.0
    %2513 = vmatpush1.xpose.msra.mxu0 0.0
    %2514 = vmatprep.subr.mxu0 0.0
    %2515 = vmatpush1.xpose.msra.mxu0 0.0
    %2516 = vmatprep.subr.mxu0 0.0
    %2517 = vmatpush1.xpose.msra.mxu0 0.0
    %2518 = vmatprep.subr.mxu0 0.0
    %2519 = vmatpush1.xpose.msra.mxu0 0.0
    %2520 = vmatprep.subr.mxu0 0.0
    %2521 = vmatpush1.xpose.msra.mxu0 0.0
    %2522 = vmatprep.subr.mxu0 0.0
    %2523 = vmatpush1.xpose.msra.mxu0 0.0
    %2524 = vmatprep.subr.mxu0 0.0
    %2525 = vmatpush1.xpose.msra.mxu0 0.0
    %2526 = vmatprep.subr.mxu0 0.0
    %2527 = vmatpush1.xpose.msra.mxu0 0.0
    %2528 = vmatprep.subr.mxu0 0.0
    %2529 = vmatpush1.xpose.msra.mxu0 0.0
    %2530 = vmatprep.subr.mxu0 0.0
    %2531 = vmatpush1.xpose.msra.mxu0 0.0
    %2532 = vmatprep.subr.mxu0 0.0
    %2533 = vmatpush1.xpose.msra.mxu0 0.0
    %2534 = vmatprep.subr.mxu0 0.0
    %2535 = vmatpush1.xpose.msra.mxu0 0.0
    %2536 = vmatprep.mubr.f32.mxu0 0.0
    %2537 = vmatmul.mubr.f32.gmra.mrb[0].mxu0 %v2468
    %v2538 = vpop.f32.mrb[0].mxu0
    %v2539 = vadd.f32 0.0, %v2538
    %v2540 = vpop.f32.mrb[0].mxu0
    %2541 = vdwg.mxu0
    %2542 = vrot.lane.b32.xlu0 %v2387, 112
    %v2543 = vpop.permute.xlu0 %2542
    %2544 = vrot.lane.b32.xlu0 %v2384, 112
    %v2545 = vpop.permute.xlu0 %2544
    %v2546 = vsel %vm202, %v2543, 0
    %v2548 = vsel %vm202, %v2545, 0
    %2550 = vmatprep.subr.mxu0 0.0
    %2551 = vmatpush1.xpose.msra.mxu0 %v2548
    %2552 = vmatprep.subr.mxu0 0.0
    %2553 = vmatpush1.xpose.msra.mxu0 0.0
    %2554 = vmatprep.subr.mxu0 0.0
    %2555 = vmatpush1.xpose.msra.mxu0 0.0
    %2556 = vmatprep.subr.mxu0 0.0
    %2557 = vmatpush1.xpose.msra.mxu0 0.0
    %2558 = vmatprep.subr.mxu0 0.0
    %2559 = vmatpush1.xpose.msra.mxu0 0.0
    %2560 = vmatprep.subr.mxu0 0.0
    %2561 = vmatpush1.xpose.msra.mxu0 0.0
    %2562 = vmatprep.subr.mxu0 0.0
    %2563 = vmatpush1.xpose.msra.mxu0 0.0
    %2564 = vmatprep.subr.mxu0 0.0
    %2565 = vmatpush1.xpose.msra.mxu0 0.0
    %2566 = vmatprep.subr.mxu0 0.0
    %2567 = vmatpush1.xpose.msra.mxu0 0.0
    %2568 = vmatprep.subr.mxu0 0.0
    %2569 = vmatpush1.xpose.msra.mxu0 0.0
    %2570 = vmatprep.subr.mxu0 0.0
    %2571 = vmatpush1.xpose.msra.mxu0 0.0
    %2572 = vmatprep.subr.mxu0 0.0
    %2573 = vmatpush1.xpose.msra.mxu0 0.0
    %2574 = vmatprep.subr.mxu0 0.0
    %2575 = vmatpush1.xpose.msra.mxu0 0.0
    %2576 = vmatprep.subr.mxu0 0.0
    %2577 = vmatpush1.xpose.msra.mxu0 0.0
    %2578 = vmatprep.subr.mxu0 0.0
    %2579 = vmatpush1.xpose.msra.mxu0 0.0
    %2580 = vmatprep.subr.mxu0 0.0
    %2581 = vmatpush1.xpose.msra.mxu0 0.0
    %2582 = vmatprep.subr.mxu0 0.0
    %2583 = vmatpush1.xpose.msra.mxu0 0.0
    %2584 = vmatprep.subr.mxu0 0.0
    %2585 = vmatpush1.xpose.msra.mxu0 0.0
    %2586 = vmatprep.subr.mxu0 0.0
    %2587 = vmatpush1.xpose.msra.mxu0 0.0
    %2588 = vmatprep.subr.mxu0 0.0
    %2589 = vmatpush1.xpose.msra.mxu0 0.0
    %2590 = vmatprep.subr.mxu0 0.0
    %2591 = vmatpush1.xpose.msra.mxu0 0.0
    %2592 = vmatprep.subr.mxu0 0.0
    %2593 = vmatpush1.xpose.msra.mxu0 0.0
    %2594 = vmatprep.subr.mxu0 0.0
    %2595 = vmatpush1.xpose.msra.mxu0 0.0
    %2596 = vmatprep.subr.mxu0 0.0
    %2597 = vmatpush1.xpose.msra.mxu0 0.0
    %2598 = vmatprep.subr.mxu0 0.0
    %2599 = vmatpush1.xpose.msra.mxu0 0.0
    %2600 = vmatprep.subr.mxu0 0.0
    %2601 = vmatpush1.xpose.msra.mxu0 0.0
    %2602 = vmatprep.subr.mxu0 0.0
    %2603 = vmatpush1.xpose.msra.mxu0 0.0
    %2604 = vmatprep.subr.mxu0 0.0
    %2605 = vmatpush1.xpose.msra.mxu0 0.0
    %2606 = vmatprep.subr.mxu0 0.0
    %2607 = vmatpush1.xpose.msra.mxu0 0.0
    %2608 = vmatprep.subr.mxu0 0.0
    %2609 = vmatpush1.xpose.msra.mxu0 0.0
    %2610 = vmatprep.subr.mxu0 0.0
    %2611 = vmatpush1.xpose.msra.mxu0 0.0
    %2612 = vmatprep.subr.mxu0 0.0
    %2613 = vmatpush1.xpose.msra.mxu0 0.0
    %2614 = vmatprep.mubr.f32.mxu0 0.0
    %2615 = vmatmul.mubr.f32.gmra.mrb[0].mxu0 %v2546
    %v2616 = vpop.f32.mrb[0].mxu0
    %v2617 = vadd.f32 0.0, %v2616
    %v2618 = vpop.f32.mrb[0].mxu0
    %2619 = vdwg.mxu0
    %2620 = vrot.lane.b32.xlu0 %v2387, 104
    %v2621 = vpop.permute.xlu0 %2620
    %2622 = vrot.lane.b32.xlu0 %v2384, 104
    %v2623 = vpop.permute.xlu0 %2622
    %v2624 = vsel %vm202, %v2621, 0
    %v2626 = vsel %vm202, %v2623, 0
    %2628 = vmatprep.subr.mxu0 0.0
    %2629 = vmatpush1.xpose.msra.mxu0 %v2626
    %2630 = vmatprep.subr.mxu0 0.0
    %2631 = vmatpush1.xpose.msra.mxu0 0.0
    %2632 = vmatprep.subr.mxu0 0.0
    %2633 = vmatpush1.xpose.msra.mxu0 0.0
    %2634 = vmatprep.subr.mxu0 0.0
    %2635 = vmatpush1.xpose.msra.mxu0 0.0
    %2636 = vmatprep.subr.mxu0 0.0
    %2637 = vmatpush1.xpose.msra.mxu0 0.0
    %2638 = vmatprep.subr.mxu0 0.0
    %2639 = vmatpush1.xpose.msra.mxu0 0.0
    %2640 = vmatprep.subr.mxu0 0.0
    %2641 = vmatpush1.xpose.msra.mxu0 0.0
    %2642 = vmatprep.subr.mxu0 0.0
    %2643 = vmatpush1.xpose.msra.mxu0 0.0
    %2644 = vmatprep.subr.mxu0 0.0
    %2645 = vmatpush1.xpose.msra.mxu0 0.0
    %2646 = vmatprep.subr.mxu0 0.0
    %2647 = vmatpush1.xpose.msra.mxu0 0.0
    %2648 = vmatprep.subr.mxu0 0.0
    %2649 = vmatpush1.xpose.msra.mxu0 0.0
    %2650 = vmatprep.subr.mxu0 0.0
    %2651 = vmatpush1.xpose.msra.mxu0 0.0
    %2652 = vmatprep.subr.mxu0 0.0
    %2653 = vmatpush1.xpose.msra.mxu0 0.0
    %2654 = vmatprep.subr.mxu0 0.0
    %2655 = vmatpush1.xpose.msra.mxu0 0.0
    %2656 = vmatprep.subr.mxu0 0.0
    %2657 = vmatpush1.xpose.msra.mxu0 0.0
    %2658 = vmatprep.subr.mxu0 0.0
    %2659 = vmatpush1.xpose.msra.mxu0 0.0
    %2660 = vmatprep.subr.mxu0 0.0
    %2661 = vmatpush1.xpose.msra.mxu0 0.0
    %2662 = vmatprep.subr.mxu0 0.0
    %2663 = vmatpush1.xpose.msra.mxu0 0.0
    %2664 = vmatprep.subr.mxu0 0.0
    %2665 = vmatpush1.xpose.msra.mxu0 0.0
    %2666 = vmatprep.subr.mxu0 0.0
    %2667 = vmatpush1.xpose.msra.mxu0 0.0
    %2668 = vmatprep.subr.mxu0 0.0
    %2669 = vmatpush1.xpose.msra.mxu0 0.0
    %2670 = vmatprep.subr.mxu0 0.0
    %2671 = vmatpush1.xpose.msra.mxu0 0.0
    %2672 = vmatprep.subr.mxu0 0.0
    %2673 = vmatpush1.xpose.msra.mxu0 0.0
    %2674 = vmatprep.subr.mxu0 0.0
    %2675 = vmatpush1.xpose.msra.mxu0 0.0
    %2676 = vmatprep.subr.mxu0 0.0
    %2677 = vmatpush1.xpose.msra.mxu0 0.0
    %2678 = vmatprep.subr.mxu0 0.0
    %2679 = vmatpush1.xpose.msra.mxu0 0.0
    %2680 = vmatprep.subr.mxu0 0.0
    %2681 = vmatpush1.xpose.msra.mxu0 0.0
    %2682 = vmatprep.subr.mxu0 0.0
    %2683 = vmatpush1.xpose.msra.mxu0 0.0
    %2684 = vmatprep.subr.mxu0 0.0
    %2685 = vmatpush1.xpose.msra.mxu0 0.0
    %2686 = vmatprep.subr.mxu0 0.0
    %2687 = vmatpush1.xpose.msra.mxu0 0.0
    %2688 = vmatprep.subr.mxu0 0.0
    %2689 = vmatpush1.xpose.msra.mxu0 0.0
    %2690 = vmatprep.subr.mxu0 0.0
    %2691 = vmatpush1.xpose.msra.mxu0 0.0
    %2692 = vmatprep.mubr.f32.mxu0 0.0
    %2693 = vmatmul.mubr.f32.gmra.mrb[0].mxu0 %v2624
    %v2694 = vpop.f32.mrb[0].mxu0
    %v2695 = vadd.f32 0.0, %v2694
    %v2696 = vpop.f32.mrb[0].mxu0
    %2697 = vdwg.mxu0
    %v2699 = vrot.slane %v2539, 7
    %v2702 = vrot.slane %v2617, 6
    %v2705 = vrot.slane %v2695, 5
    %v2707 = vsel %vm2211, %v2461, %v2699
    %v2708 = vsel %vm2213, %v2707, %v2702
    %v2709 = vsel %vm2215, %v2708, %v2705
    %v2710 = vadd.f32 %v2709, %v2216
    %vm2711 = vcmask 60416
    %v2712 = vsel %vm2711, %v2710, -inf
    %2713 = vmax.xlane.f32.xlu0 %v2712
    %v2714 = vpop.xlane.xlu0 %2713
    %v2715 = vsub.f32 %v2710, %v2714
    %v2716 = vmul.f32 %v2715, 1.442695
    %v2717 = vpow.pop %v2716
    %v2718 = vsel %vm2711, %v2717, 0.0
    %2719 = vadd.xlane.f32.xlu0 %v2718
    %v2720 = vpop.xlane.xlu0 %2719
    %v2721 = vrcp.pop %v2720
    %v2722 = vmul.f32 %v2717, %v2721
    %2723 = vrot.lane.b32.xlu0 %v2384, 96
    %v2724 = vpop.permute.xlu0 %2723
    %v2727 = vsel %vm202, %v2722, 0
    %2729 = vmatprep.subr.mxu0 0.0
    %2730 = vmatpush1.msra.mxu0 %v2724
    %2731 = vmatprep.subr.mxu0 0.0
    %2732 = vmatpush1.msra.mxu0 0.0
    %2733 = vmatprep.subr.mxu0 0.0
    %2734 = vmatpush1.msra.mxu0 0.0
    %2735 = vmatprep.subr.mxu0 0.0
    %2736 = vmatpush1.msra.mxu0 0.0
    %2737 = vmatprep.subr.mxu0 0.0
    %2738 = vmatpush1.msra.mxu0 0.0
    %2739 = vmatprep.subr.mxu0 0.0
    %2740 = vmatpush1.msra.mxu0 0.0
    %2741 = vmatprep.subr.mxu0 0.0
    %2742 = vmatpush1.msra.mxu0 0.0
    %2743 = vmatprep.subr.mxu0 0.0
    %2744 = vmatpush1.msra.mxu0 0.0
    %2745 = vmatprep.subr.mxu0 0.0
    %2746 = vmatpush1.msra.mxu0 0.0
    %2747 = vmatprep.subr.mxu0 0.0
    %2748 = vmatpush1.msra.mxu0 0.0
    %2749 = vmatprep.subr.mxu0 0.0
    %2750 = vmatpush1.msra.mxu0 0.0
    %2751 = vmatprep.subr.mxu0 0.0
    %2752 = vmatpush1.msra.mxu0 0.0
    %2753 = vmatprep.subr.mxu0 0.0
    %2754 = vmatpush1.msra.mxu0 0.0
    %2755 = vmatprep.subr.mxu0 0.0
    %2756 = vmatpush1.msra.mxu0 0.0
    %2757 = vmatprep.subr.mxu0 0.0
    %2758 = vmatpush1.msra.mxu0 0.0
    %2759 = vmatprep.subr.mxu0 0.0
    %2760 = vmatpush1.msra.mxu0 0.0
    %2761 = vmatprep.subr.mxu0 0.0
    %2762 = vmatpush1.msra.mxu0 0.0
    %2763 = vmatprep.subr.mxu0 0.0
    %2764 = vmatpush1.msra.mxu0 0.0
    %2765 = vmatprep.subr.mxu0 0.0
    %2766 = vmatpush1.msra.mxu0 0.0
    %2767 = vmatprep.subr.mxu0 0.0
    %2768 = vmatpush1.msra.mxu0 0.0
    %2769 = vmatprep.subr.mxu0 0.0
    %2770 = vmatpush1.msra.mxu0 0.0
    %2771 = vmatprep.subr.mxu0 0.0
    %2772 = vmatpush1.msra.mxu0 0.0
    %2773 = vmatprep.subr.mxu0 0.0
    %2774 = vmatpush1.msra.mxu0 0.0
    %2775 = vmatprep.subr.mxu0 0.0
    %2776 = vmatpush1.msra.mxu0 0.0
    %2777 = vmatprep.subr.mxu0 0.0
    %2778 = vmatpush1.msra.mxu0 0.0
    %2779 = vmatprep.subr.mxu0 0.0
    %2780 = vmatpush1.msra.mxu0 0.0
    %2781 = vmatprep.subr.mxu0 0.0
    %2782 = vmatpush1.msra.mxu0 0.0
    %2783 = vmatprep.subr.mxu0 0.0
    %2784 = vmatpush1.msra.mxu0 0.0
    %2785 = vmatprep.subr.mxu0 0.0
    %2786 = vmatpush1.msra.mxu0 0.0
    %2787 = vmatprep.subr.mxu0 0.0
    %2788 = vmatpush1.msra.mxu0 0.0
    %2789 = vmatprep.subr.mxu0 0.0
    %2790 = vmatpush1.msra.mxu0 0.0
    %2791 = vmatprep.subr.mxu0 0.0
    %2792 = vmatpush1.msra.mxu0 0.0
    %2793 = vmatprep.mubr.f32.mxu0 0.0
    %2794 = vmatmul.mubr.f32.gmra.mrb[0].mxu0 %v2727
    %v2795 = vpop.f32.mrb[0].mxu0
    %v2796 = vadd.f32 0.0, %v2795
    %v2797 = vpop.f32.mrb[0].mxu0
    %2798 = vdwg.mxu0
    %v2799 = vrot.slane %v2722, 1
    %2800 = vrot.lane.b32.xlu0 %v2384, 88
    %v2801 = vpop.permute.xlu0 %2800
    %v2803 = vsel %vm202, %v2799, 0
    %2805 = vmatprep.subr.mxu0 0.0
    %2806 = vmatpush1.msra.mxu0 %v2801
    %2807 = vmatprep.subr.mxu0 0.0
    %2808 = vmatpush1.msra.mxu0 0.0
    %2809 = vmatprep.subr.mxu0 0.0
    %2810 = vmatpush1.msra.mxu0 0.0
    %2811 = vmatprep.subr.mxu0 0.0
    %2812 = vmatpush1.msra.mxu0 0.0
    %2813 = vmatprep.subr.mxu0 0.0
    %2814 = vmatpush1.msra.mxu0 0.0
    %2815 = vmatprep.subr.mxu0 0.0
    %2816 = vmatpush1.msra.mxu0 0.0
    %2817 = vmatprep.subr.mxu0 0.0
    %2818 = vmatpush1.msra.mxu0 0.0
    %2819 = vmatprep.subr.mxu0 0.0
    %2820 = vmatpush1.msra.mxu0 0.0
    %2821 = vmatprep.subr.mxu0 0.0
    %2822 = vmatpush1.msra.mxu0 0.0
    %2823 = vmatprep.subr.mxu0 0.0
    %2824 = vmatpush1.msra.mxu0 0.0
    %2825 = vmatprep.subr.mxu0 0.0
    %2826 = vmatpush1.msra.mxu0 0.0
    %2827 = vmatprep.subr.mxu0 0.0
    %2828 = vmatpush1.msra.mxu0 0.0
    %2829 = vmatprep.subr.mxu0 0.0
    %2830 = vmatpush1.msra.mxu0 0.0
    %2831 = vmatprep.subr.mxu0 0.0
    %2832 = vmatpush1.msra.mxu0 0.0
    %2833 = vmatprep.subr.mxu0 0.0
    %2834 = vmatpush1.msra.mxu0 0.0
    %2835 = vmatprep.subr.mxu0 0.0
    %2836 = vmatpush1.msra.mxu0 0.0
    %2837 = vmatprep.subr.mxu0 0.0
    %2838 = vmatpush1.msra.mxu0 0.0
    %2839 = vmatprep.subr.mxu0 0.0
    %2840 = vmatpush1.msra.mxu0 0.0
    %2841 = vmatprep.subr.mxu0 0.0
    %2842 = vmatpush1.msra.mxu0 0.0
    %2843 = vmatprep.subr.mxu0 0.0
    %2844 = vmatpush1.msra.mxu0 0.0
    %2845 = vmatprep.subr.mxu0 0.0
    %2846 = vmatpush1.msra.mxu0 0.0
    %2847 = vmatprep.subr.mxu0 0.0
    %2848 = vmatpush1.msra.mxu0 0.0
    %2849 = vmatprep.subr.mxu0 0.0
    %2850 = vmatpush1.msra.mxu0 0.0
    %2851 = vmatprep.subr.mxu0 0.0
    %2852 = vmatpush1.msra.mxu0 0.0
    %2853 = vmatprep.subr.mxu0 0.0
    %2854 = vmatpush1.msra.mxu0 0.0
    %2855 = vmatprep.subr.mxu0 0.0
    %2856 = vmatpush1.msra.mxu0 0.0
    %2857 = vmatprep.subr.mxu0 0.0
    %2858 = vmatpush1.msra.mxu0 0.0
    %2859 = vmatprep.subr.mxu0 0.0
    %2860 = vmatpush1.msra.mxu0 0.0
    %2861 = vmatprep.subr.mxu0 0.0
    %2862 = vmatpush1.msra.mxu0 0.0
    %2863 = vmatprep.subr.mxu0 0.0
    %2864 = vmatpush1.msra.mxu0 0.0
    %2865 = vmatprep.subr.mxu0 0.0
    %2866 = vmatpush1.msra.mxu0 0.0
    %2867 = vmatprep.subr.mxu0 0.0
    %2868 = vmatpush1.msra.mxu0 0.0
    %2869 = vmatprep.mubr.f32.mxu0 0.0
    %2870 = vmatmul.mubr.f32.gmra.mrb[0].mxu0 %v2803
    %v2871 = vpop.f32.mrb[0].mxu0
    %v2872 = vadd.f32 0.0, %v2871
    %v2873 = vpop.f32.mrb[0].mxu0
    %2874 = vdwg.mxu0
    %v2875 = vrot.slane %v2722, 2
    %2876 = vrot.lane.b32.xlu0 %v2384, 80
    %v2877 = vpop.permute.xlu0 %2876
    %v2879 = vsel %vm202, %v2875, 0
    %2881 = vmatprep.subr.mxu0 0.0
    %2882 = vmatpush1.msra.mxu0 %v2877
    %2883 = vmatprep.subr.mxu0 0.0
    %2884 = vmatpush1.msra.mxu0 0.0
    %2885 = vmatprep.subr.mxu0 0.0
    %2886 = vmatpush1.msra.mxu0 0.0
    %2887 = vmatprep.subr.mxu0 0.0
    %2888 = vmatpush1.msra.mxu0 0.0
    %2889 = vmatprep.subr.mxu0 0.0
    %2890 = vmatpush1.msra.mxu0 0.0
    %2891 = vmatprep.subr.mxu0 0.0
    %2892 = vmatpush1.msra.mxu0 0.0
    %2893 = vmatprep.subr.mxu0 0.0
    %2894 = vmatpush1.msra.mxu0 0.0
    %2895 = vmatprep.subr.mxu0 0.0
    %2896 = vmatpush1.msra.mxu0 0.0
    %2897 = vmatprep.subr.mxu0 0.0
    %2898 = vmatpush1.msra.mxu0 0.0
    %2899 = vmatprep.subr.mxu0 0.0
    %2900 = vmatpush1.msra.mxu0 0.0
    %2901 = vmatprep.subr.mxu0 0.0
    %2902 = vmatpush1.msra.mxu0 0.0
    %2903 = vmatprep.subr.mxu0 0.0
    %2904 = vmatpush1.msra.mxu0 0.0
    %2905 = vmatprep.subr.mxu0 0.0
    %2906 = vmatpush1.msra.mxu0 0.0
    %2907 = vmatprep.subr.mxu0 0.0
    %2908 = vmatpush1.msra.mxu0 0.0
    %2909 = vmatprep.subr.mxu0 0.0
    %2910 = vmatpush1.msra.mxu0 0.0
    %2911 = vmatprep.subr.mxu0 0.0
    %2912 = vmatpush1.msra.mxu0 0.0
    %2913 = vmatprep.subr.mxu0 0.0
    %2914 = vmatpush1.msra.mxu0 0.0
    %2915 = vmatprep.subr.mxu0 0.0
    %2916 = vmatpush1.msra.mxu0 0.0
    %2917 = vmatprep.subr.mxu0 0.0
    %2918 = vmatpush1.msra.mxu0 0.0
    %2919 = vmatprep.subr.mxu0 0.0
    %2920 = vmatpush1.msra.mxu0 0.0
    %2921 = vmatprep.subr.mxu0 0.0
    %2922 = vmatpush1.msra.mxu0 0.0
    %2923 = vmatprep.subr.mxu0 0.0
    %2924 = vmatpush1.msra.mxu0 0.0
    %2925 = vmatprep.subr.mxu0 0.0
    %2926 = vmatpush1.msra.mxu0 0.0
    %2927 = vmatprep.subr.mxu0 0.0
    %2928 = vmatpush1.msra.mxu0 0.0
    %2929 = vmatprep.subr.mxu0 0.0
    %2930 = vmatpush1.msra.mxu0 0.0
    %2931 = vmatprep.subr.mxu0 0.0
    %2932 = vmatpush1.msra.mxu0 0.0
    %2933 = vmatprep.subr.mxu0 0.0
    %2934 = vmatpush1.msra.mxu0 0.0
    %2935 = vmatprep.subr.mxu0 0.0
    %2936 = vmatpush1.msra.mxu0 0.0
    %2937 = vmatprep.subr.mxu0 0.0
    %2938 = vmatpush1.msra.mxu0 0.0
    %2939 = vmatprep.subr.mxu0 0.0
    %2940 = vmatpush1.msra.mxu0 0.0
    %2941 = vmatprep.subr.mxu0 0.0
    %2942 = vmatpush1.msra.mxu0 0.0
    %2943 = vmatprep.subr.mxu0 0.0
    %2944 = vmatpush1.msra.mxu0 0.0
    %2945 = vmatprep.mubr.f32.mxu0 0.0
    %2946 = vmatmul.mubr.f32.gmra.mrb[0].mxu0 %v2879
    %v2947 = vpop.f32.mrb[0].mxu0
    %v2948 = vadd.f32 0.0, %v2947
    %v2949 = vpop.f32.mrb[0].mxu0
    %2950 = vdwg.mxu0
    %v2951 = vrot.slane %v2722, 3
    %2952 = vrot.lane.b32.xlu0 %v2384, 72
    %v2953 = vpop.permute.xlu0 %2952
    %v2955 = vsel %vm202, %v2951, 0
    %2957 = vmatprep.subr.mxu0 0.0
    %2958 = vmatpush1.msra.mxu0 %v2953
    %2959 = vmatprep.subr.mxu0 0.0
    %2960 = vmatpush1.msra.mxu0 0.0
    %2961 = vmatprep.subr.mxu0 0.0
    %2962 = vmatpush1.msra.mxu0 0.0
    %2963 = vmatprep.subr.mxu0 0.0
    %2964 = vmatpush1.msra.mxu0 0.0
    %2965 = vmatprep.subr.mxu0 0.0
    %2966 = vmatpush1.msra.mxu0 0.0
    %2967 = vmatprep.subr.mxu0 0.0
    %2968 = vmatpush1.msra.mxu0 0.0
    %2969 = vmatprep.subr.mxu0 0.0
    %2970 = vmatpush1.msra.mxu0 0.0
    %2971 = vmatprep.subr.mxu0 0.0
    %2972 = vmatpush1.msra.mxu0 0.0
    %2973 = vmatprep.subr.mxu0 0.0
    %2974 = vmatpush1.msra.mxu0 0.0
    %2975 = vmatprep.subr.mxu0 0.0
    %2976 = vmatpush1.msra.mxu0 0.0
    %2977 = vmatprep.subr.mxu0 0.0
    %2978 = vmatpush1.msra.mxu0 0.0
    %2979 = vmatprep.subr.mxu0 0.0
    %2980 = vmatpush1.msra.mxu0 0.0
    %2981 = vmatprep.subr.mxu0 0.0
    %2982 = vmatpush1.msra.mxu0 0.0
    %2983 = vmatprep.subr.mxu0 0.0
    %2984 = vmatpush1.msra.mxu0 0.0
    %2985 = vmatprep.subr.mxu0 0.0
    %2986 = vmatpush1.msra.mxu0 0.0
    %2987 = vmatprep.subr.mxu0 0.0
    %2988 = vmatpush1.msra.mxu0 0.0
    %2989 = vmatprep.subr.mxu0 0.0
    %2990 = vmatpush1.msra.mxu0 0.0
    %2991 = vmatprep.subr.mxu0 0.0
    %2992 = vmatpush1.msra.mxu0 0.0
    %2993 = vmatprep.subr.mxu0 0.0
    %2994 = vmatpush1.msra.mxu0 0.0
    %2995 = vmatprep.subr.mxu0 0.0
    %2996 = vmatpush1.msra.mxu0 0.0
    %2997 = vmatprep.subr.mxu0 0.0
    %2998 = vmatpush1.msra.mxu0 0.0
    %2999 = vmatprep.subr.mxu0 0.0
    %3000 = vmatpush1.msra.mxu0 0.0
    %3001 = vmatprep.subr.mxu0 0.0
    %3002 = vmatpush1.msra.mxu0 0.0
    %3003 = vmatprep.subr.mxu0 0.0
    %3004 = vmatpush1.msra.mxu0 0.0
    %3005 = vmatprep.subr.mxu0 0.0
    %3006 = vmatpush1.msra.mxu0 0.0
    %3007 = vmatprep.subr.mxu0 0.0
    %3008 = vmatpush1.msra.mxu0 0.0
    %3009 = vmatprep.subr.mxu0 0.0
    %3010 = vmatpush1.msra.mxu0 0.0
    %3011 = vmatprep.subr.mxu0 0.0
    %3012 = vmatpush1.msra.mxu0 0.0
    %3013 = vmatprep.subr.mxu0 0.0
    %3014 = vmatpush1.msra.mxu0 0.0
    %3015 = vmatprep.subr.mxu0 0.0
    %3016 = vmatpush1.msra.mxu0 0.0
    %3017 = vmatprep.subr.mxu0 0.0
    %3018 = vmatpush1.msra.mxu0 0.0
    %3019 = vmatprep.subr.mxu0 0.0
    %3020 = vmatpush1.msra.mxu0 0.0
    %3021 = vmatprep.mubr.f32.mxu0 0.0
    %3022 = vmatmul.mubr.f32.gmra.mrb[0].mxu0 %v2955
    %v3023 = vpop.f32.mrb[0].mxu0
    %v3024 = vadd.f32 0.0, %v3023
    %v3025 = vpop.f32.mrb[0].mxu0
    %3026 = vdwg.mxu0
    %3028 = vrot.lane.b32.xlu0 %v2872, 8
    %v3029 = vpop.permute.xlu0 %3028
    %3032 = vrot.lane.b32.xlu0 %v2948, 16
    %v3033 = vpop.permute.xlu0 %3032
    %3036 = vrot.lane.b32.xlu0 %v3024, 24
    %v3037 = vpop.permute.xlu0 %3036
    %v3039 = vsel %vm202, %v2796, %v3029
    %v3040 = vsel %vm877, %v3039, %v3033
    %v3041 = vsel %vm879, %v3040, %v3037
    %3042 = vrot.lane.b32.xlu0 %v2180, 32
    %v3043 = vpop.permute.xlu0 %3042
    %3044 = vrot.lane.b32.xlu0 %v2183, 32
    %v3045 = vpop.permute.xlu0 %3044
    %3046 = vrot.lane.b32.xlu0 %v2186, 32
    %v3047 = vpop.permute.xlu0 %3046
    %3048 = vrot.lane.b32.xlu0 %v2189, 32
    %v3049 = vpop.permute.xlu0 %3048
    %v3055 = vrot.slane %v2202, 1
    %v3058 = vsel %vm124, %v3041, 0
    %3060 = vmatprep.subr.mxu0 0.0
    %3061 = vmatpush1.msra.mxu0 %v3043
    %3062 = vmatprep.subr.mxu0 0.0
    %3063 = vmatpush1.msra.mxu0 %v3045
    %3064 = vmatprep.subr.mxu0 0.0
    %3065 = vmatpush1.msra.mxu0 %v3047
    %3066 = vmatprep.subr.mxu0 0.0
    %3067 = vmatpush1.msra.mxu0 %v3049
    %3068 = vmatprep.subr.mxu0 0.0
    %3069 = vmatpush1.msra.mxu0 0.0
    %3070 = vmatprep.subr.mxu0 0.0
    %3071 = vmatpush1.msra.mxu0 0.0
    %3072 = vmatprep.subr.mxu0 0.0
    %3073 = vmatpush1.msra.mxu0 0.0
    %3074 = vmatprep.subr.mxu0 0.0
    %3075 = vmatpush1.msra.mxu0 0.0
    %3076 = vmatprep.subr.mxu0 0.0
    %3077 = vmatpush1.msra.mxu0 0.0
    %3078 = vmatprep.subr.mxu0 0.0
    %3079 = vmatpush1.msra.mxu0 0.0
    %3080 = vmatprep.subr.mxu0 0.0
    %3081 = vmatpush1.msra.mxu0 0.0
    %3082 = vmatprep.subr.mxu0 0.0
    %3083 = vmatpush1.msra.mxu0 0.0
    %3084 = vmatprep.subr.mxu0 0.0
    %3085 = vmatpush1.msra.mxu0 0.0
    %3086 = vmatprep.subr.mxu0 0.0
    %3087 = vmatpush1.msra.mxu0 0.0
    %3088 = vmatprep.subr.mxu0 0.0
    %3089 = vmatpush1.msra.mxu0 0.0
    %3090 = vmatprep.subr.mxu0 0.0
    %3091 = vmatpush1.msra.mxu0 0.0
    %3092 = vmatprep.subr.mxu0 0.0
    %3093 = vmatpush1.msra.mxu0 0.0
    %3094 = vmatprep.subr.mxu0 0.0
    %3095 = vmatpush1.msra.mxu0 0.0
    %3096 = vmatprep.subr.mxu0 0.0
    %3097 = vmatpush1.msra.mxu0 0.0
    %3098 = vmatprep.subr.mxu0 0.0
    %3099 = vmatpush1.msra.mxu0 0.0
    %3100 = vmatprep.subr.mxu0 0.0
    %3101 = vmatpush1.msra.mxu0 0.0
    %3102 = vmatprep.subr.mxu0 0.0
    %3103 = vmatpush1.msra.mxu0 0.0
    %3104 = vmatprep.subr.mxu0 0.0
    %3105 = vmatpush1.msra.mxu0 0.0
    %3106 = vmatprep.subr.mxu0 0.0
    %3107 = vmatpush1.msra.mxu0 0.0
    %3108 = vmatprep.subr.mxu0 0.0
    %3109 = vmatpush1.msra.mxu0 0.0
    %3110 = vmatprep.subr.mxu0 0.0
    %3111 = vmatpush1.msra.mxu0 0.0
    %3112 = vmatprep.subr.mxu0 0.0
    %3113 = vmatpush1.msra.mxu0 0.0
    %3114 = vmatprep.subr.mxu0 0.0
    %3115 = vmatpush1.msra.mxu0 0.0
    %3116 = vmatprep.subr.mxu0 0.0
    %3117 = vmatpush1.msra.mxu0 0.0
    %3118 = vmatprep.subr.mxu0 0.0
    %3119 = vmatpush1.msra.mxu0 0.0
    %3120 = vmatprep.subr.mxu0 0.0
    %3121 = vmatpush1.msra.mxu0 0.0
    %3122 = vmatprep.subr.mxu0 0.0
    %3123 = vmatpush1.msra.mxu0 0.0
    %3124 = vmatprep.mubr.f32.mxu0 0.0
    %3125 = vmatmul.mubr.f32.gmra.mrb[0].mxu0 %v3058
    %v3126 = vpop.f32.mrb[0].mxu0
    %v3127 = vadd.f32 %v3055, %v3126
    %v3128 = vpop.f32.mrb[0].mxu0
    %3129 = vdwg.mxu0
    %v3131 = vadd.f32 %v3127, %v2218
    %vm3132 = vcmask 253952
    %v3133 = vsel %vm3132, %v3131, 0.0
    %3134 = vadd.xlane.f32.xlu0 %v3133
    %v3135 = vpop.xlane.xlu0 %3134
    %v3136 = vmul.f32 %v3135, %v978
    %v3137 = vsub.f32 %v3131, %v3136
    %v3138 = vmul.f32 %v3137, %v3137
    %v3139 = vsel %vm3132, %v3138, 0.0
    %3140 = vadd.xlane.f32.xlu0 %v3139
    %v3141 = vpop.xlane.xlu0 %3140
    %v3142 = vmul.f32 %v3141, %v978
    %v3143 = vadd.f32 %v3142, 1e-06
    %v3144 = vrsqrt.pop %v3143
    %v3145 = vmul.f32 %v3137, %v3144
    %v3146 = vrot.slane %v2202, 2
    %v3148 = vmul.f32 %v3145, %v3146
    %v3149 = vrot.slane %v2202, 3
    %v3151 = vadd.f32 %v3148, %v3149
    %v3152 = vrot.slane %v2202, 4
    %v3155 = vsel %vm124, %v3151, 0
    %3157 = vmatprep.subr.mxu0 0.0
    %3158 = vmatpush1.msra.mxu0 %v2181
    %3159 = vmatprep.subr.mxu0 0.0
    %3160 = vmatpush1.msra.mxu0 %v2184
    %3161 = vmatprep.subr.mxu0 0.0
    %3162 = vmatpush1.msra.mxu0 %v2187
    %3163 = vmatprep.subr.mxu0 0.0
    %3164 = vmatpush1.msra.mxu0 %v2190
    %3165 = vmatprep.subr.mxu0 0.0
    %3166 = vmatpush1.msra.mxu0 0.0
    %3167 = vmatprep.subr.mxu0 0.0
    %3168 = vmatpush1.msra.mxu0 0.0
    %3169 = vmatprep.subr.mxu0 0.0
    %3170 = vmatpush1.msra.mxu0 0.0
    %3171 = vmatprep.subr.mxu0 0.0
    %3172 = vmatpush1.msra.mxu0 0.0
    %3173 = vmatprep.subr.mxu0 0.0
    %3174 = vmatpush1.msra.mxu0 0.0
    %3175 = vmatprep.subr.mxu0 0.0
    %3176 = vmatpush1.msra.mxu0 0.0
    %3177 = vmatprep.subr.mxu0 0.0
    %3178 = vmatpush1.msra.mxu0 0.0
    %3179 = vmatprep.subr.mxu0 0.0
    %3180 = vmatpush1.msra.mxu0 0.0
    %3181 = vmatprep.subr.mxu0 0.0
    %3182 = vmatpush1.msra.mxu0 0.0
    %3183 = vmatprep.subr.mxu0 0.0
    %3184 = vmatpush1.msra.mxu0 0.0
    %3185 = vmatprep.subr.mxu0 0.0
    %3186 = vmatpush1.msra.mxu0 0.0
    %3187 = vmatprep.subr.mxu0 0.0
    %3188 = vmatpush1.msra.mxu0 0.0
    %3189 = vmatprep.subr.mxu0 0.0
    %3190 = vmatpush1.msra.mxu0 0.0
    %3191 = vmatprep.subr.mxu0 0.0
    %3192 = vmatpush1.msra.mxu0 0.0
    %3193 = vmatprep.subr.mxu0 0.0
    %3194 = vmatpush1.msra.mxu0 0.0
    %3195 = vmatprep.subr.mxu0 0.0
    %3196 = vmatpush1.msra.mxu0 0.0
    %3197 = vmatprep.subr.mxu0 0.0
    %3198 = vmatpush1.msra.mxu0 0.0
    %3199 = vmatprep.subr.mxu0 0.0
    %3200 = vmatpush1.msra.mxu0 0.0
    %3201 = vmatprep.subr.mxu0 0.0
    %3202 = vmatpush1.msra.mxu0 0.0
    %3203 = vmatprep.subr.mxu0 0.0
    %3204 = vmatpush1.msra.mxu0 0.0
    %3205 = vmatprep.subr.mxu0 0.0
    %3206 = vmatpush1.msra.mxu0 0.0
    %3207 = vmatprep.subr.mxu0 0.0
    %3208 = vmatpush1.msra.mxu0 0.0
    %3209 = vmatprep.subr.mxu0 0.0
    %3210 = vmatpush1.msra.mxu0 0.0
    %3211 = vmatprep.subr.mxu0 0.0
    %3212 = vmatpush1.msra.mxu0 0.0
    %3213 = vmatprep.subr.mxu0 0.0
    %3214 = vmatpush1.msra.mxu0 0.0
    %3215 = vmatprep.subr.mxu0 0.0
    %3216 = vmatpush1.msra.mxu0 0.0
    %3217 = vmatprep.subr.mxu0 0.0
    %3218 = vmatpush1.msra.mxu0 0.0
    %3219 = vmatprep.subr.mxu0 0.0
    %3220 = vmatpush1.msra.mxu0 0.0
    %3221 = vmatprep.mubr.f32.mxu0 0.0
    %3222 = vmatmul.mubr.f32.gmra.mrb[0].mxu0 %v3155
    %v3223 = vpop.f32.mrb[0].mxu0
    %v3224 = vadd.f32 %v3152, %v3223
    %v3225 = vpop.f32.mrb[0].mxu0
    %3226 = vdwg.mxu0
    %v3227 = vlaneseq
    %v3228 = vshrl.u32 %v3227, 7
    %v3229 = vsub.s32 4, %v3228
    %v3230 = vrot.slane %v2202, %v3229
    %3235 = vrot.lane.b32.xlu0 %v2181, 96
    %v3236 = vpop.permute.xlu0 %3235
    %3237 = vrot.lane.b32.xlu0 %v2184, 96
    %v3238 = vpop.permute.xlu0 %3237
    %3239 = vrot.lane.b32.xlu0 %v2187, 96
    %v3240 = vpop.permute.xlu0 %3239
    %3241 = vrot.lane.b32.xlu0 %v2190, 96
    %v3242 = vpop.permute.xlu0 %3241
    %3248 = vrot.lane.b32.xlu0 %v3230, 96
    %v3249 = vpop.permute.xlu0 %3248
    %3251 = vmatprep.subr.mxu0 0.0
    %3252 = vmatpush1.msra.mxu0 %v3236
    %3253 = vmatprep.subr.mxu0 0.0
    %3254 = vmatpush1.msra.mxu0 %v3238
    %3255 = vmatprep.subr.mxu0 0.0
    %3256 = vmatpush1.msra.mxu0 %v3240
    %3257 = vmatprep.subr.mxu0 0.0
    %3258 = vmatpush1.msra.mxu0 %v3242
    %3259 = vmatprep.subr.mxu0 0.0
    %3260 = vmatpush1.msra.mxu0 0.0
    %3261 = vmatprep.subr.mxu0 0.0
    %3262 = vmatpush1.msra.mxu0 0.0
    %3263 = vmatprep.subr.mxu0 0.0
    %3264 = vmatpush1.msra.mxu0 0.0
    %3265 = vmatprep.subr.mxu0 0.0
    %3266 = vmatpush1.msra.mxu0 0.0
    %3267 = vmatprep.subr.mxu0 0.0
    %3268 = vmatpush1.msra.mxu0 0.0
    %3269 = vmatprep.subr.mxu0 0.0
    %3270 = vmatpush1.msra.mxu0 0.0
    %3271 = vmatprep.subr.mxu0 0.0
    %3272 = vmatpush1.msra.mxu0 0.0
    %3273 = vmatprep.subr.mxu0 0.0
    %3274 = vmatpush1.msra.mxu0 0.0
    %3275 = vmatprep.subr.mxu0 0.0
    %3276 = vmatpush1.msra.mxu0 0.0
    %3277 = vmatprep.subr.mxu0 0.0
    %3278 = vmatpush1.msra.mxu0 0.0
    %3279 = vmatprep.subr.mxu0 0.0
    %3280 = vmatpush1.msra.mxu0 0.0
    %3281 = vmatprep.subr.mxu0 0.0
    %3282 = vmatpush1.msra.mxu0 0.0
    %3283 = vmatprep.subr.mxu0 0.0
    %3284 = vmatpush1.msra.mxu0 0.0
    %3285 = vmatprep.subr.mxu0 0.0
    %3286 = vmatpush1.msra.mxu0 0.0
    %3287 = vmatprep.subr.mxu0 0.0
    %3288 = vmatpush1.msra.mxu0 0.0
    %3289 = vmatprep.subr.mxu0 0.0
    %3290 = vmatpush1.msra.mxu0 0.0
    %3291 = vmatprep.subr.mxu0 0.0
    %3292 = vmatpush1.msra.mxu0 0.0
    %3293 = vmatprep.subr.mxu0 0.0
    %3294 = vmatpush1.msra.mxu0 0.0
    %3295 = vmatprep.subr.mxu0 0.0
    %3296 = vmatpush1.msra.mxu0 0.0
    %3297 = vmatprep.subr.mxu0 0.0
    %3298 = vmatpush1.msra.mxu0 0.0
    %3299 = vmatprep.subr.mxu0 0.0
    %3300 = vmatpush1.msra.mxu0 0.0
    %3301 = vmatprep.subr.mxu0 0.0
    %3302 = vmatpush1.msra.mxu0 0.0
    %3303 = vmatprep.subr.mxu0 0.0
    %3304 = vmatpush1.msra.mxu0 0.0
    %3305 = vmatprep.subr.mxu0 0.0
    %3306 = vmatpush1.msra.mxu0 0.0
    %3307 = vmatprep.subr.mxu0 0.0
    %3308 = vmatpush1.msra.mxu0 0.0
    %3309 = vmatprep.subr.mxu0 0.0
    %3310 = vmatpush1.msra.mxu0 0.0
    %3311 = vmatprep.subr.mxu0 0.0
    %3312 = vmatpush1.msra.mxu0 0.0
    %3313 = vmatprep.subr.mxu0 0.0
    %3314 = vmatpush1.msra.mxu0 0.0
    %3315 = vmatprep.mubr.f32.mxu0 0.0
    %3316 = vmatmul.mubr.f32.gmra.mrb[0].mxu0 %v1097
    %v3317 = vpop.f32.mrb[0].mxu0
    %v3318 = vadd.f32 %v3249, %v3317
    %v3319 = vpop.f32.mrb[0].mxu0
    %3320 = vmatprep.mubr.f32.mxu0 0.0
    %3321 = vmatmul.mubr.f32.gmra.mrb[0].mxu0 %v1100
    %v3322 = vpop.f32.mrb[0].mxu0
    %v3323 = vadd.f32 %v3249, %v3322
    %v3324 = vpop.f32.mrb[0].mxu0
    %3325 = vdwg.mxu0
    %v3326 = vmul.f32 %v3224, 0.35355338
    %v3328 = vsel %vm202, %v3326, 0
    %v3331 = vsel %vm202, %v3318, 0
    %v3334 = vsel %vm202, %v3323, 0
    %3336 = vmatprep.subr.mxu0 0.0
    %3337 = vmatpush1.xpose.msra.mxu0 %v3331
    %3338 = vmatprep.subr.mxu0 0.0
    %3339 = vmatpush1.xpose.msra.mxu0 %v3334
    %3340 = vmatprep.subr.mxu0 0.0
    %3341 = vmatpush1.xpose.msra.mxu0 0.0
    %3342 = vmatprep.subr.mxu0 0.0
    %3343 = vmatpush1.xpose.msra.mxu0 0.0
    %3344 = vmatprep.subr.mxu0 0.0
    %3345 = vmatpush1.xpose.msra.mxu0 0.0
    %3346 = vmatprep.subr.mxu0 0.0
    %3347 = vmatpush1.xpose.msra.mxu0 0.0
    %3348 = vmatprep.subr.mxu0 0.0
    %3349 = vmatpush1.xpose.msra.mxu0 0.0
    %3350 = vmatprep.subr.mxu0 0.0
    %3351 = vmatpush1.xpose.msra.mxu0 0.0
    %3352 = vmatprep.subr.mxu0 0.0
    %3353 = vmatpush1.xpose.msra.mxu0 0.0
    %3354 = vmatprep.subr.mxu0 0.0
    %3355 = vmatpush1.xpose.msra.mxu0 0.0
    %3356 = vmatprep.subr.mxu0 0.0
    %3357 = vmatpush1.xpose.msra.mxu0 0.0
    %3358 = vmatprep.subr.mxu0 0.0
    %3359 = vmatpush1.xpose.msra.mxu0 0.0
    %3360 = vmatprep.subr.mxu0 0.0
    %3361 = vmatpush1.xpose.msra.mxu0 0.0
    %3362 = vmatprep.subr.mxu0 0.0
    %3363 = vmatpush1.xpose.msra.mxu0 0.0
    %3364 = vmatprep.subr.mxu0 0.0
    %3365 = vmatpush1.xpose.msra.mxu0 0.0
    %3366 = vmatprep.subr.mxu0 0.0
    %3367 = vmatpush1.xpose.msra.mxu0 0.0
    %3368 = vmatprep.subr.mxu0 0.0
    %3369 = vmatpush1.xpose.msra.mxu0 0.0
    %3370 = vmatprep.subr.mxu0 0.0
    %3371 = vmatpush1.xpose.msra.mxu0 0.0
    %3372 = vmatprep.subr.mxu0 0.0
    %3373 = vmatpush1.xpose.msra.mxu0 0.0
    %3374 = vmatprep.subr.mxu0 0.0
    %3375 = vmatpush1.xpose.msra.mxu0 0.0
    %3376 = vmatprep.subr.mxu0 0.0
    %3377 = vmatpush1.xpose.msra.mxu0 0.0
    %3378 = vmatprep.subr.mxu0 0.0
    %3379 = vmatpush1.xpose.msra.mxu0 0.0
    %3380 = vmatprep.subr.mxu0 0.0
    %3381 = vmatpush1.xpose.msra.mxu0 0.0
    %3382 = vmatprep.subr.mxu0 0.0
    %3383 = vmatpush1.xpose.msra.mxu0 0.0
    %3384 = vmatprep.subr.mxu0 0.0
    %3385 = vmatpush1.xpose.msra.mxu0 0.0
    %3386 = vmatprep.subr.mxu0 0.0
    %3387 = vmatpush1.xpose.msra.mxu0 0.0
    %3388 = vmatprep.subr.mxu0 0.0
    %3389 = vmatpush1.xpose.msra.mxu0 0.0
    %3390 = vmatprep.subr.mxu0 0.0
    %3391 = vmatpush1.xpose.msra.mxu0 0.0
    %3392 = vmatprep.subr.mxu0 0.0
    %3393 = vmatpush1.xpose.msra.mxu0 0.0
    %3394 = vmatprep.subr.mxu0 0.0
    %3395 = vmatpush1.xpose.msra.mxu0 0.0
    %3396 = vmatprep.subr.mxu0 0.0
    %3397 = vmatpush1.xpose.msra.mxu0 0.0
    %3398 = vmatprep.subr.mxu0 0.0
    %3399 = vmatpush1.xpose.msra.mxu0 0.0
    %3400 = vmatprep.mubr.f32.mxu0 0.0
    %3401 = vmatmul.mubr.f32.gmra.mrb[0].mxu0 %v3328
    %v3402 = vpop.f32.mrb[0].mxu0
    %v3403 = vadd.f32 0.0, %v3402
    %v3404 = vpop.f32.mrb[0].mxu0
    %3405 = vdwg.mxu0
    %3406 = vrot.lane.b32.xlu0 %v3326, 120
    %v3407 = vpop.permute.xlu0 %3406
    %3408 = vrot.lane.b32.xlu0 %v3318, 120
    %v3409 = vpop.permute.xlu0 %3408
    %3410 = vrot.lane.b32.xlu0 %v3323, 120
    %v3411 = vpop.permute.xlu0 %3410
    %v3412 = vsel %vm202, %v3407, 0
    %v3414 = vsel %vm202, %v3409, 0
    %v3416 = vsel %vm202, %v3411, 0
    %3418 = vmatprep.subr.mxu0 0.0
    %3419 = vmatpush1.xpose.msra.mxu0 %v3414
    %3420 = vmatprep.subr.mxu0 0.0
    %3421 = vmatpush1.xpose.msra.mxu0 %v3416
    %3422 = vmatprep.subr.mxu0 0.0
    %3423 = vmatpush1.xpose.msra.mxu0 0.0
    %3424 = vmatprep.subr.mxu0 0.0
    %3425 = vmatpush1.xpose.msra.mxu0 0.0
    %3426 = vmatprep.subr.mxu0 0.0
    %3427 = vmatpush1.xpose.msra.mxu0 0.0
    %3428 = vmatprep.subr.mxu0 0.0
    %3429 = vmatpush1.xpose.msra.mxu0 0.0
    %3430 = vmatprep.subr.mxu0 0.0
    %3431 = vmatpush1.xpose.msra.mxu0 0.0
    %3432 = vmatprep.subr.mxu0 0.0
    %3433 = vmatpush1.xpose.msra.mxu0 0.0
    %3434 = vmatprep.subr.mxu0 0.0
    %3435 = vmatpush1.xpose.msra.mxu0 0.0
    %3436 = vmatprep.subr.mxu0 0.0
    %3437 = vmatpush1.xpose.msra.mxu0 0.0
    %3438 = vmatprep.subr.mxu0 0.0
    %3439 = vmatpush1.xpose.msra.mxu0 0.0
    %3440 = vmatprep.subr.mxu0 0.0
    %3441 = vmatpush1.xpose.msra.mxu0 0.0
    %3442 = vmatprep.subr.mxu0 0.0
    %3443 = vmatpush1.xpose.msra.mxu0 0.0
    %3444 = vmatprep.subr.mxu0 0.0
    %3445 = vmatpush1.xpose.msra.mxu0 0.0
    %3446 = vmatprep.subr.mxu0 0.0
    %3447 = vmatpush1.xpose.msra.mxu0 0.0
    %3448 = vmatprep.subr.mxu0 0.0
    %3449 = vmatpush1.xpose.msra.mxu0 0.0
    %3450 = vmatprep.subr.mxu0 0.0
    %3451 = vmatpush1.xpose.msra.mxu0 0.0
    %3452 = vmatprep.subr.mxu0 0.0
    %3453 = vmatpush1.xpose.msra.mxu0 0.0
    %3454 = vmatprep.subr.mxu0 0.0
    %3455 = vmatpush1.xpose.msra.mxu0 0.0
    %3456 = vmatprep.subr.mxu0 0.0
    %3457 = vmatpush1.xpose.msra.mxu0 0.0
    %3458 = vmatprep.subr.mxu0 0.0
    %3459 = vmatpush1.xpose.msra.mxu0 0.0
    %3460 = vmatprep.subr.mxu0 0.0
    %3461 = vmatpush1.xpose.msra.mxu0 0.0
    %3462 = vmatprep.subr.mxu0 0.0
    %3463 = vmatpush1.xpose.msra.mxu0 0.0
    %3464 = vmatprep.subr.mxu0 0.0
    %3465 = vmatpush1.xpose.msra.mxu0 0.0
    %3466 = vmatprep.subr.mxu0 0.0
    %3467 = vmatpush1.xpose.msra.mxu0 0.0
    %3468 = vmatprep.subr.mxu0 0.0
    %3469 = vmatpush1.xpose.msra.mxu0 0.0
    %3470 = vmatprep.subr.mxu0 0.0
    %3471 = vmatpush1.xpose.msra.mxu0 0.0
    %3472 = vmatprep.subr.mxu0 0.0
    %3473 = vmatpush1.xpose.msra.mxu0 0.0
    %3474 = vmatprep.subr.mxu0 0.0
    %3475 = vmatpush1.xpose.msra.mxu0 0.0
    %3476 = vmatprep.subr.mxu0 0.0
    %3477 = vmatpush1.xpose.msra.mxu0 0.0
    %3478 = vmatprep.subr.mxu0 0.0
    %3479 = vmatpush1.xpose.msra.mxu0 0.0
    %3480 = vmatprep.subr.mxu0 0.0
    %3481 = vmatpush1.xpose.msra.mxu0 0.0
    %3482 = vmatprep.mubr.f32.mxu0 0.0
    %3483 = vmatmul.mubr.f32.gmra.mrb[0].mxu0 %v3412
    %v3484 = vpop.f32.mrb[0].mxu0
    %v3485 = vadd.f32 0.0, %v3484
    %v3486 = vpop.f32.mrb[0].mxu0
    %3487 = vdwg.mxu0
    %3488 = vrot.lane.b32.xlu0 %v3326, 112
    %v3489 = vpop.permute.xlu0 %3488
    %3490 = vrot.lane.b32.xlu0 %v3318, 112
    %v3491 = vpop.permute.xlu0 %3490
    %3492 = vrot.lane.b32.xlu0 %v3323, 112
    %v3493 = vpop.permute.xlu0 %3492
    %v3494 = vsel %vm202, %v3489, 0
    %v3496 = vsel %vm202, %v3491, 0
    %v3498 = vsel %vm202, %v3493, 0
    %3500 = vmatprep.subr.mxu0 0.0
    %3501 = vmatpush1.xpose.msra.mxu0 %v3496
    %3502 = vmatprep.subr.mxu0 0.0
    %3503 = vmatpush1.xpose.msra.mxu0 %v3498
    %3504 = vmatprep.subr.mxu0 0.0
    %3505 = vmatpush1.xpose.msra.mxu0 0.0
    %3506 = vmatprep.subr.mxu0 0.0
    %3507 = vmatpush1.xpose.msra.mxu0 0.0
    %3508 = vmatprep.subr.mxu0 0.0
    %3509 = vmatpush1.xpose.msra.mxu0 0.0
    %3510 = vmatprep.subr.mxu0 0.0
    %3511 = vmatpush1.xpose.msra.mxu0 0.0
    %3512 = vmatprep.subr.mxu0 0.0
    %3513 = vmatpush1.xpose.msra.mxu0 0.0
    %3514 = vmatprep.subr.mxu0 0.0
    %3515 = vmatpush1.xpose.msra.mxu0 0.0
    %3516 = vmatprep.subr.mxu0 0.0
    %3517 = vmatpush1.xpose.msra.mxu0 0.0
    %3518 = vmatprep.subr.mxu0 0.0
    %3519 = vmatpush1.xpose.msra.mxu0 0.0
    %3520 = vmatprep.subr.mxu0 0.0
    %3521 = vmatpush1.xpose.msra.mxu0 0.0
    %3522 = vmatprep.subr.mxu0 0.0
    %3523 = vmatpush1.xpose.msra.mxu0 0.0
    %3524 = vmatprep.subr.mxu0 0.0
    %3525 = vmatpush1.xpose.msra.mxu0 0.0
    %3526 = vmatprep.subr.mxu0 0.0
    %3527 = vmatpush1.xpose.msra.mxu0 0.0
    %3528 = vmatprep.subr.mxu0 0.0
    %3529 = vmatpush1.xpose.msra.mxu0 0.0
    %3530 = vmatprep.subr.mxu0 0.0
    %3531 = vmatpush1.xpose.msra.mxu0 0.0
    %3532 = vmatprep.subr.mxu0 0.0
    %3533 = vmatpush1.xpose.msra.mxu0 0.0
    %3534 = vmatprep.subr.mxu0 0.0
    %3535 = vmatpush1.xpose.msra.mxu0 0.0
    %3536 = vmatprep.subr.mxu0 0.0
    %3537 = vmatpush1.xpose.msra.mxu0 0.0
    %3538 = vmatprep.subr.mxu0 0.0
    %3539 = vmatpush1.xpose.msra.mxu0 0.0
    %3540 = vmatprep.subr.mxu0 0.0
    %3541 = vmatpush1.xpose.msra.mxu0 0.0
    %3542 = vmatprep.subr.mxu0 0.0
    %3543 = vmatpush1.xpose.msra.mxu0 0.0
    %3544 = vmatprep.subr.mxu0 0.0
    %3545 = vmatpush1.xpose.msra.mxu0 0.0
    %3546 = vmatprep.subr.mxu0 0.0
    %3547 = vmatpush1.xpose.msra.mxu0 0.0
    %3548 = vmatprep.subr.mxu0 0.0
    %3549 = vmatpush1.xpose.msra.mxu0 0.0
    %3550 = vmatprep.subr.mxu0 0.0
    %3551 = vmatpush1.xpose.msra.mxu0 0.0
    %3552 = vmatprep.subr.mxu0 0.0
    %3553 = vmatpush1.xpose.msra.mxu0 0.0
    %3554 = vmatprep.subr.mxu0 0.0
    %3555 = vmatpush1.xpose.msra.mxu0 0.0
    %3556 = vmatprep.subr.mxu0 0.0
    %3557 = vmatpush1.xpose.msra.mxu0 0.0
    %3558 = vmatprep.subr.mxu0 0.0
    %3559 = vmatpush1.xpose.msra.mxu0 0.0
    %3560 = vmatprep.subr.mxu0 0.0
    %3561 = vmatpush1.xpose.msra.mxu0 0.0
    %3562 = vmatprep.subr.mxu0 0.0
    %3563 = vmatpush1.xpose.msra.mxu0 0.0
    %3564 = vmatprep.mubr.f32.mxu0 0.0
    %3565 = vmatmul.mubr.f32.gmra.mrb[0].mxu0 %v3494
    %v3566 = vpop.f32.mrb[0].mxu0
    %v3567 = vadd.f32 0.0, %v3566
    %v3568 = vpop.f32.mrb[0].mxu0
    %3569 = vdwg.mxu0
    %3570 = vrot.lane.b32.xlu0 %v3326, 104
    %v3571 = vpop.permute.xlu0 %3570
    %3572 = vrot.lane.b32.xlu0 %v3318, 104
    %v3573 = vpop.permute.xlu0 %3572
    %3574 = vrot.lane.b32.xlu0 %v3323, 104
    %v3575 = vpop.permute.xlu0 %3574
    %v3576 = vsel %vm202, %v3571, 0
    %v3578 = vsel %vm202, %v3573, 0
    %v3580 = vsel %vm202, %v3575, 0
    %3582 = vmatprep.subr.mxu0 0.0
    %3583 = vmatpush1.xpose.msra.mxu0 %v3578
    %3584 = vmatprep.subr.mxu0 0.0
    %3585 = vmatpush1.xpose.msra.mxu0 %v3580
    %3586 = vmatprep.subr.mxu0 0.0
    %3587 = vmatpush1.xpose.msra.mxu0 0.0
    %3588 = vmatprep.subr.mxu0 0.0
    %3589 = vmatpush1.xpose.msra.mxu0 0.0
    %3590 = vmatprep.subr.mxu0 0.0
    %3591 = vmatpush1.xpose.msra.mxu0 0.0
    %3592 = vmatprep.subr.mxu0 0.0
    %3593 = vmatpush1.xpose.msra.mxu0 0.0
    %3594 = vmatprep.subr.mxu0 0.0
    %3595 = vmatpush1.xpose.msra.mxu0 0.0
    %3596 = vmatprep.subr.mxu0 0.0
    %3597 = vmatpush1.xpose.msra.mxu0 0.0
    %3598 = vmatprep.subr.mxu0 0.0
    %3599 = vmatpush1.xpose.msra.mxu0 0.0
    %3600 = vmatprep.subr.mxu0 0.0
    %3601 = vmatpush1.xpose.msra.mxu0 0.0
    %3602 = vmatprep.subr.mxu0 0.0
    %3603 = vmatpush1.xpose.msra.mxu0 0.0
    %3604 = vmatprep.subr.mxu0 0.0
    %3605 = vmatpush1.xpose.msra.mxu0 0.0
    %3606 = vmatprep.subr.mxu0 0.0
    %3607 = vmatpush1.xpose.msra.mxu0 0.0
    %3608 = vmatprep.subr.mxu0 0.0
    %3609 = vmatpush1.xpose.msra.mxu0 0.0
    %3610 = vmatprep.subr.mxu0 0.0
    %3611 = vmatpush1.xpose.msra.mxu0 0.0
    %3612 = vmatprep.subr.mxu0 0.0
    %3613 = vmatpush1.xpose.msra.mxu0 0.0
    %3614 = vmatprep.subr.mxu0 0.0
    %3615 = vmatpush1.xpose.msra.mxu0 0.0
    %3616 = vmatprep.subr.mxu0 0.0
    %3617 = vmatpush1.xpose.msra.mxu0 0.0
    %3618 = vmatprep.subr.mxu0 0.0
    %3619 = vmatpush1.xpose.msra.mxu0 0.0
    %3620 = vmatprep.subr.mxu0 0.0
    %3621 = vmatpush1.xpose.msra.mxu0 0.0
    %3622 = vmatprep.subr.mxu0 0.0
    %3623 = vmatpush1.xpose.msra.mxu0 0.0
    %3624 = vmatprep.subr.mxu0 0.0
    %3625 = vmatpush1.xpose.msra.mxu0 0.0
    %3626 = vmatprep.subr.mxu0 0.0
    %3627 = vmatpush1.xpose.msra.mxu0 0.0
    %3628 = vmatprep.subr.mxu0 0.0
    %3629 = vmatpush1.xpose.msra.mxu0 0.0
    %3630 = vmatprep.subr.mxu0 0.0
    %3631 = vmatpush1.xpose.msra.mxu0 0.0
    %3632 = vmatprep.subr.mxu0 0.0
    %3633 = vmatpush1.xpose.msra.mxu0 0.0
    %3634 = vmatprep.subr.mxu0 0.0
    %3635 = vmatpush1.xpose.msra.mxu0 0.0
    %3636 = vmatprep.subr.mxu0 0.0
    %3637 = vmatpush1.xpose.msra.mxu0 0.0
    %3638 = vmatprep.subr.mxu0 0.0
    %3639 = vmatpush1.xpose.msra.mxu0 0.0
    %3640 = vmatprep.subr.mxu0 0.0
    %3641 = vmatpush1.xpose.msra.mxu0 0.0
    %3642 = vmatprep.subr.mxu0 0.0
    %3643 = vmatpush1.xpose.msra.mxu0 0.0
    %3644 = vmatprep.subr.mxu0 0.0
    %3645 = vmatpush1.xpose.msra.mxu0 0.0
    %3646 = vmatprep.mubr.f32.mxu0 0.0
    %3647 = vmatmul.mubr.f32.gmra.mrb[0].mxu0 %v3576
    %v3648 = vpop.f32.mrb[0].mxu0
    %v3649 = vadd.f32 0.0, %v3648
    %v3650 = vpop.f32.mrb[0].mxu0
    %3651 = vdwg.mxu0
    %v3653 = vrot.slane %v3485, 7
    %v3656 = vrot.slane %v3567, 6
    %v3659 = vrot.slane %v3649, 5
    %v3661 = vsel %vm2211, %v3403, %v3653
    %v3662 = vsel %vm2213, %v3661, %v3656
    %v3663 = vsel %vm2215, %v3662, %v3659
    %v3664 = vadd.f32 %v3663, %v1506
    %vm3665 = vcmask 125952
    %v3666 = vsel %vm3665, %v3664, -inf
    %3667 = vmax.xlane.f32.xlu0 %v3666
    %v3668 = vpop.xlane.xlu0 %3667
    %v3669 = vsub.f32 %v3664, %v3668
    %v3670 = vmul.f32 %v3669, 1.442695
    %v3671 = vpow.pop %v3670
    %v3672 = vsel %vm3665, %v3671, 0.0
    %3673 = vadd.xlane.f32.xlu0 %v3672
    %v3674 = vpop.xlane.xlu0 %3673
    %v3675 = vrcp.pop %v3674
    %v3676 = vmul.f32 %v3671, %v3675
    %3677 = vrot.lane.b32.xlu0 %v3318, 96
    %v3678 = vpop.permute.xlu0 %3677
    %3679 = vrot.lane.b32.xlu0 %v3323, 96
    %v3680 = vpop.permute.xlu0 %3679
    %v3684 = vsel %vm877, %v3676, 0
    %3686 = vmatprep.subr.mxu0 0.0
    %3687 = vmatpush1.msra.mxu0 %v3678
    %3688 = vmatprep.subr.mxu0 0.0
    %3689 = vmatpush1.msra.mxu0 %v3680
    %3690 = vmatprep.subr.mxu0 0.0
    %3691 = vmatpush1.msra.mxu0 0.0
    %3692 = vmatprep.subr.mxu0 0.0
    %3693 = vmatpush1.msra.mxu0 0.0
    %3694 = vmatprep.subr.mxu0 0.0
    %3695 = vmatpush1.msra.mxu0 0.0
    %3696 = vmatprep.subr.mxu0 0.0
    %3697 = vmatpush1.msra.mxu0 0.0
    %3698 = vmatprep.subr.mxu0 0.0
    %3699 = vmatpush1.msra.mxu0 0.0
    %3700 = vmatprep.subr.mxu0 0.0
    %3701 = vmatpush1.msra.mxu0 0.0
    %3702 = vmatprep.subr.mxu0 0.0
    %3703 = vmatpush1.msra.mxu0 0.0
    %3704 = vmatprep.subr.mxu0 0.0
    %3705 = vmatpush1.msra.mxu0 0.0
    %3706 = vmatprep.subr.mxu0 0.0
    %3707 = vmatpush1.msra.mxu0 0.0
    %3708 = vmatprep.subr.mxu0 0.0
    %3709 = vmatpush1.msra.mxu0 0.0
    %3710 = vmatprep.subr.mxu0 0.0
    %3711 = vmatpush1.msra.mxu0 0.0
    %3712 = vmatprep.subr.mxu0 0.0
    %3713 = vmatpush1.msra.mxu0 0.0
    %3714 = vmatprep.subr.mxu0 0.0
    %3715 = vmatpush1.msra.mxu0 0.0
    %3716 = vmatprep.subr.mxu0 0.0
    %3717 = vmatpush1.msra.mxu0 0.0
    %3718 = vmatprep.subr.mxu0 0.0
    %3719 = vmatpush1.msra.mxu0 0.0
    %3720 = vmatprep.subr.mxu0 0.0
    %3721 = vmatpush1.msra.mxu0 0.0
    %3722 = vmatprep.subr.mxu0 0.0
    %3723 = vmatpush1.msra.mxu0 0.0
    %3724 = vmatprep.subr.mxu0 0.0
    %3725 = vmatpush1.msra.mxu0 0.0
    %3726 = vmatprep.subr.mxu0 0.0
    %3727 = vmatpush1.msra.mxu0 0.0
    %3728 = vmatprep.subr.mxu0 0.0
    %3729 = vmatpush1.msra.mxu0 0.0
    %3730 = vmatprep.subr.mxu0 0.0
    %3731 = vmatpush1.msra.mxu0 0.0
    %3732 = vmatprep.subr.mxu0 0.0
    %3733 = vmatpush1.msra.mxu0 0.0
    %3734 = vmatprep.subr.mxu0 0.0
    %3735 = vmatpush1.msra.mxu0 0.0
    %3736 = vmatprep.subr.mxu0 0.0
    %3737 = vmatpush1.msra.mxu0 0.0
    %3738 = vmatprep.subr.mxu0 0.0
    %3739 = vmatpush1.msra.mxu0 0.0
    %3740 = vmatprep.subr.mxu0 0.0
    %3741 = vmatpush1.msra.mxu0 0.0
    %3742 = vmatprep.subr.mxu0 0.0
    %3743 = vmatpush1.msra.mxu0 0.0
    %3744 = vmatprep.subr.mxu0 0.0
    %3745 = vmatpush1.msra.mxu0 0.0
    %3746 = vmatprep.subr.mxu0 0.0
    %3747 = vmatpush1.msra.mxu0 0.0
    %3748 = vmatprep.subr.mxu0 0.0
    %3749 = vmatpush1.msra.mxu0 0.0
    %3750 = vmatprep.mubr.f32.mxu0 0.0
    %3751 = vmatmul.mubr.f32.gmra.mrb[0].mxu0 %v3684
    %v3752 = vpop.f32.mrb[0].mxu0
    %v3753 = vadd.f32 0.0, %v3752
    %v3754 = vpop.f32.mrb[0].mxu0
    %3755 = vdwg.mxu0
    %v3756 = vrot.slane %v3676, 1
    %3757 = vrot.lane.b32.xlu0 %v3318, 88
    %v3758 = vpop.permute.xlu0 %3757
    %3759 = vrot.lane.b32.xlu0 %v3323, 88
    %v3760 = vpop.permute.xlu0 %3759
    %v3763 = vsel %vm877, %v3756, 0
    %3765 = vmatprep.subr.mxu0 0.0
    %3766 = vmatpush1.msra.mxu0 %v3758
    %3767 = vmatprep.subr.mxu0 0.0
    %3768 = vmatpush1.msra.mxu0 %v3760
    %3769 = vmatprep.subr.mxu0 0.0
    %3770 = vmatpush1.msra.mxu0 0.0
    %3771 = vmatprep.subr.mxu0 0.0
    %3772 = vmatpush1.msra.mxu0 0.0
    %3773 = vmatprep.subr.mxu0 0.0
    %3774 = vmatpush1.msra.mxu0 0.0
    %3775 = vmatprep.subr.mxu0 0.0
    %3776 = vmatpush1.msra.mxu0 0.0
    %3777 = vmatprep.subr.mxu0 0.0
    %3778 = vmatpush1.msra.mxu0 0.0
    %3779 = vmatprep.subr.mxu0 0.0
    %3780 = vmatpush1.msra.mxu0 0.0
    %3781 = vmatprep.subr.mxu0 0.0
    %3782 = vmatpush1.msra.mxu0 0.0
    %3783 = vmatprep.subr.mxu0 0.0
    %3784 = vmatpush1.msra.mxu0 0.0
    %3785 = vmatprep.subr.mxu0 0.0
    %3786 = vmatpush1.msra.mxu0 0.0
    %3787 = vmatprep.subr.mxu0 0.0
    %3788 = vmatpush1.msra.mxu0 0.0
    %3789 = vmatprep.subr.mxu0 0.0
    %3790 = vmatpush1.msra.mxu0 0.0
    %3791 = vmatprep.subr.mxu0 0.0
    %3792 = vmatpush1.msra.mxu0 0.0
    %3793 = vmatprep.subr.mxu0 0.0
    %3794 = vmatpush1.msra.mxu0 0.0
    %3795 = vmatprep.subr.mxu0 0.0
    %3796 = vmatpush1.msra.mxu0 0.0
    %3797 = vmatprep.subr.mxu0 0.0
    %3798 = vmatpush1.msra.mxu0 0.0
    %3799 = vmatprep.subr.mxu0 0.0
    %3800 = vmatpush1.msra.mxu0 0.0
    %3801 = vmatprep.subr.mxu0 0.0
    %3802 = vmatpush1.msra.mxu0 0.0
    %3803 = vmatprep.subr.mxu0 0.0
    %3804 = vmatpush1.msra.mxu0 0.0
    %3805 = vmatprep.subr.mxu0 0.0
    %3806 = vmatpush1.msra.mxu0 0.0
    %3807 = vmatprep.subr.mxu0 0.0
    %3808 = vmatpush1.msra.mxu0 0.0
    %3809 = vmatprep.subr.mxu0 0.0
    %3810 = vmatpush1.msra.mxu0 0.0
    %3811 = vmatprep.subr.mxu0 0.0
    %3812 = vmatpush1.msra.mxu0 0.0
    %3813 = vmatprep.subr.mxu0 0.0
    %3814 = vmatpush1.msra.mxu0 0.0
    %3815 = vmatprep.subr.mxu0 0.0
    %3816 = vmatpush1.msra.mxu0 0.0
    %3817 = vmatprep.subr.mxu0 0.0
    %3818 = vmatpush1.msra.mxu0 0.0
    %3819 = vmatprep.subr.mxu0 0.0
    %3820 = vmatpush1.msra.mxu0 0.0
    %3821 = vmatprep.subr.mxu0 0.0
    %3822 = vmatpush1.msra.mxu0 0.0
    %3823 = vmatprep.subr.mxu0 0.0
    %3824 = vmatpush1.msra.mxu0 0.0
    %3825 = vmatprep.subr.mxu0 0.0
    %3826 = vmatpush1.msra.mxu0 0.0
    %3827 = vmatprep.subr.mxu0 0.0
    %3828 = vmatpush1.msra.mxu0 0.0
    %3829 = vmatprep.mubr.f32.mxu0 0.0
    %3830 = vmatmul.mubr.f32.gmra.mrb[0].mxu0 %v3763
    %v3831 = vpop.f32.mrb[0].mxu0
    %v3832 = vadd.f32 0.0, %v3831
    %v3833 = vpop.f32.mrb[0].mxu0
    %3834 = vdwg.mxu0
    %v3835 = vrot.slane %v3676, 2
    %3836 = vrot.lane.b32.xlu0 %v3318, 80
    %v3837 = vpop.permute.xlu0 %3836
    %3838 = vrot.lane.b32.xlu0 %v3323, 80
    %v3839 = vpop.permute.xlu0 %3838
    %v3842 = vsel %vm877, %v3835, 0
    %3844 = vmatprep.subr.mxu0 0.0
    %3845 = vmatpush1.msra.mxu0 %v3837
    %3846 = vmatprep.subr.mxu0 0.0
    %3847 = vmatpush1.msra.mxu0 %v3839
    %3848 = vmatprep.subr.mxu0 0.0
    %3849 = vmatpush1.msra.mxu0 0.0
    %3850 = vmatprep.subr.mxu0 0.0
    %3851 = vmatpush1.msra.mxu0 0.0
    %3852 = vmatprep.subr.mxu0 0.0
    %3853 = vmatpush1.msra.mxu0 0.0
    %3854 = vmatprep.subr.mxu0 0.0
    %3855 = vmatpush1.msra.mxu0 0.0
    %3856 = vmatprep.subr.mxu0 0.0
    %3857 = vmatpush1.msra.mxu0 0.0
    %3858 = vmatprep.subr.mxu0 0.0
    %3859 = vmatpush1.msra.mxu0 0.0
    %3860 = vmatprep.subr.mxu0 0.0
    %3861 = vmatpush1.msra.mxu0 0.0
    %3862 = vmatprep.subr.mxu0 0.0
    %3863 = vmatpush1.msra.mxu0 0.0
    %3864 = vmatprep.subr.mxu0 0.0
    %3865 = vmatpush1.msra.mxu0 0.0
    %3866 = vmatprep.subr.mxu0 0.0
    %3867 = vmatpush1.msra.mxu0 0.0
    %3868 = vmatprep.subr.mxu0 0.0
    %3869 = vmatpush1.msra.mxu0 0.0
    %3870 = vmatprep.subr.mxu0 0.0
    %3871 = vmatpush1.msra.mxu0 0.0
    %3872 = vmatprep.subr.mxu0 0.0
    %3873 = vmatpush1.msra.mxu0 0.0
    %3874 = vmatprep.subr.mxu0 0.0
    %3875 = vmatpush1.msra.mxu0 0.0
    %3876 = vmatprep.subr.mxu0 0.0
    %3877 = vmatpush1.msra.mxu0 0.0
    %3878 = vmatprep.subr.mxu0 0.0
    %3879 = vmatpush1.msra.mxu0 0.0
    %3880 = vmatprep.subr.mxu0 0.0
    %3881 = vmatpush1.msra.mxu0 0.0
    %3882 = vmatprep.subr.mxu0 0.0
    %3883 = vmatpush1.msra.mxu0 0.0
    %3884 = vmatprep.subr.mxu0 0.0
    %3885 = vmatpush1.msra.mxu0 0.0
    %3886 = vmatprep.subr.mxu0 0.0
    %3887 = vmatpush1.msra.mxu0 0.0
    %3888 = vmatprep.subr.mxu0 0.0
    %3889 = vmatpush1.msra.mxu0 0.0
    %3890 = vmatprep.subr.mxu0 0.0
    %3891 = vmatpush1.msra.mxu0 0.0
    %3892 = vmatprep.subr.mxu0 0.0
    %3893 = vmatpush1.msra.mxu0 0.0
    %3894 = vmatprep.subr.mxu0 0.0
    %3895 = vmatpush1.msra.mxu0 0.0
    %3896 = vmatprep.subr.mxu0 0.0
    %3897 = vmatpush1.msra.mxu0 0.0
    %3898 = vmatprep.subr.mxu0 0.0
    %3899 = vmatpush1.msra.mxu0 0.0
    %3900 = vmatprep.subr.mxu0 0.0
    %3901 = vmatpush1.msra.mxu0 0.0
    %3902 = vmatprep.subr.mxu0 0.0
    %3903 = vmatpush1.msra.mxu0 0.0
    %3904 = vmatprep.subr.mxu0 0.0
    %3905 = vmatpush1.msra.mxu0 0.0
    %3906 = vmatprep.subr.mxu0 0.0
    %3907 = vmatpush1.msra.mxu0 0.0
    %3908 = vmatprep.mubr.f32.mxu0 0.0
    %3909 = vmatmul.mubr.f32.gmra.mrb[0].mxu0 %v3842
    %v3910 = vpop.f32.mrb[0].mxu0
    %v3911 = vadd.f32 0.0, %v3910
    %v3912 = vpop.f32.mrb[0].mxu0
    %3913 = vdwg.mxu0
    %v3914 = vrot.slane %v3676, 3
    %3915 = vrot.lane.b32.xlu0 %v3318, 72
    %v3916 = vpop.permute.xlu0 %3915
    %3917 = vrot.lane.b32.xlu0 %v3323, 72
    %v3918 = vpop.permute.xlu0 %3917
    %v3921 = vsel %vm877, %v3914, 0
    %3923 = vmatprep.subr.mxu0 0.0
    %3924 = vmatpush1.msra.mxu0 %v3916
    %3925 = vmatprep.subr.mxu0 0.0
    %3926 = vmatpush1.msra.mxu0 %v3918
    %3927 = vmatprep.subr.mxu0 0.0
    %3928 = vmatpush1.msra.mxu0 0.0
    %3929 = vmatprep.subr.mxu0 0.0
    %3930 = vmatpush1.msra.mxu0 0.0
    %3931 = vmatprep.subr.mxu0 0.0
    %3932 = vmatpush1.msra.mxu0 0.0
    %3933 = vmatprep.subr.mxu0 0.0
    %3934 = vmatpush1.msra.mxu0 0.0
    %3935 = vmatprep.subr.mxu0 0.0
    %3936 = vmatpush1.msra.mxu0 0.0
    %3937 = vmatprep.subr.mxu0 0.0
    %3938 = vmatpush1.msra.mxu0 0.0
    %3939 = vmatprep.subr.mxu0 0.0
    %3940 = vmatpush1.msra.mxu0 0.0
    %3941 = vmatprep.subr.mxu0 0.0
    %3942 = vmatpush1.msra.mxu0 0.0
    %3943 = vmatprep.subr.mxu0 0.0
    %3944 = vmatpush1.msra.mxu0 0.0
    %3945 = vmatprep.subr.mxu0 0.0
    %3946 = vmatpush1.msra.mxu0 0.0
    %3947 = vmatprep.subr.mxu0 0.0
    %3948 = vmatpush1.msra.mxu0 0.0
    %3949 = vmatprep.subr.mxu0 0.0
    %3950 = vmatpush1.msra.mxu0 0.0
    %3951 = vmatprep.subr.mxu0 0.0
    %3952 = vmatpush1.msra.mxu0 0.0
    %3953 = vmatprep.subr.mxu0 0.0
    %3954 = vmatpush1.msra.mxu0 0.0
    %3955 = vmatprep.subr.mxu0 0.0
    %3956 = vmatpush1.msra.mxu0 0.0
    %3957 = vmatprep.subr.mxu0 0.0
    %3958 = vmatpush1.msra.mxu0 0.0
    %3959 = vmatprep.subr.mxu0 0.0
    %3960 = vmatpush1.msra.mxu0 0.0
    %3961 = vmatprep.subr.mxu0 0.0
    %3962 = vmatpush1.msra.mxu0 0.0
    %3963 = vmatprep.subr.mxu0 0.0
    %3964 = vmatpush1.msra.mxu0 0.0
    %3965 = vmatprep.subr.mxu0 0.0
    %3966 = vmatpush1.msra.mxu0 0.0
    %3967 = vmatprep.subr.mxu0 0.0
    %3968 = vmatpush1.msra.mxu0 0.0
    %3969 = vmatprep.subr.mxu0 0.0
    %3970 = vmatpush1.msra.mxu0 0.0
    %3971 = vmatprep.subr.mxu0 0.0
    %3972 = vmatpush1.msra.mxu0 0.0
    %3973 = vmatprep.subr.mxu0 0.0
    %3974 = vmatpush1.msra.mxu0 0.0
    %3975 = vmatprep.subr.mxu0 0.0
    %3976 = vmatpush1.msra.mxu0 0.0
    %3977 = vmatprep.subr.mxu0 0.0
    %3978 = vmatpush1.msra.mxu0 0.0
    %3979 = vmatprep.subr.mxu0 0.0
    %3980 = vmatpush1.msra.mxu0 0.0
    %3981 = vmatprep.subr.mxu0 0.0
    %3982 = vmatpush1.msra.mxu0 0.0
    %3983 = vmatprep.subr.mxu0 0.0
    %3984 = vmatpush1.msra.mxu0 0.0
    %3985 = vmatprep.subr.mxu0 0.0
    %3986 = vmatpush1.msra.mxu0 0.0
    %3987 = vmatprep.mubr.f32.mxu0 0.0
    %3988 = vmatmul.mubr.f32.gmra.mrb[0].mxu0 %v3921
    %v3989 = vpop.f32.mrb[0].mxu0
    %v3990 = vadd.f32 0.0, %v3989
    %v3991 = vpop.f32.mrb[0].mxu0
    %3992 = vdwg.mxu0
    %3994 = vrot.lane.b32.xlu0 %v3832, 8
    %v3995 = vpop.permute.xlu0 %3994
    %3998 = vrot.lane.b32.xlu0 %v3911, 16
    %v3999 = vpop.permute.xlu0 %3998
    %4002 = vrot.lane.b32.xlu0 %v3990, 24
    %v4003 = vpop.permute.xlu0 %4002
    %v4005 = vsel %vm202, %v3753, %v3995
    %v4006 = vsel %vm877, %v4005, %v3999
    %v4007 = vsel %vm879, %v4006, %v4003
    %4008 = vrot.lane.b32.xlu0 %v2181, 32
    %v4009 = vpop.permute.xlu0 %4008
    %4010 = vrot.lane.b32.xlu0 %v2184, 32
    %v4011 = vpop.permute.xlu0 %4010
    %4012 = vrot.lane.b32.xlu0 %v2187, 32
    %v4013 = vpop.permute.xlu0 %4012
    %4014 = vrot.lane.b32.xlu0 %v2190, 32
    %v4015 = vpop.permute.xlu0 %4014
    %v4020 = vrot.slane %v2202, 5
    %v4023 = vsel %vm124, %v4007, 0
    %4025 = vmatprep.subr.mxu0 0.0
    %4026 = vmatpush1.msra.mxu0 %v4009
    %4027 = vmatprep.subr.mxu0 0.0
    %4028 = vmatpush1.msra.mxu0 %v4011
    %4029 = vmatprep.subr.mxu0 0.0
    %4030 = vmatpush1.msra.mxu0 %v4013
    %4031 = vmatprep.subr.mxu0 0.0
    %4032 = vmatpush1.msra.mxu0 %v4015
    %4033 = vmatprep.subr.mxu0 0.0
    %4034 = vmatpush1.msra.mxu0 0.0
    %4035 = vmatprep.subr.mxu0 0.0
    %4036 = vmatpush1.msra.mxu0 0.0
    %4037 = vmatprep.subr.mxu0 0.0
    %4038 = vmatpush1.msra.mxu0 0.0
    %4039 = vmatprep.subr.mxu0 0.0
    %4040 = vmatpush1.msra.mxu0 0.0
    %4041 = vmatprep.subr.mxu0 0.0
    %4042 = vmatpush1.msra.mxu0 0.0
    %4043 = vmatprep.subr.mxu0 0.0
    %4044 = vmatpush1.msra.mxu0 0.0
    %4045 = vmatprep.subr.mxu0 0.0
    %4046 = vmatpush1.msra.mxu0 0.0
    %4047 = vmatprep.subr.mxu0 0.0
    %4048 = vmatpush1.msra.mxu0 0.0
    %4049 = vmatprep.subr.mxu0 0.0
    %4050 = vmatpush1.msra.mxu0 0.0
    %4051 = vmatprep.subr.mxu0 0.0
    %4052 = vmatpush1.msra.mxu0 0.0
    %4053 = vmatprep.subr.mxu0 0.0
    %4054 = vmatpush1.msra.mxu0 0.0
    %4055 = vmatprep.subr.mxu0 0.0
    %4056 = vmatpush1.msra.mxu0 0.0
    %4057 = vmatprep.subr.mxu0 0.0
    %4058 = vmatpush1.msra.mxu0 0.0
    %4059 = vmatprep.subr.mxu0 0.0
    %4060 = vmatpush1.msra.mxu0 0.0
    %4061 = vmatprep.subr.mxu0 0.0
    %4062 = vmatpush1.msra.mxu0 0.0
    %4063 = vmatprep.subr.mxu0 0.0
    %4064 = vmatpush1.msra.mxu0 0.0
    %4065 = vmatprep.subr.mxu0 0.0
    %4066 = vmatpush1.msra.mxu0 0.0
    %4067 = vmatprep.subr.mxu0 0.0
    %4068 = vmatpush1.msra.mxu0 0.0
    %4069 = vmatprep.subr.mxu0 0.0
    %4070 = vmatpush1.msra.mxu0 0.0
    %4071 = vmatprep.subr.mxu0 0.0
    %4072 = vmatpush1.msra.mxu0 0.0
    %4073 = vmatprep.subr.mxu0 0.0
    %4074 = vmatpush1.msra.mxu0 0.0
    %4075 = vmatprep.subr.mxu0 0.0
    %4076 = vmatpush1.msra.mxu0 0.0
    %4077 = vmatprep.subr.mxu0 0.0
    %4078 = vmatpush1.msra.mxu0 0.0
    %4079 = vmatprep.subr.mxu0 0.0
    %4080 = vmatpush1.msra.mxu0 0.0
    %4081 = vmatprep.subr.mxu0 0.0
    %4082 = vmatpush1.msra.mxu0 0.0
    %4083 = vmatprep.subr.mxu0 0.0
    %4084 = vmatpush1.msra.mxu0 0.0
    %4085 = vmatprep.subr.mxu0 0.0
    %4086 = vmatpush1.msra.mxu0 0.0
    %4087 = vmatprep.subr.mxu0 0.0
    %4088 = vmatpush1.msra.mxu0 0.0
    %4089 = vmatprep.mubr.f32.mxu0 0.0
    %4090 = vmatmul.mubr.f32.gmra.mrb[0].mxu0 %v4023
    %v4091 = vpop.f32.mrb[0].mxu0
    %v4092 = vadd.f32 %v4020, %v4091
    %v4093 = vpop.f32.mrb[0].mxu0
    %4094 = vdwg.mxu0
    %v4095 = vadd.f32 %v4092, %v3151
    %v4096 = vsel %vm3132, %v4095, 0.0
    %4097 = vadd.xlane.f32.xlu0 %v4096
    %v4098 = vpop.xlane.xlu0 %4097
    %v4099 = vmul.f32 %v4098, %v978
    %v4100 = vsub.f32 %v4095, %v4099
    %v4101 = vmul.f32 %v4100, %v4100
    %v4102 = vsel %vm3132, %v4101, 0.0
    %4103 = vadd.xlane.f32.xlu0 %v4102
    %v4104 = vpop.xlane.xlu0 %4103
    %v4105 = vmul.f32 %v4104, %v978
    %v4106 = vadd.f32 %v4105, 1e-06
    %v4107 = vrsqrt.pop %v4106
    %v4108 = vmul.f32 %v4100, %v4107
    %v4109 = vrot.slane %v2202, 6
    %v4111 = vmul.f32 %v4108, %v4109
    %v4112 = vrot.slane %v2202, 7
    %v4114 = vadd.f32 %v4111, %v4112
    %v4116 = vsel %vm124, %v4114, 0
    %4118 = vmatprep.subr.mxu0 0.0
    %4119 = vmatpush1.msra.mxu0 %v2182
    %4120 = vmatprep.subr.mxu0 0.0
    %4121 = vmatpush1.msra.mxu0 %v2185
    %4122 = vmatprep.subr.mxu0 0.0
    %4123 = vmatpush1.msra.mxu0 %v2188
    %4124 = vmatprep.subr.mxu0 0.0
    %4125 = vmatpush1.msra.mxu0 %v2191
    %4126 = vmatprep.subr.mxu0 0.0
    %4127 = vmatpush1.msra.mxu0 0.0
    %4128 = vmatprep.subr.mxu0 0.0
    %4129 = vmatpush1.msra.mxu0 0.0
    %4130 = vmatprep.subr.mxu0 0.0
    %4131 = vmatpush1.msra.mxu0 0.0
    %4132 = vmatprep.subr.mxu0 0.0
    %4133 = vmatpush1.msra.mxu0 0.0
    %4134 = vmatprep.subr.mxu0 0.0
    %4135 = vmatpush1.msra.mxu0 0.0
    %4136 = vmatprep.subr.mxu0 0.0
    %4137 = vmatpush1.msra.mxu0 0.0
    %4138 = vmatprep.subr.mxu0 0.0
    %4139 = vmatpush1.msra.mxu0 0.0
    %4140 = vmatprep.subr.mxu0 0.0
    %4141 = vmatpush1.msra.mxu0 0.0
    %4142 = vmatprep.subr.mxu0 0.0
    %4143 = vmatpush1.msra.mxu0 0.0
    %4144 = vmatprep.subr.mxu0 0.0
    %4145 = vmatpush1.msra.mxu0 0.0
    %4146 = vmatprep.subr.mxu0 0.0
    %4147 = vmatpush1.msra.mxu0 0.0
    %4148 = vmatprep.subr.mxu0 0.0
    %4149 = vmatpush1.msra.mxu0 0.0
    %4150 = vmatprep.subr.mxu0 0.0
    %4151 = vmatpush1.msra.mxu0 0.0
    %4152 = vmatprep.subr.mxu0 0.0
    %4153 = vmatpush1.msra.mxu0 0.0
    %4154 = vmatprep.subr.mxu0 0.0
    %4155 = vmatpush1.msra.mxu0 0.0
    %4156 = vmatprep.subr.mxu0 0.0
    %4157 = vmatpush1.msra.mxu0 0.0
    %4158 = vmatprep.subr.mxu0 0.0
    %4159 = vmatpush1.msra.mxu0 0.0
    %4160 = vmatprep.subr.mxu0 0.0
    %4161 = vmatpush1.msra.mxu0 0.0
    %4162 = vmatprep.subr.mxu0 0.0
    %4163 = vmatpush1.msra.mxu0 0.0
    %4164 = vmatprep.subr.mxu0 0.0
    %4165 = vmatpush1.msra.mxu0 0.0
    %4166 = vmatprep.subr.mxu0 0.0
    %4167 = vmatpush1.msra.mxu0 0.0
    %4168 = vmatprep.subr.mxu0 0.0
    %4169 = vmatpush1.msra.mxu0 0.0
    %4170 = vmatprep.subr.mxu0 0.0
    %4171 = vmatpush1.msra.mxu0 0.0
    %4172 = vmatprep.subr.mxu0 0.0
    %4173 = vmatpush1.msra.mxu0 0.0
    %4174 = vmatprep.subr.mxu0 0.0
    %4175 = vmatpush1.msra.mxu0 0.0
    %4176 = vmatprep.subr.mxu0 0.0
    %4177 = vmatpush1.msra.mxu0 0.0
    %4178 = vmatprep.subr.mxu0 0.0
    %4179 = vmatpush1.msra.mxu0 0.0
    %4180 = vmatprep.subr.mxu0 0.0
    %4181 = vmatpush1.msra.mxu0 0.0
    %4182 = vmatprep.mubr.f32.mxu0 0.0
    %4183 = vmatmul.mubr.f32.gmra.mrb[0].mxu0 %v4116
    %v4184 = vpop.f32.mrb[0].mxu0
    %v4185 = vadd.f32 %v2203, %v4184
    %v4186 = vpop.f32.mrb[0].mxu0
    %4187 = vdwg.mxu0
    %v4188 = vmax.f32 %v4185, 0.0
    %v4190 = vrot.slane %v2203, 1
    %v4193 = vsel %vm2081, %v4188, 0
    %4195 = vmatprep.subr.mxu0 0.0
    %4196 = vmatpush1.msra.mxu0 %v2193
    %4197 = vmatprep.subr.mxu0 0.0
    %4198 = vmatpush1.msra.mxu0 %v2194
    %4199 = vmatprep.subr.mxu0 0.0
    %4200 = vmatpush1.msra.mxu0 %v2195
    %4201 = vmatprep.subr.mxu0 0.0
    %4202 = vmatpush1.msra.mxu0 %v2196
    %4203 = vmatprep.subr.mxu0 0.0
    %4204 = vmatpush1.msra.mxu0 %v2197
    %4205 = vmatprep.subr.mxu0 0.0
    %4206 = vmatpush1.msra.mxu0 %v2198
    %4207 = vmatprep.subr.mxu0 0.0
    %4208 = vmatpush1.msra.mxu0 %v2199
    %4209 = vmatprep.subr.mxu0 0.0
    %4210 = vmatpush1.msra.mxu0 %v2200
    %4211 = vmatprep.subr.mxu0 0.0
    %4212 = vmatpush1.msra.mxu0 0.0
    %4213 = vmatprep.subr.mxu0 0.0
    %4214 = vmatpush1.msra.mxu0 0.0
    %4215 = vmatprep.subr.mxu0 0.0
    %4216 = vmatpush1.msra.mxu0 0.0
    %4217 = vmatprep.subr.mxu0 0.0
    %4218 = vmatpush1.msra.mxu0 0.0
    %4219 = vmatprep.subr.mxu0 0.0
    %4220 = vmatpush1.msra.mxu0 0.0
    %4221 = vmatprep.subr.mxu0 0.0
    %4222 = vmatpush1.msra.mxu0 0.0
    %4223 = vmatprep.subr.mxu0 0.0
    %4224 = vmatpush1.msra.mxu0 0.0
    %4225 = vmatprep.subr.mxu0 0.0
    %4226 = vmatpush1.msra.mxu0 0.0
    %4227 = vmatprep.subr.mxu0 0.0
    %4228 = vmatpush1.msra.mxu0 0.0
    %4229 = vmatprep.subr.mxu0 0.0
    %4230 = vmatpush1.msra.mxu0 0.0
    %4231 = vmatprep.subr.mxu0 0.0
    %4232 = vmatpush1.msra.mxu0 0.0
    %4233 = vmatprep.subr.mxu0 0.0
    %4234 = vmatpush1.msra.mxu0 0.0
    %4235 = vmatprep.subr.mxu0 0.0
    %4236 = vmatpush1.msra.mxu0 0.0
    %4237 = vmatprep.subr.mxu0 0.0
    %4238 = vmatpush1.msra.mxu0 0.0
    %4239 = vmatprep.subr.mxu0 0.0
    %4240 = vmatpush1.msra.mxu0 0.0
    %4241 = vmatprep.subr.mxu0 0.0
    %4242 = vmatpush1.msra.mxu0 0.0
    %4243 = vmatprep.subr.mxu0 0.0
    %4244 = vmatpush1.msra.mxu0 0.0
    %4245 = vmatprep.subr.mxu0 0.0
    %4246 = vmatpush1.msra.mxu0 0.0
    %4247 = vmatprep.subr.mxu0 0.0
    %4248 = vmatpush1.msra.mxu0 0.0
    %4249 = vmatprep.subr.mxu0 0.0
    %4250 = vmatpush1.msra.mxu0 0.0
    %4251 = vmatprep.subr.mxu0 0.0
    %4252 = vmatpush1.msra.mxu0 0.0
    %4253 = vmatprep.subr.mxu0 0.0
    %4254 = vmatpush1.msra.mxu0 0.0
    %4255 = vmatprep.subr.mxu0 0.0
    %4256 = vmatpush1.msra.mxu0 0.0
    %4257 = vmatprep.subr.mxu0 0.0
    %4258 = vmatpush1.msra.mxu0 0.0
    %4259 = vmatprep.mubr.f32.mxu0 0.0
    %4260 = vmatmul.mubr.f32.gmra.mrb[0].mxu0 %v4193
    %v4261 = vpop.f32.mrb[0].mxu0
    %v4262 = vadd.f32 %v4190, %v4261
    %v4263 = vpop.f32.mrb[0].mxu0
    %4264 = vdwg.mxu0
    %v4265 = vadd.f32 %v4262, %v4114
    %v4266 = vsel %vm3132, %v4265, 0.0
    %4267 = vadd.xlane.f32.xlu0 %v4266
    %v4268 = vpop.xlane.xlu0 %4267
    %v4269 = vmul.f32 %v4268, %v978
    %v4270 = vsub.f32 %v4265, %v4269
    %v4271 = vmul.f32 %v4270, %v4270
    %v4272 = vsel %vm3132, %v4271, 0.0
    %4273 = vadd.xlane.f32.xlu0 %v4272
    %v4274 = vpop.xlane.xlu0 %4273
    %v4275 = vmul.f32 %v4274, %v978
    %v4276 = vadd.f32 %v4275, 1e-06
    %v4277 = vrsqrt.pop %v4276
    %v4278 = vmul.f32 %v4270, %v4277
    %v4279 = vrot.slane %v2203, 2
    %v4281 = vmul.f32 %v4278, %v4279
    %v4282 = vrot.slane %v2203, 3
    %v4284 = vadd.f32 %v4281, %v4282
    %v4285 = vsel %vm3132, %v4284, 0.0
    %4286 = vadd.xlane.f32.xlu0 %v4285
    %v4287 = vpop.xlane.xlu0 %4286
    %v4288 = vmul.f32 %v4287, %v978
    %v4289 = vsub.f32 %v4284, %v4288
    %v4290 = vmul.f32 %v4289, %v4289
    %v4291 = vsel %vm3132, %v4290, 0.0
    %4292 = vadd.xlane.f32.xlu0 %v4291
    %v4293 = vpop.xlane.xlu0 %4292
    %v4294 = vmul.f32 %v4293, %v978
    %v4295 = vadd.f32 %v4294, 1e-06
    %v4296 = vrsqrt.pop %v4295
    %v4297 = vmul.f32 %v4289, %v4296
    %v4298 = vmul.f32 %v4297, %v82
    %v4300 = vrot.slane %v82, 1
    %v4302 = vadd.f32 %v4298, %v4300
    %v4303 = vrot.slane %v82, 2
    %v4306 = vsel %vm124, %v4302, 0
    %4308 = vmatprep.subr.mxu0 0.0
    %4309 = vmatpush1.msra.mxu0 %v83
    %4310 = vmatprep.subr.mxu0 0.0
    %4311 = vmatpush1.msra.mxu0 %v84
    %4312 = vmatprep.subr.mxu0 0.0
    %4313 = vmatpush1.msra.mxu0 %v85
    %4314 = vmatprep.subr.mxu0 0.0
    %4315 = vmatpush1.msra.mxu0 %v86
    %4316 = vmatprep.subr.mxu0 0.0
    %4317 = vmatpush1.msra.mxu0 0.0
    %4318 = vmatprep.subr.mxu0 0.0
    %4319 = vmatpush1.msra.mxu0 0.0
    %4320 = vmatprep.subr.mxu0 0.0
    %4321 = vmatpush1.msra.mxu0 0.0
    %4322 = vmatprep.subr.mxu0 0.0
    %4323 = vmatpush1.msra.mxu0 0.0
    %4324 = vmatprep.subr.mxu0 0.0
    %4325 = vmatpush1.msra.mxu0 0.0
    %4326 = vmatprep.subr.mxu0 0.0
    %4327 = vmatpush1.msra.mxu0 0.0
    %4328 = vmatprep.subr.mxu0 0.0
    %4329 = vmatpush1.msra.mxu0 0.0
    %4330 = vmatprep.subr.mxu0 0.0
    %4331 = vmatpush1.msra.mxu0 0.0
    %4332 = vmatprep.subr.mxu0 0.0
    %4333 = vmatpush1.msra.mxu0 0.0
    %4334 = vmatprep.subr.mxu0 0.0
    %4335 = vmatpush1.msra.mxu0 0.0
    %4336 = vmatprep.subr.mxu0 0.0
    %4337 = vmatpush1.msra.mxu0 0.0
    %4338 = vmatprep.subr.mxu0 0.0
    %4339 = vmatpush1.msra.mxu0 0.0
    %4340 = vmatprep.subr.mxu0 0.0
    %4341 = vmatpush1.msra.mxu0 0.0
    %4342 = vmatprep.subr.mxu0 0.0
    %4343 = vmatpush1.msra.mxu0 0.0
    %4344 = vmatprep.subr.mxu0 0.0
    %4345 = vmatpush1.msra.mxu0 0.0
    %4346 = vmatprep.subr.mxu0 0.0
    %4347 = vmatpush1.msra.mxu0 0.0
    %4348 = vmatprep.subr.mxu0 0.0
    %4349 = vmatpush1.msra.mxu0 0.0
    %4350 = vmatprep.subr.mxu0 0.0
    %4351 = vmatpush1.msra.mxu0 0.0
    %4352 = vmatprep.subr.mxu0 0.0
    %4353 = vmatpush1.msra.mxu0 0.0
    %4354 = vmatprep.subr.mxu0 0.0
    %4355 = vmatpush1.msra.mxu0 0.0
    %4356 = vmatprep.subr.mxu0 0.0
    %4357 = vmatpush1.msra.mxu0 0.0
    %4358 = vmatprep.subr.mxu0 0.0
    %4359 = vmatpush1.msra.mxu0 0.0
    %4360 = vmatprep.subr.mxu0 0.0
    %4361 = vmatpush1.msra.mxu0 0.0
    %4362 = vmatprep.subr.mxu0 0.0
    %4363 = vmatpush1.msra.mxu0 0.0
    %4364 = vmatprep.subr.mxu0 0.0
    %4365 = vmatpush1.msra.mxu0 0.0
    %4366 = vmatprep.subr.mxu0 0.0
    %4367 = vmatpush1.msra.mxu0 0.0
    %4368 = vmatprep.subr.mxu0 0.0
    %4369 = vmatpush1.msra.mxu0 0.0
    %4370 = vmatprep.subr.mxu0 0.0
    %4371 = vmatpush1.msra.mxu0 0.0
    %4372 = vmatprep.mubr.f32.mxu0 0.0
    %4373 = vmatmul.mubr.f32.gmra.mrb[0].mxu0 %v4306
    %v4374 = vpop.f32.mrb[0].mxu0
    %v4375 = vadd.f32 %v4303, %v4374
    %v4376 = vpop.f32.mrb[0].mxu0
    %4377 = vdwg.mxu0
    %v4378 = vlaneseq
    %v4379 = vshrl.u32 %v4378, 7
    %v4380 = vsub.s32 1, %v4379
    %v4381 = vrot.slane %v80, %v4380
    %v4382 = vadd.f32 %v92, %v4381
    %v4384 = vsel %vm124, %v75, 0
    %4386 = vmatprep.subr.mxu0 0.0
    %4387 = vmatpush1.msra.mxu0 %v98
    %4388 = vmatprep.subr.mxu0 0.0
    %4389 = vmatpush1.msra.mxu0 %v101
    %4390 = vmatprep.subr.mxu0 0.0
    %4391 = vmatpush1.msra.mxu0 %v104
    %4392 = vmatprep.subr.mxu0 0.0
    %4393 = vmatpush1.msra.mxu0 %v107
    %4394 = vmatprep.subr.mxu0 0.0
    %4395 = vmatpush1.msra.mxu0 0.0
    %4396 = vmatprep.subr.mxu0 0.0
    %4397 = vmatpush1.msra.mxu0 0.0
    %4398 = vmatprep.subr.mxu0 0.0
    %4399 = vmatpush1.msra.mxu0 0.0
    %4400 = vmatprep.subr.mxu0 0.0
    %4401 = vmatpush1.msra.mxu0 0.0
    %4402 = vmatprep.subr.mxu0 0.0
    %4403 = vmatpush1.msra.mxu0 0.0
    %4404 = vmatprep.subr.mxu0 0.0
    %4405 = vmatpush1.msra.mxu0 0.0
    %4406 = vmatprep.subr.mxu0 0.0
    %4407 = vmatpush1.msra.mxu0 0.0
    %4408 = vmatprep.subr.mxu0 0.0
    %4409 = vmatpush1.msra.mxu0 0.0
    %4410 = vmatprep.subr.mxu0 0.0
    %4411 = vmatpush1.msra.mxu0 0.0
    %4412 = vmatprep.subr.mxu0 0.0
    %4413 = vmatpush1.msra.mxu0 0.0
    %4414 = vmatprep.subr.mxu0 0.0
    %4415 = vmatpush1.msra.mxu0 0.0
    %4416 = vmatprep.subr.mxu0 0.0
    %4417 = vmatpush1.msra.mxu0 0.0
    %4418 = vmatprep.subr.mxu0 0.0
    %4419 = vmatpush1.msra.mxu0 0.0
    %4420 = vmatprep.subr.mxu0 0.0
    %4421 = vmatpush1.msra.mxu0 0.0
    %4422 = vmatprep.subr.mxu0 0.0
    %4423 = vmatpush1.msra.mxu0 0.0
    %4424 = vmatprep.subr.mxu0 0.0
    %4425 = vmatpush1.msra.mxu0 0.0
    %4426 = vmatprep.subr.mxu0 0.0
    %4427 = vmatpush1.msra.mxu0 0.0
    %4428 = vmatprep.subr.mxu0 0.0
    %4429 = vmatpush1.msra.mxu0 0.0
    %4430 = vmatprep.subr.mxu0 0.0
    %4431 = vmatpush1.msra.mxu0 0.0
    %4432 = vmatprep.subr.mxu0 0.0
    %4433 = vmatpush1.msra.mxu0 0.0
    %4434 = vmatprep.subr.mxu0 0.0
    %4435 = vmatpush1.msra.mxu0 0.0
    %4436 = vmatprep.subr.mxu0 0.0
    %4437 = vmatpush1.msra.mxu0 0.0
    %4438 = vmatprep.subr.mxu0 0.0
    %4439 = vmatpush1.msra.mxu0 0.0
    %4440 = vmatprep.subr.mxu0 0.0
    %4441 = vmatpush1.msra.mxu0 0.0
    %4442 = vmatprep.subr.mxu0 0.0
    %4443 = vmatpush1.msra.mxu0 0.0
    %4444 = vmatprep.subr.mxu0 0.0
    %4445 = vmatpush1.msra.mxu0 0.0
    %4446 = vmatprep.subr.mxu0 0.0
    %4447 = vmatpush1.msra.mxu0 0.0
    %4448 = vmatprep.subr.mxu0 0.0
    %4449 = vmatpush1.msra.mxu0 0.0
    %4450 = vmatprep.mubr.f32.mxu0 0.0
    %4451 = vmatmul.mubr.f32.gmra.mrb[0].mxu0 %v4384
    %v4452 = vpop.f32.mrb[0].mxu0
    %v4453 = vadd.f32 %v123, %v4452
    %v4454 = vpop.f32.mrb[0].mxu0
    %4455 = vdwg.mxu0
    %v4456 = vmul.f32 %v4453, 0.35355338
    %4458 = vrot.lane.b32.xlu0 %v4453, 96
    %v4459 = vpop.permute.xlu0 %4458
    %v4461 = vsel %vm202, %v4456, 0
    %v4463 = vsel %vm202, %v4459, 0
    %4465 = vmatprep.subr.mxu0 0.0
    %4466 = vmatpush1.xpose.msra.mxu0 %v4463
    %4467 = vmatprep.subr.mxu0 0.0
    %4468 = vmatpush1.xpose.msra.mxu0 0.0
    %4469 = vmatprep.subr.mxu0 0.0
    %4470 = vmatpush1.xpose.msra.mxu0 0.0
    %4471 = vmatprep.subr.mxu0 0.0
    %4472 = vmatpush1.xpose.msra.mxu0 0.0
    %4473 = vmatprep.subr.mxu0 0.0
    %4474 = vmatpush1.xpose.msra.mxu0 0.0
    %4475 = vmatprep.subr.mxu0 0.0
    %4476 = vmatpush1.xpose.msra.mxu0 0.0
    %4477 = vmatprep.subr.mxu0 0.0
    %4478 = vmatpush1.xpose.msra.mxu0 0.0
    %4479 = vmatprep.subr.mxu0 0.0
    %4480 = vmatpush1.xpose.msra.mxu0 0.0
    %4481 = vmatprep.subr.mxu0 0.0
    %4482 = vmatpush1.xpose.msra.mxu0 0.0
    %4483 = vmatprep.subr.mxu0 0.0
    %4484 = vmatpush1.xpose.msra.mxu0 0.0
    %4485 = vmatprep.subr.mxu0 0.0
    %4486 = vmatpush1.xpose.msra.mxu0 0.0
    %4487 = vmatprep.subr.mxu0 0.0
    %4488 = vmatpush1.xpose.msra.mxu0 0.0
    %4489 = vmatprep.subr.mxu0 0.0
    %4490 = vmatpush1.xpose.msra.mxu0 0.0
    %4491 = vmatprep.subr.mxu0 0.0
    %4492 = vmatpush1.xpose.msra.mxu0 0.0
    %4493 = vmatprep.subr.mxu0 0.0
    %4494 = vmatpush1.xpose.msra.mxu0 0.0
    %4495 = vmatprep.subr.mxu0 0.0
    %4496 = vmatpush1.xpose.msra.mxu0 0.0
    %4497 = vmatprep.subr.mxu0 0.0
    %4498 = vmatpush1.xpose.msra.mxu0 0.0
    %4499 = vmatprep.subr.mxu0 0.0
    %4500 = vmatpush1.xpose.msra.mxu0 0.0
    %4501 = vmatprep.subr.mxu0 0.0
    %4502 = vmatpush1.xpose.msra.mxu0 0.0
    %4503 = vmatprep.subr.mxu0 0.0
    %4504 = vmatpush1.xpose.msra.mxu0 0.0
    %4505 = vmatprep.subr.mxu0 0.0
    %4506 = vmatpush1.xpose.msra.mxu0 0.0
    %4507 = vmatprep.subr.mxu0 0.0
    %4508 = vmatpush1.xpose.msra.mxu0 0.0
    %4509 = vmatprep.subr.mxu0 0.0
    %4510 = vmatpush1.xpose.msra.mxu0 0.0
    %4511 = vmatprep.subr.mxu0 0.0
    %4512 = vmatpush1.xpose.msra.mxu0 0.0
    %4513 = vmatprep.subr.mxu0 0.0
    %4514 = vmatpush1.xpose.msra.mxu0 0.0
    %4515 = vmatprep.subr.mxu0 0.0
    %4516 = vmatpush1.xpose.msra.mxu0 0.0
    %4517 = vmatprep.subr.mxu0 0.0
    %4518 = vmatpush1.xpose.msra.mxu0 0.0
    %4519 = vmatprep.subr.mxu0 0.0
    %4520 = vmatpush1.xpose.msra.mxu0 0.0
    %4521 = vmatprep.subr.mxu0 0.0
    %4522 = vmatpush1.xpose.msra.mxu0 0.0
    %4523 = vmatprep.subr.mxu0 0.0
    %4524 = vmatpush1.xpose.msra.mxu0 0.0
    %4525 = vmatprep.subr.mxu0 0.0
    %4526 = vmatpush1.xpose.msra.mxu0 0.0
    %4527 = vmatprep.subr.mxu0 0.0
    %4528 = vmatpush1.xpose.msra.mxu0 0.0
    %4529 = vmatprep.mubr.f32.mxu0 0.0
    %4530 = vmatmul.mubr.f32.gmra.mrb[0].mxu0 %v4461
    %v4531 = vpop.f32.mrb[0].mxu0
    %v4532 = vadd.f32 0.0, %v4531
    %v4533 = vpop.f32.mrb[0].mxu0
    %4534 = vdwg.mxu0
    %4535 = vrot.lane.b32.xlu0 %v4456, 120
    %v4536 = vpop.permute.xlu0 %4535
    %4537 = vrot.lane.b32.xlu0 %v4453, 88
    %v4538 = vpop.permute.xlu0 %4537
    %v4539 = vsel %vm202, %v4536, 0
    %v4541 = vsel %vm202, %v4538, 0
    %4543 = vmatprep.subr.mxu0 0.0
    %4544 = vmatpush1.xpose.msra.mxu0 %v4541
    %4545 = vmatprep.subr.mxu0 0.0
    %4546 = vmatpush1.xpose.msra.mxu0 0.0
    %4547 = vmatprep.subr.mxu0 0.0
    %4548 = vmatpush1.xpose.msra.mxu0 0.0
    %4549 = vmatprep.subr.mxu0 0.0
    %4550 = vmatpush1.xpose.msra.mxu0 0.0
    %4551 = vmatprep.subr.mxu0 0.0
    %4552 = vmatpush1.xpose.msra.mxu0 0.0
    %4553 = vmatprep.subr.mxu0 0.0
    %4554 = vmatpush1.xpose.msra.mxu0 0.0
    %4555 = vmatprep.subr.mxu0 0.0
    %4556 = vmatpush1.xpose.msra.mxu0 0.0
    %4557 = vmatprep.subr.mxu0 0.0
    %4558 = vmatpush1.xpose.msra.mxu0 0.0
    %4559 = vmatprep.subr.mxu0 0.0
    %4560 = vmatpush1.xpose.msra.mxu0 0.0
    %4561 = vmatprep.subr.mxu0 0.0
    %4562 = vmatpush1.xpose.msra.mxu0 0.0
    %4563 = vmatprep.subr.mxu0 0.0
    %4564 = vmatpush1.xpose.msra.mxu0 0.0
    %4565 = vmatprep.subr.mxu0 0.0
    %4566 = vmatpush1.xpose.msra.mxu0 0.0
    %4567 = vmatprep.subr.mxu0 0.0
    %4568 = vmatpush1.xpose.msra.mxu0 0.0
    %4569 = vmatprep.subr.mxu0 0.0
    %4570 = vmatpush1.xpose.msra.mxu0 0.0
    %4571 = vmatprep.subr.mxu0 0.0
    %4572 = vmatpush1.xpose.msra.mxu0 0.0
    %4573 = vmatprep.subr.mxu0 0.0
    %4574 = vmatpush1.xpose.msra.mxu0 0.0
    %4575 = vmatprep.subr.mxu0 0.0
    %4576 = vmatpush1.xpose.msra.mxu0 0.0
    %4577 = vmatprep.subr.mxu0 0.0
    %4578 = vmatpush1.xpose.msra.mxu0 0.0
    %4579 = vmatprep.subr.mxu0 0.0
    %4580 = vmatpush1.xpose.msra.mxu0 0.0
    %4581 = vmatprep.subr.mxu0 0.0
    %4582 = vmatpush1.xpose.msra.mxu0 0.0
    %4583 = vmatprep.subr.mxu0 0.0
    %4584 = vmatpush1.xpose.msra.mxu0 0.0
    %4585 = vmatprep.subr.mxu0 0.0
    %4586 = vmatpush1.xpose.msra.mxu0 0.0
    %4587 = vmatprep.subr.mxu0 0.0
    %4588 = vmatpush1.xpose.msra.mxu0 0.0
    %4589 = vmatprep.subr.mxu0 0.0
    %4590 = vmatpush1.xpose.msra.mxu0 0.0
    %4591 = vmatprep.subr.mxu0 0.0
    %4592 = vmatpush1.xpose.msra.mxu0 0.0
    %4593 = vmatprep.subr.mxu0 0.0
    %4594 = vmatpush1.xpose.msra.mxu0 0.0
    %4595 = vmatprep.subr.mxu0 0.0
    %4596 = vmatpush1.xpose.msra.mxu0 0.0
    %4597 = vmatprep.subr.mxu0 0.0
    %4598 = vmatpush1.xpose.msra.mxu0 0.0
    %4599 = vmatprep.subr.mxu0 0.0
    %4600 = vmatpush1.xpose.msra.mxu0 0.0
    %4601 = vmatprep.subr.mxu0 0.0
    %4602 = vmatpush1.xpose.msra.mxu0 0.0
    %4603 = vmatprep.subr.mxu0 0.0
    %4604 = vmatpush1.xpose.msra.mxu0 0.0
    %4605 = vmatprep.subr.mxu0 0.0
    %4606 = vmatpush1.xpose.msra.mxu0 0.0
    %4607 = vmatprep.mubr.f32.mxu0 0.0
    %4608 = vmatmul.mubr.f32.gmra.mrb[0].mxu0 %v4539
    %v4609 = vpop.f32.mrb[0].mxu0
    %v4610 = vadd.f32 0.0, %v4609
    %v4611 = vpop.f32.mrb[0].mxu0
    %4612 = vdwg.mxu0
    %4613 = vrot.lane.b32.xlu0 %v4456, 112
    %v4614 = vpop.permute.xlu0 %4613
    %4615 = vrot.lane.b32.xlu0 %v4453, 80
    %v4616 = vpop.permute.xlu0 %4615
    %v4617 = vsel %vm202, %v4614, 0
    %v4619 = vsel %vm202, %v4616, 0
    %4621 = vmatprep.subr.mxu0 0.0
    %4622 = vmatpush1.xpose.msra.mxu0 %v4619
    %4623 = vmatprep.subr.mxu0 0.0
    %4624 = vmatpush1.xpose.msra.mxu0 0.0
    %4625 = vmatprep.subr.mxu0 0.0
    %4626 = vmatpush1.xpose.msra.mxu0 0.0
    %4627 = vmatprep.subr.mxu0 0.0
    %4628 = vmatpush1.xpose.msra.mxu0 0.0
    %4629 = vmatprep.subr.mxu0 0.0
    %4630 = vmatpush1.xpose.msra.mxu0 0.0
    %4631 = vmatprep.subr.mxu0 0.0
    %4632 = vmatpush1.xpose.msra.mxu0 0.0
    %4633 = vmatprep.subr.mxu0 0.0
    %4634 = vmatpush1.xpose.msra.mxu0 0.0
    %4635 = vmatprep.subr.mxu0 0.0
    %4636 = vmatpush1.xpose.msra.mxu0 0.0
    %4637 = vmatprep.subr.mxu0 0.0
    %4638 = vmatpush1.xpose.msra.mxu0 0.0
    %4639 = vmatprep.subr.mxu0 0.0
    %4640 = vmatpush1.xpose.msra.mxu0 0.0
    %4641 = vmatprep.subr.mxu0 0.0
    %4642 = vmatpush1.xpose.msra.mxu0 0.0
    %4643 = vmatprep.subr.mxu0 0.0
    %4644 = vmatpush1.xpose.msra.mxu0 0.0
    %4645 = vmatprep.subr.mxu0 0.0
    %4646 = vmatpush1.xpose.msra.mxu0 0.0
    %4647 = vmatprep.subr.mxu0 0.0
    %4648 = vmatpush1.xpose.msra.mxu0 0.0
    %4649 = vmatprep.subr.mxu0 0.0
    %4650 = vmatpush1.xpose.msra.mxu0 0.0
    %4651 = vmatprep.subr.mxu0 0.0
    %4652 = vmatpush1.xpose.msra.mxu0 0.0
    %4653 = vmatprep.subr.mxu0 0.0
    %4654 = vmatpush1.xpose.msra.mxu0 0.0
    %4655 = vmatprep.subr.mxu0 0.0
    %4656 = vmatpush1.xpose.msra.mxu0 0.0
    %4657 = vmatprep.subr.mxu0 0.0
    %4658 = vmatpush1.xpose.msra.mxu0 0.0
    %4659 = vmatprep.subr.mxu0 0.0
    %4660 = vmatpush1.xpose.msra.mxu0 0.0
    %4661 = vmatprep.subr.mxu0 0.0
    %4662 = vmatpush1.xpose.msra.mxu0 0.0
    %4663 = vmatprep.subr.mxu0 0.0
    %4664 = vmatpush1.xpose.msra.mxu0 0.0
    %4665 = vmatprep.subr.mxu0 0.0
    %4666 = vmatpush1.xpose.msra.mxu0 0.0
    %4667 = vmatprep.subr.mxu0 0.0
    %4668 = vmatpush1.xpose.msra.mxu0 0.0
    %4669 = vmatprep.subr.mxu0 0.0
    %4670 = vmatpush1.xpose.msra.mxu0 0.0
    %4671 = vmatprep.subr.mxu0 0.0
    %4672 = vmatpush1.xpose.msra.mxu0 0.0
    %4673 = vmatprep.subr.mxu0 0.0
    %4674 = vmatpush1.xpose.msra.mxu0 0.0
    %4675 = vmatprep.subr.mxu0 0.0
    %4676 = vmatpush1.xpose.msra.mxu0 0.0
    %4677 = vmatprep.subr.mxu0 0.0
    %4678 = vmatpush1.xpose.msra.mxu0 0.0
    %4679 = vmatprep.subr.mxu0 0.0
    %4680 = vmatpush1.xpose.msra.mxu0 0.0
    %4681 = vmatprep.subr.mxu0 0.0
    %4682 = vmatpush1.xpose.msra.mxu0 0.0
    %4683 = vmatprep.subr.mxu0 0.0
    %4684 = vmatpush1.xpose.msra.mxu0 0.0
    %4685 = vmatprep.mubr.f32.mxu0 0.0
    %4686 = vmatmul.mubr.f32.gmra.mrb[0].mxu0 %v4617
    %v4687 = vpop.f32.mrb[0].mxu0
    %v4688 = vadd.f32 0.0, %v4687
    %v4689 = vpop.f32.mrb[0].mxu0
    %4690 = vdwg.mxu0
    %4691 = vrot.lane.b32.xlu0 %v4456, 104
    %v4692 = vpop.permute.xlu0 %4691
    %4693 = vrot.lane.b32.xlu0 %v4453, 72
    %v4694 = vpop.permute.xlu0 %4693
    %v4695 = vsel %vm202, %v4692, 0
    %v4697 = vsel %vm202, %v4694, 0
    %4699 = vmatprep.subr.mxu0 0.0
    %4700 = vmatpush1.xpose.msra.mxu0 %v4697
    %4701 = vmatprep.subr.mxu0 0.0
    %4702 = vmatpush1.xpose.msra.mxu0 0.0
    %4703 = vmatprep.subr.mxu0 0.0
    %4704 = vmatpush1.xpose.msra.mxu0 0.0
    %4705 = vmatprep.subr.mxu0 0.0
    %4706 = vmatpush1.xpose.msra.mxu0 0.0
    %4707 = vmatprep.subr.mxu0 0.0
    %4708 = vmatpush1.xpose.msra.mxu0 0.0
    %4709 = vmatprep.subr.mxu0 0.0
    %4710 = vmatpush1.xpose.msra.mxu0 0.0
    %4711 = vmatprep.subr.mxu0 0.0
    %4712 = vmatpush1.xpose.msra.mxu0 0.0
    %4713 = vmatprep.subr.mxu0 0.0
    %4714 = vmatpush1.xpose.msra.mxu0 0.0
    %4715 = vmatprep.subr.mxu0 0.0
    %4716 = vmatpush1.xpose.msra.mxu0 0.0
    %4717 = vmatprep.subr.mxu0 0.0
    %4718 = vmatpush1.xpose.msra.mxu0 0.0
    %4719 = vmatprep.subr.mxu0 0.0
    %4720 = vmatpush1.xpose.msra.mxu0 0.0
    %4721 = vmatprep.subr.mxu0 0.0
    %4722 = vmatpush1.xpose.msra.mxu0 0.0
    %4723 = vmatprep.subr.mxu0 0.0
    %4724 = vmatpush1.xpose.msra.mxu0 0.0
    %4725 = vmatprep.subr.mxu0 0.0
    %4726 = vmatpush1.xpose.msra.mxu0 0.0
    %4727 = vmatprep.subr.mxu0 0.0
    %4728 = vmatpush1.xpose.msra.mxu0 0.0
    %4729 = vmatprep.subr.mxu0 0.0
    %4730 = vmatpush1.xpose.msra.mxu0 0.0
    %4731 = vmatprep.subr.mxu0 0.0
    %4732 = vmatpush1.xpose.msra.mxu0 0.0
    %4733 = vmatprep.subr.mxu0 0.0
    %4734 = vmatpush1.xpose.msra.mxu0 0.0
    %4735 = vmatprep.subr.mxu0 0.0
    %4736 = vmatpush1.xpose.msra.mxu0 0.0
    %4737 = vmatprep.subr.mxu0 0.0
    %4738 = vmatpush1.xpose.msra.mxu0 0.0
    %4739 = vmatprep.subr.mxu0 0.0
    %4740 = vmatpush1.xpose.msra.mxu0 0.0
    %4741 = vmatprep.subr.mxu0 0.0
    %4742 = vmatpush1.xpose.msra.mxu0 0.0
    %4743 = vmatprep.subr.mxu0 0.0
    %4744 = vmatpush1.xpose.msra.mxu0 0.0
    %4745 = vmatprep.subr.mxu0 0.0
    %4746 = vmatpush1.xpose.msra.mxu0 0.0
    %4747 = vmatprep.subr.mxu0 0.0
    %4748 = vmatpush1.xpose.msra.mxu0 0.0
    %4749 = vmatprep.subr.mxu0 0.0
    %4750 = vmatpush1.xpose.msra.mxu0 0.0
    %4751 = vmatprep.subr.mxu0 0.0
    %4752 = vmatpush1.xpose.msra.mxu0 0.0
    %4753 = vmatprep.subr.mxu0 0.0
    %4754 = vmatpush1.xpose.msra.mxu0 0.0
    %4755 = vmatprep.subr.mxu0 0.0
    %4756 = vmatpush1.xpose.msra.mxu0 0.0
    %4757 = vmatprep.subr.mxu0 0.0
    %4758 = vmatpush1.xpose.msra.mxu0 0.0
    %4759 = vmatprep.subr.mxu0 0.0
    %4760 = vmatpush1.xpose.msra.mxu0 0.0
    %4761 = vmatprep.subr.mxu0 0.0
    %4762 = vmatpush1.xpose.msra.mxu0 0.0
    %4763 = vmatprep.mubr.f32.mxu0 0.0
    %4764 = vmatmul.mubr.f32.gmra.mrb[0].mxu0 %v4695
    %v4765 = vpop.f32.mrb[0].mxu0
    %v4766 = vadd.f32 0.0, %v4765
    %v4767 = vpop.f32.mrb[0].mxu0
    %4768 = vdwg.mxu0
    %v4769 = vadd.f32 %v4532, %v4382
    %v4770 = vadd.f32 %v4610, %v4382
    %v4771 = vadd.f32 %v4688, %v4382
    %v4772 = vadd.f32 %v4766, %v4382
    %v4773 = vsel %vm202, %v4769, -inf
    %4774 = vmax.xlane.f32.xlu0 %v4773
    %v4775 = vpop.xlane.xlu0 %4774
    %v4776 = vsel %vm202, %v4770, -inf
    %4777 = vmax.xlane.f32.xlu0 %v4776
    %v4778 = vpop.xlane.xlu0 %4777
    %v4779 = vsel %vm202, %v4771, -inf
    %4780 = vmax.xlane.f32.xlu0 %v4779
    %v4781 = vpop.xlane.xlu0 %4780
    %v4782 = vsel %vm202, %v4772, -inf
    %4783 = vmax.xlane.f32.xlu0 %v4782
    %v4784 = vpop.xlane.xlu0 %4783
    %v4785 = vsub.f32 %v4769, %v4775
    %v4786 = vsub.f32 %v4770, %v4778
    %v4787 = vsub.f32 %v4771, %v4781
    %v4788 = vsub.f32 %v4772, %v4784
    %v4789 = vmul.f32 %v4785, 1.442695
    %v4790 = vpow.pop %v4789
    %v4791 = vmul.f32 %v4786, 1.442695
    %v4792 = vpow.pop %v4791
    %v4793 = vmul.f32 %v4787, 1.442695
    %v4794 = vpow.pop %v4793
    %v4795 = vmul.f32 %v4788, 1.442695
    %v4796 = vpow.pop %v4795
    %v4797 = vsel %vm202, %v4790, 0.0
    %4798 = vadd.xlane.f32.xlu0 %v4797
    %v4799 = vpop.xlane.xlu0 %4798
    %v4800 = vsel %vm202, %v4792, 0.0
    %4801 = vadd.xlane.f32.xlu0 %v4800
    %v4802 = vpop.xlane.xlu0 %4801
    %v4803 = vsel %vm202, %v4794, 0.0
    %4804 = vadd.xlane.f32.xlu0 %v4803
    %v4805 = vpop.xlane.xlu0 %4804
    %v4806 = vsel %vm202, %v4796, 0.0
    %4807 = vadd.xlane.f32.xlu0 %v4806
    %v4808 = vpop.xlane.xlu0 %4807
    %v4809 = vrcp.pop %v4799
    %v4810 = vrcp.pop %v4802
    %v4811 = vrcp.pop %v4805
    %v4812 = vrcp.pop %v4808
    %v4813 = vmul.f32 %v4790, %v4809
    %v4814 = vmul.f32 %v4792, %v4810
    %v4815 = vmul.f32 %v4794, %v4811
    %v4816 = vmul.f32 %v4796, %v4812
    %4817 = vrot.lane.b32.xlu0 %v4453, 64
    %v4818 = vpop.permute.xlu0 %4817
    %v4821 = vsel %vm202, %v4813, 0
    %4823 = vmatprep.subr.mxu0 0.0
    %4824 = vmatpush1.msra.mxu0 %v4818
    %4825 = vmatprep.subr.mxu0 0.0
    %4826 = vmatpush1.msra.mxu0 0.0
    %4827 = vmatprep.subr.mxu0 0.0
    %4828 = vmatpush1.msra.mxu0 0.0
    %4829 = vmatprep.subr.mxu0 0.0
    %4830 = vmatpush1.msra.mxu0 0.0
    %4831 = vmatprep.subr.mxu0 0.0
    %4832 = vmatpush1.msra.mxu0 0.0
    %4833 = vmatprep.subr.mxu0 0.0
    %4834 = vmatpush1.msra.mxu0 0.0
    %4835 = vmatprep.subr.mxu0 0.0
    %4836 = vmatpush1.msra.mxu0 0.0
    %4837 = vmatprep.subr.mxu0 0.0
    %4838 = vmatpush1.msra.mxu0 0.0
    %4839 = vmatprep.subr.mxu0 0.0
    %4840 = vmatpush1.msra.mxu0 0.0
    %4841 = vmatprep.subr.mxu0 0.0
    %4842 = vmatpush1.msra.mxu0 0.0
    %4843 = vmatprep.subr.mxu0 0.0
    %4844 = vmatpush1.msra.mxu0 0.0
    %4845 = vmatprep.subr.mxu0 0.0
    %4846 = vmatpush1.msra.mxu0 0.0
    %4847 = vmatprep.subr.mxu0 0.0
    %4848 = vmatpush1.msra.mxu0 0.0
    %4849 = vmatprep.subr.mxu0 0.0
    %4850 = vmatpush1.msra.mxu0 0.0
    %4851 = vmatprep.subr.mxu0 0.0
    %4852 = vmatpush1.msra.mxu0 0.0
    %4853 = vmatprep.subr.mxu0 0.0
    %4854 = vmatpush1.msra.mxu0 0.0
    %4855 = vmatprep.subr.mxu0 0.0
    %4856 = vmatpush1.msra.mxu0 0.0
    %4857 = vmatprep.subr.mxu0 0.0
    %4858 = vmatpush1.msra.mxu0 0.0
    %4859 = vmatprep.subr.mxu0 0.0
    %4860 = vmatpush1.msra.mxu0 0.0
    %4861 = vmatprep.subr.mxu0 0.0
    %4862 = vmatpush1.msra.mxu0 0.0
    %4863 = vmatprep.subr.mxu0 0.0
    %4864 = vmatpush1.msra.mxu0 0.0
    %4865 = vmatprep.subr.mxu0 0.0
    %4866 = vmatpush1.msra.mxu0 0.0
    %4867 = vmatprep.subr.mxu0 0.0
    %4868 = vmatpush1.msra.mxu0 0.0
    %4869 = vmatprep.subr.mxu0 0.0
    %4870 = vmatpush1.msra.mxu0 0.0
    %4871 = vmatprep.subr.mxu0 0.0
    %4872 = vmatpush1.msra.mxu0 0.0
    %4873 = vmatprep.subr.mxu0 0.0
    %4874 = vmatpush1.msra.mxu0 0.0
    %4875 = vmatprep.subr.mxu0 0.0
    %4876 = vmatpush1.msra.mxu0 0.0
    %4877 = vmatprep.subr.mxu0 0.0
    %4878 = vmatpush1.msra.mxu0 0.0
    %4879 = vmatprep.subr.mxu0 0.0
    %4880 = vmatpush1.msra.mxu0 0.0
    %4881 = vmatprep.subr.mxu0 0.0
    %4882 = vmatpush1.msra.mxu0 0.0
    %4883 = vmatprep.subr.mxu0 0.0
    %4884 = vmatpush1.msra.mxu0 0.0
    %4885 = vmatprep.subr.mxu0 0.0
    %4886 = vmatpush1.msra.mxu0 0.0
    %4887 = vmatprep.mubr.f32.mxu0 0.0
    %4888 = vmatmul.mubr.f32.gmra.mrb[0].mxu0 %v4821
    %v4889 = vpop.f32.mrb[0].mxu0
    %v4890 = vadd.f32 0.0, %v4889
    %v4891 = vpop.f32.mrb[0].mxu0
    %4892 = vdwg.mxu0
    %4893 = vrot.lane.b32.xlu0 %v4453, 56
    %v4894 = vpop.permute.xlu0 %4893
    %v4897 = vsel %vm202, %v4814, 0
    %4899 = vmatprep.subr.mxu0 0.0
    %4900 = vmatpush1.msra.mxu0 %v4894
    %4901 = vmatprep.subr.mxu0 0.0
    %4902 = vmatpush1.msra.mxu0 0.0
    %4903 = vmatprep.subr.mxu0 0.0
    %4904 = vmatpush1.msra.mxu0 0.0
    %4905 = vmatprep.subr.mxu0 0.0
    %4906 = vmatpush1.msra.mxu0 0.0
    %4907 = vmatprep.subr.mxu0 0.0
    %4908 = vmatpush1.msra.mxu0 0.0
    %4909 = vmatprep.subr.mxu0 0.0
    %4910 = vmatpush1.msra.mxu0 0.0
    %4911 = vmatprep.subr.mxu0 0.0
    %4912 = vmatpush1.msra.mxu0 0.0
    %4913 = vmatprep.subr.mxu0 0.0
    %4914 = vmatpush1.msra.mxu0 0.0
    %4915 = vmatprep.subr.mxu0 0.0
    %4916 = vmatpush1.msra.mxu0 0.0
    %4917 = vmatprep.subr.mxu0 0.0
    %4918 = vmatpush1.msra.mxu0 0.0
    %4919 = vmatprep.subr.mxu0 0.0
    %4920 = vmatpush1.msra.mxu0 0.0
    %4921 = vmatprep.subr.mxu0 0.0
    %4922 = vmatpush1.msra.mxu0 0.0
    %4923 = vmatprep.subr.mxu0 0.0
    %4924 = vmatpush1.msra.mxu0 0.0
    %4925 = vmatprep.subr.mxu0 0.0
    %4926 = vmatpush1.msra.mxu0 0.0
    %4927 = vmatprep.subr.mxu0 0.0
    %4928 = vmatpush1.msra.mxu0 0.0
    %4929 = vmatprep.subr.mxu0 0.0
    %4930 = vmatpush1.msra.mxu0 0.0
    %4931 = vmatprep.subr.mxu0 0.0
    %4932 = vmatpush1.msra.mxu0 0.0
    %4933 = vmatprep.subr.mxu0 0.0
    %4934 = vmatpush1.msra.mxu0 0.0
    %4935 = vmatprep.subr.mxu0 0.0
    %4936 = vmatpush1.msra.mxu0 0.0
    %4937 = vmatprep.subr.mxu0 0.0
    %4938 = vmatpush1.msra.mxu0 0.0
    %4939 = vmatprep.subr.mxu0 0.0
    %4940 = vmatpush1.msra.mxu0 0.0
    %4941 = vmatprep.subr.mxu0 0.0
    %4942 = vmatpush1.msra.mxu0 0.0
    %4943 = vmatprep.subr.mxu0 0.0
    %4944 = vmatpush1.msra.mxu0 0.0
    %4945 = vmatprep.subr.mxu0 0.0
    %4946 = vmatpush1.msra.mxu0 0.0
    %4947 = vmatprep.subr.mxu0 0.0
    %4948 = vmatpush1.msra.mxu0 0.0
    %4949 = vmatprep.subr.mxu0 0.0
    %4950 = vmatpush1.msra.mxu0 0.0
    %4951 = vmatprep.subr.mxu0 0.0
    %4952 = vmatpush1.msra.mxu0 0.0
    %4953 = vmatprep.subr.mxu0 0.0
    %4954 = vmatpush1.msra.mxu0 0.0
    %4955 = vmatprep.subr.mxu0 0.0
    %4956 = vmatpush1.msra.mxu0 0.0
    %4957 = vmatprep.subr.mxu0 0.0
    %4958 = vmatpush1.msra.mxu0 0.0
    %4959 = vmatprep.subr.mxu0 0.0
    %4960 = vmatpush1.msra.mxu0 0.0
    %4961 = vmatprep.subr.mxu0 0.0
    %4962 = vmatpush1.msra.mxu0 0.0
    %4963 = vmatprep.mubr.f32.mxu0 0.0
    %4964 = vmatmul.mubr.f32.gmra.mrb[0].mxu0 %v4897
    %v4965 = vpop.f32.mrb[0].mxu0
    %v4966 = vadd.f32 0.0, %v4965
    %v4967 = vpop.f32.mrb[0].mxu0
    %4968 = vdwg.mxu0
    %4969 = vrot.lane.b32.xlu0 %v4453, 48
    %v4970 = vpop.permute.xlu0 %4969
    %v4973 = vsel %vm202, %v4815, 0
    %4975 = vmatprep.subr.mxu0 0.0
    %4976 = vmatpush1.msra.mxu0 %v4970
    %4977 = vmatprep.subr.mxu0 0.0
    %4978 = vmatpush1.msra.mxu0 0.0
    %4979 = vmatprep.subr.mxu0 0.0
    %4980 = vmatpush1.msra.mxu0 0.0
    %4981 = vmatprep.subr.mxu0 0.0
    %4982 = vmatpush1.msra.mxu0 0.0
    %4983 = vmatprep.subr.mxu0 0.0
    %4984 = vmatpush1.msra.mxu0 0.0
    %4985 = vmatprep.subr.mxu0 0.0
    %4986 = vmatpush1.msra.mxu0 0.0
    %4987 = vmatprep.subr.mxu0 0.0
    %4988 = vmatpush1.msra.mxu0 0.0
    %4989 = vmatprep.subr.mxu0 0.0
    %4990 = vmatpush1.msra.mxu0 0.0
    %4991 = vmatprep.subr.mxu0 0.0
    %4992 = vmatpush1.msra.mxu0 0.0
    %4993 = vmatprep.subr.mxu0 0.0
    %4994 = vmatpush1.msra.mxu0 0.0
    %4995 = vmatprep.subr.mxu0 0.0
    %4996 = vmatpush1.msra.mxu0 0.0
    %4997 = vmatprep.subr.mxu0 0.0
    %4998 = vmatpush1.msra.mxu0 0.0
    %4999 = vmatprep.subr.mxu0 0.0
    %5000 = vmatpush1.msra.mxu0 0.0
    %5001 = vmatprep.subr.mxu0 0.0
    %5002 = vmatpush1.msra.mxu0 0.0
    %5003 = vmatprep.subr.mxu0 0.0
    %5004 = vmatpush1.msra.mxu0 0.0
    %5005 = vmatprep.subr.mxu0 0.0
    %5006 = vmatpush1.msra.mxu0 0.0
    %5007 = vmatprep.subr.mxu0 0.0
    %5008 = vmatpush1.msra.mxu0 0.0
    %5009 = vmatprep.subr.mxu0 0.0
    %5010 = vmatpush1.msra.mxu0 0.0
    %5011 = vmatprep.subr.mxu0 0.0
    %5012 = vmatpush1.msra.mxu0 0.0
    %5013 = vmatprep.subr.mxu0 0.0
    %5014 = vmatpush1.msra.mxu0 0.0
    %5015 = vmatprep.subr.mxu0 0.0
    %5016 = vmatpush1.msra.mxu0 0.0
    %5017 = vmatprep.subr.mxu0 0.0
    %5018 = vmatpush1.msra.mxu0 0.0
    %5019 = vmatprep.subr.mxu0 0.0
    %5020 = vmatpush1.msra.mxu0 0.0
    %5021 = vmatprep.subr.mxu0 0.0
    %5022 = vmatpush1.msra.mxu0 0.0
    %5023 = vmatprep.subr.mxu0 0.0
    %5024 = vmatpush1.msra.mxu0 0.0
    %5025 = vmatprep.subr.mxu0 0.0
    %5026 = vmatpush1.msra.mxu0 0.0
    %5027 = vmatprep.subr.mxu0 0.0
    %5028 = vmatpush1.msra.mxu0 0.0
    %5029 = vmatprep.subr.mxu0 0.0
    %5030 = vmatpush1.msra.mxu0 0.0
    %5031 = vmatprep.subr.mxu0 0.0
    %5032 = vmatpush1.msra.mxu0 0.0
    %5033 = vmatprep.subr.mxu0 0.0
    %5034 = vmatpush1.msra.mxu0 0.0
    %5035 = vmatprep.subr.mxu0 0.0
    %5036 = vmatpush1.msra.mxu0 0.0
    %5037 = vmatprep.subr.mxu0 0.0
    %5038 = vmatpush1.msra.mxu0 0.0
    %5039 = vmatprep.mubr.f32.mxu0 0.0
    %5040 = vmatmul.mubr.f32.gmra.mrb[0].mxu0 %v4973
    %v5041 = vpop.f32.mrb[0].mxu0
    %v5042 = vadd.f32 0.0, %v5041
    %v5043 = vpop.f32.mrb[0].mxu0
    %5044 = vdwg.mxu0
    %5045 = vrot.lane.b32.xlu0 %v4453, 40
    %v5046 = vpop.permute.xlu0 %5045
    %v5049 = vsel %vm202, %v4816, 0
    %5051 = vmatprep.subr.mxu0 0.0
    %5052 = vmatpush1.msra.mxu0 %v5046
    %5053 = vmatprep.subr.mxu0 0.0
    %5054 = vmatpush1.msra.mxu0 0.0
    %5055 = vmatprep.subr.mxu0 0.0
    %5056 = vmatpush1.msra.mxu0 0.0
    %5057 = vmatprep.subr.mxu0 0.0
    %5058 = vmatpush1.msra.mxu0 0.0
    %5059 = vmatprep.subr.mxu0 0.0
    %5060 = vmatpush1.msra.mxu0 0.0
    %5061 = vmatprep.subr.mxu0 0.0
    %5062 = vmatpush1.msra.mxu0 0.0
    %5063 = vmatprep.subr.mxu0 0.0
    %5064 = vmatpush1.msra.mxu0 0.0
    %5065 = vmatprep.subr.mxu0 0.0
    %5066 = vmatpush1.msra.mxu0 0.0
    %5067 = vmatprep.subr.mxu0 0.0
    %5068 = vmatpush1.msra.mxu0 0.0
    %5069 = vmatprep.subr.mxu0 0.0
    %5070 = vmatpush1.msra.mxu0 0.0
    %5071 = vmatprep.subr.mxu0 0.0
    %5072 = vmatpush1.msra.mxu0 0.0
    %5073 = vmatprep.subr.mxu0 0.0
    %5074 = vmatpush1.msra.mxu0 0.0
    %5075 = vmatprep.subr.mxu0 0.0
    %5076 = vmatpush1.msra.mxu0 0.0
    %5077 = vmatprep.subr.mxu0 0.0
    %5078 = vmatpush1.msra.mxu0 0.0
    %5079 = vmatprep.subr.mxu0 0.0
    %5080 = vmatpush1.msra.mxu0 0.0
    %5081 = vmatprep.subr.mxu0 0.0
    %5082 = vmatpush1.msra.mxu0 0.0
    %5083 = vmatprep.subr.mxu0 0.0
    %5084 = vmatpush1.msra.mxu0 0.0
    %5085 = vmatprep.subr.mxu0 0.0
    %5086 = vmatpush1.msra.mxu0 0.0
    %5087 = vmatprep.subr.mxu0 0.0
    %5088 = vmatpush1.msra.mxu0 0.0
    %5089 = vmatprep.subr.mxu0 0.0
    %5090 = vmatpush1.msra.mxu0 0.0
    %5091 = vmatprep.subr.mxu0 0.0
    %5092 = vmatpush1.msra.mxu0 0.0
    %5093 = vmatprep.subr.mxu0 0.0
    %5094 = vmatpush1.msra.mxu0 0.0
    %5095 = vmatprep.subr.mxu0 0.0
    %5096 = vmatpush1.msra.mxu0 0.0
    %5097 = vmatprep.subr.mxu0 0.0
    %5098 = vmatpush1.msra.mxu0 0.0
    %5099 = vmatprep.subr.mxu0 0.0
    %5100 = vmatpush1.msra.mxu0 0.0
    %5101 = vmatprep.subr.mxu0 0.0
    %5102 = vmatpush1.msra.mxu0 0.0
    %5103 = vmatprep.subr.mxu0 0.0
    %5104 = vmatpush1.msra.mxu0 0.0
    %5105 = vmatprep.subr.mxu0 0.0
    %5106 = vmatpush1.msra.mxu0 0.0
    %5107 = vmatprep.subr.mxu0 0.0
    %5108 = vmatpush1.msra.mxu0 0.0
    %5109 = vmatprep.subr.mxu0 0.0
    %5110 = vmatpush1.msra.mxu0 0.0
    %5111 = vmatprep.subr.mxu0 0.0
    %5112 = vmatpush1.msra.mxu0 0.0
    %5113 = vmatprep.subr.mxu0 0.0
    %5114 = vmatpush1.msra.mxu0 0.0
    %5115 = vmatprep.mubr.f32.mxu0 0.0
    %5116 = vmatmul.mubr.f32.gmra.mrb[0].mxu0 %v5049
    %v5117 = vpop.f32.mrb[0].mxu0
    %v5118 = vadd.f32 0.0, %v5117
    %v5119 = vpop.f32.mrb[0].mxu0
    %5120 = vdwg.mxu0
    %5122 = vrot.lane.b32.xlu0 %v4966, 8
    %v5123 = vpop.permute.xlu0 %5122
    %5126 = vrot.lane.b32.xlu0 %v5042, 16
    %v5127 = vpop.permute.xlu0 %5126
    %5130 = vrot.lane.b32.xlu0 %v5118, 24
    %v5131 = vpop.permute.xlu0 %5130
    %v5133 = vsel %vm202, %v4890, %v5123
    %v5134 = vsel %vm877, %v5133, %v5127
    %v5135 = vsel %vm879, %v5134, %v5131
    %v5137 = vsel %vm124, %v5135, 0
    %5139 = vmatprep.subr.mxu0 0.0
    %5140 = vmatpush1.msra.mxu0 %v890
    %5141 = vmatprep.subr.mxu0 0.0
    %5142 = vmatpush1.msra.mxu0 %v892
    %5143 = vmatprep.subr.mxu0 0.0
    %5144 = vmatpush1.msra.mxu0 %v894
    %5145 = vmatprep.subr.mxu0 0.0
    %5146 = vmatpush1.msra.mxu0 %v896
    %5147 = vmatprep.subr.mxu0 0.0
    %5148 = vmatpush1.msra.mxu0 0.0
    %5149 = vmatprep.subr.mxu0 0.0
    %5150 = vmatpush1.msra.mxu0 0.0
    %5151 = vmatprep.subr.mxu0 0.0
    %5152 = vmatpush1.msra.mxu0 0.0
    %5153 = vmatprep.subr.mxu0 0.0
    %5154 = vmatpush1.msra.mxu0 0.0
    %5155 = vmatprep.subr.mxu0 0.0
    %5156 = vmatpush1.msra.mxu0 0.0
    %5157 = vmatprep.subr.mxu0 0.0
    %5158 = vmatpush1.msra.mxu0 0.0
    %5159 = vmatprep.subr.mxu0 0.0
    %5160 = vmatpush1.msra.mxu0 0.0
    %5161 = vmatprep.subr.mxu0 0.0
    %5162 = vmatpush1.msra.mxu0 0.0
    %5163 = vmatprep.subr.mxu0 0.0
    %5164 = vmatpush1.msra.mxu0 0.0
    %5165 = vmatprep.subr.mxu0 0.0
    %5166 = vmatpush1.msra.mxu0 0.0
    %5167 = vmatprep.subr.mxu0 0.0
    %5168 = vmatpush1.msra.mxu0 0.0
    %5169 = vmatprep.subr.mxu0 0.0
    %5170 = vmatpush1.msra.mxu0 0.0
    %5171 = vmatprep.subr.mxu0 0.0
    %5172 = vmatpush1.msra.mxu0 0.0
    %5173 = vmatprep.subr.mxu0 0.0
    %5174 = vmatpush1.msra.mxu0 0.0
    %5175 = vmatprep.subr.mxu0 0.0
    %5176 = vmatpush1.msra.mxu0 0.0
    %5177 = vmatprep.subr.mxu0 0.0
    %5178 = vmatpush1.msra.mxu0 0.0
    %5179 = vmatprep.subr.mxu0 0.0
    %5180 = vmatpush1.msra.mxu0 0.0
    %5181 = vmatprep.subr.mxu0 0.0
    %5182 = vmatpush1.msra.mxu0 0.0
    %5183 = vmatprep.subr.mxu0 0.0
    %5184 = vmatpush1.msra.mxu0 0.0
    %5185 = vmatprep.subr.mxu0 0.0
    %5186 = vmatpush1.msra.mxu0 0.0
    %5187 = vmatprep.subr.mxu0 0.0
    %5188 = vmatpush1.msra.mxu0 0.0
    %5189 = vmatprep.subr.mxu0 0.0
    %5190 = vmatpush1.msra.mxu0 0.0
    %5191 = vmatprep.subr.mxu0 0.0
    %5192 = vmatpush1.msra.mxu0 0.0
    %5193 = vmatprep.subr.mxu0 0.0
    %5194 = vmatpush1.msra.mxu0 0.0
    %5195 = vmatprep.subr.mxu0 0.0
    %5196 = vmatpush1.msra.mxu0 0.0
    %5197 = vmatprep.subr.mxu0 0.0
    %5198 = vmatpush1.msra.mxu0 0.0
    %5199 = vmatprep.subr.mxu0 0.0
    %5200 = vmatpush1.msra.mxu0 0.0
    %5201 = vmatprep.subr.mxu0 0.0
    %5202 = vmatpush1.msra.mxu0 0.0
    %5203 = vmatprep.mubr.f32.mxu0 0.0
    %5204 = vmatmul.mubr.f32.gmra.mrb[0].mxu0 %v5137
    %v5205 = vpop.f32.mrb[0].mxu0
    %v5206 = vadd.f32 %v884, %v5205
    %v5207 = vpop.f32.mrb[0].mxu0
    %5208 = vdwg.mxu0
    %v5209 = vadd.f32 %v5206, %v75
    %v5210 = vsel %vm124, %v5209, 0.0
    %5211 = vadd.xlane.f32.xlu0 %v5210
    %v5212 = vpop.xlane.xlu0 %5211
    %v5213 = vmul.f32 %v5212, %v978
    %v5214 = vsub.f32 %v5209, %v5213
    %v5215 = vmul.f32 %v5214, %v5214
    %v5216 = vsel %vm124, %v5215, 0.0
    %5217 = vadd.xlane.f32.xlu0 %v5216
    %v5218 = vpop.xlane.xlu0 %5217
    %v5219 = vmul.f32 %v5218, %v978
    %v5220 = vadd.f32 %v5219, 1e-06
    %v5221 = vrsqrt.pop %v5220
    %v5222 = vmul.f32 %v5214, %v5221
    %v5223 = vmul.f32 %v5222, %v992
    %v5224 = vadd.f32 %v5223, %v997
    %v5226 = vsel %vm124, %v5224, 0
    %5228 = vmatprep.subr.mxu0 0.0
    %5229 = vmatpush1.msra.mxu0 %v99
    %5230 = vmatprep.subr.mxu0 0.0
    %5231 = vmatpush1.msra.mxu0 %v102
    %5232 = vmatprep.subr.mxu0 0.0
    %5233 = vmatpush1.msra.mxu0 %v105
    %5234 = vmatprep.subr.mxu0 0.0
    %5235 = vmatpush1.msra.mxu0 %v108
    %5236 = vmatprep.subr.mxu0 0.0
    %5237 = vmatpush1.msra.mxu0 0.0
    %5238 = vmatprep.subr.mxu0 0.0
    %5239 = vmatpush1.msra.mxu0 0.0
    %5240 = vmatprep.subr.mxu0 0.0
    %5241 = vmatpush1.msra.mxu0 0.0
    %5242 = vmatprep.subr.mxu0 0.0
    %5243 = vmatpush1.msra.mxu0 0.0
    %5244 = vmatprep.subr.mxu0 0.0
    %5245 = vmatpush1.msra.mxu0 0.0
    %5246 = vmatprep.subr.mxu0 0.0
    %5247 = vmatpush1.msra.mxu0 0.0
    %5248 = vmatprep.subr.mxu0 0.0
    %5249 = vmatpush1.msra.mxu0 0.0
    %5250 = vmatprep.subr.mxu0 0.0
    %5251 = vmatpush1.msra.mxu0 0.0
    %5252 = vmatprep.subr.mxu0 0.0
    %5253 = vmatpush1.msra.mxu0 0.0
    %5254 = vmatprep.subr.mxu0 0.0
    %5255 = vmatpush1.msra.mxu0 0.0
    %5256 = vmatprep.subr.mxu0 0.0
    %5257 = vmatpush1.msra.mxu0 0.0
    %5258 = vmatprep.subr.mxu0 0.0
    %5259 = vmatpush1.msra.mxu0 0.0
    %5260 = vmatprep.subr.mxu0 0.0
    %5261 = vmatpush1.msra.mxu0 0.0
    %5262 = vmatprep.subr.mxu0 0.0
    %5263 = vmatpush1.msra.mxu0 0.0
    %5264 = vmatprep.subr.mxu0 0.0
    %5265 = vmatpush1.msra.mxu0 0.0
    %5266 = vmatprep.subr.mxu0 0.0
    %5267 = vmatpush1.msra.mxu0 0.0
    %5268 = vmatprep.subr.mxu0 0.0
    %5269 = vmatpush1.msra.mxu0 0.0
    %5270 = vmatprep.subr.mxu0 0.0
    %5271 = vmatpush1.msra.mxu0 0.0
    %5272 = vmatprep.subr.mxu0 0.0
    %5273 = vmatpush1.msra.mxu0 0.0
    %5274 = vmatprep.subr.mxu0 0.0
    %5275 = vmatpush1.msra.mxu0 0.0
    %5276 = vmatprep.subr.mxu0 0.0
    %5277 = vmatpush1.msra.mxu0 0.0
    %5278 = vmatprep.subr.mxu0 0.0
    %5279 = vmatpush1.msra.mxu0 0.0
    %5280 = vmatprep.subr.mxu0 0.0
    %5281 = vmatpush1.msra.mxu0 0.0
    %5282 = vmatprep.subr.mxu0 0.0
    %5283 = vmatpush1.msra.mxu0 0.0
    %5284 = vmatprep.subr.mxu0 0.0
    %5285 = vmatpush1.msra.mxu0 0.0
    %5286 = vmatprep.subr.mxu0 0.0
    %5287 = vmatpush1.msra.mxu0 0.0
    %5288 = vmatprep.subr.mxu0 0.0
    %5289 = vmatpush1.msra.mxu0 0.0
    %5290 = vmatprep.subr.mxu0 0.0
    %5291 = vmatpush1.msra.mxu0 0.0
    %5292 = vmatprep.mubr.f32.mxu0 0.0
    %5293 = vmatmul.mubr.f32.gmra.mrb[0].mxu0 %v5226
    %v5294 = vpop.f32.mrb[0].mxu0
    %v5295 = vadd.f32 %v1002, %v5294
    %v5296 = vpop.f32.mrb[0].mxu0
    %5297 = vdwg.mxu0
    %v5299 = vsel %vm124, %v78, 0
    %v5302 = vsel %vm124, %v79, 0
    %5304 = vmatprep.subr.mxu0 0.0
    %5305 = vmatpush1.msra.mxu0 %v1081
    %5306 = vmatprep.subr.mxu0 0.0
    %5307 = vmatpush1.msra.mxu0 %v1083
    %5308 = vmatprep.subr.mxu0 0.0
    %5309 = vmatpush1.msra.mxu0 %v1085
    %5310 = vmatprep.subr.mxu0 0.0
    %5311 = vmatpush1.msra.mxu0 %v1087
    %5312 = vmatprep.subr.mxu0 0.0
    %5313 = vmatpush1.msra.mxu0 0.0
    %5314 = vmatprep.subr.mxu0 0.0
    %5315 = vmatpush1.msra.mxu0 0.0
    %5316 = vmatprep.subr.mxu0 0.0
    %5317 = vmatpush1.msra.mxu0 0.0
    %5318 = vmatprep.subr.mxu0 0.0
    %5319 = vmatpush1.msra.mxu0 0.0
    %5320 = vmatprep.subr.mxu0 0.0
    %5321 = vmatpush1.msra.mxu0 0.0
    %5322 = vmatprep.subr.mxu0 0.0
    %5323 = vmatpush1.msra.mxu0 0.0
    %5324 = vmatprep.subr.mxu0 0.0
    %5325 = vmatpush1.msra.mxu0 0.0
    %5326 = vmatprep.subr.mxu0 0.0
    %5327 = vmatpush1.msra.mxu0 0.0
    %5328 = vmatprep.subr.mxu0 0.0
    %5329 = vmatpush1.msra.mxu0 0.0
    %5330 = vmatprep.subr.mxu0 0.0
    %5331 = vmatpush1.msra.mxu0 0.0
    %5332 = vmatprep.subr.mxu0 0.0
    %5333 = vmatpush1.msra.mxu0 0.0
    %5334 = vmatprep.subr.mxu0 0.0
    %5335 = vmatpush1.msra.mxu0 0.0
    %5336 = vmatprep.subr.mxu0 0.0
    %5337 = vmatpush1.msra.mxu0 0.0
    %5338 = vmatprep.subr.mxu0 0.0
    %5339 = vmatpush1.msra.mxu0 0.0
    %5340 = vmatprep.subr.mxu0 0.0
    %5341 = vmatpush1.msra.mxu0 0.0
    %5342 = vmatprep.subr.mxu0 0.0
    %5343 = vmatpush1.msra.mxu0 0.0
    %5344 = vmatprep.subr.mxu0 0.0
    %5345 = vmatpush1.msra.mxu0 0.0
    %5346 = vmatprep.subr.mxu0 0.0
    %5347 = vmatpush1.msra.mxu0 0.0
    %5348 = vmatprep.subr.mxu0 0.0
    %5349 = vmatpush1.msra.mxu0 0.0
    %5350 = vmatprep.subr.mxu0 0.0
    %5351 = vmatpush1.msra.mxu0 0.0
    %5352 = vmatprep.subr.mxu0 0.0
    %5353 = vmatpush1.msra.mxu0 0.0
    %5354 = vmatprep.subr.mxu0 0.0
    %5355 = vmatpush1.msra.mxu0 0.0
    %5356 = vmatprep.subr.mxu0 0.0
    %5357 = vmatpush1.msra.mxu0 0.0
    %5358 = vmatprep.subr.mxu0 0.0
    %5359 = vmatpush1.msra.mxu0 0.0
    %5360 = vmatprep.subr.mxu0 0.0
    %5361 = vmatpush1.msra.mxu0 0.0
    %5362 = vmatprep.subr.mxu0 0.0
    %5363 = vmatpush1.msra.mxu0 0.0
    %5364 = vmatprep.subr.mxu0 0.0
    %5365 = vmatpush1.msra.mxu0 0.0
    %5366 = vmatprep.subr.mxu0 0.0
    %5367 = vmatpush1.msra.mxu0 0.0
    %5368 = vmatprep.mubr.f32.mxu0 0.0
    %5369 = vmatmul.mubr.f32.gmra.mrb[0].mxu0 %v5299
    %v5370 = vpop.f32.mrb[0].mxu0
    %v5371 = vadd.f32 %v1094, %v5370
    %v5372 = vpop.f32.mrb[0].mxu0
    %5373 = vmatprep.mubr.f32.mxu0 0.0
    %5374 = vmatmul.mubr.f32.gmra.mrb[0].mxu0 %v5302
    %v5375 = vpop.f32.mrb[0].mxu0
    %v5376 = vadd.f32 %v1094, %v5375
    %v5377 = vpop.f32.mrb[0].mxu0
    %5378 = vdwg.mxu0
    %v5379 = vmul.f32 %v5295, 0.35355338
    %v5381 = vsel %vm202, %v5379, 0
    %v5384 = vsel %vm202, %v5371, 0
    %v5387 = vsel %vm202, %v5376, 0
    %5389 = vmatprep.subr.mxu0 0.0
    %5390 = vmatpush1.xpose.msra.mxu0 %v5384
    %5391 = vmatprep.subr.mxu0 0.0
    %5392 = vmatpush1.xpose.msra.mxu0 %v5387
    %5393 = vmatprep.subr.mxu0 0.0
    %5394 = vmatpush1.xpose.msra.mxu0 0.0
    %5395 = vmatprep.subr.mxu0 0.0
    %5396 = vmatpush1.xpose.msra.mxu0 0.0
    %5397 = vmatprep.subr.mxu0 0.0
    %5398 = vmatpush1.xpose.msra.mxu0 0.0
    %5399 = vmatprep.subr.mxu0 0.0
    %5400 = vmatpush1.xpose.msra.mxu0 0.0
    %5401 = vmatprep.subr.mxu0 0.0
    %5402 = vmatpush1.xpose.msra.mxu0 0.0
    %5403 = vmatprep.subr.mxu0 0.0
    %5404 = vmatpush1.xpose.msra.mxu0 0.0
    %5405 = vmatprep.subr.mxu0 0.0
    %5406 = vmatpush1.xpose.msra.mxu0 0.0
    %5407 = vmatprep.subr.mxu0 0.0
    %5408 = vmatpush1.xpose.msra.mxu0 0.0
    %5409 = vmatprep.subr.mxu0 0.0
    %5410 = vmatpush1.xpose.msra.mxu0 0.0
    %5411 = vmatprep.subr.mxu0 0.0
    %5412 = vmatpush1.xpose.msra.mxu0 0.0
    %5413 = vmatprep.subr.mxu0 0.0
    %5414 = vmatpush1.xpose.msra.mxu0 0.0
    %5415 = vmatprep.subr.mxu0 0.0
    %5416 = vmatpush1.xpose.msra.mxu0 0.0
    %5417 = vmatprep.subr.mxu0 0.0
    %5418 = vmatpush1.xpose.msra.mxu0 0.0
    %5419 = vmatprep.subr.mxu0 0.0
    %5420 = vmatpush1.xpose.msra.mxu0 0.0
    %5421 = vmatprep.subr.mxu0 0.0
    %5422 = vmatpush1.xpose.msra.mxu0 0.0
    %5423 = vmatprep.subr.mxu0 0.0
    %5424 = vmatpush1.xpose.msra.mxu0 0.0
    %5425 = vmatprep.subr.mxu0 0.0
    %5426 = vmatpush1.xpose.msra.mxu0 0.0
    %5427 = vmatprep.subr.mxu0 0.0
    %5428 = vmatpush1.xpose.msra.mxu0 0.0
    %5429 = vmatprep.subr.mxu0 0.0
    %5430 = vmatpush1.xpose.msra.mxu0 0.0
    %5431 = vmatprep.subr.mxu0 0.0
    %5432 = vmatpush1.xpose.msra.mxu0 0.0
    %5433 = vmatprep.subr.mxu0 0.0
    %5434 = vmatpush1.xpose.msra.mxu0 0.0
    %5435 = vmatprep.subr.mxu0 0.0
    %5436 = vmatpush1.xpose.msra.mxu0 0.0
    %5437 = vmatprep.subr.mxu0 0.0
    %5438 = vmatpush1.xpose.msra.mxu0 0.0
    %5439 = vmatprep.subr.mxu0 0.0
    %5440 = vmatpush1.xpose.msra.mxu0 0.0
    %5441 = vmatprep.subr.mxu0 0.0
    %5442 = vmatpush1.xpose.msra.mxu0 0.0
    %5443 = vmatprep.subr.mxu0 0.0
    %5444 = vmatpush1.xpose.msra.mxu0 0.0
    %5445 = vmatprep.subr.mxu0 0.0
    %5446 = vmatpush1.xpose.msra.mxu0 0.0
    %5447 = vmatprep.subr.mxu0 0.0
    %5448 = vmatpush1.xpose.msra.mxu0 0.0
    %5449 = vmatprep.subr.mxu0 0.0
    %5450 = vmatpush1.xpose.msra.mxu0 0.0
    %5451 = vmatprep.subr.mxu0 0.0
    %5452 = vmatpush1.xpose.msra.mxu0 0.0
    %5453 = vmatprep.mubr.f32.mxu0 0.0
    %5454 = vmatmul.mubr.f32.gmra.mrb[0].mxu0 %v5381
    %v5455 = vpop.f32.mrb[0].mxu0
    %v5456 = vadd.f32 0.0, %v5455
    %v5457 = vpop.f32.mrb[0].mxu0
    %5458 = vdwg.mxu0
    %5459 = vrot.lane.b32.xlu0 %v5379, 120
    %v5460 = vpop.permute.xlu0 %5459
    %5461 = vrot.lane.b32.xlu0 %v5371, 120
    %v5462 = vpop.permute.xlu0 %5461
    %5463 = vrot.lane.b32.xlu0 %v5376, 120
    %v5464 = vpop.permute.xlu0 %5463
    %v5465 = vsel %vm202, %v5460, 0
    %v5467 = vsel %vm202, %v5462, 0
    %v5469 = vsel %vm202, %v5464, 0
    %5471 = vmatprep.subr.mxu0 0.0
    %5472 = vmatpush1.xpose.msra.mxu0 %v5467
    %5473 = vmatprep.subr.mxu0 0.0
    %5474 = vmatpush1.xpose.msra.mxu0 %v5469
    %5475 = vmatprep.subr.mxu0 0.0
    %5476 = vmatpush1.xpose.msra.mxu0 0.0
    %5477 = vmatprep.subr.mxu0 0.0
    %5478 = vmatpush1.xpose.msra.mxu0 0.0
    %5479 = vmatprep.subr.mxu0 0.0
    %5480 = vmatpush1.xpose.msra.mxu0 0.0
    %5481 = vmatprep.subr.mxu0 0.0
    %5482 = vmatpush1.xpose.msra.mxu0 0.0
    %5483 = vmatprep.subr.mxu0 0.0
    %5484 = vmatpush1.xpose.msra.mxu0 0.0
    %5485 = vmatprep.subr.mxu0 0.0
    %5486 = vmatpush1.xpose.msra.mxu0 0.0
    %5487 = vmatprep.subr.mxu0 0.0
    %5488 = vmatpush1.xpose.msra.mxu0 0.0
    %5489 = vmatprep.subr.mxu0 0.0
    %5490 = vmatpush1.xpose.msra.mxu0 0.0
    %5491 = vmatprep.subr.mxu0 0.0
    %5492 = vmatpush1.xpose.msra.mxu0 0.0
    %5493 = vmatprep.subr.mxu0 0.0
    %5494 = vmatpush1.xpose.msra.mxu0 0.0
    %5495 = vmatprep.subr.mxu0 0.0
    %5496 = vmatpush1.xpose.msra.mxu0 0.0
    %5497 = vmatprep.subr.mxu0 0.0
    %5498 = vmatpush1.xpose.msra.mxu0 0.0
    %5499 = vmatprep.subr.mxu0 0.0
    %5500 = vmatpush1.xpose.msra.mxu0 0.0
    %5501 = vmatprep.subr.mxu0 0.0
    %5502 = vmatpush1.xpose.msra.mxu0 0.0
    %5503 = vmatprep.subr.mxu0 0.0
    %5504 = vmatpush1.xpose.msra.mxu0 0.0
    %5505 = vmatprep.subr.mxu0 0.0
    %5506 = vmatpush1.xpose.msra.mxu0 0.0
    %5507 = vmatprep.subr.mxu0 0.0
    %5508 = vmatpush1.xpose.msra.mxu0 0.0
    %5509 = vmatprep.subr.mxu0 0.0
    %5510 = vmatpush1.xpose.msra.mxu0 0.0
    %5511 = vmatprep.subr.mxu0 0.0
    %5512 = vmatpush1.xpose.msra.mxu0 0.0
    %5513 = vmatprep.subr.mxu0 0.0
    %5514 = vmatpush1.xpose.msra.mxu0 0.0
    %5515 = vmatprep.subr.mxu0 0.0
    %5516 = vmatpush1.xpose.msra.mxu0 0.0
    %5517 = vmatprep.subr.mxu0 0.0
    %5518 = vmatpush1.xpose.msra.mxu0 0.0
    %5519 = vmatprep.subr.mxu0 0.0
    %5520 = vmatpush1.xpose.msra.mxu0 0.0
    %5521 = vmatprep.subr.mxu0 0.0
    %5522 = vmatpush1.xpose.msra.mxu0 0.0
    %5523 = vmatprep.subr.mxu0 0.0
    %5524 = vmatpush1.xpose.msra.mxu0 0.0
    %5525 = vmatprep.subr.mxu0 0.0
    %5526 = vmatpush1.xpose.msra.mxu0 0.0
    %5527 = vmatprep.subr.mxu0 0.0
    %5528 = vmatpush1.xpose.msra.mxu0 0.0
    %5529 = vmatprep.subr.mxu0 0.0
    %5530 = vmatpush1.xpose.msra.mxu0 0.0
    %5531 = vmatprep.subr.mxu0 0.0
    %5532 = vmatpush1.xpose.msra.mxu0 0.0
    %5533 = vmatprep.subr.mxu0 0.0
    %5534 = vmatpush1.xpose.msra.mxu0 0.0
    %5535 = vmatprep.mubr.f32.mxu0 0.0
    %5536 = vmatmul.mubr.f32.gmra.mrb[0].mxu0 %v5465
    %v5537 = vpop.f32.mrb[0].mxu0
    %v5538 = vadd.f32 0.0, %v5537
    %v5539 = vpop.f32.mrb[0].mxu0
    %5540 = vdwg.mxu0
    %5541 = vrot.lane.b32.xlu0 %v5379, 112
    %v5542 = vpop.permute.xlu0 %5541
    %5543 = vrot.lane.b32.xlu0 %v5371, 112
    %v5544 = vpop.permute.xlu0 %5543
    %5545 = vrot.lane.b32.xlu0 %v5376, 112
    %v5546 = vpop.permute.xlu0 %5545
    %v5547 = vsel %vm202, %v5542, 0
    %v5549 = vsel %vm202, %v5544, 0
    %v5551 = vsel %vm202, %v5546, 0
    %5553 = vmatprep.subr.mxu0 0.0
    %5554 = vmatpush1.xpose.msra.mxu0 %v5549
    %5555 = vmatprep.subr.mxu0 0.0
    %5556 = vmatpush1.xpose.msra.mxu0 %v5551
    %5557 = vmatprep.subr.mxu0 0.0
    %5558 = vmatpush1.xpose.msra.mxu0 0.0
    %5559 = vmatprep.subr.mxu0 0.0
    %5560 = vmatpush1.xpose.msra.mxu0 0.0
    %5561 = vmatprep.subr.mxu0 0.0
    %5562 = vmatpush1.xpose.msra.mxu0 0.0
    %5563 = vmatprep.subr.mxu0 0.0
    %5564 = vmatpush1.xpose.msra.mxu0 0.0
    %5565 = vmatprep.subr.mxu0 0.0
    %5566 = vmatpush1.xpose.msra.mxu0 0.0
    %5567 = vmatprep.subr.mxu0 0.0
    %5568 = vmatpush1.xpose.msra.mxu0 0.0
    %5569 = vmatprep.subr.mxu0 0.0
    %5570 = vmatpush1.xpose.msra.mxu0 0.0
    %5571 = vmatprep.subr.mxu0 0.0
    %5572 = vmatpush1.xpose.msra.mxu0 0.0
    %5573 = vmatprep.subr.mxu0 0.0
    %5574 = vmatpush1.xpose.msra.mxu0 0.0
    %5575 = vmatprep.subr.mxu0 0.0
    %5576 = vmatpush1.xpose.msra.mxu0 0.0
    %5577 = vmatprep.subr.mxu0 0.0
    %5578 = vmatpush1.xpose.msra.mxu0 0.0
    %5579 = vmatprep.subr.mxu0 0.0
    %5580 = vmatpush1.xpose.msra.mxu0 0.0
    %5581 = vmatprep.subr.mxu0 0.0
    %5582 = vmatpush1.xpose.msra.mxu0 0.0
    %5583 = vmatprep.subr.mxu0 0.0
    %5584 = vmatpush1.xpose.msra.mxu0 0.0
    %5585 = vmatprep.subr.mxu0 0.0
    %5586 = vmatpush1.xpose.msra.mxu0 0.0
    %5587 = vmatprep.subr.mxu0 0.0
    %5588 = vmatpush1.xpose.msra.mxu0 0.0
    %5589 = vmatprep.subr.mxu0 0.0
    %5590 = vmatpush1.xpose.msra.mxu0 0.0
    %5591 = vmatprep.subr.mxu0 0.0
    %5592 = vmatpush1.xpose.msra.mxu0 0.0
    %5593 = vmatprep.subr.mxu0 0.0
    %5594 = vmatpush1.xpose.msra.mxu0 0.0
    %5595 = vmatprep.subr.mxu0 0.0
    %5596 = vmatpush1.xpose.msra.mxu0 0.0
    %5597 = vmatprep.subr.mxu0 0.0
    %5598 = vmatpush1.xpose.msra.mxu0 0.0
    %5599 = vmatprep.subr.mxu0 0.0
    %5600 = vmatpush1.xpose.msra.mxu0 0.0
    %5601 = vmatprep.subr.mxu0 0.0
    %5602 = vmatpush1.xpose.msra.mxu0 0.0
    %5603 = vmatprep.subr.mxu0 0.0
    %5604 = vmatpush1.xpose.msra.mxu0 0.0
    %5605 = vmatprep.subr.mxu0 0.0
    %5606 = vmatpush1.xpose.msra.mxu0 0.0
    %5607 = vmatprep.subr.mxu0 0.0
    %5608 = vmatpush1.xpose.msra.mxu0 0.0
    %5609 = vmatprep.subr.mxu0 0.0
    %5610 = vmatpush1.xpose.msra.mxu0 0.0
    %5611 = vmatprep.subr.mxu0 0.0
    %5612 = vmatpush1.xpose.msra.mxu0 0.0
    %5613 = vmatprep.subr.mxu0 0.0
    %5614 = vmatpush1.xpose.msra.mxu0 0.0
    %5615 = vmatprep.subr.mxu0 0.0
    %5616 = vmatpush1.xpose.msra.mxu0 0.0
    %5617 = vmatprep.mubr.f32.mxu0 0.0
    %5618 = vmatmul.mubr.f32.gmra.mrb[0].mxu0 %v5547
    %v5619 = vpop.f32.mrb[0].mxu0
    %v5620 = vadd.f32 0.0, %v5619
    %v5621 = vpop.f32.mrb[0].mxu0
    %5622 = vdwg.mxu0
    %5623 = vrot.lane.b32.xlu0 %v5379, 104
    %v5624 = vpop.permute.xlu0 %5623
    %5625 = vrot.lane.b32.xlu0 %v5371, 104
    %v5626 = vpop.permute.xlu0 %5625
    %5627 = vrot.lane.b32.xlu0 %v5376, 104
    %v5628 = vpop.permute.xlu0 %5627
    %v5629 = vsel %vm202, %v5624, 0
    %v5631 = vsel %vm202, %v5626, 0
    %v5633 = vsel %vm202, %v5628, 0
    %5635 = vmatprep.subr.mxu0 0.0
    %5636 = vmatpush1.xpose.msra.mxu0 %v5631
    %5637 = vmatprep.subr.mxu0 0.0
    %5638 = vmatpush1.xpose.msra.mxu0 %v5633
    %5639 = vmatprep.subr.mxu0 0.0
    %5640 = vmatpush1.xpose.msra.mxu0 0.0
    %5641 = vmatprep.subr.mxu0 0.0
    %5642 = vmatpush1.xpose.msra.mxu0 0.0
    %5643 = vmatprep.subr.mxu0 0.0
    %5644 = vmatpush1.xpose.msra.mxu0 0.0
    %5645 = vmatprep.subr.mxu0 0.0
    %5646 = vmatpush1.xpose.msra.mxu0 0.0
    %5647 = vmatprep.subr.mxu0 0.0
    %5648 = vmatpush1.xpose.msra.mxu0 0.0
    %5649 = vmatprep.subr.mxu0 0.0
    %5650 = vmatpush1.xpose.msra.mxu0 0.0
    %5651 = vmatprep.subr.mxu0 0.0
    %5652 = vmatpush1.xpose.msra.mxu0 0.0
    %5653 = vmatprep.subr.mxu0 0.0
    %5654 = vmatpush1.xpose.msra.mxu0 0.0
    %5655 = vmatprep.subr.mxu0 0.0
    %5656 = vmatpush1.xpose.msra.mxu0 0.0
    %5657 = vmatprep.subr.mxu0 0.0
    %5658 = vmatpush1.xpose.msra.mxu0 0.0
    %5659 = vmatprep.subr.mxu0 0.0
    %5660 = vmatpush1.xpose.msra.mxu0 0.0
    %5661 = vmatprep.subr.mxu0 0.0
    %5662 = vmatpush1.xpose.msra.mxu0 0.0
    %5663 = vmatprep.subr.mxu0 0.0
    %5664 = vmatpush1.xpose.msra.mxu0 0.0
    %5665 = vmatprep.subr.mxu0 0.0
    %5666 = vmatpush1.xpose.msra.mxu0 0.0
    %5667 = vmatprep.subr.mxu0 0.0
    %5668 = vmatpush1.xpose.msra.mxu0 0.0
    %5669 = vmatprep.subr.mxu0 0.0
    %5670 = vmatpush1.xpose.msra.mxu0 0.0
    %5671 = vmatprep.subr.mxu0 0.0
    %5672 = vmatpush1.xpose.msra.mxu0 0.0
    %5673 = vmatprep.subr.mxu0 0.0
    %5674 = vmatpush1.xpose.msra.mxu0 0.0
    %5675 = vmatprep.subr.mxu0 0.0
    %5676 = vmatpush1.xpose.msra.mxu0 0.0
    %5677 = vmatprep.subr.mxu0 0.0
    %5678 = vmatpush1.xpose.msra.mxu0 0.0
    %5679 = vmatprep.subr.mxu0 0.0
    %5680 = vmatpush1.xpose.msra.mxu0 0.0
    %5681 = vmatprep.subr.mxu0 0.0
    %5682 = vmatpush1.xpose.msra.mxu0 0.0
    %5683 = vmatprep.subr.mxu0 0.0
    %5684 = vmatpush1.xpose.msra.mxu0 0.0
    %5685 = vmatprep.subr.mxu0 0.0
    %5686 = vmatpush1.xpose.msra.mxu0 0.0
    %5687 = vmatprep.subr.mxu0 0.0
    %5688 = vmatpush1.xpose.msra.mxu0 0.0
    %5689 = vmatprep.subr.mxu0 0.0
    %5690 = vmatpush1.xpose.msra.mxu0 0.0
    %5691 = vmatprep.subr.mxu0 0.0
    %5692 = vmatpush1.xpose.msra.mxu0 0.0
    %5693 = vmatprep.subr.mxu0 0.0
    %5694 = vmatpush1.xpose.msra.mxu0 0.0
    %5695 = vmatprep.subr.mxu0 0.0
    %5696 = vmatpush1.xpose.msra.mxu0 0.0
    %5697 = vmatprep.subr.mxu0 0.0
    %5698 = vmatpush1.xpose.msra.mxu0 0.0
    %5699 = vmatprep.mubr.f32.mxu0 0.0
    %5700 = vmatmul.mubr.f32.gmra.mrb[0].mxu0 %v5629
    %v5701 = vpop.f32.mrb[0].mxu0
    %v5702 = vadd.f32 0.0, %v5701
    %v5703 = vpop.f32.mrb[0].mxu0
    %5704 = vdwg.mxu0
    %v5705 = vlaneseq
    %v5706 = vshrl.u32 %v5705, 7
    %v5707 = vsub.s32 1, %v5706
    %v5708 = vrot.slane %v81, %v5707
    %v5709 = vadd.f32 %v5456, %v5708
    %v5710 = vadd.f32 %v5538, %v5708
    %v5711 = vadd.f32 %v5620, %v5708
    %v5712 = vadd.f32 %v5702, %v5708
    %v5713 = vsel %vm877, %v5709, -inf
    %5714 = vmax.xlane.f32.xlu0 %v5713
    %v5715 = vpop.xlane.xlu0 %5714
    %v5716 = vsel %vm877, %v5710, -inf
    %5717 = vmax.xlane.f32.xlu0 %v5716
    %v5718 = vpop.xlane.xlu0 %5717
    %v5719 = vsel %vm877, %v5711, -inf
    %5720 = vmax.xlane.f32.xlu0 %v5719
    %v5721 = vpop.xlane.xlu0 %5720
    %v5722 = vsel %vm877, %v5712, -inf
    %5723 = vmax.xlane.f32.xlu0 %v5722
    %v5724 = vpop.xlane.xlu0 %5723
    %v5725 = vsub.f32 %v5709, %v5715
    %v5726 = vsub.f32 %v5710, %v5718
    %v5727 = vsub.f32 %v5711, %v5721
    %v5728 = vsub.f32 %v5712, %v5724
    %v5729 = vmul.f32 %v5725, 1.442695
    %v5730 = vpow.pop %v5729
    %v5731 = vmul.f32 %v5726, 1.442695
    %v5732 = vpow.pop %v5731
    %v5733 = vmul.f32 %v5727, 1.442695
    %v5734 = vpow.pop %v5733
    %v5735 = vmul.f32 %v5728, 1.442695
    %v5736 = vpow.pop %v5735
    %v5737 = vsel %vm877, %v5730, 0.0
    %5738 = vadd.xlane.f32.xlu0 %v5737
    %v5739 = vpop.xlane.xlu0 %5738
    %v5740 = vsel %vm877, %v5732, 0.0
    %5741 = vadd.xlane.f32.xlu0 %v5740
    %v5742 = vpop.xlane.xlu0 %5741
    %v5743 = vsel %vm877, %v5734, 0.0
    %5744 = vadd.xlane.f32.xlu0 %v5743
    %v5745 = vpop.xlane.xlu0 %5744
    %v5746 = vsel %vm877, %v5736, 0.0
    %5747 = vadd.xlane.f32.xlu0 %v5746
    %v5748 = vpop.xlane.xlu0 %5747
    %v5749 = vrcp.pop %v5739
    %v5750 = vrcp.pop %v5742
    %v5751 = vrcp.pop %v5745
    %v5752 = vrcp.pop %v5748
    %v5753 = vmul.f32 %v5730, %v5749
    %v5754 = vmul.f32 %v5732, %v5750
    %v5755 = vmul.f32 %v5734, %v5751
    %v5756 = vmul.f32 %v5736, %v5752
    %5757 = vrot.lane.b32.xlu0 %v5371, 96
    %v5758 = vpop.permute.xlu0 %5757
    %5759 = vrot.lane.b32.xlu0 %v5376, 96
    %v5760 = vpop.permute.xlu0 %5759
    %v5764 = vsel %vm877, %v5753, 0
    %5766 = vmatprep.subr.mxu0 0.0
    %5767 = vmatpush1.msra.mxu0 %v5758
    %5768 = vmatprep.subr.mxu0 0.0
    %5769 = vmatpush1.msra.mxu0 %v5760
    %5770 = vmatprep.subr.mxu0 0.0
    %5771 = vmatpush1.msra.mxu0 0.0
    %5772 = vmatprep.subr.mxu0 0.0
    %5773 = vmatpush1.msra.mxu0 0.0
    %5774 = vmatprep.subr.mxu0 0.0
    %5775 = vmatpush1.msra.mxu0 0.0
    %5776 = vmatprep.subr.mxu0 0.0
    %5777 = vmatpush1.msra.mxu0 0.0
    %5778 = vmatprep.subr.mxu0 0.0
    %5779 = vmatpush1.msra.mxu0 0.0
    %5780 = vmatprep.subr.mxu0 0.0
    %5781 = vmatpush1.msra.mxu0 0.0
    %5782 = vmatprep.subr.mxu0 0.0
    %5783 = vmatpush1.msra.mxu0 0.0
    %5784 = vmatprep.subr.mxu0 0.0
    %5785 = vmatpush1.msra.mxu0 0.0
    %5786 = vmatprep.subr.mxu0 0.0
    %5787 = vmatpush1.msra.mxu0 0.0
    %5788 = vmatprep.subr.mxu0 0.0
    %5789 = vmatpush1.msra.mxu0 0.0
    %5790 = vmatprep.subr.mxu0 0.0
    %5791 = vmatpush1.msra.mxu0 0.0
    %5792 = vmatprep.subr.mxu0 0.0
    %5793 = vmatpush1.msra.mxu0 0.0
    %5794 = vmatprep.subr.mxu0 0.0
    %5795 = vmatpush1.msra.mxu0 0.0
    %5796 = vmatprep.subr.mxu0 0.0
    %5797 = vmatpush1.msra.mxu0 0.0
    %5798 = vmatprep.subr.mxu0 0.0
    %5799 = vmatpush1.msra.mxu0 0.0
    %5800 = vmatprep.subr.mxu0 0.0
    %5801 = vmatpush1.msra.mxu0 0.0
    %5802 = vmatprep.subr.mxu0 0.0
    %5803 = vmatpush1.msra.mxu0 0.0
    %5804 = vmatprep.subr.mxu0 0.0
    %5805 = vmatpush1.msra.mxu0 0.0
    %5806 = vmatprep.subr.mxu0 0.0
    %5807 = vmatpush1.msra.mxu0 0.0
    %5808 = vmatprep.subr.mxu0 0.0
    %5809 = vmatpush1.msra.mxu0 0.0
    %5810 = vmatprep.subr.mxu0 0.0
    %5811 = vmatpush1.msra.mxu0 0.0
    %5812 = vmatprep.subr.mxu0 0.0
    %5813 = vmatpush1.msra.mxu0 0.0
    %5814 = vmatprep.subr.mxu0 0.0
    %5815 = vmatpush1.msra.mxu0 0.0
    %5816 = vmatprep.subr.mxu0 0.0
    %5817 = vmatpush1.msra.mxu0 0.0
    %5818 = vmatprep.subr.mxu0 0.0
    %5819 = vmatpush1.msra.mxu0 0.0
    %5820 = vmatprep.subr.mxu0 0.0
    %5821 = vmatpush1.msra.mxu0 0.0
    %5822 = vmatprep.subr.mxu0 0.0
    %5823 = vmatpush1.msra.mxu0 0.0
    %5824 = vmatprep.subr.mxu0 0.0
    %5825 = vmatpush1.msra.mxu0 0.0
    %5826 = vmatprep.subr.mxu0 0.0
    %5827 = vmatpush1.msra.mxu0 0.0
    %5828 = vmatprep.subr.mxu0 0.0
    %5829 = vmatpush1.msra.mxu0 0.0
    %5830 = vmatprep.mubr.f32.mxu0 0.0
    %5831 = vmatmul.mubr.f32.gmra.mrb[0].mxu0 %v5764
    %v5832 = vpop.f32.mrb[0].mxu0
    %v5833 = vadd.f32 0.0, %v5832
    %v5834 = vpop.f32.mrb[0].mxu0
    %5835 = vdwg.mxu0
    %5836 = vrot.lane.b32.xlu0 %v5371, 88
    %v5837 = vpop.permute.xlu0 %5836
    %5838 = vrot.lane.b32.xlu0 %v5376, 88
    %v5839 = vpop.permute.xlu0 %5838
    %v5843 = vsel %vm877, %v5754, 0
    %5845 = vmatprep.subr.mxu0 0.0
    %5846 = vmatpush1.msra.mxu0 %v5837
    %5847 = vmatprep.subr.mxu0 0.0
    %5848 = vmatpush1.msra.mxu0 %v5839
    %5849 = vmatprep.subr.mxu0 0.0
    %5850 = vmatpush1.msra.mxu0 0.0
    %5851 = vmatprep.subr.mxu0 0.0
    %5852 = vmatpush1.msra.mxu0 0.0
    %5853 = vmatprep.subr.mxu0 0.0
    %5854 = vmatpush1.msra.mxu0 0.0
    %5855 = vmatprep.subr.mxu0 0.0
    %5856 = vmatpush1.msra.mxu0 0.0
    %5857 = vmatprep.subr.mxu0 0.0
    %5858 = vmatpush1.msra.mxu0 0.0
    %5859 = vmatprep.subr.mxu0 0.0
    %5860 = vmatpush1.msra.mxu0 0.0
    %5861 = vmatprep.subr.mxu0 0.0
    %5862 = vmatpush1.msra.mxu0 0.0
    %5863 = vmatprep.subr.mxu0 0.0
    %5864 = vmatpush1.msra.mxu0 0.0
    %5865 = vmatprep.subr.mxu0 0.0
    %5866 = vmatpush1.msra.mxu0 0.0
    %5867 = vmatprep.subr.mxu0 0.0
    %5868 = vmatpush1.msra.mxu0 0.0
    %5869 = vmatprep.subr.mxu0 0.0
    %5870 = vmatpush1.msra.mxu0 0.0
    %5871 = vmatprep.subr.mxu0 0.0
    %5872 = vmatpush1.msra.mxu0 0.0
    %5873 = vmatprep.subr.mxu0 0.0
    %5874 = vmatpush1.msra.mxu0 0.0
    %5875 = vmatprep.subr.mxu0 0.0
    %5876 = vmatpush1.msra.mxu0 0.0
    %5877 = vmatprep.subr.mxu0 0.0
    %5878 = vmatpush1.msra.mxu0 0.0
    %5879 = vmatprep.subr.mxu0 0.0
    %5880 = vmatpush1.msra.mxu0 0.0
    %5881 = vmatprep.subr.mxu0 0.0
    %5882 = vmatpush1.msra.mxu0 0.0
    %5883 = vmatprep.subr.mxu0 0.0
    %5884 = vmatpush1.msra.mxu0 0.0
    %5885 = vmatprep.subr.mxu0 0.0
    %5886 = vmatpush1.msra.mxu0 0.0
    %5887 = vmatprep.subr.mxu0 0.0
    %5888 = vmatpush1.msra.mxu0 0.0
    %5889 = vmatprep.subr.mxu0 0.0
    %5890 = vmatpush1.msra.mxu0 0.0
    %5891 = vmatprep.subr.mxu0 0.0
    %5892 = vmatpush1.msra.mxu0 0.0
    %5893 = vmatprep.subr.mxu0 0.0
    %5894 = vmatpush1.msra.mxu0 0.0
    %5895 = vmatprep.subr.mxu0 0.0
    %5896 = vmatpush1.msra.mxu0 0.0
    %5897 = vmatprep.subr.mxu0 0.0
    %5898 = vmatpush1.msra.mxu0 0.0
    %5899 = vmatprep.subr.mxu0 0.0
    %5900 = vmatpush1.msra.mxu0 0.0
    %5901 = vmatprep.subr.mxu0 0.0
    %5902 = vmatpush1.msra.mxu0 0.0
    %5903 = vmatprep.subr.mxu0 0.0
    %5904 = vmatpush1.msra.mxu0 0.0
    %5905 = vmatprep.subr.mxu0 0.0
    %5906 = vmatpush1.msra.mxu0 0.0
    %5907 = vmatprep.subr.mxu0 0.0
    %5908 = vmatpush1.msra.mxu0 0.0
    %5909 = vmatprep.mubr.f32.mxu0 0.0
    %5910 = vmatmul.mubr.f32.gmra.mrb[0].mxu0 %v5843
    %v5911 = vpop.f32.mrb[0].mxu0
    %v5912 = vadd.f32 0.0, %v5911
    %v5913 = vpop.f32.mrb[0].mxu0
    %5914 = vdwg.mxu0
    %5915 = vrot.lane.b32.xlu0 %v5371, 80
    %v5916 = vpop.permute.xlu0 %5915
    %5917 = vrot.lane.b32.xlu0 %v5376, 80
    %v5918 = vpop.permute.xlu0 %5917
    %v5922 = vsel %vm877, %v5755, 0
    %5924 = vmatprep.subr.mxu0 0.0
    %5925 = vmatpush1.msra.mxu0 %v5916
    %5926 = vmatprep.subr.mxu0 0.0
    %5927 = vmatpush1.msra.mxu0 %v5918
    %5928 = vmatprep.subr.mxu0 0.0
    %5929 = vmatpush1.msra.mxu0 0.0
    %5930 = vmatprep.subr.mxu0 0.0
    %5931 = vmatpush1.msra.mxu0 0.0
    %5932 = vmatprep.subr.mxu0 0.0
    %5933 = vmatpush1.msra.mxu0 0.0
    %5934 = vmatprep.subr.mxu0 0.0
    %5935 = vmatpush1.msra.mxu0 0.0
    %5936 = vmatprep.subr.mxu0 0.0
    %5937 = vmatpush1.msra.mxu0 0.0
    %5938 = vmatprep.subr.mxu0 0.0
    %5939 = vmatpush1.msra.mxu0 0.0
    %5940 = vmatprep.subr.mxu0 0.0
    %5941 = vmatpush1.msra.mxu0 0.0
    %5942 = vmatprep.subr.mxu0 0.0
    %5943 = vmatpush1.msra.mxu0 0.0
    %5944 = vmatprep.subr.mxu0 0.0
    %5945 = vmatpush1.msra.mxu0 0.0
    %5946 = vmatprep.subr.mxu0 0.0
    %5947 = vmatpush1.msra.mxu0 0.0
    %5948 = vmatprep.subr.mxu0 0.0
    %5949 = vmatpush1.msra.mxu0 0.0
    %5950 = vmatprep.subr.mxu0 0.0
    %5951 = vmatpush1.msra.mxu0 0.0
    %5952 = vmatprep.subr.mxu0 0.0
    %5953 = vmatpush1.msra.mxu0 0.0
    %5954 = vmatprep.subr.mxu0 0.0
    %5955 = vmatpush1.msra.mxu0 0.0
    %5956 = vmatprep.subr.mxu0 0.0
    %5957 = vmatpush1.msra.mxu0 0.0
    %5958 = vmatprep.subr.mxu0 0.0
    %5959 = vmatpush1.msra.mxu0 0.0
    %5960 = vmatprep.subr.mxu0 0.0
    %5961 = vmatpush1.msra.mxu0 0.0
    %5962 = vmatprep.subr.mxu0 0.0
    %5963 = vmatpush1.msra.mxu0 0.0
    %5964 = vmatprep.subr.mxu0 0.0
    %5965 = vmatpush1.msra.mxu0 0.0
    %5966 = vmatprep.subr.mxu0 0.0
    %5967 = vmatpush1.msra.mxu0 0.0
    %5968 = vmatprep.subr.mxu0 0.0
    %5969 = vmatpush1.msra.mxu0 0.0
    %5970 = vmatprep.subr.mxu0 0.0
    %5971 = vmatpush1.msra.mxu0 0.0
    %5972 = vmatprep.subr.mxu0 0.0
    %5973 = vmatpush1.msra.mxu0 0.0
    %5974 = vmatprep.subr.mxu0 0.0
    %5975 = vmatpush1.msra.mxu0 0.0
    %5976 = vmatprep.subr.mxu0 0.0
    %5977 = vmatpush1.msra.mxu0 0.0
    %5978 = vmatprep.subr.mxu0 0.0
    %5979 = vmatpush1.msra.mxu0 0.0
    %5980 = vmatprep.subr.mxu0 0.0
    %5981 = vmatpush1.msra.mxu0 0.0
    %5982 = vmatprep.subr.mxu0 0.0
    %5983 = vmatpush1.msra.mxu0 0.0
    %5984 = vmatprep.subr.mxu0 0.0
    %5985 = vmatpush1.msra.mxu0 0.0
    %5986 = vmatprep.subr.mxu0 0.0
    %5987 = vmatpush1.msra.mxu0 0.0
    %5988 = vmatprep.mubr.f32.mxu0 0.0
    %5989 = vmatmul.mubr.f32.gmra.mrb[0].mxu0 %v5922
    %v5990 = vpop.f32.mrb[0].mxu0
    %v5991 = vadd.f32 0.0, %v5990
    %v5992 = vpop.f32.mrb[0].mxu0
    %5993 = vdwg.mxu0
    %5994 = vrot.lane.b32.xlu0 %v5371, 72
    %v5995 = vpop.permute.xlu0 %5994
    %5996 = vrot.lane.b32.xlu0 %v5376, 72
    %v5997 = vpop.permute.xlu0 %5996
    %v6001 = vsel %vm877, %v5756, 0
    %6003 = vmatprep.subr.mxu0 0.0
    %6004 = vmatpush1.msra.mxu0 %v5995
    %6005 = vmatprep.subr.mxu0 0.0
    %6006 = vmatpush1.msra.mxu0 %v5997
    %6007 = vmatprep.subr.mxu0 0.0
    %6008 = vmatpush1.msra.mxu0 0.0
    %6009 = vmatprep.subr.mxu0 0.0
    %6010 = vmatpush1.msra.mxu0 0.0
    %6011 = vmatprep.subr.mxu0 0.0
    %6012 = vmatpush1.msra.mxu0 0.0
    %6013 = vmatprep.subr.mxu0 0.0
    %6014 = vmatpush1.msra.mxu0 0.0
    %6015 = vmatprep.subr.mxu0 0.0
    %6016 = vmatpush1.msra.mxu0 0.0
    %6017 = vmatprep.subr.mxu0 0.0
    %6018 = vmatpush1.msra.mxu0 0.0
    %6019 = vmatprep.subr.mxu0 0.0
    %6020 = vmatpush1.msra.mxu0 0.0
    %6021 = vmatprep.subr.mxu0 0.0
    %6022 = vmatpush1.msra.mxu0 0.0
    %6023 = vmatprep.subr.mxu0 0.0
    %6024 = vmatpush1.msra.mxu0 0.0
    %6025 = vmatprep.subr.mxu0 0.0
    %6026 = vmatpush1.msra.mxu0 0.0
    %6027 = vmatprep.subr.mxu0 0.0
    %6028 = vmatpush1.msra.mxu0 0.0
    %6029 = vmatprep.subr.mxu0 0.0
    %6030 = vmatpush1.msra.mxu0 0.0
    %6031 = vmatprep.subr.mxu0 0.0
    %6032 = vmatpush1.msra.mxu0 0.0
    %6033 = vmatprep.subr.mxu0 0.0
    %6034 = vmatpush1.msra.mxu0 0.0
    %6035 = vmatprep.subr.mxu0 0.0
    %6036 = vmatpush1.msra.mxu0 0.0
    %6037 = vmatprep.subr.mxu0 0.0
    %6038 = vmatpush1.msra.mxu0 0.0
    %6039 = vmatprep.subr.mxu0 0.0
    %6040 = vmatpush1.msra.mxu0 0.0
    %6041 = vmatprep.subr.mxu0 0.0
    %6042 = vmatpush1.msra.mxu0 0.0
    %6043 = vmatprep.subr.mxu0 0.0
    %6044 = vmatpush1.msra.mxu0 0.0
    %6045 = vmatprep.subr.mxu0 0.0
    %6046 = vmatpush1.msra.mxu0 0.0
    %6047 = vmatprep.subr.mxu0 0.0
    %6048 = vmatpush1.msra.mxu0 0.0
    %6049 = vmatprep.subr.mxu0 0.0
    %6050 = vmatpush1.msra.mxu0 0.0
    %6051 = vmatprep.subr.mxu0 0.0
    %6052 = vmatpush1.msra.mxu0 0.0
    %6053 = vmatprep.subr.mxu0 0.0
    %6054 = vmatpush1.msra.mxu0 0.0
    %6055 = vmatprep.subr.mxu0 0.0
    %6056 = vmatpush1.msra.mxu0 0.0
    %6057 = vmatprep.subr.mxu0 0.0
    %6058 = vmatpush1.msra.mxu0 0.0
    %6059 = vmatprep.subr.mxu0 0.0
    %6060 = vmatpush1.msra.mxu0 0.0
    %6061 = vmatprep.subr.mxu0 0.0
    %6062 = vmatpush1.msra.mxu0 0.0
    %6063 = vmatprep.subr.mxu0 0.0
    %6064 = vmatpush1.msra.mxu0 0.0
    %6065 = vmatprep.subr.mxu0 0.0
    %6066 = vmatpush1.msra.mxu0 0.0
    %6067 = vmatprep.mubr.f32.mxu0 0.0
    %6068 = vmatmul.mubr.f32.gmra.mrb[0].mxu0 %v6001
    %v6069 = vpop.f32.mrb[0].mxu0
    %v6070 = vadd.f32 0.0, %v6069
    %v6071 = vpop.f32.mrb[0].mxu0
    %6072 = vdwg.mxu0
    %6074 = vrot.lane.b32.xlu0 %v5912, 8
    %v6075 = vpop.permute.xlu0 %6074
    %6078 = vrot.lane.b32.xlu0 %v5991, 16
    %v6079 = vpop.permute.xlu0 %6078
    %6082 = vrot.lane.b32.xlu0 %v6070, 24
    %v6083 = vpop.permute.xlu0 %6082
    %v6085 = vsel %vm202, %v5833, %v6075
    %v6086 = vsel %vm877, %v6085, %v6079
    %v6087 = vsel %vm879, %v6086, %v6083
    %v6089 = vsel %vm124, %v6087, 0
    %6091 = vmatprep.subr.mxu0 0.0
    %6092 = vmatpush1.msra.mxu0 %v1891
    %6093 = vmatprep.subr.mxu0 0.0
    %6094 = vmatpush1.msra.mxu0 %v1893
    %6095 = vmatprep.subr.mxu0 0.0
    %6096 = vmatpush1.msra.mxu0 %v1895
    %6097 = vmatprep.subr.mxu0 0.0
    %6098 = vmatpush1.msra.mxu0 %v1897
    %6099 = vmatprep.subr.mxu0 0.0
    %6100 = vmatpush1.msra.mxu0 0.0
    %6101 = vmatprep.subr.mxu0 0.0
    %6102 = vmatpush1.msra.mxu0 0.0
    %6103 = vmatprep.subr.mxu0 0.0
    %6104 = vmatpush1.msra.mxu0 0.0
    %6105 = vmatprep.subr.mxu0 0.0
    %6106 = vmatpush1.msra.mxu0 0.0
    %6107 = vmatprep.subr.mxu0 0.0
    %6108 = vmatpush1.msra.mxu0 0.0
    %6109 = vmatprep.subr.mxu0 0.0
    %6110 = vmatpush1.msra.mxu0 0.0
    %6111 = vmatprep.subr.mxu0 0.0
    %6112 = vmatpush1.msra.mxu0 0.0
    %6113 = vmatprep.subr.mxu0 0.0
    %6114 = vmatpush1.msra.mxu0 0.0
    %6115 = vmatprep.subr.mxu0 0.0
    %6116 = vmatpush1.msra.mxu0 0.0
    %6117 = vmatprep.subr.mxu0 0.0
    %6118 = vmatpush1.msra.mxu0 0.0
    %6119 = vmatprep.subr.mxu0 0.0
    %6120 = vmatpush1.msra.mxu0 0.0
    %6121 = vmatprep.subr.mxu0 0.0
    %6122 = vmatpush1.msra.mxu0 0.0
    %6123 = vmatprep.subr.mxu0 0.0
    %6124 = vmatpush1.msra.mxu0 0.0
    %6125 = vmatprep.subr.mxu0 0.0
    %6126 = vmatpush1.msra.mxu0 0.0
    %6127 = vmatprep.subr.mxu0 0.0
    %6128 = vmatpush1.msra.mxu0 0.0
    %6129 = vmatprep.subr.mxu0 0.0
    %6130 = vmatpush1.msra.mxu0 0.0
    %6131 = vmatprep.subr.mxu0 0.0
    %6132 = vmatpush1.msra.mxu0 0.0
    %6133 = vmatprep.subr.mxu0 0.0
    %6134 = vmatpush1.msra.mxu0 0.0
    %6135 = vmatprep.subr.mxu0 0.0
    %6136 = vmatpush1.msra.mxu0 0.0
    %6137 = vmatprep.subr.mxu0 0.0
    %6138 = vmatpush1.msra.mxu0 0.0
    %6139 = vmatprep.subr.mxu0 0.0
    %6140 = vmatpush1.msra.mxu0 0.0
    %6141 = vmatprep.subr.mxu0 0.0
    %6142 = vmatpush1.msra.mxu0 0.0
    %6143 = vmatprep.subr.mxu0 0.0
    %6144 = vmatpush1.msra.mxu0 0.0
    %6145 = vmatprep.subr.mxu0 0.0
    %6146 = vmatpush1.msra.mxu0 0.0
    %6147 = vmatprep.subr.mxu0 0.0
    %6148 = vmatpush1.msra.mxu0 0.0
    %6149 = vmatprep.subr.mxu0 0.0
    %6150 = vmatpush1.msra.mxu0 0.0
    %6151 = vmatprep.subr.mxu0 0.0
    %6152 = vmatpush1.msra.mxu0 0.0
    %6153 = vmatprep.subr.mxu0 0.0
    %6154 = vmatpush1.msra.mxu0 0.0
    %6155 = vmatprep.mubr.f32.mxu0 0.0
    %6156 = vmatmul.mubr.f32.gmra.mrb[0].mxu0 %v6089
    %v6157 = vpop.f32.mrb[0].mxu0
    %v6158 = vadd.f32 %v1889, %v6157
    %v6159 = vpop.f32.mrb[0].mxu0
    %6160 = vdwg.mxu0
    %v6161 = vadd.f32 %v6158, %v5224
    %v6162 = vsel %vm124, %v6161, 0.0
    %6163 = vadd.xlane.f32.xlu0 %v6162
    %v6164 = vpop.xlane.xlu0 %6163
    %v6165 = vmul.f32 %v6164, %v978
    %v6166 = vsub.f32 %v6161, %v6165
    %v6167 = vmul.f32 %v6166, %v6166
    %v6168 = vsel %vm124, %v6167, 0.0
    %6169 = vadd.xlane.f32.xlu0 %v6168
    %v6170 = vpop.xlane.xlu0 %6169
    %v6171 = vmul.f32 %v6170, %v978
    %v6172 = vadd.f32 %v6171, 1e-06
    %v6173 = vrsqrt.pop %v6172
    %v6174 = vmul.f32 %v6166, %v6173
    %v6175 = vmul.f32 %v6174, %v1992
    %v6176 = vadd.f32 %v6175, %v1997
    %v6178 = vsel %vm124, %v6176, 0
    %6180 = vmatprep.subr.mxu0 0.0
    %6181 = vmatpush1.msra.mxu0 %v100
    %6182 = vmatprep.subr.mxu0 0.0
    %6183 = vmatpush1.msra.mxu0 %v103
    %6184 = vmatprep.subr.mxu0 0.0
    %6185 = vmatpush1.msra.mxu0 %v106
    %6186 = vmatprep.subr.mxu0 0.0
    %6187 = vmatpush1.msra.mxu0 %v109
    %6188 = vmatprep.subr.mxu0 0.0
    %6189 = vmatpush1.msra.mxu0 0.0
    %6190 = vmatprep.subr.mxu0 0.0
    %6191 = vmatpush1.msra.mxu0 0.0
    %6192 = vmatprep.subr.mxu0 0.0
    %6193 = vmatpush1.msra.mxu0 0.0
    %6194 = vmatprep.subr.mxu0 0.0
    %6195 = vmatpush1.msra.mxu0 0.0
    %6196 = vmatprep.subr.mxu0 0.0
    %6197 = vmatpush1.msra.mxu0 0.0
    %6198 = vmatprep.subr.mxu0 0.0
    %6199 = vmatpush1.msra.mxu0 0.0
    %6200 = vmatprep.subr.mxu0 0.0
    %6201 = vmatpush1.msra.mxu0 0.0
    %6202 = vmatprep.subr.mxu0 0.0
    %6203 = vmatpush1.msra.mxu0 0.0
    %6204 = vmatprep.subr.mxu0 0.0
    %6205 = vmatpush1.msra.mxu0 0.0
    %6206 = vmatprep.subr.mxu0 0.0
    %6207 = vmatpush1.msra.mxu0 0.0
    %6208 = vmatprep.subr.mxu0 0.0
    %6209 = vmatpush1.msra.mxu0 0.0
    %6210 = vmatprep.subr.mxu0 0.0
    %6211 = vmatpush1.msra.mxu0 0.0
    %6212 = vmatprep.subr.mxu0 0.0
    %6213 = vmatpush1.msra.mxu0 0.0
    %6214 = vmatprep.subr.mxu0 0.0
    %6215 = vmatpush1.msra.mxu0 0.0
    %6216 = vmatprep.subr.mxu0 0.0
    %6217 = vmatpush1.msra.mxu0 0.0
    %6218 = vmatprep.subr.mxu0 0.0
    %6219 = vmatpush1.msra.mxu0 0.0
    %6220 = vmatprep.subr.mxu0 0.0
    %6221 = vmatpush1.msra.mxu0 0.0
    %6222 = vmatprep.subr.mxu0 0.0
    %6223 = vmatpush1.msra.mxu0 0.0
    %6224 = vmatprep.subr.mxu0 0.0
    %6225 = vmatpush1.msra.mxu0 0.0
    %6226 = vmatprep.subr.mxu0 0.0
    %6227 = vmatpush1.msra.mxu0 0.0
    %6228 = vmatprep.subr.mxu0 0.0
    %6229 = vmatpush1.msra.mxu0 0.0
    %6230 = vmatprep.subr.mxu0 0.0
    %6231 = vmatpush1.msra.mxu0 0.0
    %6232 = vmatprep.subr.mxu0 0.0
    %6233 = vmatpush1.msra.mxu0 0.0
    %6234 = vmatprep.subr.mxu0 0.0
    %6235 = vmatpush1.msra.mxu0 0.0
    %6236 = vmatprep.subr.mxu0 0.0
    %6237 = vmatpush1.msra.mxu0 0.0
    %6238 = vmatprep.subr.mxu0 0.0
    %6239 = vmatpush1.msra.mxu0 0.0
    %6240 = vmatprep.subr.mxu0 0.0
    %6241 = vmatpush1.msra.mxu0 0.0
    %6242 = vmatprep.subr.mxu0 0.0
    %6243 = vmatpush1.msra.mxu0 0.0
    %6244 = vmatprep.mubr.f32.mxu0 0.0
    %6245 = vmatmul.mubr.f32.gmra.mrb[0].mxu0 %v6178
    %v6246 = vpop.f32.mrb[0].mxu0
    %v6247 = vadd.f32 %v2002, %v6246
    %v6248 = vpop.f32.mrb[0].mxu0
    %6249 = vdwg.mxu0
    %v6250 = vmax.f32 %v6247, 0.0
    %v6252 = vsel %vm2081, %v6250, 0
    %6254 = vmatprep.subr.mxu0 0.0
    %6255 = vmatpush1.msra.mxu0 %v110
    %6256 = vmatprep.subr.mxu0 0.0
    %6257 = vmatpush1.msra.mxu0 %v111
    %6258 = vmatprep.subr.mxu0 0.0
    %6259 = vmatpush1.msra.mxu0 %v112
    %6260 = vmatprep.subr.mxu0 0.0
    %6261 = vmatpush1.msra.mxu0 %v113
    %6262 = vmatprep.subr.mxu0 0.0
    %6263 = vmatpush1.msra.mxu0 %v114
    %6264 = vmatprep.subr.mxu0 0.0
    %6265 = vmatpush1.msra.mxu0 %v115
    %6266 = vmatprep.subr.mxu0 0.0
    %6267 = vmatpush1.msra.mxu0 %v116
    %6268 = vmatprep.subr.mxu0 0.0
    %6269 = vmatpush1.msra.mxu0 %v117
    %6270 = vmatprep.subr.mxu0 0.0
    %6271 = vmatpush1.msra.mxu0 0.0
    %6272 = vmatprep.subr.mxu0 0.0
    %6273 = vmatpush1.msra.mxu0 0.0
    %6274 = vmatprep.subr.mxu0 0.0
    %6275 = vmatpush1.msra.mxu0 0.0
    %6276 = vmatprep.subr.mxu0 0.0
    %6277 = vmatpush1.msra.mxu0 0.0
    %6278 = vmatprep.subr.mxu0 0.0
    %6279 = vmatpush1.msra.mxu0 0.0
    %6280 = vmatprep.subr.mxu0 0.0
    %6281 = vmatpush1.msra.mxu0 0.0
    %6282 = vmatprep.subr.mxu0 0.0
    %6283 = vmatpush1.msra.mxu0 0.0
    %6284 = vmatprep.subr.mxu0 0.0
    %6285 = vmatpush1.msra.mxu0 0.0
    %6286 = vmatprep.subr.mxu0 0.0
    %6287 = vmatpush1.msra.mxu0 0.0
    %6288 = vmatprep.subr.mxu0 0.0
    %6289 = vmatpush1.msra.mxu0 0.0
    %6290 = vmatprep.subr.mxu0 0.0
    %6291 = vmatpush1.msra.mxu0 0.0
    %6292 = vmatprep.subr.mxu0 0.0
    %6293 = vmatpush1.msra.mxu0 0.0
    %6294 = vmatprep.subr.mxu0 0.0
    %6295 = vmatpush1.msra.mxu0 0.0
    %6296 = vmatprep.subr.mxu0 0.0
    %6297 = vmatpush1.msra.mxu0 0.0
    %6298 = vmatprep.subr.mxu0 0.0
    %6299 = vmatpush1.msra.mxu0 0.0
    %6300 = vmatprep.subr.mxu0 0.0
    %6301 = vmatpush1.msra.mxu0 0.0
    %6302 = vmatprep.subr.mxu0 0.0
    %6303 = vmatpush1.msra.mxu0 0.0
    %6304 = vmatprep.subr.mxu0 0.0
    %6305 = vmatpush1.msra.mxu0 0.0
    %6306 = vmatprep.subr.mxu0 0.0
    %6307 = vmatpush1.msra.mxu0 0.0
    %6308 = vmatprep.subr.mxu0 0.0
    %6309 = vmatpush1.msra.mxu0 0.0
    %6310 = vmatprep.subr.mxu0 0.0
    %6311 = vmatpush1.msra.mxu0 0.0
    %6312 = vmatprep.subr.mxu0 0.0
    %6313 = vmatpush1.msra.mxu0 0.0
    %6314 = vmatprep.subr.mxu0 0.0
    %6315 = vmatpush1.msra.mxu0 0.0
    %6316 = vmatprep.subr.mxu0 0.0
    %6317 = vmatpush1.msra.mxu0 0.0
    %6318 = vmatprep.mubr.f32.mxu0 0.0
    %6319 = vmatmul.mubr.f32.gmra.mrb[0].mxu0 %v6252
    %v6320 = vpop.f32.mrb[0].mxu0
    %v6321 = vadd.f32 %v2080, %v6320
    %v6322 = vpop.f32.mrb[0].mxu0
    %6323 = vdwg.mxu0
    %v6324 = vadd.f32 %v6321, %v6176
    %v6325 = vsel %vm124, %v6324, 0.0
    %6326 = vadd.xlane.f32.xlu0 %v6325
    %v6327 = vpop.xlane.xlu0 %6326
    %v6328 = vmul.f32 %v6327, %v978
    %v6329 = vsub.f32 %v6324, %v6328
    %v6330 = vmul.f32 %v6329, %v6329
    %v6331 = vsel %vm124, %v6330, 0.0
    %6332 = vadd.xlane.f32.xlu0 %v6331
    %v6333 = vpop.xlane.xlu0 %6332
    %v6334 = vmul.f32 %v6333, %v978
    %v6335 = vadd.f32 %v6334, 1e-06
    %v6336 = vrsqrt.pop %v6335
    %v6337 = vmul.f32 %v6329, %v6336
    %v6338 = vmul.f32 %v6337, %v2172
    %v6339 = vadd.f32 %v6338, %v2177
    %v6341 = vrot.slane %v4382, 3
    %v6343 = vrot.slane %v4382, 2
    %v6345 = vrot.slane %v4382, 1
    %v6347 = vsel %vm2211, %v6341, %v6343
    %v6348 = vsel %vm2213, %v6347, %v6345
    %v6349 = vsel %vm2215, %v6348, %v4382
    %v6351 = vrot.slane %v6339, 3
    %v6352 = vsel %vm124, %v6351, 0
    %6354 = vmatprep.subr.mxu0 0.0
    %6355 = vmatpush1.msra.mxu0 %v2180
    %6356 = vmatprep.subr.mxu0 0.0
    %6357 = vmatpush1.msra.mxu0 %v2183
    %6358 = vmatprep.subr.mxu0 0.0
    %6359 = vmatpush1.msra.mxu0 %v2186
    %6360 = vmatprep.subr.mxu0 0.0
    %6361 = vmatpush1.msra.mxu0 %v2189
    %6362 = vmatprep.subr.mxu0 0.0
    %6363 = vmatpush1.msra.mxu0 0.0
    %6364 = vmatprep.subr.mxu0 0.0
    %6365 = vmatpush1.msra.mxu0 0.0
    %6366 = vmatprep.subr.mxu0 0.0
    %6367 = vmatpush1.msra.mxu0 0.0
    %6368 = vmatprep.subr.mxu0 0.0
    %6369 = vmatpush1.msra.mxu0 0.0
    %6370 = vmatprep.subr.mxu0 0.0
    %6371 = vmatpush1.msra.mxu0 0.0
    %6372 = vmatprep.subr.mxu0 0.0
    %6373 = vmatpush1.msra.mxu0 0.0
    %6374 = vmatprep.subr.mxu0 0.0
    %6375 = vmatpush1.msra.mxu0 0.0
    %6376 = vmatprep.subr.mxu0 0.0
    %6377 = vmatpush1.msra.mxu0 0.0
    %6378 = vmatprep.subr.mxu0 0.0
    %6379 = vmatpush1.msra.mxu0 0.0
    %6380 = vmatprep.subr.mxu0 0.0
    %6381 = vmatpush1.msra.mxu0 0.0
    %6382 = vmatprep.subr.mxu0 0.0
    %6383 = vmatpush1.msra.mxu0 0.0
    %6384 = vmatprep.subr.mxu0 0.0
    %6385 = vmatpush1.msra.mxu0 0.0
    %6386 = vmatprep.subr.mxu0 0.0
    %6387 = vmatpush1.msra.mxu0 0.0
    %6388 = vmatprep.subr.mxu0 0.0
    %6389 = vmatpush1.msra.mxu0 0.0
    %6390 = vmatprep.subr.mxu0 0.0
    %6391 = vmatpush1.msra.mxu0 0.0
    %6392 = vmatprep.subr.mxu0 0.0
    %6393 = vmatpush1.msra.mxu0 0.0
    %6394 = vmatprep.subr.mxu0 0.0
    %6395 = vmatpush1.msra.mxu0 0.0
    %6396 = vmatprep.subr.mxu0 0.0
    %6397 = vmatpush1.msra.mxu0 0.0
    %6398 = vmatprep.subr.mxu0 0.0
    %6399 = vmatpush1.msra.mxu0 0.0
    %6400 = vmatprep.subr.mxu0 0.0
    %6401 = vmatpush1.msra.mxu0 0.0
    %6402 = vmatprep.subr.mxu0 0.0
    %6403 = vmatpush1.msra.mxu0 0.0
    %6404 = vmatprep.subr.mxu0 0.0
    %6405 = vmatpush1.msra.mxu0 0.0
    %6406 = vmatprep.subr.mxu0 0.0
    %6407 = vmatpush1.msra.mxu0 0.0
    %6408 = vmatprep.subr.mxu0 0.0
    %6409 = vmatpush1.msra.mxu0 0.0
    %6410 = vmatprep.subr.mxu0 0.0
    %6411 = vmatpush1.msra.mxu0 0.0
    %6412 = vmatprep.subr.mxu0 0.0
    %6413 = vmatpush1.msra.mxu0 0.0
    %6414 = vmatprep.subr.mxu0 0.0
    %6415 = vmatpush1.msra.mxu0 0.0
    %6416 = vmatprep.subr.mxu0 0.0
    %6417 = vmatpush1.msra.mxu0 0.0
    %6418 = vmatprep.mubr.f32.mxu0 0.0
    %6419 = vmatmul.mubr.f32.gmra.mrb[0].mxu0 %v6352
    %v6420 = vpop.f32.mrb[0].mxu0
    %v6421 = vadd.f32 %v2202, %v6420
    %v6422 = vpop.f32.mrb[0].mxu0
    %6423 = vdwg.mxu0
    %v6424 = vsel %vm124, %v6339, 0
    %6426 = vmatprep.subr.mxu0 0.0
    %6427 = vmatpush1.msra.mxu0 %v2300
    %6428 = vmatprep.subr.mxu0 0.0
    %6429 = vmatpush1.msra.mxu0 %v2302
    %6430 = vmatprep.subr.mxu0 0.0
    %6431 = vmatpush1.msra.mxu0 %v2304
    %6432 = vmatprep.subr.mxu0 0.0
    %6433 = vmatpush1.msra.mxu0 %v2306
    %6434 = vmatprep.subr.mxu0 0.0
    %6435 = vmatpush1.msra.mxu0 0.0
    %6436 = vmatprep.subr.mxu0 0.0
    %6437 = vmatpush1.msra.mxu0 0.0
    %6438 = vmatprep.subr.mxu0 0.0
    %6439 = vmatpush1.msra.mxu0 0.0
    %6440 = vmatprep.subr.mxu0 0.0
    %6441 = vmatpush1.msra.mxu0 0.0
    %6442 = vmatprep.subr.mxu0 0.0
    %6443 = vmatpush1.msra.mxu0 0.0
    %6444 = vmatprep.subr.mxu0 0.0
    %6445 = vmatpush1.msra.mxu0 0.0
    %6446 = vmatprep.subr.mxu0 0.0
    %6447 = vmatpush1.msra.mxu0 0.0
    %6448 = vmatprep.subr.mxu0 0.0
    %6449 = vmatpush1.msra.mxu0 0.0
    %6450 = vmatprep.subr.mxu0 0.0
    %6451 = vmatpush1.msra.mxu0 0.0
    %6452 = vmatprep.subr.mxu0 0.0
    %6453 = vmatpush1.msra.mxu0 0.0
    %6454 = vmatprep.subr.mxu0 0.0
    %6455 = vmatpush1.msra.mxu0 0.0
    %6456 = vmatprep.subr.mxu0 0.0
    %6457 = vmatpush1.msra.mxu0 0.0
    %6458 = vmatprep.subr.mxu0 0.0
    %6459 = vmatpush1.msra.mxu0 0.0
    %6460 = vmatprep.subr.mxu0 0.0
    %6461 = vmatpush1.msra.mxu0 0.0
    %6462 = vmatprep.subr.mxu0 0.0
    %6463 = vmatpush1.msra.mxu0 0.0
    %6464 = vmatprep.subr.mxu0 0.0
    %6465 = vmatpush1.msra.mxu0 0.0
    %6466 = vmatprep.subr.mxu0 0.0
    %6467 = vmatpush1.msra.mxu0 0.0
    %6468 = vmatprep.subr.mxu0 0.0
    %6469 = vmatpush1.msra.mxu0 0.0
    %6470 = vmatprep.subr.mxu0 0.0
    %6471 = vmatpush1.msra.mxu0 0.0
    %6472 = vmatprep.subr.mxu0 0.0
    %6473 = vmatpush1.msra.mxu0 0.0
    %6474 = vmatprep.subr.mxu0 0.0
    %6475 = vmatpush1.msra.mxu0 0.0
    %6476 = vmatprep.subr.mxu0 0.0
    %6477 = vmatpush1.msra.mxu0 0.0
    %6478 = vmatprep.subr.mxu0 0.0
    %6479 = vmatpush1.msra.mxu0 0.0
    %6480 = vmatprep.subr.mxu0 0.0
    %6481 = vmatpush1.msra.mxu0 0.0
    %6482 = vmatprep.subr.mxu0 0.0
    %6483 = vmatpush1.msra.mxu0 0.0
    %6484 = vmatprep.subr.mxu0 0.0
    %6485 = vmatpush1.msra.mxu0 0.0
    %6486 = vmatprep.subr.mxu0 0.0
    %6487 = vmatpush1.msra.mxu0 0.0
    %6488 = vmatprep.subr.mxu0 0.0
    %6489 = vmatpush1.msra.mxu0 0.0
    %6490 = vmatprep.mubr.f32.mxu0 0.0
    %6491 = vmatmul.mubr.f32.gmra.mrb[0].mxu0 %v6424
    %v6492 = vpop.f32.mrb[0].mxu0
    %v6493 = vadd.f32 %v2313, %v6492
    %v6494 = vpop.f32.mrb[0].mxu0
    %6495 = vdwg.mxu0
    %v6496 = vmul.f32 %v6421, 0.35355338
    %v6498 = vsel %vm202, %v6496, 0
    %v6501 = vsel %vm202, %v6493, 0
    %6503 = vmatprep.subr.mxu0 0.0
    %6504 = vmatpush1.xpose.msra.mxu0 %v6501
    %6505 = vmatprep.subr.mxu0 0.0
    %6506 = vmatpush1.xpose.msra.mxu0 0.0
    %6507 = vmatprep.subr.mxu0 0.0
    %6508 = vmatpush1.xpose.msra.mxu0 0.0
    %6509 = vmatprep.subr.mxu0 0.0
    %6510 = vmatpush1.xpose.msra.mxu0 0.0
    %6511 = vmatprep.subr.mxu0 0.0
    %6512 = vmatpush1.xpose.msra.mxu0 0.0
    %6513 = vmatprep.subr.mxu0 0.0
    %6514 = vmatpush1.xpose.msra.mxu0 0.0
    %6515 = vmatprep.subr.mxu0 0.0
    %6516 = vmatpush1.xpose.msra.mxu0 0.0
    %6517 = vmatprep.subr.mxu0 0.0
    %6518 = vmatpush1.xpose.msra.mxu0 0.0
    %6519 = vmatprep.subr.mxu0 0.0
    %6520 = vmatpush1.xpose.msra.mxu0 0.0
    %6521 = vmatprep.subr.mxu0 0.0
    %6522 = vmatpush1.xpose.msra.mxu0 0.0
    %6523 = vmatprep.subr.mxu0 0.0
    %6524 = vmatpush1.xpose.msra.mxu0 0.0
    %6525 = vmatprep.subr.mxu0 0.0
    %6526 = vmatpush1.xpose.msra.mxu0 0.0
    %6527 = vmatprep.subr.mxu0 0.0
    %6528 = vmatpush1.xpose.msra.mxu0 0.0
    %6529 = vmatprep.subr.mxu0 0.0
    %6530 = vmatpush1.xpose.msra.mxu0 0.0
    %6531 = vmatprep.subr.mxu0 0.0
    %6532 = vmatpush1.xpose.msra.mxu0 0.0
    %6533 = vmatprep.subr.mxu0 0.0
    %6534 = vmatpush1.xpose.msra.mxu0 0.0
    %6535 = vmatprep.subr.mxu0 0.0
    %6536 = vmatpush1.xpose.msra.mxu0 0.0
    %6537 = vmatprep.subr.mxu0 0.0
    %6538 = vmatpush1.xpose.msra.mxu0 0.0
    %6539 = vmatprep.subr.mxu0 0.0
    %6540 = vmatpush1.xpose.msra.mxu0 0.0
    %6541 = vmatprep.subr.mxu0 0.0
    %6542 = vmatpush1.xpose.msra.mxu0 0.0
    %6543 = vmatprep.subr.mxu0 0.0
    %6544 = vmatpush1.xpose.msra.mxu0 0.0
    %6545 = vmatprep.subr.mxu0 0.0
    %6546 = vmatpush1.xpose.msra.mxu0 0.0
    %6547 = vmatprep.subr.mxu0 0.0
    %6548 = vmatpush1.xpose.msra.mxu0 0.0
    %6549 = vmatprep.subr.mxu0 0.0
    %6550 = vmatpush1.xpose.msra.mxu0 0.0
    %6551 = vmatprep.subr.mxu0 0.0
    %6552 = vmatpush1.xpose.msra.mxu0 0.0
    %6553 = vmatprep.subr.mxu0 0.0
    %6554 = vmatpush1.xpose.msra.mxu0 0.0
    %6555 = vmatprep.subr.mxu0 0.0
    %6556 = vmatpush1.xpose.msra.mxu0 0.0
    %6557 = vmatprep.subr.mxu0 0.0
    %6558 = vmatpush1.xpose.msra.mxu0 0.0
    %6559 = vmatprep.subr.mxu0 0.0
    %6560 = vmatpush1.xpose.msra.mxu0 0.0
    %6561 = vmatprep.subr.mxu0 0.0
    %6562 = vmatpush1.xpose.msra.mxu0 0.0
    %6563 = vmatprep.subr.mxu0 0.0
    %6564 = vmatpush1.xpose.msra.mxu0 0.0
    %6565 = vmatprep.subr.mxu0 0.0
    %6566 = vmatpush1.xpose.msra.mxu0 0.0
    %6567 = vmatprep.mubr.f32.mxu0 0.0
    %6568 = vmatmul.mubr.f32.gmra.mrb[0].mxu0 %v6498
    %v6569 = vpop.f32.mrb[0].mxu0
    %v6570 = vadd.f32 0.0, %v6569
    %v6571 = vpop.f32.mrb[0].mxu0
    %6572 = vdwg.mxu0
    %6573 = vrot.lane.b32.xlu0 %v6496, 120
    %v6574 = vpop.permute.xlu0 %6573
    %6575 = vrot.lane.b32.xlu0 %v6493, 120
    %v6576 = vpop.permute.xlu0 %6575
    %v6577 = vsel %vm202, %v6574, 0
    %v6579 = vsel %vm202, %v6576, 0
    %6581 = vmatprep.subr.mxu0 0.0
    %6582 = vmatpush1.xpose.msra.mxu0 %v6579
    %6583 = vmatprep.subr.mxu0 0.0
    %6584 = vmatpush1.xpose.msra.mxu0 0.0
    %6585 = vmatprep.subr.mxu0 0.0
    %6586 = vmatpush1.xpose.msra.mxu0 0.0
    %6587 = vmatprep.subr.mxu0 0.0
    %6588 = vmatpush1.xpose.msra.mxu0 0.0
    %6589 = vmatprep.subr.mxu0 0.0
    %6590 = vmatpush1.xpose.msra.mxu0 0.0
    %6591 = vmatprep.subr.mxu0 0.0
    %6592 = vmatpush1.xpose.msra.mxu0 0.0
    %6593 = vmatprep.subr.mxu0 0.0
    %6594 = vmatpush1.xpose.msra.mxu0 0.0
    %6595 = vmatprep.subr.mxu0 0.0
    %6596 = vmatpush1.xpose.msra.mxu0 0.0
    %6597 = vmatprep.subr.mxu0 0.0
    %6598 = vmatpush1.xpose.msra.mxu0 0.0
    %6599 = vmatprep.subr.mxu0 0.0
    %6600 = vmatpush1.xpose.msra.mxu0 0.0
    %6601 = vmatprep.subr.mxu0 0.0
    %6602 = vmatpush1.xpose.msra.mxu0 0.0
    %6603 = vmatprep.subr.mxu0 0.0
    %6604 = vmatpush1.xpose.msra.mxu0 0.0
    %6605 = vmatprep.subr.mxu0 0.0
    %6606 = vmatpush1.xpose.msra.mxu0 0.0
    %6607 = vmatprep.subr.mxu0 0.0
    %6608 = vmatpush1.xpose.msra.mxu0 0.0
    %6609 = vmatprep.subr.mxu0 0.0
    %6610 = vmatpush1.xpose.msra.mxu0 0.0
    %6611 = vmatprep.subr.mxu0 0.0
    %6612 = vmatpush1.xpose.msra.mxu0 0.0
    %6613 = vmatprep.subr.mxu0 0.0
    %6614 = vmatpush1.xpose.msra.mxu0 0.0
    %6615 = vmatprep.subr.mxu0 0.0
    %6616 = vmatpush1.xpose.msra.mxu0 0.0
    %6617 = vmatprep.subr.mxu0 0.0
    %6618 = vmatpush1.xpose.msra.mxu0 0.0
    %6619 = vmatprep.subr.mxu0 0.0
    %6620 = vmatpush1.xpose.msra.mxu0 0.0
    %6621 = vmatprep.subr.mxu0 0.0
    %6622 = vmatpush1.xpose.msra.mxu0 0.0
    %6623 = vmatprep.subr.mxu0 0.0
    %6624 = vmatpush1.xpose.msra.mxu0 0.0
    %6625 = vmatprep.subr.mxu0 0.0
    %6626 = vmatpush1.xpose.msra.mxu0 0.0
    %6627 = vmatprep.subr.mxu0 0.0
    %6628 = vmatpush1.xpose.msra.mxu0 0.0
    %6629 = vmatprep.subr.mxu0 0.0
    %6630 = vmatpush1.xpose.msra.mxu0 0.0
    %6631 = vmatprep.subr.mxu0 0.0
    %6632 = vmatpush1.xpose.msra.mxu0 0.0
    %6633 = vmatprep.subr.mxu0 0.0
    %6634 = vmatpush1.xpose.msra.mxu0 0.0
    %6635 = vmatprep.subr.mxu0 0.0
    %6636 = vmatpush1.xpose.msra.mxu0 0.0
    %6637 = vmatprep.subr.mxu0 0.0
    %6638 = vmatpush1.xpose.msra.mxu0 0.0
    %6639 = vmatprep.subr.mxu0 0.0
    %6640 = vmatpush1.xpose.msra.mxu0 0.0
    %6641 = vmatprep.subr.mxu0 0.0
    %6642 = vmatpush1.xpose.msra.mxu0 0.0
    %6643 = vmatprep.subr.mxu0 0.0
    %6644 = vmatpush1.xpose.msra.mxu0 0.0
    %6645 = vmatprep.mubr.f32.mxu0 0.0
    %6646 = vmatmul.mubr.f32.gmra.mrb[0].mxu0 %v6577
    %v6647 = vpop.f32.mrb[0].mxu0
    %v6648 = vadd.f32 0.0, %v6647
    %v6649 = vpop.f32.mrb[0].mxu0
    %6650 = vdwg.mxu0
    %6651 = vrot.lane.b32.xlu0 %v6496, 112
    %v6652 = vpop.permute.xlu0 %6651
    %6653 = vrot.lane.b32.xlu0 %v6493, 112
    %v6654 = vpop.permute.xlu0 %6653
    %v6655 = vsel %vm202, %v6652, 0
    %v6657 = vsel %vm202, %v6654, 0
    %6659 = vmatprep.subr.mxu0 0.0
    %6660 = vmatpush1.xpose.msra.mxu0 %v6657
    %6661 = vmatprep.subr.mxu0 0.0
    %6662 = vmatpush1.xpose.msra.mxu0 0.0
    %6663 = vmatprep.subr.mxu0 0.0
    %6664 = vmatpush1.xpose.msra.mxu0 0.0
    %6665 = vmatprep.subr.mxu0 0.0
    %6666 = vmatpush1.xpose.msra.mxu0 0.0
    %6667 = vmatprep.subr.mxu0 0.0
    %6668 = vmatpush1.xpose.msra.mxu0 0.0
    %6669 = vmatprep.subr.mxu0 0.0
    %6670 = vmatpush1.xpose.msra.mxu0 0.0
    %6671 = vmatprep.subr.mxu0 0.0
    %6672 = vmatpush1.xpose.msra.mxu0 0.0
    %6673 = vmatprep.subr.mxu0 0.0
    %6674 = vmatpush1.xpose.msra.mxu0 0.0
    %6675 = vmatprep.subr.mxu0 0.0
    %6676 = vmatpush1.xpose.msra.mxu0 0.0
    %6677 = vmatprep.subr.mxu0 0.0
    %6678 = vmatpush1.xpose.msra.mxu0 0.0
    %6679 = vmatprep.subr.mxu0 0.0
    %6680 = vmatpush1.xpose.msra.mxu0 0.0
    %6681 = vmatprep.subr.mxu0 0.0
    %6682 = vmatpush1.xpose.msra.mxu0 0.0
    %6683 = vmatprep.subr.mxu0 0.0
    %6684 = vmatpush1.xpose.msra.mxu0 0.0
    %6685 = vmatprep.subr.mxu0 0.0
    %6686 = vmatpush1.xpose.msra.mxu0 0.0
    %6687 = vmatprep.subr.mxu0 0.0
    %6688 = vmatpush1.xpose.msra.mxu0 0.0
    %6689 = vmatprep.subr.mxu0 0.0
    %6690 = vmatpush1.xpose.msra.mxu0 0.0
    %6691 = vmatprep.subr.mxu0 0.0
    %6692 = vmatpush1.xpose.msra.mxu0 0.0
    %6693 = vmatprep.subr.mxu0 0.0
    %6694 = vmatpush1.xpose.msra.mxu0 0.0
    %6695 = vmatprep.subr.mxu0 0.0
    %6696 = vmatpush1.xpose.msra.mxu0 0.0
    %6697 = vmatprep.subr.mxu0 0.0
    %6698 = vmatpush1.xpose.msra.mxu0 0.0
    %6699 = vmatprep.subr.mxu0 0.0
    %6700 = vmatpush1.xpose.msra.mxu0 0.0
    %6701 = vmatprep.subr.mxu0 0.0
    %6702 = vmatpush1.xpose.msra.mxu0 0.0
    %6703 = vmatprep.subr.mxu0 0.0
    %6704 = vmatpush1.xpose.msra.mxu0 0.0
    %6705 = vmatprep.subr.mxu0 0.0
    %6706 = vmatpush1.xpose.msra.mxu0 0.0
    %6707 = vmatprep.subr.mxu0 0.0
    %6708 = vmatpush1.xpose.msra.mxu0 0.0
    %6709 = vmatprep.subr.mxu0 0.0
    %6710 = vmatpush1.xpose.msra.mxu0 0.0
    %6711 = vmatprep.subr.mxu0 0.0
    %6712 = vmatpush1.xpose.msra.mxu0 0.0
    %6713 = vmatprep.subr.mxu0 0.0
    %6714 = vmatpush1.xpose.msra.mxu0 0.0
    %6715 = vmatprep.subr.mxu0 0.0
    %6716 = vmatpush1.xpose.msra.mxu0 0.0
    %6717 = vmatprep.subr.mxu0 0.0
    %6718 = vmatpush1.xpose.msra.mxu0 0.0
    %6719 = vmatprep.subr.mxu0 0.0
    %6720 = vmatpush1.xpose.msra.mxu0 0.0
    %6721 = vmatprep.subr.mxu0 0.0
    %6722 = vmatpush1.xpose.msra.mxu0 0.0
    %6723 = vmatprep.mubr.f32.mxu0 0.0
    %6724 = vmatmul.mubr.f32.gmra.mrb[0].mxu0 %v6655
    %v6725 = vpop.f32.mrb[0].mxu0
    %v6726 = vadd.f32 0.0, %v6725
    %v6727 = vpop.f32.mrb[0].mxu0
    %6728 = vdwg.mxu0
    %6729 = vrot.lane.b32.xlu0 %v6496, 104
    %v6730 = vpop.permute.xlu0 %6729
    %6731 = vrot.lane.b32.xlu0 %v6493, 104
    %v6732 = vpop.permute.xlu0 %6731
    %v6733 = vsel %vm202, %v6730, 0
    %v6735 = vsel %vm202, %v6732, 0
    %6737 = vmatprep.subr.mxu0 0.0
    %6738 = vmatpush1.xpose.msra.mxu0 %v6735
    %6739 = vmatprep.subr.mxu0 0.0
    %6740 = vmatpush1.xpose.msra.mxu0 0.0
    %6741 = vmatprep.subr.mxu0 0.0
    %6742 = vmatpush1.xpose.msra.mxu0 0.0
    %6743 = vmatprep.subr.mxu0 0.0
    %6744 = vmatpush1.xpose.msra.mxu0 0.0
    %6745 = vmatprep.subr.mxu0 0.0
    %6746 = vmatpush1.xpose.msra.mxu0 0.0
    %6747 = vmatprep.subr.mxu0 0.0
    %6748 = vmatpush1.xpose.msra.mxu0 0.0
    %6749 = vmatprep.subr.mxu0 0.0
    %6750 = vmatpush1.xpose.msra.mxu0 0.0
    %6751 = vmatprep.subr.mxu0 0.0
    %6752 = vmatpush1.xpose.msra.mxu0 0.0
    %6753 = vmatprep.subr.mxu0 0.0
    %6754 = vmatpush1.xpose.msra.mxu0 0.0
    %6755 = vmatprep.subr.mxu0 0.0
    %6756 = vmatpush1.xpose.msra.mxu0 0.0
    %6757 = vmatprep.subr.mxu0 0.0
    %6758 = vmatpush1.xpose.msra.mxu0 0.0
    %6759 = vmatprep.subr.mxu0 0.0
    %6760 = vmatpush1.xpose.msra.mxu0 0.0
    %6761 = vmatprep.subr.mxu0 0.0
    %6762 = vmatpush1.xpose.msra.mxu0 0.0
    %6763 = vmatprep.subr.mxu0 0.0
    %6764 = vmatpush1.xpose.msra.mxu0 0.0
    %6765 = vmatprep.subr.mxu0 0.0
    %6766 = vmatpush1.xpose.msra.mxu0 0.0
    %6767 = vmatprep.subr.mxu0 0.0
    %6768 = vmatpush1.xpose.msra.mxu0 0.0
    %6769 = vmatprep.subr.mxu0 0.0
    %6770 = vmatpush1.xpose.msra.mxu0 0.0
    %6771 = vmatprep.subr.mxu0 0.0
    %6772 = vmatpush1.xpose.msra.mxu0 0.0
    %6773 = vmatprep.subr.mxu0 0.0
    %6774 = vmatpush1.xpose.msra.mxu0 0.0
    %6775 = vmatprep.subr.mxu0 0.0
    %6776 = vmatpush1.xpose.msra.mxu0 0.0
    %6777 = vmatprep.subr.mxu0 0.0
    %6778 = vmatpush1.xpose.msra.mxu0 0.0
    %6779 = vmatprep.subr.mxu0 0.0
    %6780 = vmatpush1.xpose.msra.mxu0 0.0
    %6781 = vmatprep.subr.mxu0 0.0
    %6782 = vmatpush1.xpose.msra.mxu0 0.0
    %6783 = vmatprep.subr.mxu0 0.0
    %6784 = vmatpush1.xpose.msra.mxu0 0.0
    %6785 = vmatprep.subr.mxu0 0.0
    %6786 = vmatpush1.xpose.msra.mxu0 0.0
    %6787 = vmatprep.subr.mxu0 0.0
    %6788 = vmatpush1.xpose.msra.mxu0 0.0
    %6789 = vmatprep.subr.mxu0 0.0
    %6790 = vmatpush1.xpose.msra.mxu0 0.0
    %6791 = vmatprep.subr.mxu0 0.0
    %6792 = vmatpush1.xpose.msra.mxu0 0.0
    %6793 = vmatprep.subr.mxu0 0.0
    %6794 = vmatpush1.xpose.msra.mxu0 0.0
    %6795 = vmatprep.subr.mxu0 0.0
    %6796 = vmatpush1.xpose.msra.mxu0 0.0
    %6797 = vmatprep.subr.mxu0 0.0
    %6798 = vmatpush1.xpose.msra.mxu0 0.0
    %6799 = vmatprep.subr.mxu0 0.0
    %6800 = vmatpush1.xpose.msra.mxu0 0.0
    %6801 = vmatprep.mubr.f32.mxu0 0.0
    %6802 = vmatmul.mubr.f32.gmra.mrb[0].mxu0 %v6733
    %v6803 = vpop.f32.mrb[0].mxu0
    %v6804 = vadd.f32 0.0, %v6803
    %v6805 = vpop.f32.mrb[0].mxu0
    %6806 = vdwg.mxu0
    %v6808 = vrot.slane %v6648, 7
    %v6811 = vrot.slane %v6726, 6
    %v6814 = vrot.slane %v6804, 5
    %v6816 = vsel %vm2211, %v6570, %v6808
    %v6817 = vsel %vm2213, %v6816, %v6811
    %v6818 = vsel %vm2215, %v6817, %v6814
    %v6819 = vadd.f32 %v6818, %v6349
    %v6820 = vsel %vm2711, %v6819, -inf
    %6821 = vmax.xlane.f32.xlu0 %v6820
    %v6822 = vpop.xlane.xlu0 %6821
    %v6823 = vsub.f32 %v6819, %v6822
    %v6824 = vmul.f32 %v6823, 1.442695
    %v6825 = vpow.pop %v6824
    %v6826 = vsel %vm2711, %v6825, 0.0
    %6827 = vadd.xlane.f32.xlu0 %v6826
    %v6828 = vpop.xlane.xlu0 %6827
    %v6829 = vrcp.pop %v6828
    %v6830 = vmul.f32 %v6825, %v6829
    %6831 = vrot.lane.b32.xlu0 %v6493, 96
    %v6832 = vpop.permute.xlu0 %6831
    %v6835 = vsel %vm202, %v6830, 0
    %6837 = vmatprep.subr.mxu0 0.0
    %6838 = vmatpush1.msra.mxu0 %v6832
    %6839 = vmatprep.subr.mxu0 0.0
    %6840 = vmatpush1.msra.mxu0 0.0
    %6841 = vmatprep.subr.mxu0 0.0
    %6842 = vmatpush1.msra.mxu0 0.0
    %6843 = vmatprep.subr.mxu0 0.0
    %6844 = vmatpush1.msra.mxu0 0.0
    %6845 = vmatprep.subr.mxu0 0.0
    %6846 = vmatpush1.msra.mxu0 0.0
    %6847 = vmatprep.subr.mxu0 0.0
    %6848 = vmatpush1.msra.mxu0 0.0
    %6849 = vmatprep.subr.mxu0 0.0
    %6850 = vmatpush1.msra.mxu0 0.0
    %6851 = vmatprep.subr.mxu0 0.0
    %6852 = vmatpush1.msra.mxu0 0.0
    %6853 = vmatprep.subr.mxu0 0.0
    %6854 = vmatpush1.msra.mxu0 0.0
    %6855 = vmatprep.subr.mxu0 0.0
    %6856 = vmatpush1.msra.mxu0 0.0
    %6857 = vmatprep.subr.mxu0 0.0
    %6858 = vmatpush1.msra.mxu0 0.0
    %6859 = vmatprep.subr.mxu0 0.0
    %6860 = vmatpush1.msra.mxu0 0.0
    %6861 = vmatprep.subr.mxu0 0.0
    %6862 = vmatpush1.msra.mxu0 0.0
    %6863 = vmatprep.subr.mxu0 0.0
    %6864 = vmatpush1.msra.mxu0 0.0
    %6865 = vmatprep.subr.mxu0 0.0
    %6866 = vmatpush1.msra.mxu0 0.0
    %6867 = vmatprep.subr.mxu0 0.0
    %6868 = vmatpush1.msra.mxu0 0.0
    %6869 = vmatprep.subr.mxu0 0.0
    %6870 = vmatpush1.msra.mxu0 0.0
    %6871 = vmatprep.subr.mxu0 0.0
    %6872 = vmatpush1.msra.mxu0 0.0
    %6873 = vmatprep.subr.mxu0 0.0
    %6874 = vmatpush1.msra.mxu0 0.0
    %6875 = vmatprep.subr.mxu0 0.0
    %6876 = vmatpush1.msra.mxu0 0.0
    %6877 = vmatprep.subr.mxu0 0.0
    %6878 = vmatpush1.msra.mxu0 0.0
    %6879 = vmatprep.subr.mxu0 0.0
    %6880 = vmatpush1.msra.mxu0 0.0
    %6881 = vmatprep.subr.mxu0 0.0
    %6882 = vmatpush1.msra.mxu0 0.0
    %6883 = vmatprep.subr.mxu0 0.0
    %6884 = vmatpush1.msra.mxu0 0.0
    %6885 = vmatprep.subr.mxu0 0.0
    %6886 = vmatpush1.msra.mxu0 0.0
    %6887 = vmatprep.subr.mxu0 0.0
    %6888 = vmatpush1.msra.mxu0 0.0
    %6889 = vmatprep.subr.mxu0 0.0
    %6890 = vmatpush1.msra.mxu0 0.0
    %6891 = vmatprep.subr.mxu0 0.0
    %6892 = vmatpush1.msra.mxu0 0.0
    %6893 = vmatprep.subr.mxu0 0.0
    %6894 = vmatpush1.msra.mxu0 0.0
    %6895 = vmatprep.subr.mxu0 0.0
    %6896 = vmatpush1.msra.mxu0 0.0
    %6897 = vmatprep.subr.mxu0 0.0
    %6898 = vmatpush1.msra.mxu0 0.0
    %6899 = vmatprep.subr.mxu0 0.0
    %6900 = vmatpush1.msra.mxu0 0.0
    %6901 = vmatprep.mubr.f32.mxu0 0.0
    %6902 = vmatmul.mubr.f32.gmra.mrb[0].mxu0 %v6835
    %v6903 = vpop.f32.mrb[0].mxu0
    %v6904 = vadd.f32 0.0, %v6903
    %v6905 = vpop.f32.mrb[0].mxu0
    %6906 = vdwg.mxu0
    %v6907 = vrot.slane %v6830, 1
    %6908 = vrot.lane.b32.xlu0 %v6493, 88
    %v6909 = vpop.permute.xlu0 %6908
    %v6911 = vsel %vm202, %v6907, 0
    %6913 = vmatprep.subr.mxu0 0.0
    %6914 = vmatpush1.msra.mxu0 %v6909
    %6915 = vmatprep.subr.mxu0 0.0
    %6916 = vmatpush1.msra.mxu0 0.0
    %6917 = vmatprep.subr.mxu0 0.0
    %6918 = vmatpush1.msra.mxu0 0.0
    %6919 = vmatprep.subr.mxu0 0.0
    %6920 = vmatpush1.msra.mxu0 0.0
    %6921 = vmatprep.subr.mxu0 0.0
    %6922 = vmatpush1.msra.mxu0 0.0
    %6923 = vmatprep.subr.mxu0 0.0
    %6924 = vmatpush1.msra.mxu0 0.0
    %6925 = vmatprep.subr.mxu0 0.0
    %6926 = vmatpush1.msra.mxu0 0.0
    %6927 = vmatprep.subr.mxu0 0.0
    %6928 = vmatpush1.msra.mxu0 0.0
    %6929 = vmatprep.subr.mxu0 0.0
    %6930 = vmatpush1.msra.mxu0 0.0
    %6931 = vmatprep.subr.mxu0 0.0
    %6932 = vmatpush1.msra.mxu0 0.0
    %6933 = vmatprep.subr.mxu0 0.0
    %6934 = vmatpush1.msra.mxu0 0.0
    %6935 = vmatprep.subr.mxu0 0.0
    %6936 = vmatpush1.msra.mxu0 0.0
    %6937 = vmatprep.subr.mxu0 0.0
    %6938 = vmatpush1.msra.mxu0 0.0
    %6939 = vmatprep.subr.mxu0 0.0
    %6940 = vmatpush1.msra.mxu0 0.0
    %6941 = vmatprep.subr.mxu0 0.0
    %6942 = vmatpush1.msra.mxu0 0.0
    %6943 = vmatprep.subr.mxu0 0.0
    %6944 = vmatpush1.msra.mxu0 0.0
    %6945 = vmatprep.subr.mxu0 0.0
    %6946 = vmatpush1.msra.mxu0 0.0
    %6947 = vmatprep.subr.mxu0 0.0
    %6948 = vmatpush1.msra.mxu0 0.0
    %6949 = vmatprep.subr.mxu0 0.0
    %6950 = vmatpush1.msra.mxu0 0.0
    %6951 = vmatprep.subr.mxu0 0.0
    %6952 = vmatpush1.msra.mxu0 0.0
    %6953 = vmatprep.subr.mxu0 0.0
    %6954 = vmatpush1.msra.mxu0 0.0
    %6955 = vmatprep.subr.mxu0 0.0
    %6956 = vmatpush1.msra.mxu0 0.0
    %6957 = vmatprep.subr.mxu0 0.0
    %6958 = vmatpush1.msra.mxu0 0.0
    %6959 = vmatprep.subr.mxu0 0.0
    %6960 = vmatpush1.msra.mxu0 0.0
    %6961 = vmatprep.subr.mxu0 0.0
    %6962 = vmatpush1.msra.mxu0 0.0
    %6963 = vmatprep.subr.mxu0 0.0
    %6964 = vmatpush1.msra.mxu0 0.0
    %6965 = vmatprep.subr.mxu0 0.0
    %6966 = vmatpush1.msra.mxu0 0.0
    %6967 = vmatprep.subr.mxu0 0.0
    %6968 = vmatpush1.msra.mxu0 0.0
    %6969 = vmatprep.subr.mxu0 0.0
    %6970 = vmatpush1.msra.mxu0 0.0
    %6971 = vmatprep.subr.mxu0 0.0
    %6972 = vmatpush1.msra.mxu0 0.0
    %6973 = vmatprep.subr.mxu0 0.0
    %6974 = vmatpush1.msra.mxu0 0.0
    %6975 = vmatprep.subr.mxu0 0.0
    %6976 = vmatpush1.msra.mxu0 0.0
    %6977 = vmatprep.mubr.f32.mxu0 0.0
    %6978 = vmatmul.mubr.f32.gmra.mrb[0].mxu0 %v6911
    %v6979 = vpop.f32.mrb[0].mxu0
    %v6980 = vadd.f32 0.0, %v6979
    %v6981 = vpop.f32.mrb[0].mxu0
    %6982 = vdwg.mxu0
    %v6983 = vrot.slane %v6830, 2
    %6984 = vrot.lane.b32.xlu0 %v6493, 80
    %v6985 = vpop.permute.xlu0 %6984
    %v6987 = vsel %vm202, %v6983, 0
    %6989 = vmatprep.subr.mxu0 0.0
    %6990 = vmatpush1.msra.mxu0 %v6985
    %6991 = vmatprep.subr.mxu0 0.0
    %6992 = vmatpush1.msra.mxu0 0.0
    %6993 = vmatprep.subr.mxu0 0.0
    %6994 = vmatpush1.msra.mxu0 0.0
    %6995 = vmatprep.subr.mxu0 0.0
    %6996 = vmatpush1.msra.mxu0 0.0
    %6997 = vmatprep.subr.mxu0 0.0
    %6998 = vmatpush1.msra.mxu0 0.0
    %6999 = vmatprep.subr.mxu0 0.0
    %7000 = vmatpush1.msra.mxu0 0.0
    %7001 = vmatprep.subr.mxu0 0.0
    %7002 = vmatpush1.msra.mxu0 0.0
    %7003 = vmatprep.subr.mxu0 0.0
    %7004 = vmatpush1.msra.mxu0 0.0
    %7005 = vmatprep.subr.mxu0 0.0
    %7006 = vmatpush1.msra.mxu0 0.0
    %7007 = vmatprep.subr.mxu0 0.0
    %7008 = vmatpush1.msra.mxu0 0.0
    %7009 = vmatprep.subr.mxu0 0.0
    %7010 = vmatpush1.msra.mxu0 0.0
    %7011 = vmatprep.subr.mxu0 0.0
    %7012 = vmatpush1.msra.mxu0 0.0
    %7013 = vmatprep.subr.mxu0 0.0
    %7014 = vmatpush1.msra.mxu0 0.0
    %7015 = vmatprep.subr.mxu0 0.0
    %7016 = vmatpush1.msra.mxu0 0.0
    %7017 = vmatprep.subr.mxu0 0.0
    %7018 = vmatpush1.msra.mxu0 0.0
    %7019 = vmatprep.subr.mxu0 0.0
    %7020 = vmatpush1.msra.mxu0 0.0
    %7021 = vmatprep.subr.mxu0 0.0
    %7022 = vmatpush1.msra.mxu0 0.0
    %7023 = vmatprep.subr.mxu0 0.0
    %7024 = vmatpush1.msra.mxu0 0.0
    %7025 = vmatprep.subr.mxu0 0.0
    %7026 = vmatpush1.msra.mxu0 0.0
    %7027 = vmatprep.subr.mxu0 0.0
    %7028 = vmatpush1.msra.mxu0 0.0
    %7029 = vmatprep.subr.mxu0 0.0
    %7030 = vmatpush1.msra.mxu0 0.0
    %7031 = vmatprep.subr.mxu0 0.0
    %7032 = vmatpush1.msra.mxu0 0.0
    %7033 = vmatprep.subr.mxu0 0.0
    %7034 = vmatpush1.msra.mxu0 0.0
    %7035 = vmatprep.subr.mxu0 0.0
    %7036 = vmatpush1.msra.mxu0 0.0
    %7037 = vmatprep.subr.mxu0 0.0
    %7038 = vmatpush1.msra.mxu0 0.0
    %7039 = vmatprep.subr.mxu0 0.0
    %7040 = vmatpush1.msra.mxu0 0.0
    %7041 = vmatprep.subr.mxu0 0.0
    %7042 = vmatpush1.msra.mxu0 0.0
    %7043 = vmatprep.subr.mxu0 0.0
    %7044 = vmatpush1.msra.mxu0 0.0
    %7045 = vmatprep.subr.mxu0 0.0
    %7046 = vmatpush1.msra.mxu0 0.0
    %7047 = vmatprep.subr.mxu0 0.0
    %7048 = vmatpush1.msra.mxu0 0.0
    %7049 = vmatprep.subr.mxu0 0.0
    %7050 = vmatpush1.msra.mxu0 0.0
    %7051 = vmatprep.subr.mxu0 0.0
    %7052 = vmatpush1.msra.mxu0 0.0
    %7053 = vmatprep.mubr.f32.mxu0 0.0
    %7054 = vmatmul.mubr.f32.gmra.mrb[0].mxu0 %v6987
    %v7055 = vpop.f32.mrb[0].mxu0
    %v7056 = vadd.f32 0.0, %v7055
    %v7057 = vpop.f32.mrb[0].mxu0
    %7058 = vdwg.mxu0
    %v7059 = vrot.slane %v6830, 3
    %7060 = vrot.lane.b32.xlu0 %v6493, 72
    %v7061 = vpop.permute.xlu0 %7060
    %v7063 = vsel %vm202, %v7059, 0
    %7065 = vmatprep.subr.mxu0 0.0
    %7066 = vmatpush1.msra.mxu0 %v7061
    %7067 = vmatprep.subr.mxu0 0.0
    %7068 = vmatpush1.msra.mxu0 0.0
    %7069 = vmatprep.subr.mxu0 0.0
    %7070 = vmatpush1.msra.mxu0 0.0
    %7071 = vmatprep.subr.mxu0 0.0
    %7072 = vmatpush1.msra.mxu0 0.0
    %7073 = vmatprep.subr.mxu0 0.0
    %7074 = vmatpush1.msra.mxu0 0.0
    %7075 = vmatprep.subr.mxu0 0.0
    %7076 = vmatpush1.msra.mxu0 0.0
    %7077 = vmatprep.subr.mxu0 0.0
    %7078 = vmatpush1.msra.mxu0 0.0
    %7079 = vmatprep.subr.mxu0 0.0
    %7080 = vmatpush1.msra.mxu0 0.0
    %7081 = vmatprep.subr.mxu0 0.0
    %7082 = vmatpush1.msra.mxu0 0.0
    %7083 = vmatprep.subr.mxu0 0.0
    %7084 = vmatpush1.msra.mxu0 0.0
    %7085 = vmatprep.subr.mxu0 0.0
    %7086 = vmatpush1.msra.mxu0 0.0
    %7087 = vmatprep.subr.mxu0 0.0
    %7088 = vmatpush1.msra.mxu0 0.0
    %7089 = vmatprep.subr.mxu0 0.0
    %7090 = vmatpush1.msra.mxu0 0.0
    %7091 = vmatprep.subr.mxu0 0.0
    %7092 = vmatpush1.msra.mxu0 0.0
    %7093 = vmatprep.subr.mxu0 0.0
    %7094 = vmatpush1.msra.mxu0 0.0
    %7095 = vmatprep.subr.mxu0 0.0
    %7096 = vmatpush1.msra.mxu0 0.0
    %7097 = vmatprep.subr.mxu0 0.0
    %7098 = vmatpush1.msra.mxu0 0.0
    %7099 = vmatprep.subr.mxu0 0.0
    %7100 = vmatpush1.msra.mxu0 0.0
    %7101 = vmatprep.subr.mxu0 0.0
    %7102 = vmatpush1.msra.mxu0 0.0
    %7103 = vmatprep.subr.mxu0 0.0
    %7104 = vmatpush1.msra.mxu0 0.0
    %7105 = vmatprep.subr.mxu0 0.0
    %7106 = vmatpush1.msra.mxu0 0.0
    %7107 = vmatprep.subr.mxu0 0.0
    %7108 = vmatpush1.msra.mxu0 0.0
    %7109 = vmatprep.subr.mxu0 0.0
    %7110 = vmatpush1.msra.mxu0 0.0
    %7111 = vmatprep.subr.mxu0 0.0
    %7112 = vmatpush1.msra.mxu0 0.0
    %7113 = vmatprep.subr.mxu0 0.0
    %7114 = vmatpush1.msra.mxu0 0.0
    %7115 = vmatprep.subr.mxu0 0.0
    %7116 = vmatpush1.msra.mxu0 0.0
    %7117 = vmatprep.subr.mxu0 0.0
    %7118 = vmatpush1.msra.mxu0 0.0
    %7119 = vmatprep.subr.mxu0 0.0
    %7120 = vmatpush1.msra.mxu0 0.0
    %7121 = vmatprep.subr.mxu0 0.0
    %7122 = vmatpush1.msra.mxu0 0.0
    %7123 = vmatprep.subr.mxu0 0.0
    %7124 = vmatpush1.msra.mxu0 0.0
    %7125 = vmatprep.subr.mxu0 0.0
    %7126 = vmatpush1.msra.mxu0 0.0
    %7127 = vmatprep.subr.mxu0 0.0
    %7128 = vmatpush1.msra.mxu0 0.0
    %7129 = vmatprep.mubr.f32.mxu0 0.0
    %7130 = vmatmul.mubr.f32.gmra.mrb[0].mxu0 %v7063
    %v7131 = vpop.f32.mrb[0].mxu0
    %v7132 = vadd.f32 0.0, %v7131
    %v7133 = vpop.f32.mrb[0].mxu0
    %7134 = vdwg.mxu0
    %7136 = vrot.lane.b32.xlu0 %v6980, 8
    %v7137 = vpop.permute.xlu0 %7136
    %7140 = vrot.lane.b32.xlu0 %v7056, 16
    %v7141 = vpop.permute.xlu0 %7140
    %7144 = vrot.lane.b32.xlu0 %v7132, 24
    %v7145 = vpop.permute.xlu0 %7144
    %v7147 = vsel %vm202, %v6904, %v7137
    %v7148 = vsel %vm877, %v7147, %v7141
    %v7149 = vsel %vm879, %v7148, %v7145
    %v7151 = vsel %vm124, %v7149, 0
    %7153 = vmatprep.subr.mxu0 0.0
    %7154 = vmatpush1.msra.mxu0 %v3043
    %7155 = vmatprep.subr.mxu0 0.0
    %7156 = vmatpush1.msra.mxu0 %v3045
    %7157 = vmatprep.subr.mxu0 0.0
    %7158 = vmatpush1.msra.mxu0 %v3047
    %7159 = vmatprep.subr.mxu0 0.0
    %7160 = vmatpush1.msra.mxu0 %v3049
    %7161 = vmatprep.subr.mxu0 0.0
    %7162 = vmatpush1.msra.mxu0 0.0
    %7163 = vmatprep.subr.mxu0 0.0
    %7164 = vmatpush1.msra.mxu0 0.0
    %7165 = vmatprep.subr.mxu0 0.0
    %7166 = vmatpush1.msra.mxu0 0.0
    %7167 = vmatprep.subr.mxu0 0.0
    %7168 = vmatpush1.msra.mxu0 0.0
    %7169 = vmatprep.subr.mxu0 0.0
    %7170 = vmatpush1.msra.mxu0 0.0
    %7171 = vmatprep.subr.mxu0 0.0
    %7172 = vmatpush1.msra.mxu0 0.0
    %7173 = vmatprep.subr.mxu0 0.0
    %7174 = vmatpush1.msra.mxu0 0.0
    %7175 = vmatprep.subr.mxu0 0.0
    %7176 = vmatpush1.msra.mxu0 0.0
    %7177 = vmatprep.subr.mxu0 0.0
    %7178 = vmatpush1.msra.mxu0 0.0
    %7179 = vmatprep.subr.mxu0 0.0
    %7180 = vmatpush1.msra.mxu0 0.0
    %7181 = vmatprep.subr.mxu0 0.0
    %7182 = vmatpush1.msra.mxu0 0.0
    %7183 = vmatprep.subr.mxu0 0.0
    %7184 = vmatpush1.msra.mxu0 0.0
    %7185 = vmatprep.subr.mxu0 0.0
    %7186 = vmatpush1.msra.mxu0 0.0
    %7187 = vmatprep.subr.mxu0 0.0
    %7188 = vmatpush1.msra.mxu0 0.0
    %7189 = vmatprep.subr.mxu0 0.0
    %7190 = vmatpush1.msra.mxu0 0.0
    %7191 = vmatprep.subr.mxu0 0.0
    %7192 = vmatpush1.msra.mxu0 0.0
    %7193 = vmatprep.subr.mxu0 0.0
    %7194 = vmatpush1.msra.mxu0 0.0
    %7195 = vmatprep.subr.mxu0 0.0
    %7196 = vmatpush1.msra.mxu0 0.0
    %7197 = vmatprep.subr.mxu0 0.0
    %7198 = vmatpush1.msra.mxu0 0.0
    %7199 = vmatprep.subr.mxu0 0.0
    %7200 = vmatpush1.msra.mxu0 0.0
    %7201 = vmatprep.subr.mxu0 0.0
    %7202 = vmatpush1.msra.mxu0 0.0
    %7203 = vmatprep.subr.mxu0 0.0
    %7204 = vmatpush1.msra.mxu0 0.0
    %7205 = vmatprep.subr.mxu0 0.0
    %7206 = vmatpush1.msra.mxu0 0.0
    %7207 = vmatprep.subr.mxu0 0.0
    %7208 = vmatpush1.msra.mxu0 0.0
    %7209 = vmatprep.subr.mxu0 0.0
    %7210 = vmatpush1.msra.mxu0 0.0
    %7211 = vmatprep.subr.mxu0 0.0
    %7212 = vmatpush1.msra.mxu0 0.0
    %7213 = vmatprep.subr.mxu0 0.0
    %7214 = vmatpush1.msra.mxu0 0.0
    %7215 = vmatprep.subr.mxu0 0.0
    %7216 = vmatpush1.msra.mxu0 0.0
    %7217 = vmatprep.mubr.f32.mxu0 0.0
    %7218 = vmatmul.mubr.f32.gmra.mrb[0].mxu0 %v7151
    %v7219 = vpop.f32.mrb[0].mxu0
    %v7220 = vadd.f32 %v3055, %v7219
    %v7221 = vpop.f32.mrb[0].mxu0
    %7222 = vdwg.mxu0
    %v7224 = vadd.f32 %v7220, %v6351
    %v7225 = vsel %vm3132, %v7224, 0.0
    %7226 = vadd.xlane.f32.xlu0 %v7225
    %v7227 = vpop.xlane.xlu0 %7226
    %v7228 = vmul.f32 %v7227, %v978
    %v7229 = vsub.f32 %v7224, %v7228
    %v7230 = vmul.f32 %v7229, %v7229
    %v7231 = vsel %vm3132, %v7230, 0.0
    %7232 = vadd.xlane.f32.xlu0 %v7231
    %v7233 = vpop.xlane.xlu0 %7232
    %v7234 = vmul.f32 %v7233, %v978
    %v7235 = vadd.f32 %v7234, 1e-06
    %v7236 = vrsqrt.pop %v7235
    %v7237 = vmul.f32 %v7229, %v7236
    %v7238 = vmul.f32 %v7237, %v3146
    %v7239 = vadd.f32 %v7238, %v3149
    %v7241 = vsel %vm124, %v7239, 0
    %7243 = vmatprep.subr.mxu0 0.0
    %7244 = vmatpush1.msra.mxu0 %v2181
    %7245 = vmatprep.subr.mxu0 0.0
    %7246 = vmatpush1.msra.mxu0 %v2184
    %7247 = vmatprep.subr.mxu0 0.0
    %7248 = vmatpush1.msra.mxu0 %v2187
    %7249 = vmatprep.subr.mxu0 0.0
    %7250 = vmatpush1.msra.mxu0 %v2190
    %7251 = vmatprep.subr.mxu0 0.0
    %7252 = vmatpush1.msra.mxu0 0.0
    %7253 = vmatprep.subr.mxu0 0.0
    %7254 = vmatpush1.msra.mxu0 0.0
    %7255 = vmatprep.subr.mxu0 0.0
    %7256 = vmatpush1.msra.mxu0 0.0
    %7257 = vmatprep.subr.mxu0 0.0
    %7258 = vmatpush1.msra.mxu0 0.0
    %7259 = vmatprep.subr.mxu0 0.0
    %7260 = vmatpush1.msra.mxu0 0.0
    %7261 = vmatprep.subr.mxu0 0.0
    %7262 = vmatpush1.msra.mxu0 0.0
    %7263 = vmatprep.subr.mxu0 0.0
    %7264 = vmatpush1.msra.mxu0 0.0
    %7265 = vmatprep.subr.mxu0 0.0
    %7266 = vmatpush1.msra.mxu0 0.0
    %7267 = vmatprep.subr.mxu0 0.0
    %7268 = vmatpush1.msra.mxu0 0.0
    %7269 = vmatprep.subr.mxu0 0.0
    %7270 = vmatpush1.msra.mxu0 0.0
    %7271 = vmatprep.subr.mxu0 0.0
    %7272 = vmatpush1.msra.mxu0 0.0
    %7273 = vmatprep.subr.mxu0 0.0
    %7274 = vmatpush1.msra.mxu0 0.0
    %7275 = vmatprep.subr.mxu0 0.0
    %7276 = vmatpush1.msra.mxu0 0.0
    %7277 = vmatprep.subr.mxu0 0.0
    %7278 = vmatpush1.msra.mxu0 0.0
    %7279 = vmatprep.subr.mxu0 0.0
    %7280 = vmatpush1.msra.mxu0 0.0
    %7281 = vmatprep.subr.mxu0 0.0
    %7282 = vmatpush1.msra.mxu0 0.0
    %7283 = vmatprep.subr.mxu0 0.0
    %7284 = vmatpush1.msra.mxu0 0.0
    %7285 = vmatprep.subr.mxu0 0.0
    %7286 = vmatpush1.msra.mxu0 0.0
    %7287 = vmatprep.subr.mxu0 0.0
    %7288 = vmatpush1.msra.mxu0 0.0
    %7289 = vmatprep.subr.mxu0 0.0
    %7290 = vmatpush1.msra.mxu0 0.0
    %7291 = vmatprep.subr.mxu0 0.0
    %7292 = vmatpush1.msra.mxu0 0.0
    %7293 = vmatprep.subr.mxu0 0.0
    %7294 = vmatpush1.msra.mxu0 0.0
    %7295 = vmatprep.subr.mxu0 0.0
    %7296 = vmatpush1.msra.mxu0 0.0
    %7297 = vmatprep.subr.mxu0 0.0
    %7298 = vmatpush1.msra.mxu0 0.0
    %7299 = vmatprep.subr.mxu0 0.0
    %7300 = vmatpush1.msra.mxu0 0.0
    %7301 = vmatprep.subr.mxu0 0.0
    %7302 = vmatpush1.msra.mxu0 0.0
    %7303 = vmatprep.subr.mxu0 0.0
    %7304 = vmatpush1.msra.mxu0 0.0
    %7305 = vmatprep.subr.mxu0 0.0
    %7306 = vmatpush1.msra.mxu0 0.0
    %7307 = vmatprep.mubr.f32.mxu0 0.0
    %7308 = vmatmul.mubr.f32.gmra.mrb[0].mxu0 %v7241
    %v7309 = vpop.f32.mrb[0].mxu0
    %v7310 = vadd.f32 %v3152, %v7309
    %v7311 = vpop.f32.mrb[0].mxu0
    %7312 = vdwg.mxu0
    %7313 = vmatprep.subr.mxu0 0.0
    %7314 = vmatpush1.msra.mxu0 %v3236
    %7315 = vmatprep.subr.mxu0 0.0
    %7316 = vmatpush1.msra.mxu0 %v3238
    %7317 = vmatprep.subr.mxu0 0.0
    %7318 = vmatpush1.msra.mxu0 %v3240
    %7319 = vmatprep.subr.mxu0 0.0
    %7320 = vmatpush1.msra.mxu0 %v3242
    %7321 = vmatprep.subr.mxu0 0.0
    %7322 = vmatpush1.msra.mxu0 0.0
    %7323 = vmatprep.subr.mxu0 0.0
    %7324 = vmatpush1.msra.mxu0 0.0
    %7325 = vmatprep.subr.mxu0 0.0
    %7326 = vmatpush1.msra.mxu0 0.0
    %7327 = vmatprep.subr.mxu0 0.0
    %7328 = vmatpush1.msra.mxu0 0.0
    %7329 = vmatprep.subr.mxu0 0.0
    %7330 = vmatpush1.msra.mxu0 0.0
    %7331 = vmatprep.subr.mxu0 0.0
    %7332 = vmatpush1.msra.mxu0 0.0
    %7333 = vmatprep.subr.mxu0 0.0
    %7334 = vmatpush1.msra.mxu0 0.0
    %7335 = vmatprep.subr.mxu0 0.0
    %7336 = vmatpush1.msra.mxu0 0.0
    %7337 = vmatprep.subr.mxu0 0.0
    %7338 = vmatpush1.msra.mxu0 0.0
    %7339 = vmatprep.subr.mxu0 0.0
    %7340 = vmatpush1.msra.mxu0 0.0
    %7341 = vmatprep.subr.mxu0 0.0
    %7342 = vmatpush1.msra.mxu0 0.0
    %7343 = vmatprep.subr.mxu0 0.0
    %7344 = vmatpush1.msra.mxu0 0.0
    %7345 = vmatprep.subr.mxu0 0.0
    %7346 = vmatpush1.msra.mxu0 0.0
    %7347 = vmatprep.subr.mxu0 0.0
    %7348 = vmatpush1.msra.mxu0 0.0
    %7349 = vmatprep.subr.mxu0 0.0
    %7350 = vmatpush1.msra.mxu0 0.0
    %7351 = vmatprep.subr.mxu0 0.0
    %7352 = vmatpush1.msra.mxu0 0.0
    %7353 = vmatprep.subr.mxu0 0.0
    %7354 = vmatpush1.msra.mxu0 0.0
    %7355 = vmatprep.subr.mxu0 0.0
    %7356 = vmatpush1.msra.mxu0 0.0
    %7357 = vmatprep.subr.mxu0 0.0
    %7358 = vmatpush1.msra.mxu0 0.0
    %7359 = vmatprep.subr.mxu0 0.0
    %7360 = vmatpush1.msra.mxu0 0.0
    %7361 = vmatprep.subr.mxu0 0.0
    %7362 = vmatpush1.msra.mxu0 0.0
    %7363 = vmatprep.subr.mxu0 0.0
    %7364 = vmatpush1.msra.mxu0 0.0
    %7365 = vmatprep.subr.mxu0 0.0
    %7366 = vmatpush1.msra.mxu0 0.0
    %7367 = vmatprep.subr.mxu0 0.0
    %7368 = vmatpush1.msra.mxu0 0.0
    %7369 = vmatprep.subr.mxu0 0.0
    %7370 = vmatpush1.msra.mxu0 0.0
    %7371 = vmatprep.subr.mxu0 0.0
    %7372 = vmatpush1.msra.mxu0 0.0
    %7373 = vmatprep.subr.mxu0 0.0
    %7374 = vmatpush1.msra.mxu0 0.0
    %7375 = vmatprep.subr.mxu0 0.0
    %7376 = vmatpush1.msra.mxu0 0.0
    %7377 = vmatprep.mubr.f32.mxu0 0.0
    %7378 = vmatmul.mubr.f32.gmra.mrb[0].mxu0 %v5299
    %v7379 = vpop.f32.mrb[0].mxu0
    %v7380 = vadd.f32 %v3249, %v7379
    %v7381 = vpop.f32.mrb[0].mxu0
    %7382 = vmatprep.mubr.f32.mxu0 0.0
    %7383 = vmatmul.mubr.f32.gmra.mrb[0].mxu0 %v5302
    %v7384 = vpop.f32.mrb[0].mxu0
    %v7385 = vadd.f32 %v3249, %v7384
    %v7386 = vpop.f32.mrb[0].mxu0
    %7387 = vdwg.mxu0
    %v7388 = vmul.f32 %v7310, 0.35355338
    %v7390 = vsel %vm202, %v7388, 0
    %v7393 = vsel %vm202, %v7380, 0
    %v7396 = vsel %vm202, %v7385, 0
    %7398 = vmatprep.subr.mxu0 0.0
    %7399 = vmatpush1.xpose.msra.mxu0 %v7393
    %7400 = vmatprep.subr.mxu0 0.0
    %7401 = vmatpush1.xpose.msra.mxu0 %v7396
    %7402 = vmatprep.subr.mxu0 0.0
    %7403 = vmatpush1.xpose.msra.mxu0 0.0
    %7404 = vmatprep.subr.mxu0 0.0
    %7405 = vmatpush1.xpose.msra.mxu0 0.0
    %7406 = vmatprep.subr.mxu0 0.0
    %7407 = vmatpush1.xpose.msra.mxu0 0.0
    %7408 = vmatprep.subr.mxu0 0.0
    %7409 = vmatpush1.xpose.msra.mxu0 0.0
    %7410 = vmatprep.subr.mxu0 0.0
    %7411 = vmatpush1.xpose.msra.mxu0 0.0
    %7412 = vmatprep.subr.mxu0 0.0
    %7413 = vmatpush1.xpose.msra.mxu0 0.0
    %7414 = vmatprep.subr.mxu0 0.0
    %7415 = vmatpush1.xpose.msra.mxu0 0.0
    %7416 = vmatprep.subr.mxu0 0.0
    %7417 = vmatpush1.xpose.msra.mxu0 0.0
    %7418 = vmatprep.subr.mxu0 0.0
    %7419 = vmatpush1.xpose.msra.mxu0 0.0
    %7420 = vmatprep.subr.mxu0 0.0
    %7421 = vmatpush1.xpose.msra.mxu0 0.0
    %7422 = vmatprep.subr.mxu0 0.0
    %7423 = vmatpush1.xpose.msra.mxu0 0.0
    %7424 = vmatprep.subr.mxu0 0.0
    %7425 = vmatpush1.xpose.msra.mxu0 0.0
    %7426 = vmatprep.subr.mxu0 0.0
    %7427 = vmatpush1.xpose.msra.mxu0 0.0
    %7428 = vmatprep.subr.mxu0 0.0
    %7429 = vmatpush1.xpose.msra.mxu0 0.0
    %7430 = vmatprep.subr.mxu0 0.0
    %7431 = vmatpush1.xpose.msra.mxu0 0.0
    %7432 = vmatprep.subr.mxu0 0.0
    %7433 = vmatpush1.xpose.msra.mxu0 0.0
    %7434 = vmatprep.subr.mxu0 0.0
    %7435 = vmatpush1.xpose.msra.mxu0 0.0
    %7436 = vmatprep.subr.mxu0 0.0
    %7437 = vmatpush1.xpose.msra.mxu0 0.0
    %7438 = vmatprep.subr.mxu0 0.0
    %7439 = vmatpush1.xpose.msra.mxu0 0.0
    %7440 = vmatprep.subr.mxu0 0.0
    %7441 = vmatpush1.xpose.msra.mxu0 0.0
    %7442 = vmatprep.subr.mxu0 0.0
    %7443 = vmatpush1.xpose.msra.mxu0 0.0
    %7444 = vmatprep.subr.mxu0 0.0
    %7445 = vmatpush1.xpose.msra.mxu0 0.0
    %7446 = vmatprep.subr.mxu0 0.0
    %7447 = vmatpush1.xpose.msra.mxu0 0.0
    %7448 = vmatprep.subr.mxu0 0.0
    %7449 = vmatpush1.xpose.msra.mxu0 0.0
    %7450 = vmatprep.subr.mxu0 0.0
    %7451 = vmatpush1.xpose.msra.mxu0 0.0
    %7452 = vmatprep.subr.mxu0 0.0
    %7453 = vmatpush1.xpose.msra.mxu0 0.0
    %7454 = vmatprep.subr.mxu0 0.0
    %7455 = vmatpush1.xpose.msra.mxu0 0.0
    %7456 = vmatprep.subr.mxu0 0.0
    %7457 = vmatpush1.xpose.msra.mxu0 0.0
    %7458 = vmatprep.subr.mxu0 0.0
    %7459 = vmatpush1.xpose.msra.mxu0 0.0
    %7460 = vmatprep.subr.mxu0 0.0
    %7461 = vmatpush1.xpose.msra.mxu0 0.0
    %7462 = vmatprep.mubr.f32.mxu0 0.0
    %7463 = vmatmul.mubr.f32.gmra.mrb[0].mxu0 %v7390
    %v7464 = vpop.f32.mrb[0].mxu0
    %v7465 = vadd.f32 0.0, %v7464
    %v7466 = vpop.f32.mrb[0].mxu0
    %7467 = vdwg.mxu0
    %7468 = vrot.lane.b32.xlu0 %v7388, 120
    %v7469 = vpop.permute.xlu0 %7468
    %7470 = vrot.lane.b32.xlu0 %v7380, 120
    %v7471 = vpop.permute.xlu0 %7470
    %7472 = vrot.lane.b32.xlu0 %v7385, 120
    %v7473 = vpop.permute.xlu0 %7472
    %v7474 = vsel %vm202, %v7469, 0
    %v7476 = vsel %vm202, %v7471, 0
    %v7478 = vsel %vm202, %v7473, 0
    %7480 = vmatprep.subr.mxu0 0.0
    %7481 = vmatpush1.xpose.msra.mxu0 %v7476
    %7482 = vmatprep.subr.mxu0 0.0
    %7483 = vmatpush1.xpose.msra.mxu0 %v7478
    %7484 = vmatprep.subr.mxu0 0.0
    %7485 = vmatpush1.xpose.msra.mxu0 0.0
    %7486 = vmatprep.subr.mxu0 0.0
    %7487 = vmatpush1.xpose.msra.mxu0 0.0
    %7488 = vmatprep.subr.mxu0 0.0
    %7489 = vmatpush1.xpose.msra.mxu0 0.0
    %7490 = vmatprep.subr.mxu0 0.0
    %7491 = vmatpush1.xpose.msra.mxu0 0.0
    %7492 = vmatprep.subr.mxu0 0.0
    %7493 = vmatpush1.xpose.msra.mxu0 0.0
    %7494 = vmatprep.subr.mxu0 0.0
    %7495 = vmatpush1.xpose.msra.mxu0 0.0
    %7496 = vmatprep.subr.mxu0 0.0
    %7497 = vmatpush1.xpose.msra.mxu0 0.0
    %7498 = vmatprep.subr.mxu0 0.0
    %7499 = vmatpush1.xpose.msra.mxu0 0.0
    %7500 = vmatprep.subr.mxu0 0.0
    %7501 = vmatpush1.xpose.msra.mxu0 0.0
    %7502 = vmatprep.subr.mxu0 0.0
    %7503 = vmatpush1.xpose.msra.mxu0 0.0
    %7504 = vmatprep.subr.mxu0 0.0
    %7505 = vmatpush1.xpose.msra.mxu0 0.0
    %7506 = vmatprep.subr.mxu0 0.0
    %7507 = vmatpush1.xpose.msra.mxu0 0.0
    %7508 = vmatprep.subr.mxu0 0.0
    %7509 = vmatpush1.xpose.msra.mxu0 0.0
    %7510 = vmatprep.subr.mxu0 0.0
    %7511 = vmatpush1.xpose.msra.mxu0 0.0
    %7512 = vmatprep.subr.mxu0 0.0
    %7513 = vmatpush1.xpose.msra.mxu0 0.0
    %7514 = vmatprep.subr.mxu0 0.0
    %7515 = vmatpush1.xpose.msra.mxu0 0.0
    %7516 = vmatprep.subr.mxu0 0.0
    %7517 = vmatpush1.xpose.msra.mxu0 0.0
    %7518 = vmatprep.subr.mxu0 0.0
    %7519 = vmatpush1.xpose.msra.mxu0 0.0
    %7520 = vmatprep.subr.mxu0 0.0
    %7521 = vmatpush1.xpose.msra.mxu0 0.0
    %7522 = vmatprep.subr.mxu0 0.0
    %7523 = vmatpush1.xpose.msra.mxu0 0.0
    %7524 = vmatprep.subr.mxu0 0.0
    %7525 = vmatpush1.xpose.msra.mxu0 0.0
    %7526 = vmatprep.subr.mxu0 0.0
    %7527 = vmatpush1.xpose.msra.mxu0 0.0
    %7528 = vmatprep.subr.mxu0 0.0
    %7529 = vmatpush1.xpose.msra.mxu0 0.0
    %7530 = vmatprep.subr.mxu0 0.0
    %7531 = vmatpush1.xpose.msra.mxu0 0.0
    %7532 = vmatprep.subr.mxu0 0.0
    %7533 = vmatpush1.xpose.msra.mxu0 0.0
    %7534 = vmatprep.subr.mxu0 0.0
    %7535 = vmatpush1.xpose.msra.mxu0 0.0
    %7536 = vmatprep.subr.mxu0 0.0
    %7537 = vmatpush1.xpose.msra.mxu0 0.0
    %7538 = vmatprep.subr.mxu0 0.0
    %7539 = vmatpush1.xpose.msra.mxu0 0.0
    %7540 = vmatprep.subr.mxu0 0.0
    %7541 = vmatpush1.xpose.msra.mxu0 0.0
    %7542 = vmatprep.subr.mxu0 0.0
    %7543 = vmatpush1.xpose.msra.mxu0 0.0
    %7544 = vmatprep.mubr.f32.mxu0 0.0
    %7545 = vmatmul.mubr.f32.gmra.mrb[0].mxu0 %v7474
    %v7546 = vpop.f32.mrb[0].mxu0
    %v7547 = vadd.f32 0.0, %v7546
    %v7548 = vpop.f32.mrb[0].mxu0
    %7549 = vdwg.mxu0
    %7550 = vrot.lane.b32.xlu0 %v7388, 112
    %v7551 = vpop.permute.xlu0 %7550
    %7552 = vrot.lane.b32.xlu0 %v7380, 112
    %v7553 = vpop.permute.xlu0 %7552
    %7554 = vrot.lane.b32.xlu0 %v7385, 112
    %v7555 = vpop.permute.xlu0 %7554
    %v7556 = vsel %vm202, %v7551, 0
    %v7558 = vsel %vm202, %v7553, 0
    %v7560 = vsel %vm202, %v7555, 0
    %7562 = vmatprep.subr.mxu0 0.0
    %7563 = vmatpush1.xpose.msra.mxu0 %v7558
    %7564 = vmatprep.subr.mxu0 0.0
    %7565 = vmatpush1.xpose.msra.mxu0 %v7560
    %7566 = vmatprep.subr.mxu0 0.0
    %7567 = vmatpush1.xpose.msra.mxu0 0.0
    %7568 = vmatprep.subr.mxu0 0.0
    %7569 = vmatpush1.xpose.msra.mxu0 0.0
    %7570 = vmatprep.subr.mxu0 0.0
    %7571 = vmatpush1.xpose.msra.mxu0 0.0
    %7572 = vmatprep.subr.mxu0 0.0
    %7573 = vmatpush1.xpose.msra.mxu0 0.0
    %7574 = vmatprep.subr.mxu0 0.0
    %7575 = vmatpush1.xpose.msra.mxu0 0.0
    %7576 = vmatprep.subr.mxu0 0.0
    %7577 = vmatpush1.xpose.msra.mxu0 0.0
    %7578 = vmatprep.subr.mxu0 0.0
    %7579 = vmatpush1.xpose.msra.mxu0 0.0
    %7580 = vmatprep.subr.mxu0 0.0
    %7581 = vmatpush1.xpose.msra.mxu0 0.0
    %7582 = vmatprep.subr.mxu0 0.0
    %7583 = vmatpush1.xpose.msra.mxu0 0.0
    %7584 = vmatprep.subr.mxu0 0.0
    %7585 = vmatpush1.xpose.msra.mxu0 0.0
    %7586 = vmatprep.subr.mxu0 0.0
    %7587 = vmatpush1.xpose.msra.mxu0 0.0
    %7588 = vmatprep.subr.mxu0 0.0
    %7589 = vmatpush1.xpose.msra.mxu0 0.0
    %7590 = vmatprep.subr.mxu0 0.0
    %7591 = vmatpush1.xpose.msra.mxu0 0.0
    %7592 = vmatprep.subr.mxu0 0.0
    %7593 = vmatpush1.xpose.msra.mxu0 0.0
    %7594 = vmatprep.subr.mxu0 0.0
    %7595 = vmatpush1.xpose.msra.mxu0 0.0
    %7596 = vmatprep.subr.mxu0 0.0
    %7597 = vmatpush1.xpose.msra.mxu0 0.0
    %7598 = vmatprep.subr.mxu0 0.0
    %7599 = vmatpush1.xpose.msra.mxu0 0.0
    %7600 = vmatprep.subr.mxu0 0.0
    %7601 = vmatpush1.xpose.msra.mxu0 0.0
    %7602 = vmatprep.subr.mxu0 0.0
    %7603 = vmatpush1.xpose.msra.mxu0 0.0
    %7604 = vmatprep.subr.mxu0 0.0
    %7605 = vmatpush1.xpose.msra.mxu0 0.0
    %7606 = vmatprep.subr.mxu0 0.0
    %7607 = vmatpush1.xpose.msra.mxu0 0.0
    %7608 = vmatprep.subr.mxu0 0.0
    %7609 = vmatpush1.xpose.msra.mxu0 0.0
    %7610 = vmatprep.subr.mxu0 0.0
    %7611 = vmatpush1.xpose.msra.mxu0 0.0
    %7612 = vmatprep.subr.mxu0 0.0
    %7613 = vmatpush1.xpose.msra.mxu0 0.0
    %7614 = vmatprep.subr.mxu0 0.0
    %7615 = vmatpush1.xpose.msra.mxu0 0.0
    %7616 = vmatprep.subr.mxu0 0.0
    %7617 = vmatpush1.xpose.msra.mxu0 0.0
    %7618 = vmatprep.subr.mxu0 0.0
    %7619 = vmatpush1.xpose.msra.mxu0 0.0
    %7620 = vmatprep.subr.mxu0 0.0
    %7621 = vmatpush1.xpose.msra.mxu0 0.0
    %7622 = vmatprep.subr.mxu0 0.0
    %7623 = vmatpush1.xpose.msra.mxu0 0.0
    %7624 = vmatprep.subr.mxu0 0.0
    %7625 = vmatpush1.xpose.msra.mxu0 0.0
    %7626 = vmatprep.mubr.f32.mxu0 0.0
    %7627 = vmatmul.mubr.f32.gmra.mrb[0].mxu0 %v7556
    %v7628 = vpop.f32.mrb[0].mxu0
    %v7629 = vadd.f32 0.0, %v7628
    %v7630 = vpop.f32.mrb[0].mxu0
    %7631 = vdwg.mxu0
    %7632 = vrot.lane.b32.xlu0 %v7388, 104
    %v7633 = vpop.permute.xlu0 %7632
    %7634 = vrot.lane.b32.xlu0 %v7380, 104
    %v7635 = vpop.permute.xlu0 %7634
    %7636 = vrot.lane.b32.xlu0 %v7385, 104
    %v7637 = vpop.permute.xlu0 %7636
    %v7638 = vsel %vm202, %v7633, 0
    %v7640 = vsel %vm202, %v7635, 0
    %v7642 = vsel %vm202, %v7637, 0
    %7644 = vmatprep.subr.mxu0 0.0
    %7645 = vmatpush1.xpose.msra.mxu0 %v7640
    %7646 = vmatprep.subr.mxu0 0.0
    %7647 = vmatpush1.xpose.msra.mxu0 %v7642
    %7648 = vmatprep.subr.mxu0 0.0
    %7649 = vmatpush1.xpose.msra.mxu0 0.0
    %7650 = vmatprep.subr.mxu0 0.0
    %7651 = vmatpush1.xpose.msra.mxu0 0.0
    %7652 = vmatprep.subr.mxu0 0.0
    %7653 = vmatpush1.xpose.msra.mxu0 0.0
    %7654 = vmatprep.subr.mxu0 0.0
    %7655 = vmatpush1.xpose.msra.mxu0 0.0
    %7656 = vmatprep.subr.mxu0 0.0
    %7657 = vmatpush1.xpose.msra.mxu0 0.0
    %7658 = vmatprep.subr.mxu0 0.0
    %7659 = vmatpush1.xpose.msra.mxu0 0.0
    %7660 = vmatprep.subr.mxu0 0.0
    %7661 = vmatpush1.xpose.msra.mxu0 0.0
    %7662 = vmatprep.subr.mxu0 0.0
    %7663 = vmatpush1.xpose.msra.mxu0 0.0
    %7664 = vmatprep.subr.mxu0 0.0
    %7665 = vmatpush1.xpose.msra.mxu0 0.0
    %7666 = vmatprep.subr.mxu0 0.0
    %7667 = vmatpush1.xpose.msra.mxu0 0.0
    %7668 = vmatprep.subr.mxu0 0.0
    %7669 = vmatpush1.xpose.msra.mxu0 0.0
    %7670 = vmatprep.subr.mxu0 0.0
    %7671 = vmatpush1.xpose.msra.mxu0 0.0
    %7672 = vmatprep.subr.mxu0 0.0
    %7673 = vmatpush1.xpose.msra.mxu0 0.0
    %7674 = vmatprep.subr.mxu0 0.0
    %7675 = vmatpush1.xpose.msra.mxu0 0.0
    %7676 = vmatprep.subr.mxu0 0.0
    %7677 = vmatpush1.xpose.msra.mxu0 0.0
    %7678 = vmatprep.subr.mxu0 0.0
    %7679 = vmatpush1.xpose.msra.mxu0 0.0
    %7680 = vmatprep.subr.mxu0 0.0
    %7681 = vmatpush1.xpose.msra.mxu0 0.0
    %7682 = vmatprep.subr.mxu0 0.0
    %7683 = vmatpush1.xpose.msra.mxu0 0.0
    %7684 = vmatprep.subr.mxu0 0.0
    %7685 = vmatpush1.xpose.msra.mxu0 0.0
    %7686 = vmatprep.subr.mxu0 0.0
    %7687 = vmatpush1.xpose.msra.mxu0 0.0
    %7688 = vmatprep.subr.mxu0 0.0
    %7689 = vmatpush1.xpose.msra.mxu0 0.0
    %7690 = vmatprep.subr.mxu0 0.0
    %7691 = vmatpush1.xpose.msra.mxu0 0.0
    %7692 = vmatprep.subr.mxu0 0.0
    %7693 = vmatpush1.xpose.msra.mxu0 0.0
    %7694 = vmatprep.subr.mxu0 0.0
    %7695 = vmatpush1.xpose.msra.mxu0 0.0
    %7696 = vmatprep.subr.mxu0 0.0
    %7697 = vmatpush1.xpose.msra.mxu0 0.0
    %7698 = vmatprep.subr.mxu0 0.0
    %7699 = vmatpush1.xpose.msra.mxu0 0.0
    %7700 = vmatprep.subr.mxu0 0.0
    %7701 = vmatpush1.xpose.msra.mxu0 0.0
    %7702 = vmatprep.subr.mxu0 0.0
    %7703 = vmatpush1.xpose.msra.mxu0 0.0
    %7704 = vmatprep.subr.mxu0 0.0
    %7705 = vmatpush1.xpose.msra.mxu0 0.0
    %7706 = vmatprep.subr.mxu0 0.0
    %7707 = vmatpush1.xpose.msra.mxu0 0.0
    %7708 = vmatprep.mubr.f32.mxu0 0.0
    %7709 = vmatmul.mubr.f32.gmra.mrb[0].mxu0 %v7638
    %v7710 = vpop.f32.mrb[0].mxu0
    %v7711 = vadd.f32 0.0, %v7710
    %v7712 = vpop.f32.mrb[0].mxu0
    %7713 = vdwg.mxu0
    %v7715 = vrot.slane %v7547, 7
    %v7718 = vrot.slane %v7629, 6
    %v7721 = vrot.slane %v7711, 5
    %v7723 = vsel %vm2211, %v7465, %v7715
    %v7724 = vsel %vm2213, %v7723, %v7718
    %v7725 = vsel %vm2215, %v7724, %v7721
    %v7726 = vadd.f32 %v7725, %v5708
    %v7727 = vsel %vm3665, %v7726, -inf
    %7728 = vmax.xlane.f32.xlu0 %v7727
    %v7729 = vpop.xlane.xlu0 %7728
    %v7730 = vsub.f32 %v7726, %v7729
    %v7731 = vmul.f32 %v7730, 1.442695
    %v7732 = vpow.pop %v7731
    %v7733 = vsel %vm3665, %v7732, 0.0
    %7734 = vadd.xlane.f32.xlu0 %v7733
    %v7735 = vpop.xlane.xlu0 %7734
    %v7736 = vrcp.pop %v7735
    %v7737 = vmul.f32 %v7732, %v7736
    %7738 = vrot.lane.b32.xlu0 %v7380, 96
    %v7739 = vpop.permute.xlu0 %7738
    %7740 = vrot.lane.b32.xlu0 %v7385, 96
    %v7741 = vpop.permute.xlu0 %7740
    %v7745 = vsel %vm877, %v7737, 0
    %7747 = vmatprep.subr.mxu0 0.0
    %7748 = vmatpush1.msra.mxu0 %v7739
    %7749 = vmatprep.subr.mxu0 0.0
    %7750 = vmatpush1.msra.mxu0 %v7741
    %7751 = vmatprep.subr.mxu0 0.0
    %7752 = vmatpush1.msra.mxu0 0.0
    %7753 = vmatprep.subr.mxu0 0.0
    %7754 = vmatpush1.msra.mxu0 0.0
    %7755 = vmatprep.subr.mxu0 0.0
    %7756 = vmatpush1.msra.mxu0 0.0
    %7757 = vmatprep.subr.mxu0 0.0
    %7758 = vmatpush1.msra.mxu0 0.0
    %7759 = vmatprep.subr.mxu0 0.0
    %7760 = vmatpush1.msra.mxu0 0.0
    %7761 = vmatprep.subr.mxu0 0.0
    %7762 = vmatpush1.msra.mxu0 0.0
    %7763 = vmatprep.subr.mxu0 0.0
    %7764 = vmatpush1.msra.mxu0 0.0
    %7765 = vmatprep.subr.mxu0 0.0
    %7766 = vmatpush1.msra.mxu0 0.0
    %7767 = vmatprep.subr.mxu0 0.0
    %7768 = vmatpush1.msra.mxu0 0.0
    %7769 = vmatprep.subr.mxu0 0.0
    %7770 = vmatpush1.msra.mxu0 0.0
    %7771 = vmatprep.subr.mxu0 0.0
    %7772 = vmatpush1.msra.mxu0 0.0
    %7773 = vmatprep.subr.mxu0 0.0
    %7774 = vmatpush1.msra.mxu0 0.0
    %7775 = vmatprep.subr.mxu0 0.0
    %7776 = vmatpush1.msra.mxu0 0.0
    %7777 = vmatprep.subr.mxu0 0.0
    %7778 = vmatpush1.msra.mxu0 0.0
    %7779 = vmatprep.subr.mxu0 0.0
    %7780 = vmatpush1.msra.mxu0 0.0
    %7781 = vmatprep.subr.mxu0 0.0
    %7782 = vmatpush1.msra.mxu0 0.0
    %7783 = vmatprep.subr.mxu0 0.0
    %7784 = vmatpush1.msra.mxu0 0.0
    %7785 = vmatprep.subr.mxu0 0.0
    %7786 = vmatpush1.msra.mxu0 0.0
    %7787 = vmatprep.subr.mxu0 0.0
    %7788 = vmatpush1.msra.mxu0 0.0
    %7789 = vmatprep.subr.mxu0 0.0
    %7790 = vmatpush1.msra.mxu0 0.0
    %7791 = vmatprep.subr.mxu0 0.0
    %7792 = vmatpush1.msra.mxu0 0.0
    %7793 = vmatprep.subr.mxu0 0.0
    %7794 = vmatpush1.msra.mxu0 0.0
    %7795 = vmatprep.subr.mxu0 0.0
    %7796 = vmatpush1.msra.mxu0 0.0
    %7797 = vmatprep.subr.mxu0 0.0
    %7798 = vmatpush1.msra.mxu0 0.0
    %7799 = vmatprep.subr.mxu0 0.0
    %7800 = vmatpush1.msra.mxu0 0.0
    %7801 = vmatprep.subr.mxu0 0.0
    %7802 = vmatpush1.msra.mxu0 0.0
    %7803 = vmatprep.subr.mxu0 0.0
    %7804 = vmatpush1.msra.mxu0 0.0
    %7805 = vmatprep.subr.mxu0 0.0
    %7806 = vmatpush1.msra.mxu0 0.0
    %7807 = vmatprep.subr.mxu0 0.0
    %7808 = vmatpush1.msra.mxu0 0.0
    %7809 = vmatprep.subr.mxu0 0.0
    %7810 = vmatpush1.msra.mxu0 0.0
    %7811 = vmatprep.mubr.f32.mxu0 0.0
    %7812 = vmatmul.mubr.f32.gmra.mrb[0].mxu0 %v7745
    %v7813 = vpop.f32.mrb[0].mxu0
    %v7814 = vadd.f32 0.0, %v7813
    %v7815 = vpop.f32.mrb[0].mxu0
    %7816 = vdwg.mxu0
    %v7817 = vrot.slane %v7737, 1
    %7818 = vrot.lane.b32.xlu0 %v7380, 88
    %v7819 = vpop.permute.xlu0 %7818
    %7820 = vrot.lane.b32.xlu0 %v7385, 88
    %v7821 = vpop.permute.xlu0 %7820
    %v7824 = vsel %vm877, %v7817, 0
    %7826 = vmatprep.subr.mxu0 0.0
    %7827 = vmatpush1.msra.mxu0 %v7819
    %7828 = vmatprep.subr.mxu0 0.0
    %7829 = vmatpush1.msra.mxu0 %v7821
    %7830 = vmatprep.subr.mxu0 0.0
    %7831 = vmatpush1.msra.mxu0 0.0
    %7832 = vmatprep.subr.mxu0 0.0
    %7833 = vmatpush1.msra.mxu0 0.0
    %7834 = vmatprep.subr.mxu0 0.0
    %7835 = vmatpush1.msra.mxu0 0.0
    %7836 = vmatprep.subr.mxu0 0.0
    %7837 = vmatpush1.msra.mxu0 0.0
    %7838 = vmatprep.subr.mxu0 0.0
    %7839 = vmatpush1.msra.mxu0 0.0
    %7840 = vmatprep.subr.mxu0 0.0
    %7841 = vmatpush1.msra.mxu0 0.0
    %7842 = vmatprep.subr.mxu0 0.0
    %7843 = vmatpush1.msra.mxu0 0.0
    %7844 = vmatprep.subr.mxu0 0.0
    %7845 = vmatpush1.msra.mxu0 0.0
    %7846 = vmatprep.subr.mxu0 0.0
    %7847 = vmatpush1.msra.mxu0 0.0
    %7848 = vmatprep.subr.mxu0 0.0
    %7849 = vmatpush1.msra.mxu0 0.0
    %7850 = vmatprep.subr.mxu0 0.0
    %7851 = vmatpush1.msra.mxu0 0.0
    %7852 = vmatprep.subr.mxu0 0.0
    %7853 = vmatpush1.msra.mxu0 0.0
    %7854 = vmatprep.subr.mxu0 0.0
    %7855 = vmatpush1.msra.mxu0 0.0
    %7856 = vmatprep.subr.mxu0 0.0
    %7857 = vmatpush1.msra.mxu0 0.0
    %7858 = vmatprep.subr.mxu0 0.0
    %7859 = vmatpush1.msra.mxu0 0.0
    %7860 = vmatprep.subr.mxu0 0.0
    %7861 = vmatpush1.msra.mxu0 0.0
    %7862 = vmatprep.subr.mxu0 0.0
    %7863 = vmatpush1.msra.mxu0 0.0
    %7864 = vmatprep.subr.mxu0 0.0
    %7865 = vmatpush1.msra.mxu0 0.0
    %7866 = vmatprep.subr.mxu0 0.0
    %7867 = vmatpush1.msra.mxu0 0.0
    %7868 = vmatprep.subr.mxu0 0.0
    %7869 = vmatpush1.msra.mxu0 0.0
    %7870 = vmatprep.subr.mxu0 0.0
    %7871 = vmatpush1.msra.mxu0 0.0
    %7872 = vmatprep.subr.mxu0 0.0
    %7873 = vmatpush1.msra.mxu0 0.0
    %7874 = vmatprep.subr.mxu0 0.0
    %7875 = vmatpush1.msra.mxu0 0.0
    %7876 = vmatprep.subr.mxu0 0.0
    %7877 = vmatpush1.msra.mxu0 0.0
    %7878 = vmatprep.subr.mxu0 0.0
    %7879 = vmatpush1.msra.mxu0 0.0
    %7880 = vmatprep.subr.mxu0 0.0
    %7881 = vmatpush1.msra.mxu0 0.0
    %7882 = vmatprep.subr.mxu0 0.0
    %7883 = vmatpush1.msra.mxu0 0.0
    %7884 = vmatprep.subr.mxu0 0.0
    %7885 = vmatpush1.msra.mxu0 0.0
    %7886 = vmatprep.subr.mxu0 0.0
    %7887 = vmatpush1.msra.mxu0 0.0
    %7888 = vmatprep.subr.mxu0 0.0
    %7889 = vmatpush1.msra.mxu0 0.0
    %7890 = vmatprep.mubr.f32.mxu0 0.0
    %7891 = vmatmul.mubr.f32.gmra.mrb[0].mxu0 %v7824
    %v7892 = vpop.f32.mrb[0].mxu0
    %v7893 = vadd.f32 0.0, %v7892
    %v7894 = vpop.f32.mrb[0].mxu0
    %7895 = vdwg.mxu0
    %v7896 = vrot.slane %v7737, 2
    %7897 = vrot.lane.b32.xlu0 %v7380, 80
    %v7898 = vpop.permute.xlu0 %7897
    %7899 = vrot.lane.b32.xlu0 %v7385, 80
    %v7900 = vpop.permute.xlu0 %7899
    %v7903 = vsel %vm877, %v7896, 0
    %7905 = vmatprep.subr.mxu0 0.0
    %7906 = vmatpush1.msra.mxu0 %v7898
    %7907 = vmatprep.subr.mxu0 0.0
    %7908 = vmatpush1.msra.mxu0 %v7900
    %7909 = vmatprep.subr.mxu0 0.0
    %7910 = vmatpush1.msra.mxu0 0.0
    %7911 = vmatprep.subr.mxu0 0.0
    %7912 = vmatpush1.msra.mxu0 0.0
    %7913 = vmatprep.subr.mxu0 0.0
    %7914 = vmatpush1.msra.mxu0 0.0
    %7915 = vmatprep.subr.mxu0 0.0
    %7916 = vmatpush1.msra.mxu0 0.0
    %7917 = vmatprep.subr.mxu0 0.0
    %7918 = vmatpush1.msra.mxu0 0.0
    %7919 = vmatprep.subr.mxu0 0.0
    %7920 = vmatpush1.msra.mxu0 0.0
    %7921 = vmatprep.subr.mxu0 0.0
    %7922 = vmatpush1.msra.mxu0 0.0
    %7923 = vmatprep.subr.mxu0 0.0
    %7924 = vmatpush1.msra.mxu0 0.0
    %7925 = vmatprep.subr.mxu0 0.0
    %7926 = vmatpush1.msra.mxu0 0.0
    %7927 = vmatprep.subr.mxu0 0.0
    %7928 = vmatpush1.msra.mxu0 0.0
    %7929 = vmatprep.subr.mxu0 0.0
    %7930 = vmatpush1.msra.mxu0 0.0
    %7931 = vmatprep.subr.mxu0 0.0
    %7932 = vmatpush1.msra.mxu0 0.0
    %7933 = vmatprep.subr.mxu0 0.0
    %7934 = vmatpush1.msra.mxu0 0.0
    %7935 = vmatprep.subr.mxu0 0.0
    %7936 = vmatpush1.msra.mxu0 0.0
    %7937 = vmatprep.subr.mxu0 0.0
    %7938 = vmatpush1.msra.mxu0 0.0
    %7939 = vmatprep.subr.mxu0 0.0
    %7940 = vmatpush1.msra.mxu0 0.0
    %7941 = vmatprep.subr.mxu0 0.0
    %7942 = vmatpush1.msra.mxu0 0.0
    %7943 = vmatprep.subr.mxu0 0.0
    %7944 = vmatpush1.msra.mxu0 0.0
    %7945 = vmatprep.subr.mxu0 0.0
    %7946 = vmatpush1.msra.mxu0 0.0
    %7947 = vmatprep.subr.mxu0 0.0
    %7948 = vmatpush1.msra.mxu0 0.0
    %7949 = vmatprep.subr.mxu0 0.0
    %7950 = vmatpush1.msra.mxu0 0.0
    %7951 = vmatprep.subr.mxu0 0.0
    %7952 = vmatpush1.msra.mxu0 0.0
    %7953 = vmatprep.subr.mxu0 0.0
    %7954 = vmatpush1.msra.mxu0 0.0
    %7955 = vmatprep.subr.mxu0 0.0
    %7956 = vmatpush1.msra.mxu0 0.0
    %7957 = vmatprep.subr.mxu0 0.0
    %7958 = vmatpush1.msra.mxu0 0.0
    %7959 = vmatprep.subr.mxu0 0.0
    %7960 = vmatpush1.msra.mxu0 0.0
    %7961 = vmatprep.subr.mxu0 0.0
    %7962 = vmatpush1.msra.mxu0 0.0
    %7963 = vmatprep.subr.mxu0 0.0
    %7964 = vmatpush1.msra.mxu0 0.0
    %7965 = vmatprep.subr.mxu0 0.0
    %7966 = vmatpush1.msra.mxu0 0.0
    %7967 = vmatprep.subr.mxu0 0.0
    %7968 = vmatpush1.msra.mxu0 0.0
    %7969 = vmatprep.mubr.f32.mxu0 0.0
    %7970 = vmatmul.mubr.f32.gmra.mrb[0].mxu0 %v7903
    %v7971 = vpop.f32.mrb[0].mxu0
    %v7972 = vadd.f32 0.0, %v7971
    %v7973 = vpop.f32.mrb[0].mxu0
    %7974 = vdwg.mxu0
    %v7975 = vrot.slane %v7737, 3
    %7976 = vrot.lane.b32.xlu0 %v7380, 72
    %v7977 = vpop.permute.xlu0 %7976
    %7978 = vrot.lane.b32.xlu0 %v7385, 72
    %v7979 = vpop.permute.xlu0 %7978
    %v7982 = vsel %vm877, %v7975, 0
    %7984 = vmatprep.subr.mxu0 0.0
    %7985 = vmatpush1.msra.mxu0 %v7977
    %7986 = vmatprep.subr.mxu0 0.0
    %7987 = vmatpush1.msra.mxu0 %v7979
    %7988 = vmatprep.subr.mxu0 0.0
    %7989 = vmatpush1.msra.mxu0 0.0
    %7990 = vmatprep.subr.mxu0 0.0
    %7991 = vmatpush1.msra.mxu0 0.0
    %7992 = vmatprep.subr.mxu0 0.0
    %7993 = vmatpush1.msra.mxu0 0.0
    %7994 = vmatprep.subr.mxu0 0.0
    %7995 = vmatpush1.msra.mxu0 0.0
    %7996 = vmatprep.subr.mxu0 0.0
    %7997 = vmatpush1.msra.mxu0 0.0
    %7998 = vmatprep.subr.mxu0 0.0
    %7999 = vmatpush1.msra.mxu0 0.0
    %8000 = vmatprep.subr.mxu0 0.0
    %8001 = vmatpush1.msra.mxu0 0.0
    %8002 = vmatprep.subr.mxu0 0.0
    %8003 = vmatpush1.msra.mxu0 0.0
    %8004 = vmatprep.subr.mxu0 0.0
    %8005 = vmatpush1.msra.mxu0 0.0
    %8006 = vmatprep.subr.mxu0 0.0
    %8007 = vmatpush1.msra.mxu0 0.0
    %8008 = vmatprep.subr.mxu0 0.0
    %8009 = vmatpush1.msra.mxu0 0.0
    %8010 = vmatprep.subr.mxu0 0.0
    %8011 = vmatpush1.msra.mxu0 0.0
    %8012 = vmatprep.subr.mxu0 0.0
    %8013 = vmatpush1.msra.mxu0 0.0
    %8014 = vmatprep.subr.mxu0 0.0
    %8015 = vmatpush1.msra.mxu0 0.0
    %8016 = vmatprep.subr.mxu0 0.0
    %8017 = vmatpush1.msra.mxu0 0.0
    %8018 = vmatprep.subr.mxu0 0.0
    %8019 = vmatpush1.msra.mxu0 0.0
    %8020 = vmatprep.subr.mxu0 0.0
    %8021 = vmatpush1.msra.mxu0 0.0
    %8022 = vmatprep.subr.mxu0 0.0
    %8023 = vmatpush1.msra.mxu0 0.0
    %8024 = vmatprep.subr.mxu0 0.0
    %8025 = vmatpush1.msra.mxu0 0.0
    %8026 = vmatprep.subr.mxu0 0.0
    %8027 = vmatpush1.msra.mxu0 0.0
    %8028 = vmatprep.subr.mxu0 0.0
    %8029 = vmatpush1.msra.mxu0 0.0
    %8030 = vmatprep.subr.mxu0 0.0
    %8031 = vmatpush1.msra.mxu0 0.0
    %8032 = vmatprep.subr.mxu0 0.0
    %8033 = vmatpush1.msra.mxu0 0.0
    %8034 = vmatprep.subr.mxu0 0.0
    %8035 = vmatpush1.msra.mxu0 0.0
    %8036 = vmatprep.subr.mxu0 0.0
    %8037 = vmatpush1.msra.mxu0 0.0
    %8038 = vmatprep.subr.mxu0 0.0
    %8039 = vmatpush1.msra.mxu0 0.0
    %8040 = vmatprep.subr.mxu0 0.0
    %8041 = vmatpush1.msra.mxu0 0.0
    %8042 = vmatprep.subr.mxu0 0.0
    %8043 = vmatpush1.msra.mxu0 0.0
    %8044 = vmatprep.subr.mxu0 0.0
    %8045 = vmatpush1.msra.mxu0 0.0
    %8046 = vmatprep.subr.mxu0 0.0
    %8047 = vmatpush1.msra.mxu0 0.0
    %8048 = vmatprep.mubr.f32.mxu0 0.0
    %8049 = vmatmul.mubr.f32.gmra.mrb[0].mxu0 %v7982
    %v8050 = vpop.f32.mrb[0].mxu0
    %v8051 = vadd.f32 0.0, %v8050
    %v8052 = vpop.f32.mrb[0].mxu0
    %8053 = vdwg.mxu0
    %8055 = vrot.lane.b32.xlu0 %v7893, 8
    %v8056 = vpop.permute.xlu0 %8055
    %8059 = vrot.lane.b32.xlu0 %v7972, 16
    %v8060 = vpop.permute.xlu0 %8059
    %8063 = vrot.lane.b32.xlu0 %v8051, 24
    %v8064 = vpop.permute.xlu0 %8063
    %v8066 = vsel %vm202, %v7814, %v8056
    %v8067 = vsel %vm877, %v8066, %v8060
    %v8068 = vsel %vm879, %v8067, %v8064
    %v8070 = vsel %vm124, %v8068, 0
    %8072 = vmatprep.subr.mxu0 0.0
    %8073 = vmatpush1.msra.mxu0 %v4009
    %8074 = vmatprep.subr.mxu0 0.0
    %8075 = vmatpush1.msra.mxu0 %v4011
    %8076 = vmatprep.subr.mxu0 0.0
    %8077 = vmatpush1.msra.mxu0 %v4013
    %8078 = vmatprep.subr.mxu0 0.0
    %8079 = vmatpush1.msra.mxu0 %v4015
    %8080 = vmatprep.subr.mxu0 0.0
    %8081 = vmatpush1.msra.mxu0 0.0
    %8082 = vmatprep.subr.mxu0 0.0
    %8083 = vmatpush1.msra.mxu0 0.0
    %8084 = vmatprep.subr.mxu0 0.0
    %8085 = vmatpush1.msra.mxu0 0.0
    %8086 = vmatprep.subr.mxu0 0.0
    %8087 = vmatpush1.msra.mxu0 0.0
    %8088 = vmatprep.subr.mxu0 0.0
    %8089 = vmatpush1.msra.mxu0 0.0
    %8090 = vmatprep.subr.mxu0 0.0
    %8091 = vmatpush1.msra.mxu0 0.0
    %8092 = vmatprep.subr.mxu0 0.0
    %8093 = vmatpush1.msra.mxu0 0.0
    %8094 = vmatprep.subr.mxu0 0.0
    %8095 = vmatpush1.msra.mxu0 0.0
    %8096 = vmatprep.subr.mxu0 0.0
    %8097 = vmatpush1.msra.mxu0 0.0
    %8098 = vmatprep.subr.mxu0 0.0
    %8099 = vmatpush1.msra.mxu0 0.0
    %8100 = vmatprep.subr.mxu0 0.0
    %8101 = vmatpush1.msra.mxu0 0.0
    %8102 = vmatprep.subr.mxu0 0.0
    %8103 = vmatpush1.msra.mxu0 0.0
    %8104 = vmatprep.subr.mxu0 0.0
    %8105 = vmatpush1.msra.mxu0 0.0
    %8106 = vmatprep.subr.mxu0 0.0
    %8107 = vmatpush1.msra.mxu0 0.0
    %8108 = vmatprep.subr.mxu0 0.0
    %8109 = vmatpush1.msra.mxu0 0.0
    %8110 = vmatprep.subr.mxu0 0.0
    %8111 = vmatpush1.msra.mxu0 0.0
    %8112 = vmatprep.subr.mxu0 0.0
    %8113 = vmatpush1.msra.mxu0 0.0
    %8114 = vmatprep.subr.mxu0 0.0
    %8115 = vmatpush1.msra.mxu0 0.0
    %8116 = vmatprep.subr.mxu0 0.0
    %8117 = vmatpush1.msra.mxu0 0.0
    %8118 = vmatprep.subr.mxu0 0.0
    %8119 = vmatpush1.msra.mxu0 0.0
    %8120 = vmatprep.subr.mxu0 0.0
    %8121 = vmatpush1.msra.mxu0 0.0
    %8122 = vmatprep.subr.mxu0 0.0
    %8123 = vmatpush1.msra.mxu0 0.0
    %8124 = vmatprep.subr.mxu0 0.0
    %8125 = vmatpush1.msra.mxu0 0.0
    %8126 = vmatprep.subr.mxu0 0.0
    %8127 = vmatpush1.msra.mxu0 0.0
    %8128 = vmatprep.subr.mxu0 0.0
    %8129 = vmatpush1.msra.mxu0 0.0
    %8130 = vmatprep.subr.mxu0 0.0
    %8131 = vmatpush1.msra.mxu0 0.0
    %8132 = vmatprep.subr.mxu0 0.0
    %8133 = vmatpush1.msra.mxu0 0.0
    %8134 = vmatprep.subr.mxu0 0.0
    %8135 = vmatpush1.msra.mxu0 0.0
    %8136 = vmatprep.mubr.f32.mxu0 0.0
    %8137 = vmatmul.mubr.f32.gmra.mrb[0].mxu0 %v8070
    %v8138 = vpop.f32.mrb[0].mxu0
    %v8139 = vadd.f32 %v4020, %v8138
    %v8140 = vpop.f32.mrb[0].mxu0
    %8141 = vdwg.mxu0
    %v8142 = vadd.f32 %v8139, %v7239
    %v8143 = vsel %vm3132, %v8142, 0.0
    %8144 = vadd.xlane.f32.xlu0 %v8143
    %v8145 = vpop.xlane.xlu0 %8144
    %v8146 = vmul.f32 %v8145, %v978
    %v8147 = vsub.f32 %v8142, %v8146
    %v8148 = vmul.f32 %v8147, %v8147
    %v8149 = vsel %vm3132, %v8148, 0.0
    %8150 = vadd.xlane.f32.xlu0 %v8149
    %v8151 = vpop.xlane.xlu0 %8150
    %v8152 = vmul.f32 %v8151, %v978
    %v8153 = vadd.f32 %v8152, 1e-06
    %v8154 = vrsqrt.pop %v8153
    %v8155 = vmul.f32 %v8147, %v8154
    %v8156 = vmul.f32 %v8155, %v4109
    %v8157 = vadd.f32 %v8156, %v4112
    %v8159 = vsel %vm124, %v8157, 0
    %8161 = vmatprep.subr.mxu0 0.0
    %8162 = vmatpush1.msra.mxu0 %v2182
    %8163 = vmatprep.subr.mxu0 0.0
    %8164 = vmatpush1.msra.mxu0 %v2185
    %8165 = vmatprep.subr.mxu0 0.0
    %8166 = vmatpush1.msra.mxu0 %v2188
    %8167 = vmatprep.subr.mxu0 0.0
    %8168 = vmatpush1.msra.mxu0 %v2191
    %8169 = vmatprep.subr.mxu0 0.0
    %8170 = vmatpush1.msra.mxu0 0.0
    %8171 = vmatprep.subr.mxu0 0.0
    %8172 = vmatpush1.msra.mxu0 0.0
    %8173 = vmatprep.subr.mxu0 0.0
    %8174 = vmatpush1.msra.mxu0 0.0
    %8175 = vmatprep.subr.mxu0 0.0
    %8176 = vmatpush1.msra.mxu0 0.0
    %8177 = vmatprep.subr.mxu0 0.0
    %8178 = vmatpush1.msra.mxu0 0.0
    %8179 = vmatprep.subr.mxu0 0.0
    %8180 = vmatpush1.msra.mxu0 0.0
    %8181 = vmatprep.subr.mxu0 0.0
    %8182 = vmatpush1.msra.mxu0 0.0
    %8183 = vmatprep.subr.mxu0 0.0
    %8184 = vmatpush1.msra.mxu0 0.0
    %8185 = vmatprep.subr.mxu0 0.0
    %8186 = vmatpush1.msra.mxu0 0.0
    %8187 = vmatprep.subr.mxu0 0.0
    %8188 = vmatpush1.msra.mxu0 0.0
    %8189 = vmatprep.subr.mxu0 0.0
    %8190 = vmatpush1.msra.mxu0 0.0
    %8191 = vmatprep.subr.mxu0 0.0
    %8192 = vmatpush1.msra.mxu0 0.0
    %8193 = vmatprep.subr.mxu0 0.0
    %8194 = vmatpush1.msra.mxu0 0.0
    %8195 = vmatprep.subr.mxu0 0.0
    %8196 = vmatpush1.msra.mxu0 0.0
    %8197 = vmatprep.subr.mxu0 0.0
    %8198 = vmatpush1.msra.mxu0 0.0
    %8199 = vmatprep.subr.mxu0 0.0
    %8200 = vmatpush1.msra.mxu0 0.0
    %8201 = vmatprep.subr.mxu0 0.0
    %8202 = vmatpush1.msra.mxu0 0.0
    %8203 = vmatprep.subr.mxu0 0.0
    %8204 = vmatpush1.msra.mxu0 0.0
    %8205 = vmatprep.subr.mxu0 0.0
    %8206 = vmatpush1.msra.mxu0 0.0
    %8207 = vmatprep.subr.mxu0 0.0
    %8208 = vmatpush1.msra.mxu0 0.0
    %8209 = vmatprep.subr.mxu0 0.0
    %8210 = vmatpush1.msra.mxu0 0.0
    %8211 = vmatprep.subr.mxu0 0.0
    %8212 = vmatpush1.msra.mxu0 0.0
    %8213 = vmatprep.subr.mxu0 0.0
    %8214 = vmatpush1.msra.mxu0 0.0
    %8215 = vmatprep.subr.mxu0 0.0
    %8216 = vmatpush1.msra.mxu0 0.0
    %8217 = vmatprep.subr.mxu0 0.0
    %8218 = vmatpush1.msra.mxu0 0.0
    %8219 = vmatprep.subr.mxu0 0.0
    %8220 = vmatpush1.msra.mxu0 0.0
    %8221 = vmatprep.subr.mxu0 0.0
    %8222 = vmatpush1.msra.mxu0 0.0
    %8223 = vmatprep.subr.mxu0 0.0
    %8224 = vmatpush1.msra.mxu0 0.0
    %8225 = vmatprep.mubr.f32.mxu0 0.0
    %8226 = vmatmul.mubr.f32.gmra.mrb[0].mxu0 %v8159
    %v8227 = vpop.f32.mrb[0].mxu0
    %v8228 = vadd.f32 %v2203, %v8227
    %v8229 = vpop.f32.mrb[0].mxu0
    %8230 = vdwg.mxu0
    %v8231 = vmax.f32 %v8228, 0.0
    %v8233 = vsel %vm2081, %v8231, 0
    %8235 = vmatprep.subr.mxu0 0.0
    %8236 = vmatpush1.msra.mxu0 %v2193
    %8237 = vmatprep.subr.mxu0 0.0
    %8238 = vmatpush1.msra.mxu0 %v2194
    %8239 = vmatprep.subr.mxu0 0.0
    %8240 = vmatpush1.msra.mxu0 %v2195
    %8241 = vmatprep.subr.mxu0 0.0
    %8242 = vmatpush1.msra.mxu0 %v2196
    %8243 = vmatprep.subr.mxu0 0.0
    %8244 = vmatpush1.msra.mxu0 %v2197
    %8245 = vmatprep.subr.mxu0 0.0
    %8246 = vmatpush1.msra.mxu0 %v2198
    %8247 = vmatprep.subr.mxu0 0.0
    %8248 = vmatpush1.msra.mxu0 %v2199
    %8249 = vmatprep.subr.mxu0 0.0
    %8250 = vmatpush1.msra.mxu0 %v2200
    %8251 = vmatprep.subr.mxu0 0.0
    %8252 = vmatpush1.msra.mxu0 0.0
    %8253 = vmatprep.subr.mxu0 0.0
    %8254 = vmatpush1.msra.mxu0 0.0
    %8255 = vmatprep.subr.mxu0 0.0
    %8256 = vmatpush1.msra.mxu0 0.0
    %8257 = vmatprep.subr.mxu0 0.0
    %8258 = vmatpush1.msra.mxu0 0.0
    %8259 = vmatprep.subr.mxu0 0.0
    %8260 = vmatpush1.msra.mxu0 0.0
    %8261 = vmatprep.subr.mxu0 0.0
    %8262 = vmatpush1.msra.mxu0 0.0
    %8263 = vmatprep.subr.mxu0 0.0
    %8264 = vmatpush1.msra.mxu0 0.0
    %8265 = vmatprep.subr.mxu0 0.0
    %8266 = vmatpush1.msra.mxu0 0.0
    %8267 = vmatprep.subr.mxu0 0.0
    %8268 = vmatpush1.msra.mxu0 0.0
    %8269 = vmatprep.subr.mxu0 0.0
    %8270 = vmatpush1.msra.mxu0 0.0
    %8271 = vmatprep.subr.mxu0 0.0
    %8272 = vmatpush1.msra.mxu0 0.0
    %8273 = vmatprep.subr.mxu0 0.0
    %8274 = vmatpush1.msra.mxu0 0.0
    %8275 = vmatprep.subr.mxu0 0.0
    %8276 = vmatpush1.msra.mxu0 0.0
    %8277 = vmatprep.subr.mxu0 0.0
    %8278 = vmatpush1.msra.mxu0 0.0
    %8279 = vmatprep.subr.mxu0 0.0
    %8280 = vmatpush1.msra.mxu0 0.0
    %8281 = vmatprep.subr.mxu0 0.0
    %8282 = vmatpush1.msra.mxu0 0.0
    %8283 = vmatprep.subr.mxu0 0.0
    %8284 = vmatpush1.msra.mxu0 0.0
    %8285 = vmatprep.subr.mxu0 0.0
    %8286 = vmatpush1.msra.mxu0 0.0
    %8287 = vmatprep.subr.mxu0 0.0
    %8288 = vmatpush1.msra.mxu0 0.0
    %8289 = vmatprep.subr.mxu0 0.0
    %8290 = vmatpush1.msra.mxu0 0.0
    %8291 = vmatprep.subr.mxu0 0.0
    %8292 = vmatpush1.msra.mxu0 0.0
    %8293 = vmatprep.subr.mxu0 0.0
    %8294 = vmatpush1.msra.mxu0 0.0
    %8295 = vmatprep.subr.mxu0 0.0
    %8296 = vmatpush1.msra.mxu0 0.0
    %8297 = vmatprep.subr.mxu0 0.0
    %8298 = vmatpush1.msra.mxu0 0.0
    %8299 = vmatprep.mubr.f32.mxu0 0.0
    %8300 = vmatmul.mubr.f32.gmra.mrb[0].mxu0 %v8233
    %v8301 = vpop.f32.mrb[0].mxu0
    %v8302 = vadd.f32 %v4190, %v8301
    %v8303 = vpop.f32.mrb[0].mxu0
    %8304 = vdwg.mxu0
    %v8305 = vadd.f32 %v8302, %v8157
    %v8306 = vsel %vm3132, %v8305, 0.0
    %8307 = vadd.xlane.f32.xlu0 %v8306
    %v8308 = vpop.xlane.xlu0 %8307
    %v8309 = vmul.f32 %v8308, %v978
    %v8310 = vsub.f32 %v8305, %v8309
    %v8311 = vmul.f32 %v8310, %v8310
    %v8312 = vsel %vm3132, %v8311, 0.0
    %8313 = vadd.xlane.f32.xlu0 %v8312
    %v8314 = vpop.xlane.xlu0 %8313
    %v8315 = vmul.f32 %v8314, %v978
    %v8316 = vadd.f32 %v8315, 1e-06
    %v8317 = vrsqrt.pop %v8316
    %v8318 = vmul.f32 %v8310, %v8317
    %v8319 = vmul.f32 %v8318, %v4279
    %v8320 = vadd.f32 %v8319, %v4282
    %v8321 = vsel %vm3132, %v8320, 0.0
    %8322 = vadd.xlane.f32.xlu0 %v8321
    %v8323 = vpop.xlane.xlu0 %8322
    %v8324 = vmul.f32 %v8323, %v978
    %v8325 = vsub.f32 %v8320, %v8324
    %v8326 = vmul.f32 %v8325, %v8325
    %v8327 = vsel %vm3132, %v8326, 0.0
    %8328 = vadd.xlane.f32.xlu0 %v8327
    %v8329 = vpop.xlane.xlu0 %8328
    %v8330 = vmul.f32 %v8329, %v978
    %v8331 = vadd.f32 %v8330, 1e-06
    %v8332 = vrsqrt.pop %v8331
    %v8333 = vmul.f32 %v8325, %v8332
    %v8334 = vmul.f32 %v8333, %v82
    %v8335 = vadd.f32 %v8334, %v4300
    %v8337 = vsel %vm124, %v8335, 0
    %8339 = vmatprep.subr.mxu0 0.0
    %8340 = vmatpush1.msra.mxu0 %v83
    %8341 = vmatprep.subr.mxu0 0.0
    %8342 = vmatpush1.msra.mxu0 %v84
    %8343 = vmatprep.subr.mxu0 0.0
    %8344 = vmatpush1.msra.mxu0 %v85
    %8345 = vmatprep.subr.mxu0 0.0
    %8346 = vmatpush1.msra.mxu0 %v86
    %8347 = vmatprep.subr.mxu0 0.0
    %8348 = vmatpush1.msra.mxu0 0.0
    %8349 = vmatprep.subr.mxu0 0.0
    %8350 = vmatpush1.msra.mxu0 0.0
    %8351 = vmatprep.subr.mxu0 0.0
    %8352 = vmatpush1.msra.mxu0 0.0
    %8353 = vmatprep.subr.mxu0 0.0
    %8354 = vmatpush1.msra.mxu0 0.0
    %8355 = vmatprep.subr.mxu0 0.0
    %8356 = vmatpush1.msra.mxu0 0.0
    %8357 = vmatprep.subr.mxu0 0.0
    %8358 = vmatpush1.msra.mxu0 0.0
    %8359 = vmatprep.subr.mxu0 0.0
    %8360 = vmatpush1.msra.mxu0 0.0
    %8361 = vmatprep.subr.mxu0 0.0
    %8362 = vmatpush1.msra.mxu0 0.0
    %8363 = vmatprep.subr.mxu0 0.0
    %8364 = vmatpush1.msra.mxu0 0.0
    %8365 = vmatprep.subr.mxu0 0.0
    %8366 = vmatpush1.msra.mxu0 0.0
    %8367 = vmatprep.subr.mxu0 0.0
    %8368 = vmatpush1.msra.mxu0 0.0
    %8369 = vmatprep.subr.mxu0 0.0
    %8370 = vmatpush1.msra.mxu0 0.0
    %8371 = vmatprep.subr.mxu0 0.0
    %8372 = vmatpush1.msra.mxu0 0.0
    %8373 = vmatprep.subr.mxu0 0.0
    %8374 = vmatpush1.msra.mxu0 0.0
    %8375 = vmatprep.subr.mxu0 0.0
    %8376 = vmatpush1.msra.mxu0 0.0
    %8377 = vmatprep.subr.mxu0 0.0
    %8378 = vmatpush1.msra.mxu0 0.0
    %8379 = vmatprep.subr.mxu0 0.0
    %8380 = vmatpush1.msra.mxu0 0.0
    %8381 = vmatprep.subr.mxu0 0.0
    %8382 = vmatpush1.msra.mxu0 0.0
    %8383 = vmatprep.subr.mxu0 0.0
    %8384 = vmatpush1.msra.mxu0 0.0
    %8385 = vmatprep.subr.mxu0 0.0
    %8386 = vmatpush1.msra.mxu0 0.0
    %8387 = vmatprep.subr.mxu0 0.0
    %8388 = vmatpush1.msra.mxu0 0.0
    %8389 = vmatprep.subr.mxu0 0.0
    %8390 = vmatpush1.msra.mxu0 0.0
    %8391 = vmatprep.subr.mxu0 0.0
    %8392 = vmatpush1.msra.mxu0 0.0
    %8393 = vmatprep.subr.mxu0 0.0
    %8394 = vmatpush1.msra.mxu0 0.0
    %8395 = vmatprep.subr.mxu0 0.0
    %8396 = vmatpush1.msra.mxu0 0.0
    %8397 = vmatprep.subr.mxu0 0.0
    %8398 = vmatpush1.msra.mxu0 0.0
    %8399 = vmatprep.subr.mxu0 0.0
    %8400 = vmatpush1.msra.mxu0 0.0
    %8401 = vmatprep.subr.mxu0 0.0
    %8402 = vmatpush1.msra.mxu0 0.0
    %8403 = vmatprep.mubr.f32.mxu0 0.0
    %8404 = vmatmul.mubr.f32.gmra.mrb[0].mxu0 %v8337
    %v8405 = vpop.f32.mrb[0].mxu0
    %v8406 = vadd.f32 %v4303, %v8405
    %v8407 = vpop.f32.mrb[0].mxu0
    %8408 = vdwg.mxu0
    %v8410 = vrot.slane %v8406, 7
    %v8412 = vsel %vm2211, %v4375, %v8410
    %8413 = vst [vmem:[#allocation8] sm:$0x3] %v8412
    // Predicated region
    $region50: #{tpu_custom_call.1} parent=1 // pred_check
      _
    $region51: #{tpu_custom_call.1} parent=1 // pred_check_branch
      %8415 = sbr.rel (0) target = $region53
    $region52: #{tpu_custom_call.1} parent=1 // pred_region
      %s8417 = ssub.s32 32, 32
      %8418 = vsyncadd [#allocation4], %s8417
      %s8420 = sshll.u32 [#allocation8], 4
      %s8421 = int_to_ptr.vmem [resolvable:$true] %s8420
      %8423 = dma.vmem_to_hbm [thread:$0]  %s8421, 32, %s9, [#allocation4]
    $region53: #{tpu_custom_call.1} parent=1 // pred_fallthru
      _
    // Predicated region
    $region54: #{tpu_custom_call.1} parent=1 // pred_check
      _
    $region55: #{tpu_custom_call.1} parent=1 // pred_check_branch
      %8425 = sbr.rel (0) target = $region57
    $region56: #{tpu_custom_call.1} parent=1 // pred_region
      %8426 = dma.done [#allocation4], 32
    $region57: #{tpu_custom_call.1} parent=1 // pred_fallthru
      _
    %8427 = vsyncpa [#allocation3], 1
    %8428 = vsyncpa [#allocation6], 1
    %8429 = vsyncpa [#allocation4], 1

</llo_original>
